<compile_context>
chip_gen: v6e
topology: v6e:2x2x1
jax: 0.10.0
libtpu: 0.0.40
codegen_flags: <defaults>
</compile_context>

<pallas_src>
import jax
import jax.numpy as jnp
from jax.experimental import pallas as pl
from jax.experimental.pallas import tpu as pltpu

# ---------------- model hyper-params (from the PyTorch module) ----------------
INPUT_SIZE = 7          # global `input_size` in the reference file
HIDDEN_1 = 32           # hidden_units_1
HIDDEN_2 = 8            # hidden_units_2
LENGTH = 36             # self.length
STEPS = 5               # self.steps
SEC_SIZE = 1            # type == 'water_level'


def _gru_recurrence(gi_rz_ref, gi_n_ref, w_rz, w_n, b_hn, hidden, seq_len, batch):
    """Serial h->h GRU recurrence; input projections already hoisted.

    gi_rz_ref: (seq_len*batch, 2H) time-major slabs of x_t@W_ih[r,z]^T + (b_ih+b_hh)[r,z]
    gi_n_ref : (seq_len*batch, H)  time-major slabs of x_t@W_ih[n]^T   + b_ih[n]
    Gate order (r, z, n) and update equations match torch.nn.GRU:
      r = sigmoid(gi_r + gh_r); z = sigmoid(gi_z + gh_z)
      n = tanh(gi_n + r * (gh_n + b_hn)); h = n + z*(h - n)   [== (1-z)*n + z*h]
    Fully unrolled (static trip count, static aligned slices).
    """
    # Hoist the (1,H)->(batch,H) broadcast out of the unrolled loop.
    b_hn_b = jnp.broadcast_to(b_hn, (batch, hidden))
    h = jnp.zeros((batch, hidden), jnp.float32)
    for t in range(seq_len):                                   # full unroll
        row = t * batch
        gi_rz = gi_rz_ref[pl.ds(row, batch), :]                # (B, 2H) aligned slab
        gi_n = gi_n_ref[pl.ds(row, batch), :]                  # (B, H)  aligned slab
        gh_rz = jnp.dot(h, w_rz, preferred_element_type=jnp.float32)  # (B, 2H)
        gh_n = jnp.dot(h, w_n, preferred_element_type=jnp.float32)    # (B, H)
        # sigmoid via a single EUP tanh: sigmoid(x) = 0.5*(tanh(x/2)+1)
        rz = 0.5 * (jnp.tanh(0.5 * (gi_rz + gh_rz)) + 1.0)
        r = rz[:, :hidden]                                     # lanes 0..H-1 (no rotate)
        z = rz[:, hidden:]                                     # one lane realign per step
        n = jnp.tanh(gi_n + r * (gh_n + b_hn_b))
        h = n + z * (h - n)
    return h


def gru_model_kernel(x1_ref, xt_ref,
                     wih1_rz_ref, wih1_n_ref, whh1_rz_ref, whh1_n_ref,
                     bf1_rz_ref, bf1_n_ref, bhn1_ref,
                     wih2_rz_ref, wih2_n_ref, whh2_rz_ref, whh2_n_ref,
                     bf2_rz_ref, bf2_n_ref, bhn2_ref,
                     wfc1a_ref, wfc1b_ref, bfc1_ref, wfc2_ref, bfc2_ref,
                     out_ref,
                     gi1_rz_ref, gi1_n_ref, gi2_rz_ref, gi2_n_ref):
    BB = out_ref.shape[0]                       # rows in this batch block (mult of 8)

    # ---- hoisted input projections (off the serial critical chain), split by
    # gate group so r/n/h stay at lanes 0..H-1 inside the recurrence ----------
    x1_2d = x1_ref[...].reshape(LENGTH * BB, INPUT_SIZE)        # BB % 8 == 0: relayout no-op
    gi1_rz_ref[...] = (jnp.dot(x1_2d, wih1_rz_ref[...],
                               preferred_element_type=jnp.float32)
                       + bf1_rz_ref[...])                       # (36*BB, 64)
    gi1_n_ref[...] = (jnp.dot(x1_2d, wih1_n_ref[...],
                              preferred_element_type=jnp.float32)
                      + bf1_n_ref[...])                         # (36*BB, 32)

    # water_level branch: x2 = max over last axis of the (5,BB,5) tail.
    x2 = jnp.max(xt_ref[...], axis=2, keepdims=True).reshape(STEPS * BB, 1)
    # GRU2 input projection has K=1 -> rank-1 broadcast on the VPU (no MXU traffic).
    gi2_rz_ref[...] = x2 * wih2_rz_ref[...] + bf2_rz_ref[...]   # (5*BB, 16)
    gi2_n_ref[...] = x2 * wih2_n_ref[...] + bf2_n_ref[...]      # (5*BB, 8)

    # ---- serial recurrences (fully unrolled; only the h-dependent dots per step) --
    hn1 = _gru_recurrence(gi1_rz_ref, gi1_n_ref, whh1_rz_ref[...], whh1_n_ref[...],
                          bhn1_ref[...], HIDDEN_1, LENGTH, BB)  # (BB, 32)
    hn2 = _gru_recurrence(gi2_rz_ref, gi2_n_ref, whh2_rz_ref[...], whh2_n_ref[...],
                          bhn2_ref[...], HIDDEN_2, STEPS, BB)   # (BB, 8)

    # ---- head: fc1 split to avoid a lane-axis concat, ReLU, fc2 ----
    fc1 = (jnp.dot(hn1, wfc1a_ref[...], preferred_element_type=jnp.float32)
           + jnp.dot(hn2, wfc1b_ref[...], preferred_element_type=jnp.float32)
           + bfc1_ref[...])
    fc1 = jnp.maximum(fc1, 0.0)
    out_ref[...] = (jnp.dot(fc1, wfc2_ref[...], preferred_element_type=jnp.float32)
                    + bfc2_ref[...])                            # (BB, 1)


def init_params(key):
    """Deterministic parameter init matching the PyTorch module's shapes."""
    ks = jax.random.split(key, 12)

    def u(k, shape, fan):
        bound = 1.0 / jnp.sqrt(jnp.float32(fan))
        return jax.random.uniform(k, shape, jnp.float32, -bound, bound)

    p = {}
    # nn.GRU(input_size=7, hidden_size=32)
    p["w_ih1"] = u(ks[0], (3 * HIDDEN_1, INPUT_SIZE), HIDDEN_1)
    p["w_hh1"] = u(ks[1], (3 * HIDDEN_1, HIDDEN_1), HIDDEN_1)
    p["b_ih1"] = u(ks[2], (3 * HIDDEN_1,), HIDDEN_1)
    p["b_hh1"] = u(ks[3], (3 * HIDDEN_1,), HIDDEN_1)
    # nn.GRU(input_size=1, hidden_size=8)
    p["w_ih2"] = u(ks[4], (3 * HIDDEN_2, SEC_SIZE), HIDDEN_2)
    p["w_hh2"] = u(ks[5], (3 * HIDDEN_2, HIDDEN_2), HIDDEN_2)
    p["b_ih2"] = u(ks[6], (3 * HIDDEN_2,), HIDDEN_2)
    p["b_hh2"] = u(ks[7], (3 * HIDDEN_2,), HIDDEN_2)
    # nn.Linear(40, 4) / nn.Linear(4, 1)
    p["w_fc1"] = u(ks[8], (4, HIDDEN_1 + HIDDEN_2), HIDDEN_1 + HIDDEN_2)
    p["b_fc1"] = u(ks[9], (4,), HIDDEN_1 + HIDDEN_2)
    p["w_fc2"] = u(ks[10], (1, 4), 4)
    p["b_fc2"] = u(ks[11], (1,), 4)
    return p


def _num_tensorcores():
    """Best-effort detection of dual-TensorCore chips (v7x); 1 otherwise."""
    try:
        kind = jax.devices()[0].device_kind.lower()
        if "v7" in kind or "7x" in kind:
            return 2
    except Exception:
        pass
    return 1


def gru_model_forward(x, p, *, block_cap=128):
    """x: (B, 36*7 + 25) float32  ->  (B, 1) float32"""
    B = x.shape[0]
    num_tc = _num_tensorcores()

    # batch block: pad to a sublane multiple (8 for f32); cap block rows at
    # block_cap.  On dual-TC chips (v7x) target >= num_tc "parallel" grid blocks
    # so both TensorCores get work; single-TC chips keep grid=1 when possible so
    # the serial 36-step chain is traversed only once.
    B8 = ((B + 7) // 8) * 8
    if num_tc > 1 and B8 >= 8 * num_tc * 2:
        per_core = -(-B8 // num_tc)                 # ceil
        BB = min(block_cap, ((per_core + 7) // 8) * 8)
    else:
        BB = min(block_cap, B8)
    B_pad = ((B + BB - 1) // BB) * BB
    if B_pad != B:
        x = jnp.pad(x, ((0, B_pad - B), (0, 0)))    # padded rows independent, dropped below

    # time-major layouts so per-step access is a leading sublane-slab slice
    x1 = x[:, :LENGTH * INPUT_SIZE].reshape(B_pad, LENGTH, INPUT_SIZE)
    x1 = jnp.transpose(x1, (1, 0, 2))               # (36, B_pad, 7)
    xt = x[:, LENGTH * INPUT_SIZE:].reshape(B_pad, STEPS, 5)
    xt = jnp.transpose(xt, (1, 0, 2))               # (5, B_pad, 5)

    H1, H2 = HIDDEN_1, HIDDEN_2

    # --- GRU1 weights, split by gate group (r,z | n), transposed for x@W ---
    wih1 = p["w_ih1"].T                             # (7, 96)
    whh1 = p["w_hh1"].T                             # (32, 96)
    wih1_rz, wih1_n = wih1[:, :2 * H1], wih1[:, 2 * H1:]
    whh1_rz, whh1_n = whh1[:, :2 * H1], whh1[:, 2 * H1:]
    # fold b_ih + b_hh into the r/z columns of the hoisted projection; the n-gate
    # input bias is also hoisted; only b_hn stays inside the recurrence (r * (gh+b_hn)).
    bf1_rz = (p["b_ih1"][:2 * H1] + p["b_hh1"][:2 * H1]).reshape(1, 2 * H1)
    bf1_n = p["b_ih1"][2 * H1:].reshape(1, H1)
    bhn1 = p["b_hh1"][2 * H1:].reshape(1, H1)

    # --- GRU2 weights ---
    wih2 = p["w_ih2"].T                             # (1, 24)
    whh2 = p["w_hh2"].T                             # (8, 24)
    wih2_rz, wih2_n = wih2[:, :2 * H2], wih2[:, 2 * H2:]
    whh2_rz, whh2_n = whh2[:, :2 * H2], whh2[:, 2 * H2:]
    bf2_rz = (p["b_ih2"][:2 * H2] + p["b_hh2"][:2 * H2]).reshape(1, 2 * H2)
    bf2_n = p["b_ih2"][2 * H2:].reshape(1, H2)
    bhn2 = p["b_hh2"][2 * H2:].reshape(1, H2)

    wfc1_t = p["w_fc1"].T                           # (40, 4), split to avoid in-kernel concat

    args = (
        x1, xt,
        wih1_rz, wih1_n, whh1_rz, whh1_n, bf1_rz, bf1_n, bhn1,
        wih2_rz, wih2_n, whh2_rz, whh2_n, bf2_rz, bf2_n, bhn2,
        wfc1_t[:H1], wfc1_t[H1:], p["b_fc1"].reshape(1, -1),
        p["w_fc2"].T, p["b_fc2"].reshape(1, -1),
    )

    def full_spec(a):
        nd = a.ndim
        return pl.BlockSpec(a.shape, lambda b, _nd=nd: (0,) * _nd)

    in_specs = [
        pl.BlockSpec((LENGTH, BB, INPUT_SIZE), lambda b: (0, b, 0)),
        pl.BlockSpec((STEPS, BB, 5), lambda b: (0, b, 0)),
    ] + [full_spec(a) for a in args[2:]]

    # advisory cost hint for XLA's scheduler around the custom call
    flops = int(
        2 * LENGTH * B_pad * INPUT_SIZE * 3 * H1       # hoisted x1 @ W_ih1
        + 2 * LENGTH * B_pad * H1 * 3 * H1             # per-step h @ W_hh1
        + 2 * STEPS * B_pad * (3 * H2 + H2 * 3 * H2)   # GRU2 proj + per-step h @ W_hh2
        + 2 * B_pad * (H1 + H2) * 4 + 2 * B_pad * 4    # fc1 + fc2
    )
    transcendentals = int(B_pad * (LENGTH * 3 * H1 + STEPS * 3 * H2))
    bytes_accessed = int(4 * (x1.size + xt.size + B_pad
                              + sum(int(a.size) for a in args[2:])))
    cost = pl.CostEstimate(flops=flops, transcendentals=transcendentals,
                           bytes_accessed=bytes_accessed)

    out = pl.pallas_call(
        gru_model_kernel,
        out_shape=jax.ShapeDtypeStruct((B_pad, 1), jnp.float32),
        grid_spec=pltpu.PrefetchScalarGridSpec(
            num_scalar_prefetch=0,
            grid=(B_pad // BB,),
            in_specs=in_specs,
            out_specs=pl.BlockSpec((BB, 1), lambda b: (b, 0)),
            scratch_shapes=[
                pltpu.VMEM((LENGTH * BB, 2 * HIDDEN_1), jnp.float32),  # gi1 r,z
                pltpu.VMEM((LENGTH * BB, HIDDEN_1), jnp.float32),      # gi1 n
                pltpu.VMEM((STEPS * BB, 2 * HIDDEN_2), jnp.float32),   # gi2 r,z
                pltpu.VMEM((STEPS * BB, HIDDEN_2), jnp.float32),       # gi2 n
            ],
        ),
        compiler_params=pltpu.CompilerParams(dimension_semantics=("parallel",)),
        cost_estimate=cost,
    )(*args)
    return out[:B]


# --------------------------- pure-JAX reference -------------------------------
def _gru_ref(x, w_ih, w_hh, b_ih, b_hh, hidden):
    """torch.nn.GRU semantics over (B, T, I); returns final hidden (B, H)."""
    B = x.shape[0]

    def step(h, xt):
        gi = xt @ w_ih.T + b_ih
        gh = h @ w_hh.T + b_hh
        r = jax.nn.sigmoid(gi[:, :hidden] + gh[:, :hidden])
        z = jax.nn.sigmoid(gi[:, hidden:2 * hidden] + gh[:, hidden:2 * hidden])
        n = jnp.tanh(gi[:, 2 * hidden:] + r * gh[:, 2 * hidden:])
        return (1.0 - z) * n + z * h, None

    h0 = jnp.zeros((B, hidden), jnp.float32)
    hT, _ = jax.lax.scan(step, h0, jnp.transpose(x, (1, 0, 2)))
    return hT


def gru_model_reference(x, p):
    B = x.shape[0]
    x1 = x[:, :LENGTH * INPUT_SIZE].reshape(B, LENGTH, INPUT_SIZE)
    x2 = jnp.max(x[:, LENGTH * INPUT_SIZE:].reshape(B, STEPS, 5), axis=2, keepdims=True)
    hn1 = _gru_ref(x1, p["w_ih1"], p["w_hh1"], p["b_ih1"], p["b_hh1"], HIDDEN_1)
    hn2 = _gru_ref(x2, p["w_ih2"], p["w_hh2"], p["b_ih2"], p["b_hh2"], HIDDEN_2)
    hn = jnp.concatenate([hn1, hn2], axis=1)
    fc1 = jnp.maximum(hn @ p["w_fc1"].T + p["b_fc1"], 0.0)
    return fc1 @ p["w_fc2"].T + p["b_fc2"]


if __name__ == "__main__":
    key = jax.random.PRNGKey(0)
    k_param, k_x1, k_x2 = jax.random.split(key, 3)
    params = init_params(k_param)

    FEAT = LENGTH * INPUT_SIZE + STEPS * 5          # 277

    # small batch (exercises the single-block path)
    B = 4
    x = jax.random.normal(k_x1, (B, FEAT), jnp.float32)
    out = jax.block_until_ready(gru_model_forward(x, params))
    ref = jax.block_until_ready(gru_model_reference(x, params))
    assert out.shape == (B, 1)
    assert jnp.allclose(out, ref, atol=1e-4, rtol=1e-4), (out, ref)

    # batch needing padding (and a 2-block grid on dual-TC chips)
    B2 = 20
    x2 = jax.random.normal(k_x2, (B2, FEAT), jnp.float32)
    out2 = jax.block_until_ready(gru_model_forward(x2, params))
    ref2 = jax.block_until_ready(gru_model_reference(x2, params))
    assert out2.shape == (B2, 1)
    assert jnp.allclose(out2, ref2, atol=1e-4, rtol=1e-4), (out2, ref2)

    print("KERNEL_OK")
</pallas_src>

<mosaic_0001>
module attributes {stable_mosaic.version = 11 : i64} {
  func.func @gru_model_kernel(%arg0: i32, %arg1: memref<36x8x7xf32, #tpu.memory_space<vmem>>, %arg2: memref<5x8x5xf32, #tpu.memory_space<vmem>>, %arg3: memref<7x64xf32, #tpu.memory_space<vmem>>, %arg4: memref<7x32xf32, #tpu.memory_space<vmem>>, %arg5: memref<32x64xf32, #tpu.memory_space<vmem>>, %arg6: memref<32x32xf32, #tpu.memory_space<vmem>>, %arg7: memref<1x64xf32, #tpu.memory_space<vmem>>, %arg8: memref<1x32xf32, #tpu.memory_space<vmem>>, %arg9: memref<1x32xf32, #tpu.memory_space<vmem>>, %arg10: memref<1x16xf32, #tpu.memory_space<vmem>>, %arg11: memref<1x8xf32, #tpu.memory_space<vmem>>, %arg12: memref<8x16xf32, #tpu.memory_space<vmem>>, %arg13: memref<8x8xf32, #tpu.memory_space<vmem>>, %arg14: memref<1x16xf32, #tpu.memory_space<vmem>>, %arg15: memref<1x8xf32, #tpu.memory_space<vmem>>, %arg16: memref<1x8xf32, #tpu.memory_space<vmem>>, %arg17: memref<32x4xf32, #tpu.memory_space<vmem>>, %arg18: memref<8x4xf32, #tpu.memory_space<vmem>>, %arg19: memref<1x4xf32, #tpu.memory_space<vmem>>, %arg20: memref<4x1xf32, #tpu.memory_space<vmem>>, %arg21: memref<1x1xf32, #tpu.memory_space<vmem>>, %arg22: memref<8x1xf32, #tpu.memory_space<vmem>>, %arg23: memref<288x64xf32, #tpu.memory_space<vmem>>, %arg24: memref<288x32xf32, #tpu.memory_space<vmem>>, %arg25: memref<40x16xf32, #tpu.memory_space<vmem>>, %arg26: memref<40x8xf32, #tpu.memory_space<vmem>>) attributes {dimension_semantics = [#tpu.dimension_semantics<parallel>], iteration_bounds = array<i64: 1>, scalar_prefetch = 0 : i64, scratch_operands = 4 : i64, tpu.core_type = #tpu.core_type<tc>, window_params = [{transform_indices = @transform_0, window_bounds = array<i64: 36, 8, 7>}, {transform_indices = @transform_1, window_bounds = array<i64: 5, 8, 5>}, {pipeline_mode = #tpu.pipeline_mode<synchronous>, transform_indices = @transform_2, window_bounds = array<i64: 7, 64>}, {pipeline_mode = #tpu.pipeline_mode<synchronous>, transform_indices = @transform_3, window_bounds = array<i64: 7, 32>}, {pipeline_mode = #tpu.pipeline_mode<synchronous>, transform_indices = @transform_4, window_bounds = array<i64: 32, 64>}, {pipeline_mode = #tpu.pipeline_mode<synchronous>, transform_indices = @transform_5, window_bounds = array<i64: 32, 32>}, {pipeline_mode = #tpu.pipeline_mode<synchronous>, transform_indices = @transform_6, window_bounds = array<i64: 1, 64>}, {pipeline_mode = #tpu.pipeline_mode<synchronous>, transform_indices = @transform_7, window_bounds = array<i64: 1, 32>}, {pipeline_mode = #tpu.pipeline_mode<synchronous>, transform_indices = @transform_8, window_bounds = array<i64: 1, 32>}, {pipeline_mode = #tpu.pipeline_mode<synchronous>, transform_indices = @transform_9, window_bounds = array<i64: 1, 16>}, {pipeline_mode = #tpu.pipeline_mode<synchronous>, transform_indices = @transform_10, window_bounds = array<i64: 1, 8>}, {pipeline_mode = #tpu.pipeline_mode<synchronous>, transform_indices = @transform_11, window_bounds = array<i64: 8, 16>}, {pipeline_mode = #tpu.pipeline_mode<synchronous>, transform_indices = @transform_12, window_bounds = array<i64: 8, 8>}, {pipeline_mode = #tpu.pipeline_mode<synchronous>, transform_indices = @transform_13, window_bounds = array<i64: 1, 16>}, {pipeline_mode = #tpu.pipeline_mode<synchronous>, transform_indices = @transform_14, window_bounds = array<i64: 1, 8>}, {pipeline_mode = #tpu.pipeline_mode<synchronous>, transform_indices = @transform_15, window_bounds = array<i64: 1, 8>}, {pipeline_mode = #tpu.pipeline_mode<synchronous>, transform_indices = @transform_16, window_bounds = array<i64: 32, 4>}, {pipeline_mode = #tpu.pipeline_mode<synchronous>, transform_indices = @transform_17, window_bounds = array<i64: 8, 4>}, {pipeline_mode = #tpu.pipeline_mode<synchronous>, transform_indices = @transform_18, window_bounds = array<i64: 1, 4>}, {pipeline_mode = #tpu.pipeline_mode<synchronous>, transform_indices = @transform_19, window_bounds = array<i64: 4, 1>}, {pipeline_mode = #tpu.pipeline_mode<synchronous>, transform_indices = @transform_20, window_bounds = array<i64: 1, 1>}, {transform_indices = @transform_21, window_bounds = array<i64: 8, 1>}]} {
    %c0 = arith.constant 0 : index
    %c0_0 = arith.constant 0 : index
    %c0_1 = arith.constant 0 : index
    %0 = vector.load %arg1[%c0, %c0_0, %c0_1] : memref<36x8x7xf32, #tpu.memory_space<vmem>>, vector<36x8x7xf32>
    %1 = vector.shape_cast %0 : vector<36x8x7xf32> to vector<288x7xf32>
    %c0_2 = arith.constant 0 : index
    %c0_3 = arith.constant 0 : index
    %2 = vector.load %arg3[%c0_2, %c0_3] : memref<7x64xf32, #tpu.memory_space<vmem>>, vector<7x64xf32>
    %cst = arith.constant dense<0.000000e+00> : vector<288x64xf32>
    %3 = tpu.matmul %1, %2, %cst {dimension_numbers = #tpu.dot_dimension_numbers<[1], [0], [0], [1], [0, 0, 1, 1], [], []>} : vector<288x7xf32>, vector<7x64xf32>, vector<288x64xf32> -> vector<288x64xf32>
    %c0_4 = arith.constant 0 : index
    %c0_5 = arith.constant 0 : index
    %4 = vector.load %arg7[%c0_4, %c0_5] : memref<1x64xf32, #tpu.memory_space<vmem>>, vector<1x64xf32>
    %5 = vector.broadcast %4 : vector<1x64xf32> to vector<288x64xf32>
    %6 = arith.addf %3, %5 : vector<288x64xf32>
    %c0_6 = arith.constant 0 : index
    %c0_7 = arith.constant 0 : index
    %7 = vector.load %arg23[%c0_6, %c0_7] : memref<288x64xf32, #tpu.memory_space<vmem>>, vector<288x64xf32>
    tpu.vector_store %arg23[%c0_6, %c0_7], %6 {strides = array<i32>} : memref<288x64xf32, #tpu.memory_space<vmem>>, vector<288x64xf32>,
    %c0_8 = arith.constant 0 : index
    %c0_9 = arith.constant 0 : index
    %8 = vector.load %arg4[%c0_8, %c0_9] : memref<7x32xf32, #tpu.memory_space<vmem>>, vector<7x32xf32>
    %cst_10 = arith.constant dense<0.000000e+00> : vector<288x32xf32>
    %9 = tpu.matmul %1, %8, %cst_10 {dimension_numbers = #tpu.dot_dimension_numbers<[1], [0], [0], [1], [0, 0, 1, 1], [], []>} : vector<288x7xf32>, vector<7x32xf32>, vector<288x32xf32> -> vector<288x32xf32>
    %c0_11 = arith.constant 0 : index
    %c0_12 = arith.constant 0 : index
    %10 = vector.load %arg8[%c0_11, %c0_12] : memref<1x32xf32, #tpu.memory_space<vmem>>, vector<1x32xf32>
    %11 = vector.broadcast %10 : vector<1x32xf32> to vector<288x32xf32>
    %12 = arith.addf %9, %11 : vector<288x32xf32>
    %c0_13 = arith.constant 0 : index
    %c0_14 = arith.constant 0 : index
    %13 = vector.load %arg24[%c0_13, %c0_14] : memref<288x32xf32, #tpu.memory_space<vmem>>, vector<288x32xf32>
    tpu.vector_store %arg24[%c0_13, %c0_14], %12 {strides = array<i32>} : memref<288x32xf32, #tpu.memory_space<vmem>>, vector<288x32xf32>,
    %c0_15 = arith.constant 0 : index
    %c0_16 = arith.constant 0 : index
    %c0_17 = arith.constant 0 : index
    %14 = vector.load %arg2[%c0_15, %c0_16, %c0_17] : memref<5x8x5xf32, #tpu.memory_space<vmem>>, vector<5x8x5xf32>
    %cst_18 = arith.constant dense<0xFF800000> : vector<5x8xf32>
    %15 = vector.multi_reduction <maximumf>, %14, %cst_18 [2] : vector<5x8x5xf32> to vector<5x8xf32>
    %16 = vector.shape_cast %15 : vector<5x8xf32> to vector<5x8x1xf32>
    %17 = vector.shape_cast %16 : vector<5x8x1xf32> to vector<40x1xf32>
    %c0_19 = arith.constant 0 : index
    %c0_20 = arith.constant 0 : index
    %18 = vector.load %arg10[%c0_19, %c0_20] : memref<1x16xf32, #tpu.memory_space<vmem>>, vector<1x16xf32>
    %19 = vector.broadcast %17 : vector<40x1xf32> to vector<40x16xf32>
    %20 = vector.broadcast %18 : vector<1x16xf32> to vector<40x16xf32>
    %21 = arith.mulf %19, %20 : vector<40x16xf32>
    %c0_21 = arith.constant 0 : index
    %c0_22 = arith.constant 0 : index
    %22 = vector.load %arg14[%c0_21, %c0_22] : memref<1x16xf32, #tpu.memory_space<vmem>>, vector<1x16xf32>
    %23 = vector.broadcast %22 : vector<1x16xf32> to vector<40x16xf32>
    %24 = arith.addf %21, %23 : vector<40x16xf32>
    %c0_23 = arith.constant 0 : index
    %c0_24 = arith.constant 0 : index
    %25 = vector.load %arg25[%c0_23, %c0_24] : memref<40x16xf32, #tpu.memory_space<vmem>>, vector<40x16xf32>
    tpu.vector_store %arg25[%c0_23, %c0_24], %24 {strides = array<i32>} : memref<40x16xf32, #tpu.memory_space<vmem>>, vector<40x16xf32>,
    %c0_25 = arith.constant 0 : index
    %c0_26 = arith.constant 0 : index
    %26 = vector.load %arg11[%c0_25, %c0_26] : memref<1x8xf32, #tpu.memory_space<vmem>>, vector<1x8xf32>
    %27 = vector.broadcast %17 : vector<40x1xf32> to vector<40x8xf32>
    %28 = vector.broadcast %26 : vector<1x8xf32> to vector<40x8xf32>
    %29 = arith.mulf %27, %28 : vector<40x8xf32>
    %c0_27 = arith.constant 0 : index
    %c0_28 = arith.constant 0 : index
    %30 = vector.load %arg15[%c0_27, %c0_28] : memref<1x8xf32, #tpu.memory_space<vmem>>, vector<1x8xf32>
    %31 = vector.broadcast %30 : vector<1x8xf32> to vector<40x8xf32>
    %32 = arith.addf %29, %31 : vector<40x8xf32>
    %c0_29 = arith.constant 0 : index
    %c0_30 = arith.constant 0 : index
    %33 = vector.load %arg26[%c0_29, %c0_30] : memref<40x8xf32, #tpu.memory_space<vmem>>, vector<40x8xf32>
    tpu.vector_store %arg26[%c0_29, %c0_30], %32 {strides = array<i32>} : memref<40x8xf32, #tpu.memory_space<vmem>>, vector<40x8xf32>,
    %c0_31 = arith.constant 0 : index
    %c0_32 = arith.constant 0 : index
    %34 = vector.load %arg5[%c0_31, %c0_32] : memref<32x64xf32, #tpu.memory_space<vmem>>, vector<32x64xf32>
    %c0_33 = arith.constant 0 : index
    %c0_34 = arith.constant 0 : index
    %35 = vector.load %arg6[%c0_33, %c0_34] : memref<32x32xf32, #tpu.memory_space<vmem>>, vector<32x32xf32>
    %c0_35 = arith.constant 0 : index
    %c0_36 = arith.constant 0 : index
    %36 = vector.load %arg9[%c0_35, %c0_36] : memref<1x32xf32, #tpu.memory_space<vmem>>, vector<1x32xf32>
    %37 = vector.shape_cast %36 : vector<1x32xf32> to vector<1x32xf32>
    %38 = vector.broadcast %37 : vector<1x32xf32> to vector<8x32xf32>
    %cst_37 = arith.constant 0.000000e+00 : f32
    %39 = vector.broadcast %cst_37 : f32 to vector<8x32xf32>
    %c0_38 = arith.constant 0 : index
    %c0_39 = arith.constant 0 : index
    %40 = vector.load %arg23[%c0_38, %c0_39] : memref<288x64xf32, #tpu.memory_space<vmem>>, vector<8x64xf32>
    %c0_40 = arith.constant 0 : index
    %c0_41 = arith.constant 0 : index
    %41 = vector.load %arg24[%c0_40, %c0_41] : memref<288x32xf32, #tpu.memory_space<vmem>>, vector<8x32xf32>
    %cst_42 = arith.constant dense<0.000000e+00> : vector<8x64xf32>
    %42 = tpu.matmul %39, %34, %cst_42 {dimension_numbers = #tpu.dot_dimension_numbers<[1], [0], [0], [1], [0, 0, 1, 1], [], []>} : vector<8x32xf32>, vector<32x64xf32>, vector<8x64xf32> -> vector<8x64xf32>
    %cst_43 = arith.constant dense<0.000000e+00> : vector<8x32xf32>
    %43 = tpu.matmul %39, %35, %cst_43 {dimension_numbers = #tpu.dot_dimension_numbers<[1], [0], [0], [1], [0, 0, 1, 1], [], []>} : vector<8x32xf32>, vector<32x32xf32>, vector<8x32xf32> -> vector<8x32xf32>
    %44 = arith.addf %40, %42 : vector<8x64xf32>
    %cst_44 = arith.constant 5.000000e-01 : f32
    %45 = vector.broadcast %cst_44 : f32 to vector<8x64xf32>
    %46 = arith.mulf %45, %44 : vector<8x64xf32>
    %47 = math.tanh %46 : vector<8x64xf32>
    %cst_45 = arith.constant 1.000000e+00 : f32
    %48 = vector.broadcast %cst_45 : f32 to vector<8x64xf32>
    %49 = arith.addf %47, %48 : vector<8x64xf32>
    %cst_46 = arith.constant 5.000000e-01 : f32
    %50 = vector.broadcast %cst_46 : f32 to vector<8x64xf32>
    %51 = arith.mulf %50, %49 : vector<8x64xf32>
    %52 = vector.extract_strided_slice %51 {offsets = [0, 0], sizes = [8, 32], strides = [1, 1]} : vector<8x64xf32> to vector<8x32xf32>
    %53 = vector.extract_strided_slice %51 {offsets = [0, 32], sizes = [8, 32], strides = [1, 1]} : vector<8x64xf32> to vector<8x32xf32>
    %54 = arith.addf %43, %38 : vector<8x32xf32>
    %55 = arith.mulf %52, %54 : vector<8x32xf32>
    %56 = arith.addf %41, %55 : vector<8x32xf32>
    %57 = math.tanh %56 : vector<8x32xf32>
    %58 = arith.subf %39, %57 : vector<8x32xf32>
    %59 = arith.mulf %53, %58 : vector<8x32xf32>
    %60 = arith.addf %57, %59 : vector<8x32xf32>
    %c8 = arith.constant 8 : index
    %c0_47 = arith.constant 0 : index
    %61 = vector.load %arg23[%c8, %c0_47] : memref<288x64xf32, #tpu.memory_space<vmem>>, vector<8x64xf32>
    %c8_48 = arith.constant 8 : index
    %c0_49 = arith.constant 0 : index
    %62 = vector.load %arg24[%c8_48, %c0_49] : memref<288x32xf32, #tpu.memory_space<vmem>>, vector<8x32xf32>
    %cst_50 = arith.constant dense<0.000000e+00> : vector<8x64xf32>
    %63 = tpu.matmul %60, %34, %cst_50 {dimension_numbers = #tpu.dot_dimension_numbers<[1], [0], [0], [1], [0, 0, 1, 1], [], []>} : vector<8x32xf32>, vector<32x64xf32>, vector<8x64xf32> -> vector<8x64xf32>
    %cst_51 = arith.constant dense<0.000000e+00> : vector<8x32xf32>
    %64 = tpu.matmul %60, %35, %cst_51 {dimension_numbers = #tpu.dot_dimension_numbers<[1], [0], [0], [1], [0, 0, 1, 1], [], []>} : vector<8x32xf32>, vector<32x32xf32>, vector<8x32xf32> -> vector<8x32xf32>
    %65 = arith.addf %61, %63 : vector<8x64xf32>
    %cst_52 = arith.constant 5.000000e-01 : f32
    %66 = vector.broadcast %cst_52 : f32 to vector<8x64xf32>
    %67 = arith.mulf %66, %65 : vector<8x64xf32>
    %68 = math.tanh %67 : vector<8x64xf32>
    %cst_53 = arith.constant 1.000000e+00 : f32
    %69 = vector.broadcast %cst_53 : f32 to vector<8x64xf32>
    %70 = arith.addf %68, %69 : vector<8x64xf32>
    %cst_54 = arith.constant 5.000000e-01 : f32
    %71 = vector.broadcast %cst_54 : f32 to vector<8x64xf32>
    %72 = arith.mulf %71, %70 : vector<8x64xf32>
    %73 = vector.extract_strided_slice %72 {offsets = [0, 0], sizes = [8, 32], strides = [1, 1]} : vector<8x64xf32> to vector<8x32xf32>
    %74 = vector.extract_strided_slice %72 {offsets = [0, 32], sizes = [8, 32], strides = [1, 1]} : vector<8x64xf32> to vector<8x32xf32>
    %75 = arith.addf %64, %38 : vector<8x32xf32>
    %76 = arith.mulf %73, %75 : vector<8x32xf32>
    %77 = arith.addf %62, %76 : vector<8x32xf32>
    %78 = math.tanh %77 : vector<8x32xf32>
    %79 = arith.subf %60, %78 : vector<8x32xf32>
    %80 = arith.mulf %74, %79 : vector<8x32xf32>
    %81 = arith.addf %78, %80 : vector<8x32xf32>
    %c16 = arith.constant 16 : index
    %c0_55 = arith.constant 0 : index
    %82 = vector.load %arg23[%c16, %c0_55] : memref<288x64xf32, #tpu.memory_space<vmem>>, vector<8x64xf32>
    %c16_56 = arith.constant 16 : index
    %c0_57 = arith.constant 0 : index
    %83 = vector.load %arg24[%c16_56, %c0_57] : memref<288x32xf32, #tpu.memory_space<vmem>>, vector<8x32xf32>
    %cst_58 = arith.constant dense<0.000000e+00> : vector<8x64xf32>
    %84 = tpu.matmul %81, %34, %cst_58 {dimension_numbers = #tpu.dot_dimension_numbers<[1], [0], [0], [1], [0, 0, 1, 1], [], []>} : vector<8x32xf32>, vector<32x64xf32>, vector<8x64xf32> -> vector<8x64xf32>
    %cst_59 = arith.constant dense<0.000000e+00> : vector<8x32xf32>
    %85 = tpu.matmul %81, %35, %cst_59 {dimension_numbers = #tpu.dot_dimension_numbers<[1], [0], [0], [1], [0, 0, 1, 1], [], []>} : vector<8x32xf32>, vector<32x32xf32>, vector<8x32xf32> -> vector<8x32xf32>
    %86 = arith.addf %82, %84 : vector<8x64xf32>
    %cst_60 = arith.constant 5.000000e-01 : f32
    %87 = vector.broadcast %cst_60 : f32 to vector<8x64xf32>
    %88 = arith.mulf %87, %86 : vector<8x64xf32>
    %89 = math.tanh %88 : vector<8x64xf32>
    %cst_61 = arith.constant 1.000000e+00 : f32
    %90 = vector.broadcast %cst_61 : f32 to vector<8x64xf32>
    %91 = arith.addf %89, %90 : vector<8x64xf32>
    %cst_62 = arith.constant 5.000000e-01 : f32
    %92 = vector.broadcast %cst_62 : f32 to vector<8x64xf32>
    %93 = arith.mulf %92, %91 : vector<8x64xf32>
    %94 = vector.extract_strided_slice %93 {offsets = [0, 0], sizes = [8, 32], strides = [1, 1]} : vector<8x64xf32> to vector<8x32xf32>
    %95 = vector.extract_strided_slice %93 {offsets = [0, 32], sizes = [8, 32], strides = [1, 1]} : vector<8x64xf32> to vector<8x32xf32>
    %96 = arith.addf %85, %38 : vector<8x32xf32>
    %97 = arith.mulf %94, %96 : vector<8x32xf32>
    %98 = arith.addf %83, %97 : vector<8x32xf32>
    %99 = math.tanh %98 : vector<8x32xf32>
    %100 = arith.subf %81, %99 : vector<8x32xf32>
    %101 = arith.mulf %95, %100 : vector<8x32xf32>
    %102 = arith.addf %99, %101 : vector<8x32xf32>
    %c24 = arith.constant 24 : index
    %c0_63 = arith.constant 0 : index
    %103 = vector.load %arg23[%c24, %c0_63] : memref<288x64xf32, #tpu.memory_space<vmem>>, vector<8x64xf32>
    %c24_64 = arith.constant 24 : index
    %c0_65 = arith.constant 0 : index
    %104 = vector.load %arg24[%c24_64, %c0_65] : memref<288x32xf32, #tpu.memory_space<vmem>>, vector<8x32xf32>
    %cst_66 = arith.constant dense<0.000000e+00> : vector<8x64xf32>
    %105 = tpu.matmul %102, %34, %cst_66 {dimension_numbers = #tpu.dot_dimension_numbers<[1], [0], [0], [1], [0, 0, 1, 1], [], []>} : vector<8x32xf32>, vector<32x64xf32>, vector<8x64xf32> -> vector<8x64xf32>
    %cst_67 = arith.constant dense<0.000000e+00> : vector<8x32xf32>
    %106 = tpu.matmul %102, %35, %cst_67 {dimension_numbers = #tpu.dot_dimension_numbers<[1], [0], [0], [1], [0, 0, 1, 1], [], []>} : vector<8x32xf32>, vector<32x32xf32>, vector<8x32xf32> -> vector<8x32xf32>
    %107 = arith.addf %103, %105 : vector<8x64xf32>
    %cst_68 = arith.constant 5.000000e-01 : f32
    %108 = vector.broadcast %cst_68 : f32 to vector<8x64xf32>
    %109 = arith.mulf %108, %107 : vector<8x64xf32>
    %110 = math.tanh %109 : vector<8x64xf32>
    %cst_69 = arith.constant 1.000000e+00 : f32
    %111 = vector.broadcast %cst_69 : f32 to vector<8x64xf32>
    %112 = arith.addf %110, %111 : vector<8x64xf32>
    %cst_70 = arith.constant 5.000000e-01 : f32
    %113 = vector.broadcast %cst_70 : f32 to vector<8x64xf32>
    %114 = arith.mulf %113, %112 : vector<8x64xf32>
    %115 = vector.extract_strided_slice %114 {offsets = [0, 0], sizes = [8, 32], strides = [1, 1]} : vector<8x64xf32> to vector<8x32xf32>
    %116 = vector.extract_strided_slice %114 {offsets = [0, 32], sizes = [8, 32], strides = [1, 1]} : vector<8x64xf32> to vector<8x32xf32>
    %117 = arith.addf %106, %38 : vector<8x32xf32>
    %118 = arith.mulf %115, %117 : vector<8x32xf32>
    %119 = arith.addf %104, %118 : vector<8x32xf32>
    %120 = math.tanh %119 : vector<8x32xf32>
    %121 = arith.subf %102, %120 : vector<8x32xf32>
    %122 = arith.mulf %116, %121 : vector<8x32xf32>
    %123 = arith.addf %120, %122 : vector<8x32xf32>
    %c32 = arith.constant 32 : index
    %c0_71 = arith.constant 0 : index
    %124 = vector.load %arg23[%c32, %c0_71] : memref<288x64xf32, #tpu.memory_space<vmem>>, vector<8x64xf32>
    %c32_72 = arith.constant 32 : index
    %c0_73 = arith.constant 0 : index
    %125 = vector.load %arg24[%c32_72, %c0_73] : memref<288x32xf32, #tpu.memory_space<vmem>>, vector<8x32xf32>
    %cst_74 = arith.constant dense<0.000000e+00> : vector<8x64xf32>
    %126 = tpu.matmul %123, %34, %cst_74 {dimension_numbers = #tpu.dot_dimension_numbers<[1], [0], [0], [1], [0, 0, 1, 1], [], []>} : vector<8x32xf32>, vector<32x64xf32>, vector<8x64xf32> -> vector<8x64xf32>
    %cst_75 = arith.constant dense<0.000000e+00> : vector<8x32xf32>
    %127 = tpu.matmul %123, %35, %cst_75 {dimension_numbers = #tpu.dot_dimension_numbers<[1], [0], [0], [1], [0, 0, 1, 1], [], []>} : vector<8x32xf32>, vector<32x32xf32>, vector<8x32xf32> -> vector<8x32xf32>
    %128 = arith.addf %124, %126 : vector<8x64xf32>
    %cst_76 = arith.constant 5.000000e-01 : f32
    %129 = vector.broadcast %cst_76 : f32 to vector<8x64xf32>
    %130 = arith.mulf %129, %128 : vector<8x64xf32>
    %131 = math.tanh %130 : vector<8x64xf32>
    %cst_77 = arith.constant 1.000000e+00 : f32
    %132 = vector.broadcast %cst_77 : f32 to vector<8x64xf32>
    %133 = arith.addf %131, %132 : vector<8x64xf32>
    %cst_78 = arith.constant 5.000000e-01 : f32
    %134 = vector.broadcast %cst_78 : f32 to vector<8x64xf32>
    %135 = arith.mulf %134, %133 : vector<8x64xf32>
    %136 = vector.extract_strided_slice %135 {offsets = [0, 0], sizes = [8, 32], strides = [1, 1]} : vector<8x64xf32> to vector<8x32xf32>
    %137 = vector.extract_strided_slice %135 {offsets = [0, 32], sizes = [8, 32], strides = [1, 1]} : vector<8x64xf32> to vector<8x32xf32>
    %138 = arith.addf %127, %38 : vector<8x32xf32>
    %139 = arith.mulf %136, %138 : vector<8x32xf32>
    %140 = arith.addf %125, %139 : vector<8x32xf32>
    %141 = math.tanh %140 : vector<8x32xf32>
    %142 = arith.subf %123, %141 : vector<8x32xf32>
    %143 = arith.mulf %137, %142 : vector<8x32xf32>
    %144 = arith.addf %141, %143 : vector<8x32xf32>
    %c40 = arith.constant 40 : index
    %c0_79 = arith.constant 0 : index
    %145 = vector.load %arg23[%c40, %c0_79] : memref<288x64xf32, #tpu.memory_space<vmem>>, vector<8x64xf32>
    %c40_80 = arith.constant 40 : index
    %c0_81 = arith.constant 0 : index
    %146 = vector.load %arg24[%c40_80, %c0_81] : memref<288x32xf32, #tpu.memory_space<vmem>>, vector<8x32xf32>
    %cst_82 = arith.constant dense<0.000000e+00> : vector<8x64xf32>
    %147 = tpu.matmul %144, %34, %cst_82 {dimension_numbers = #tpu.dot_dimension_numbers<[1], [0], [0], [1], [0, 0, 1, 1], [], []>} : vector<8x32xf32>, vector<32x64xf32>, vector<8x64xf32> -> vector<8x64xf32>
    %cst_83 = arith.constant dense<0.000000e+00> : vector<8x32xf32>
    %148 = tpu.matmul %144, %35, %cst_83 {dimension_numbers = #tpu.dot_dimension_numbers<[1], [0], [0], [1], [0, 0, 1, 1], [], []>} : vector<8x32xf32>, vector<32x32xf32>, vector<8x32xf32> -> vector<8x32xf32>
    %149 = arith.addf %145, %147 : vector<8x64xf32>
    %cst_84 = arith.constant 5.000000e-01 : f32
    %150 = vector.broadcast %cst_84 : f32 to vector<8x64xf32>
    %151 = arith.mulf %150, %149 : vector<8x64xf32>
    %152 = math.tanh %151 : vector<8x64xf32>
    %cst_85 = arith.constant 1.000000e+00 : f32
    %153 = vector.broadcast %cst_85 : f32 to vector<8x64xf32>
    %154 = arith.addf %152, %153 : vector<8x64xf32>
    %cst_86 = arith.constant 5.000000e-01 : f32
    %155 = vector.broadcast %cst_86 : f32 to vector<8x64xf32>
    %156 = arith.mulf %155, %154 : vector<8x64xf32>
    %157 = vector.extract_strided_slice %156 {offsets = [0, 0], sizes = [8, 32], strides = [1, 1]} : vector<8x64xf32> to vector<8x32xf32>
    %158 = vector.extract_strided_slice %156 {offsets = [0, 32], sizes = [8, 32], strides = [1, 1]} : vector<8x64xf32> to vector<8x32xf32>
    %159 = arith.addf %148, %38 : vector<8x32xf32>
    %160 = arith.mulf %157, %159 : vector<8x32xf32>
    %161 = arith.addf %146, %160 : vector<8x32xf32>
    %162 = math.tanh %161 : vector<8x32xf32>
    %163 = arith.subf %144, %162 : vector<8x32xf32>
    %164 = arith.mulf %158, %163 : vector<8x32xf32>
    %165 = arith.addf %162, %164 : vector<8x32xf32>
    %c48 = arith.constant 48 : index
    %c0_87 = arith.constant 0 : index
    %166 = vector.load %arg23[%c48, %c0_87] : memref<288x64xf32, #tpu.memory_space<vmem>>, vector<8x64xf32>
    %c48_88 = arith.constant 48 : index
    %c0_89 = arith.constant 0 : index
    %167 = vector.load %arg24[%c48_88, %c0_89] : memref<288x32xf32, #tpu.memory_space<vmem>>, vector<8x32xf32>
    %cst_90 = arith.constant dense<0.000000e+00> : vector<8x64xf32>
    %168 = tpu.matmul %165, %34, %cst_90 {dimension_numbers = #tpu.dot_dimension_numbers<[1], [0], [0], [1], [0, 0, 1, 1], [], []>} : vector<8x32xf32>, vector<32x64xf32>, vector<8x64xf32> -> vector<8x64xf32>
    %cst_91 = arith.constant dense<0.000000e+00> : vector<8x32xf32>
    %169 = tpu.matmul %165, %35, %cst_91 {dimension_numbers = #tpu.dot_dimension_numbers<[1], [0], [0], [1], [0, 0, 1, 1], [], []>} : vector<8x32xf32>, vector<32x32xf32>, vector<8x32xf32> -> vector<8x32xf32>
    %170 = arith.addf %166, %168 : vector<8x64xf32>
    %cst_92 = arith.constant 5.000000e-01 : f32
    %171 = vector.broadcast %cst_92 : f32 to vector<8x64xf32>
    %172 = arith.mulf %171, %170 : vector<8x64xf32>
    %173 = math.tanh %172 : vector<8x64xf32>
    %cst_93 = arith.constant 1.000000e+00 : f32
    %174 = vector.broadcast %cst_93 : f32 to vector<8x64xf32>
    %175 = arith.addf %173, %174 : vector<8x64xf32>
    %cst_94 = arith.constant 5.000000e-01 : f32
    %176 = vector.broadcast %cst_94 : f32 to vector<8x64xf32>
    %177 = arith.mulf %176, %175 : vector<8x64xf32>
    %178 = vector.extract_strided_slice %177 {offsets = [0, 0], sizes = [8, 32], strides = [1, 1]} : vector<8x64xf32> to vector<8x32xf32>
    %179 = vector.extract_strided_slice %177 {offsets = [0, 32], sizes = [8, 32], strides = [1, 1]} : vector<8x64xf32> to vector<8x32xf32>
    %180 = arith.addf %169, %38 : vector<8x32xf32>
    %181 = arith.mulf %178, %180 : vector<8x32xf32>
    %182 = arith.addf %167, %181 : vector<8x32xf32>
    %183 = math.tanh %182 : vector<8x32xf32>
    %184 = arith.subf %165, %183 : vector<8x32xf32>
    %185 = arith.mulf %179, %184 : vector<8x32xf32>
    %186 = arith.addf %183, %185 : vector<8x32xf32>
    %c56 = arith.constant 56 : index
    %c0_95 = arith.constant 0 : index
    %187 = vector.load %arg23[%c56, %c0_95] : memref<288x64xf32, #tpu.memory_space<vmem>>, vector<8x64xf32>
    %c56_96 = arith.constant 56 : index
    %c0_97 = arith.constant 0 : index
    %188 = vector.load %arg24[%c56_96, %c0_97] : memref<288x32xf32, #tpu.memory_space<vmem>>, vector<8x32xf32>
    %cst_98 = arith.constant dense<0.000000e+00> : vector<8x64xf32>
    %189 = tpu.matmul %186, %34, %cst_98 {dimension_numbers = #tpu.dot_dimension_numbers<[1], [0], [0], [1], [0, 0, 1, 1], [], []>} : vector<8x32xf32>, vector<32x64xf32>, vector<8x64xf32> -> vector<8x64xf32>
    %cst_99 = arith.constant dense<0.000000e+00> : vector<8x32xf32>
    %190 = tpu.matmul %186, %35, %cst_99 {dimension_numbers = #tpu.dot_dimension_numbers<[1], [0], [0], [1], [0, 0, 1, 1], [], []>} : vector<8x32xf32>, vector<32x32xf32>, vector<8x32xf32> -> vector<8x32xf32>
    %191 = arith.addf %187, %189 : vector<8x64xf32>
    %cst_100 = arith.constant 5.000000e-01 : f32
    %192 = vector.broadcast %cst_100 : f32 to vector<8x64xf32>
    %193 = arith.mulf %192, %191 : vector<8x64xf32>
    %194 = math.tanh %193 : vector<8x64xf32>
    %cst_101 = arith.constant 1.000000e+00 : f32
    %195 = vector.broadcast %cst_101 : f32 to vector<8x64xf32>
    %196 = arith.addf %194, %195 : vector<8x64xf32>
    %cst_102 = arith.constant 5.000000e-01 : f32
    %197 = vector.broadcast %cst_102 : f32 to vector<8x64xf32>
    %198 = arith.mulf %197, %196 : vector<8x64xf32>
    %199 = vector.extract_strided_slice %198 {offsets = [0, 0], sizes = [8, 32], strides = [1, 1]} : vector<8x64xf32> to vector<8x32xf32>
    %200 = vector.extract_strided_slice %198 {offsets = [0, 32], sizes = [8, 32], strides = [1, 1]} : vector<8x64xf32> to vector<8x32xf32>
    %201 = arith.addf %190, %38 : vector<8x32xf32>
    %202 = arith.mulf %199, %201 : vector<8x32xf32>
    %203 = arith.addf %188, %202 : vector<8x32xf32>
    %204 = math.tanh %203 : vector<8x32xf32>
    %205 = arith.subf %186, %204 : vector<8x32xf32>
    %206 = arith.mulf %200, %205 : vector<8x32xf32>
    %207 = arith.addf %204, %206 : vector<8x32xf32>
    %c64 = arith.constant 64 : index
    %c0_103 = arith.constant 0 : index
    %208 = vector.load %arg23[%c64, %c0_103] : memref<288x64xf32, #tpu.memory_space<vmem>>, vector<8x64xf32>
    %c64_104 = arith.constant 64 : index
    %c0_105 = arith.constant 0 : index
    %209 = vector.load %arg24[%c64_104, %c0_105] : memref<288x32xf32, #tpu.memory_space<vmem>>, vector<8x32xf32>
    %cst_106 = arith.constant dense<0.000000e+00> : vector<8x64xf32>
    %210 = tpu.matmul %207, %34, %cst_106 {dimension_numbers = #tpu.dot_dimension_numbers<[1], [0], [0], [1], [0, 0, 1, 1], [], []>} : vector<8x32xf32>, vector<32x64xf32>, vector<8x64xf32> -> vector<8x64xf32>
    %cst_107 = arith.constant dense<0.000000e+00> : vector<8x32xf32>
    %211 = tpu.matmul %207, %35, %cst_107 {dimension_numbers = #tpu.dot_dimension_numbers<[1], [0], [0], [1], [0, 0, 1, 1], [], []>} : vector<8x32xf32>, vector<32x32xf32>, vector<8x32xf32> -> vector<8x32xf32>
    %212 = arith.addf %208, %210 : vector<8x64xf32>
    %cst_108 = arith.constant 5.000000e-01 : f32
    %213 = vector.broadcast %cst_108 : f32 to vector<8x64xf32>
    %214 = arith.mulf %213, %212 : vector<8x64xf32>
    %215 = math.tanh %214 : vector<8x64xf32>
    %cst_109 = arith.constant 1.000000e+00 : f32
    %216 = vector.broadcast %cst_109 : f32 to vector<8x64xf32>
    %217 = arith.addf %215, %216 : vector<8x64xf32>
    %cst_110 = arith.constant 5.000000e-01 : f32
    %218 = vector.broadcast %cst_110 : f32 to vector<8x64xf32>
    %219 = arith.mulf %218, %217 : vector<8x64xf32>
    %220 = vector.extract_strided_slice %219 {offsets = [0, 0], sizes = [8, 32], strides = [1, 1]} : vector<8x64xf32> to vector<8x32xf32>
    %221 = vector.extract_strided_slice %219 {offsets = [0, 32], sizes = [8, 32], strides = [1, 1]} : vector<8x64xf32> to vector<8x32xf32>
    %222 = arith.addf %211, %38 : vector<8x32xf32>
    %223 = arith.mulf %220, %222 : vector<8x32xf32>
    %224 = arith.addf %209, %223 : vector<8x32xf32>
    %225 = math.tanh %224 : vector<8x32xf32>
    %226 = arith.subf %207, %225 : vector<8x32xf32>
    %227 = arith.mulf %221, %226 : vector<8x32xf32>
    %228 = arith.addf %225, %227 : vector<8x32xf32>
    %c72 = arith.constant 72 : index
    %c0_111 = arith.constant 0 : index
    %229 = vector.load %arg23[%c72, %c0_111] : memref<288x64xf32, #tpu.memory_space<vmem>>, vector<8x64xf32>
    %c72_112 = arith.constant 72 : index
    %c0_113 = arith.constant 0 : index
    %230 = vector.load %arg24[%c72_112, %c0_113] : memref<288x32xf32, #tpu.memory_space<vmem>>, vector<8x32xf32>
    %cst_114 = arith.constant dense<0.000000e+00> : vector<8x64xf32>
    %231 = tpu.matmul %228, %34, %cst_114 {dimension_numbers = #tpu.dot_dimension_numbers<[1], [0], [0], [1], [0, 0, 1, 1], [], []>} : vector<8x32xf32>, vector<32x64xf32>, vector<8x64xf32> -> vector<8x64xf32>
    %cst_115 = arith.constant dense<0.000000e+00> : vector<8x32xf32>
    %232 = tpu.matmul %228, %35, %cst_115 {dimension_numbers = #tpu.dot_dimension_numbers<[1], [0], [0], [1], [0, 0, 1, 1], [], []>} : vector<8x32xf32>, vector<32x32xf32>, vector<8x32xf32> -> vector<8x32xf32>
    %233 = arith.addf %229, %231 : vector<8x64xf32>
    %cst_116 = arith.constant 5.000000e-01 : f32
    %234 = vector.broadcast %cst_116 : f32 to vector<8x64xf32>
    %235 = arith.mulf %234, %233 : vector<8x64xf32>
    %236 = math.tanh %235 : vector<8x64xf32>
    %cst_117 = arith.constant 1.000000e+00 : f32
    %237 = vector.broadcast %cst_117 : f32 to vector<8x64xf32>
    %238 = arith.addf %236, %237 : vector<8x64xf32>
    %cst_118 = arith.constant 5.000000e-01 : f32
    %239 = vector.broadcast %cst_118 : f32 to vector<8x64xf32>
    %240 = arith.mulf %239, %238 : vector<8x64xf32>
    %241 = vector.extract_strided_slice %240 {offsets = [0, 0], sizes = [8, 32], strides = [1, 1]} : vector<8x64xf32> to vector<8x32xf32>
    %242 = vector.extract_strided_slice %240 {offsets = [0, 32], sizes = [8, 32], strides = [1, 1]} : vector<8x64xf32> to vector<8x32xf32>
    %243 = arith.addf %232, %38 : vector<8x32xf32>
    %244 = arith.mulf %241, %243 : vector<8x32xf32>
    %245 = arith.addf %230, %244 : vector<8x32xf32>
    %246 = math.tanh %245 : vector<8x32xf32>
    %247 = arith.subf %228, %246 : vector<8x32xf32>
    %248 = arith.mulf %242, %247 : vector<8x32xf32>
    %249 = arith.addf %246, %248 : vector<8x32xf32>
    %c80 = arith.constant 80 : index
    %c0_119 = arith.constant 0 : index
    %250 = vector.load %arg23[%c80, %c0_119] : memref<288x64xf32, #tpu.memory_space<vmem>>, vector<8x64xf32>
    %c80_120 = arith.constant 80 : index
    %c0_121 = arith.constant 0 : index
    %251 = vector.load %arg24[%c80_120, %c0_121] : memref<288x32xf32, #tpu.memory_space<vmem>>, vector<8x32xf32>
    %cst_122 = arith.constant dense<0.000000e+00> : vector<8x64xf32>
    %252 = tpu.matmul %249, %34, %cst_122 {dimension_numbers = #tpu.dot_dimension_numbers<[1], [0], [0], [1], [0, 0, 1, 1], [], []>} : vector<8x32xf32>, vector<32x64xf32>, vector<8x64xf32> -> vector<8x64xf32>
    %cst_123 = arith.constant dense<0.000000e+00> : vector<8x32xf32>
    %253 = tpu.matmul %249, %35, %cst_123 {dimension_numbers = #tpu.dot_dimension_numbers<[1], [0], [0], [1], [0, 0, 1, 1], [], []>} : vector<8x32xf32>, vector<32x32xf32>, vector<8x32xf32> -> vector<8x32xf32>
    %254 = arith.addf %250, %252 : vector<8x64xf32>
    %cst_124 = arith.constant 5.000000e-01 : f32
    %255 = vector.broadcast %cst_124 : f32 to vector<8x64xf32>
    %256 = arith.mulf %255, %254 : vector<8x64xf32>
    %257 = math.tanh %256 : vector<8x64xf32>
    %cst_125 = arith.constant 1.000000e+00 : f32
    %258 = vector.broadcast %cst_125 : f32 to vector<8x64xf32>
    %259 = arith.addf %257, %258 : vector<8x64xf32>
    %cst_126 = arith.constant 5.000000e-01 : f32
    %260 = vector.broadcast %cst_126 : f32 to vector<8x64xf32>
    %261 = arith.mulf %260, %259 : vector<8x64xf32>
    %262 = vector.extract_strided_slice %261 {offsets = [0, 0], sizes = [8, 32], strides = [1, 1]} : vector<8x64xf32> to vector<8x32xf32>
    %263 = vector.extract_strided_slice %261 {offsets = [0, 32], sizes = [8, 32], strides = [1, 1]} : vector<8x64xf32> to vector<8x32xf32>
    %264 = arith.addf %253, %38 : vector<8x32xf32>
    %265 = arith.mulf %262, %264 : vector<8x32xf32>
    %266 = arith.addf %251, %265 : vector<8x32xf32>
    %267 = math.tanh %266 : vector<8x32xf32>
    %268 = arith.subf %249, %267 : vector<8x32xf32>
    %269 = arith.mulf %263, %268 : vector<8x32xf32>
    %270 = arith.addf %267, %269 : vector<8x32xf32>
    %c88 = arith.constant 88 : index
    %c0_127 = arith.constant 0 : index
    %271 = vector.load %arg23[%c88, %c0_127] : memref<288x64xf32, #tpu.memory_space<vmem>>, vector<8x64xf32>
    %c88_128 = arith.constant 88 : index
    %c0_129 = arith.constant 0 : index
    %272 = vector.load %arg24[%c88_128, %c0_129] : memref<288x32xf32, #tpu.memory_space<vmem>>, vector<8x32xf32>
    %cst_130 = arith.constant dense<0.000000e+00> : vector<8x64xf32>
    %273 = tpu.matmul %270, %34, %cst_130 {dimension_numbers = #tpu.dot_dimension_numbers<[1], [0], [0], [1], [0, 0, 1, 1], [], []>} : vector<8x32xf32>, vector<32x64xf32>, vector<8x64xf32> -> vector<8x64xf32>
    %cst_131 = arith.constant dense<0.000000e+00> : vector<8x32xf32>
    %274 = tpu.matmul %270, %35, %cst_131 {dimension_numbers = #tpu.dot_dimension_numbers<[1], [0], [0], [1], [0, 0, 1, 1], [], []>} : vector<8x32xf32>, vector<32x32xf32>, vector<8x32xf32> -> vector<8x32xf32>
    %275 = arith.addf %271, %273 : vector<8x64xf32>
    %cst_132 = arith.constant 5.000000e-01 : f32
    %276 = vector.broadcast %cst_132 : f32 to vector<8x64xf32>
    %277 = arith.mulf %276, %275 : vector<8x64xf32>
    %278 = math.tanh %277 : vector<8x64xf32>
    %cst_133 = arith.constant 1.000000e+00 : f32
    %279 = vector.broadcast %cst_133 : f32 to vector<8x64xf32>
    %280 = arith.addf %278, %279 : vector<8x64xf32>
    %cst_134 = arith.constant 5.000000e-01 : f32
    %281 = vector.broadcast %cst_134 : f32 to vector<8x64xf32>
    %282 = arith.mulf %281, %280 : vector<8x64xf32>
    %283 = vector.extract_strided_slice %282 {offsets = [0, 0], sizes = [8, 32], strides = [1, 1]} : vector<8x64xf32> to vector<8x32xf32>
    %284 = vector.extract_strided_slice %282 {offsets = [0, 32], sizes = [8, 32], strides = [1, 1]} : vector<8x64xf32> to vector<8x32xf32>
    %285 = arith.addf %274, %38 : vector<8x32xf32>
    %286 = arith.mulf %283, %285 : vector<8x32xf32>
    %287 = arith.addf %272, %286 : vector<8x32xf32>
    %288 = math.tanh %287 : vector<8x32xf32>
    %289 = arith.subf %270, %288 : vector<8x32xf32>
    %290 = arith.mulf %284, %289 : vector<8x32xf32>
    %291 = arith.addf %288, %290 : vector<8x32xf32>
    %c96 = arith.constant 96 : index
    %c0_135 = arith.constant 0 : index
    %292 = vector.load %arg23[%c96, %c0_135] : memref<288x64xf32, #tpu.memory_space<vmem>>, vector<8x64xf32>
    %c96_136 = arith.constant 96 : index
    %c0_137 = arith.constant 0 : index
    %293 = vector.load %arg24[%c96_136, %c0_137] : memref<288x32xf32, #tpu.memory_space<vmem>>, vector<8x32xf32>
    %cst_138 = arith.constant dense<0.000000e+00> : vector<8x64xf32>
    %294 = tpu.matmul %291, %34, %cst_138 {dimension_numbers = #tpu.dot_dimension_numbers<[1], [0], [0], [1], [0, 0, 1, 1], [], []>} : vector<8x32xf32>, vector<32x64xf32>, vector<8x64xf32> -> vector<8x64xf32>
    %cst_139 = arith.constant dense<0.000000e+00> : vector<8x32xf32>
    %295 = tpu.matmul %291, %35, %cst_139 {dimension_numbers = #tpu.dot_dimension_numbers<[1], [0], [0], [1], [0, 0, 1, 1], [], []>} : vector<8x32xf32>, vector<32x32xf32>, vector<8x32xf32> -> vector<8x32xf32>
    %296 = arith.addf %292, %294 : vector<8x64xf32>
    %cst_140 = arith.constant 5.000000e-01 : f32
    %297 = vector.broadcast %cst_140 : f32 to vector<8x64xf32>
    %298 = arith.mulf %297, %296 : vector<8x64xf32>
    %299 = math.tanh %298 : vector<8x64xf32>
    %cst_141 = arith.constant 1.000000e+00 : f32
    %300 = vector.broadcast %cst_141 : f32 to vector<8x64xf32>
    %301 = arith.addf %299, %300 : vector<8x64xf32>
    %cst_142 = arith.constant 5.000000e-01 : f32
    %302 = vector.broadcast %cst_142 : f32 to vector<8x64xf32>
    %303 = arith.mulf %302, %301 : vector<8x64xf32>
    %304 = vector.extract_strided_slice %303 {offsets = [0, 0], sizes = [8, 32], strides = [1, 1]} : vector<8x64xf32> to vector<8x32xf32>
    %305 = vector.extract_strided_slice %303 {offsets = [0, 32], sizes = [8, 32], strides = [1, 1]} : vector<8x64xf32> to vector<8x32xf32>
    %306 = arith.addf %295, %38 : vector<8x32xf32>
    %307 = arith.mulf %304, %306 : vector<8x32xf32>
    %308 = arith.addf %293, %307 : vector<8x32xf32>
    %309 = math.tanh %308 : vector<8x32xf32>
    %310 = arith.subf %291, %309 : vector<8x32xf32>
    %311 = arith.mulf %305, %310 : vector<8x32xf32>
    %312 = arith.addf %309, %311 : vector<8x32xf32>
    %c104 = arith.constant 104 : index
    %c0_143 = arith.constant 0 : index
    %313 = vector.load %arg23[%c104, %c0_143] : memref<288x64xf32, #tpu.memory_space<vmem>>, vector<8x64xf32>
    %c104_144 = arith.constant 104 : index
    %c0_145 = arith.constant 0 : index
    %314 = vector.load %arg24[%c104_144, %c0_145] : memref<288x32xf32, #tpu.memory_space<vmem>>, vector<8x32xf32>
    %cst_146 = arith.constant dense<0.000000e+00> : vector<8x64xf32>
    %315 = tpu.matmul %312, %34, %cst_146 {dimension_numbers = #tpu.dot_dimension_numbers<[1], [0], [0], [1], [0, 0, 1, 1], [], []>} : vector<8x32xf32>, vector<32x64xf32>, vector<8x64xf32> -> vector<8x64xf32>
    %cst_147 = arith.constant dense<0.000000e+00> : vector<8x32xf32>
    %316 = tpu.matmul %312, %35, %cst_147 {dimension_numbers = #tpu.dot_dimension_numbers<[1], [0], [0], [1], [0, 0, 1, 1], [], []>} : vector<8x32xf32>, vector<32x32xf32>, vector<8x32xf32> -> vector<8x32xf32>
    %317 = arith.addf %313, %315 : vector<8x64xf32>
    %cst_148 = arith.constant 5.000000e-01 : f32
    %318 = vector.broadcast %cst_148 : f32 to vector<8x64xf32>
    %319 = arith.mulf %318, %317 : vector<8x64xf32>
    %320 = math.tanh %319 : vector<8x64xf32>
    %cst_149 = arith.constant 1.000000e+00 : f32
    %321 = vector.broadcast %cst_149 : f32 to vector<8x64xf32>
    %322 = arith.addf %320, %321 : vector<8x64xf32>
    %cst_150 = arith.constant 5.000000e-01 : f32
    %323 = vector.broadcast %cst_150 : f32 to vector<8x64xf32>
    %324 = arith.mulf %323, %322 : vector<8x64xf32>
    %325 = vector.extract_strided_slice %324 {offsets = [0, 0], sizes = [8, 32], strides = [1, 1]} : vector<8x64xf32> to vector<8x32xf32>
    %326 = vector.extract_strided_slice %324 {offsets = [0, 32], sizes = [8, 32], strides = [1, 1]} : vector<8x64xf32> to vector<8x32xf32>
    %327 = arith.addf %316, %38 : vector<8x32xf32>
    %328 = arith.mulf %325, %327 : vector<8x32xf32>
    %329 = arith.addf %314, %328 : vector<8x32xf32>
    %330 = math.tanh %329 : vector<8x32xf32>
    %331 = arith.subf %312, %330 : vector<8x32xf32>
    %332 = arith.mulf %326, %331 : vector<8x32xf32>
    %333 = arith.addf %330, %332 : vector<8x32xf32>
    %c112 = arith.constant 112 : index
    %c0_151 = arith.constant 0 : index
    %334 = vector.load %arg23[%c112, %c0_151] : memref<288x64xf32, #tpu.memory_space<vmem>>, vector<8x64xf32>
    %c112_152 = arith.constant 112 : index
    %c0_153 = arith.constant 0 : index
    %335 = vector.load %arg24[%c112_152, %c0_153] : memref<288x32xf32, #tpu.memory_space<vmem>>, vector<8x32xf32>
    %cst_154 = arith.constant dense<0.000000e+00> : vector<8x64xf32>
    %336 = tpu.matmul %333, %34, %cst_154 {dimension_numbers = #tpu.dot_dimension_numbers<[1], [0], [0], [1], [0, 0, 1, 1], [], []>} : vector<8x32xf32>, vector<32x64xf32>, vector<8x64xf32> -> vector<8x64xf32>
    %cst_155 = arith.constant dense<0.000000e+00> : vector<8x32xf32>
    %337 = tpu.matmul %333, %35, %cst_155 {dimension_numbers = #tpu.dot_dimension_numbers<[1], [0], [0], [1], [0, 0, 1, 1], [], []>} : vector<8x32xf32>, vector<32x32xf32>, vector<8x32xf32> -> vector<8x32xf32>
    %338 = arith.addf %334, %336 : vector<8x64xf32>
    %cst_156 = arith.constant 5.000000e-01 : f32
    %339 = vector.broadcast %cst_156 : f32 to vector<8x64xf32>
    %340 = arith.mulf %339, %338 : vector<8x64xf32>
    %341 = math.tanh %340 : vector<8x64xf32>
    %cst_157 = arith.constant 1.000000e+00 : f32
    %342 = vector.broadcast %cst_157 : f32 to vector<8x64xf32>
    %343 = arith.addf %341, %342 : vector<8x64xf32>
    %cst_158 = arith.constant 5.000000e-01 : f32
    %344 = vector.broadcast %cst_158 : f32 to vector<8x64xf32>
    %345 = arith.mulf %344, %343 : vector<8x64xf32>
    %346 = vector.extract_strided_slice %345 {offsets = [0, 0], sizes = [8, 32], strides = [1, 1]} : vector<8x64xf32> to vector<8x32xf32>
    %347 = vector.extract_strided_slice %345 {offsets = [0, 32], sizes = [8, 32], strides = [1, 1]} : vector<8x64xf32> to vector<8x32xf32>
    %348 = arith.addf %337, %38 : vector<8x32xf32>
    %349 = arith.mulf %346, %348 : vector<8x32xf32>
    %350 = arith.addf %335, %349 : vector<8x32xf32>
    %351 = math.tanh %350 : vector<8x32xf32>
    %352 = arith.subf %333, %351 : vector<8x32xf32>
    %353 = arith.mulf %347, %352 : vector<8x32xf32>
    %354 = arith.addf %351, %353 : vector<8x32xf32>
    %c120 = arith.constant 120 : index
    %c0_159 = arith.constant 0 : index
    %355 = vector.load %arg23[%c120, %c0_159] : memref<288x64xf32, #tpu.memory_space<vmem>>, vector<8x64xf32>
    %c120_160 = arith.constant 120 : index
    %c0_161 = arith.constant 0 : index
    %356 = vector.load %arg24[%c120_160, %c0_161] : memref<288x32xf32, #tpu.memory_space<vmem>>, vector<8x32xf32>
    %cst_162 = arith.constant dense<0.000000e+00> : vector<8x64xf32>
    %357 = tpu.matmul %354, %34, %cst_162 {dimension_numbers = #tpu.dot_dimension_numbers<[1], [0], [0], [1], [0, 0, 1, 1], [], []>} : vector<8x32xf32>, vector<32x64xf32>, vector<8x64xf32> -> vector<8x64xf32>
    %cst_163 = arith.constant dense<0.000000e+00> : vector<8x32xf32>
    %358 = tpu.matmul %354, %35, %cst_163 {dimension_numbers = #tpu.dot_dimension_numbers<[1], [0], [0], [1], [0, 0, 1, 1], [], []>} : vector<8x32xf32>, vector<32x32xf32>, vector<8x32xf32> -> vector<8x32xf32>
    %359 = arith.addf %355, %357 : vector<8x64xf32>
    %cst_164 = arith.constant 5.000000e-01 : f32
    %360 = vector.broadcast %cst_164 : f32 to vector<8x64xf32>
    %361 = arith.mulf %360, %359 : vector<8x64xf32>
    %362 = math.tanh %361 : vector<8x64xf32>
    %cst_165 = arith.constant 1.000000e+00 : f32
    %363 = vector.broadcast %cst_165 : f32 to vector<8x64xf32>
    %364 = arith.addf %362, %363 : vector<8x64xf32>
    %cst_166 = arith.constant 5.000000e-01 : f32
    %365 = vector.broadcast %cst_166 : f32 to vector<8x64xf32>
    %366 = arith.mulf %365, %364 : vector<8x64xf32>
    %367 = vector.extract_strided_slice %366 {offsets = [0, 0], sizes = [8, 32], strides = [1, 1]} : vector<8x64xf32> to vector<8x32xf32>
    %368 = vector.extract_strided_slice %366 {offsets = [0, 32], sizes = [8, 32], strides = [1, 1]} : vector<8x64xf32> to vector<8x32xf32>
    %369 = arith.addf %358, %38 : vector<8x32xf32>
    %370 = arith.mulf %367, %369 : vector<8x32xf32>
    %371 = arith.addf %356, %370 : vector<8x32xf32>
    %372 = math.tanh %371 : vector<8x32xf32>
    %373 = arith.subf %354, %372 : vector<8x32xf32>
    %374 = arith.mulf %368, %373 : vector<8x32xf32>
    %375 = arith.addf %372, %374 : vector<8x32xf32>
    %c128 = arith.constant 128 : index
    %c0_167 = arith.constant 0 : index
    %376 = vector.load %arg23[%c128, %c0_167] : memref<288x64xf32, #tpu.memory_space<vmem>>, vector<8x64xf32>
    %c128_168 = arith.constant 128 : index
    %c0_169 = arith.constant 0 : index
    %377 = vector.load %arg24[%c128_168, %c0_169] : memref<288x32xf32, #tpu.memory_space<vmem>>, vector<8x32xf32>
    %cst_170 = arith.constant dense<0.000000e+00> : vector<8x64xf32>
    %378 = tpu.matmul %375, %34, %cst_170 {dimension_numbers = #tpu.dot_dimension_numbers<[1], [0], [0], [1], [0, 0, 1, 1], [], []>} : vector<8x32xf32>, vector<32x64xf32>, vector<8x64xf32> -> vector<8x64xf32>
    %cst_171 = arith.constant dense<0.000000e+00> : vector<8x32xf32>
    %379 = tpu.matmul %375, %35, %cst_171 {dimension_numbers = #tpu.dot_dimension_numbers<[1], [0], [0], [1], [0, 0, 1, 1], [], []>} : vector<8x32xf32>, vector<32x32xf32>, vector<8x32xf32> -> vector<8x32xf32>
    %380 = arith.addf %376, %378 : vector<8x64xf32>
    %cst_172 = arith.constant 5.000000e-01 : f32
    %381 = vector.broadcast %cst_172 : f32 to vector<8x64xf32>
    %382 = arith.mulf %381, %380 : vector<8x64xf32>
    %383 = math.tanh %382 : vector<8x64xf32>
    %cst_173 = arith.constant 1.000000e+00 : f32
    %384 = vector.broadcast %cst_173 : f32 to vector<8x64xf32>
    %385 = arith.addf %383, %384 : vector<8x64xf32>
    %cst_174 = arith.constant 5.000000e-01 : f32
    %386 = vector.broadcast %cst_174 : f32 to vector<8x64xf32>
    %387 = arith.mulf %386, %385 : vector<8x64xf32>
    %388 = vector.extract_strided_slice %387 {offsets = [0, 0], sizes = [8, 32], strides = [1, 1]} : vector<8x64xf32> to vector<8x32xf32>
    %389 = vector.extract_strided_slice %387 {offsets = [0, 32], sizes = [8, 32], strides = [1, 1]} : vector<8x64xf32> to vector<8x32xf32>
    %390 = arith.addf %379, %38 : vector<8x32xf32>
    %391 = arith.mulf %388, %390 : vector<8x32xf32>
    %392 = arith.addf %377, %391 : vector<8x32xf32>
    %393 = math.tanh %392 : vector<8x32xf32>
    %394 = arith.subf %375, %393 : vector<8x32xf32>
    %395 = arith.mulf %389, %394 : vector<8x32xf32>
    %396 = arith.addf %393, %395 : vector<8x32xf32>
    %c136 = arith.constant 136 : index
    %c0_175 = arith.constant 0 : index
    %397 = vector.load %arg23[%c136, %c0_175] : memref<288x64xf32, #tpu.memory_space<vmem>>, vector<8x64xf32>
    %c136_176 = arith.constant 136 : index
    %c0_177 = arith.constant 0 : index
    %398 = vector.load %arg24[%c136_176, %c0_177] : memref<288x32xf32, #tpu.memory_space<vmem>>, vector<8x32xf32>
    %cst_178 = arith.constant dense<0.000000e+00> : vector<8x64xf32>
    %399 = tpu.matmul %396, %34, %cst_178 {dimension_numbers = #tpu.dot_dimension_numbers<[1], [0], [0], [1], [0, 0, 1, 1], [], []>} : vector<8x32xf32>, vector<32x64xf32>, vector<8x64xf32> -> vector<8x64xf32>
    %cst_179 = arith.constant dense<0.000000e+00> : vector<8x32xf32>
    %400 = tpu.matmul %396, %35, %cst_179 {dimension_numbers = #tpu.dot_dimension_numbers<[1], [0], [0], [1], [0, 0, 1, 1], [], []>} : vector<8x32xf32>, vector<32x32xf32>, vector<8x32xf32> -> vector<8x32xf32>
    %401 = arith.addf %397, %399 : vector<8x64xf32>
    %cst_180 = arith.constant 5.000000e-01 : f32
    %402 = vector.broadcast %cst_180 : f32 to vector<8x64xf32>
    %403 = arith.mulf %402, %401 : vector<8x64xf32>
    %404 = math.tanh %403 : vector<8x64xf32>
    %cst_181 = arith.constant 1.000000e+00 : f32
    %405 = vector.broadcast %cst_181 : f32 to vector<8x64xf32>
    %406 = arith.addf %404, %405 : vector<8x64xf32>
    %cst_182 = arith.constant 5.000000e-01 : f32
    %407 = vector.broadcast %cst_182 : f32 to vector<8x64xf32>
    %408 = arith.mulf %407, %406 : vector<8x64xf32>
    %409 = vector.extract_strided_slice %408 {offsets = [0, 0], sizes = [8, 32], strides = [1, 1]} : vector<8x64xf32> to vector<8x32xf32>
    %410 = vector.extract_strided_slice %408 {offsets = [0, 32], sizes = [8, 32], strides = [1, 1]} : vector<8x64xf32> to vector<8x32xf32>
    %411 = arith.addf %400, %38 : vector<8x32xf32>
    %412 = arith.mulf %409, %411 : vector<8x32xf32>
    %413 = arith.addf %398, %412 : vector<8x32xf32>
    %414 = math.tanh %413 : vector<8x32xf32>
    %415 = arith.subf %396, %414 : vector<8x32xf32>
    %416 = arith.mulf %410, %415 : vector<8x32xf32>
    %417 = arith.addf %414, %416 : vector<8x32xf32>
    %c144 = arith.constant 144 : index
    %c0_183 = arith.constant 0 : index
    %418 = vector.load %arg23[%c144, %c0_183] : memref<288x64xf32, #tpu.memory_space<vmem>>, vector<8x64xf32>
    %c144_184 = arith.constant 144 : index
    %c0_185 = arith.constant 0 : index
    %419 = vector.load %arg24[%c144_184, %c0_185] : memref<288x32xf32, #tpu.memory_space<vmem>>, vector<8x32xf32>
    %cst_186 = arith.constant dense<0.000000e+00> : vector<8x64xf32>
    %420 = tpu.matmul %417, %34, %cst_186 {dimension_numbers = #tpu.dot_dimension_numbers<[1], [0], [0], [1], [0, 0, 1, 1], [], []>} : vector<8x32xf32>, vector<32x64xf32>, vector<8x64xf32> -> vector<8x64xf32>
    %cst_187 = arith.constant dense<0.000000e+00> : vector<8x32xf32>
    %421 = tpu.matmul %417, %35, %cst_187 {dimension_numbers = #tpu.dot_dimension_numbers<[1], [0], [0], [1], [0, 0, 1, 1], [], []>} : vector<8x32xf32>, vector<32x32xf32>, vector<8x32xf32> -> vector<8x32xf32>
    %422 = arith.addf %418, %420 : vector<8x64xf32>
    %cst_188 = arith.constant 5.000000e-01 : f32
    %423 = vector.broadcast %cst_188 : f32 to vector<8x64xf32>
    %424 = arith.mulf %423, %422 : vector<8x64xf32>
    %425 = math.tanh %424 : vector<8x64xf32>
    %cst_189 = arith.constant 1.000000e+00 : f32
    %426 = vector.broadcast %cst_189 : f32 to vector<8x64xf32>
    %427 = arith.addf %425, %426 : vector<8x64xf32>
    %cst_190 = arith.constant 5.000000e-01 : f32
    %428 = vector.broadcast %cst_190 : f32 to vector<8x64xf32>
    %429 = arith.mulf %428, %427 : vector<8x64xf32>
    %430 = vector.extract_strided_slice %429 {offsets = [0, 0], sizes = [8, 32], strides = [1, 1]} : vector<8x64xf32> to vector<8x32xf32>
    %431 = vector.extract_strided_slice %429 {offsets = [0, 32], sizes = [8, 32], strides = [1, 1]} : vector<8x64xf32> to vector<8x32xf32>
    %432 = arith.addf %421, %38 : vector<8x32xf32>
    %433 = arith.mulf %430, %432 : vector<8x32xf32>
    %434 = arith.addf %419, %433 : vector<8x32xf32>
    %435 = math.tanh %434 : vector<8x32xf32>
    %436 = arith.subf %417, %435 : vector<8x32xf32>
    %437 = arith.mulf %431, %436 : vector<8x32xf32>
    %438 = arith.addf %435, %437 : vector<8x32xf32>
    %c152 = arith.constant 152 : index
    %c0_191 = arith.constant 0 : index
    %439 = vector.load %arg23[%c152, %c0_191] : memref<288x64xf32, #tpu.memory_space<vmem>>, vector<8x64xf32>
    %c152_192 = arith.constant 152 : index
    %c0_193 = arith.constant 0 : index
    %440 = vector.load %arg24[%c152_192, %c0_193] : memref<288x32xf32, #tpu.memory_space<vmem>>, vector<8x32xf32>
    %cst_194 = arith.constant dense<0.000000e+00> : vector<8x64xf32>
    %441 = tpu.matmul %438, %34, %cst_194 {dimension_numbers = #tpu.dot_dimension_numbers<[1], [0], [0], [1], [0, 0, 1, 1], [], []>} : vector<8x32xf32>, vector<32x64xf32>, vector<8x64xf32> -> vector<8x64xf32>
    %cst_195 = arith.constant dense<0.000000e+00> : vector<8x32xf32>
    %442 = tpu.matmul %438, %35, %cst_195 {dimension_numbers = #tpu.dot_dimension_numbers<[1], [0], [0], [1], [0, 0, 1, 1], [], []>} : vector<8x32xf32>, vector<32x32xf32>, vector<8x32xf32> -> vector<8x32xf32>
    %443 = arith.addf %439, %441 : vector<8x64xf32>
    %cst_196 = arith.constant 5.000000e-01 : f32
    %444 = vector.broadcast %cst_196 : f32 to vector<8x64xf32>
    %445 = arith.mulf %444, %443 : vector<8x64xf32>
    %446 = math.tanh %445 : vector<8x64xf32>
    %cst_197 = arith.constant 1.000000e+00 : f32
    %447 = vector.broadcast %cst_197 : f32 to vector<8x64xf32>
    %448 = arith.addf %446, %447 : vector<8x64xf32>
    %cst_198 = arith.constant 5.000000e-01 : f32
    %449 = vector.broadcast %cst_198 : f32 to vector<8x64xf32>
    %450 = arith.mulf %449, %448 : vector<8x64xf32>
    %451 = vector.extract_strided_slice %450 {offsets = [0, 0], sizes = [8, 32], strides = [1, 1]} : vector<8x64xf32> to vector<8x32xf32>
    %452 = vector.extract_strided_slice %450 {offsets = [0, 32], sizes = [8, 32], strides = [1, 1]} : vector<8x64xf32> to vector<8x32xf32>
    %453 = arith.addf %442, %38 : vector<8x32xf32>
    %454 = arith.mulf %451, %453 : vector<8x32xf32>
    %455 = arith.addf %440, %454 : vector<8x32xf32>
    %456 = math.tanh %455 : vector<8x32xf32>
    %457 = arith.subf %438, %456 : vector<8x32xf32>
    %458 = arith.mulf %452, %457 : vector<8x32xf32>
    %459 = arith.addf %456, %458 : vector<8x32xf32>
    %c160 = arith.constant 160 : index
    %c0_199 = arith.constant 0 : index
    %460 = vector.load %arg23[%c160, %c0_199] : memref<288x64xf32, #tpu.memory_space<vmem>>, vector<8x64xf32>
    %c160_200 = arith.constant 160 : index
    %c0_201 = arith.constant 0 : index
    %461 = vector.load %arg24[%c160_200, %c0_201] : memref<288x32xf32, #tpu.memory_space<vmem>>, vector<8x32xf32>
    %cst_202 = arith.constant dense<0.000000e+00> : vector<8x64xf32>
    %462 = tpu.matmul %459, %34, %cst_202 {dimension_numbers = #tpu.dot_dimension_numbers<[1], [0], [0], [1], [0, 0, 1, 1], [], []>} : vector<8x32xf32>, vector<32x64xf32>, vector<8x64xf32> -> vector<8x64xf32>
    %cst_203 = arith.constant dense<0.000000e+00> : vector<8x32xf32>
    %463 = tpu.matmul %459, %35, %cst_203 {dimension_numbers = #tpu.dot_dimension_numbers<[1], [0], [0], [1], [0, 0, 1, 1], [], []>} : vector<8x32xf32>, vector<32x32xf32>, vector<8x32xf32> -> vector<8x32xf32>
    %464 = arith.addf %460, %462 : vector<8x64xf32>
    %cst_204 = arith.constant 5.000000e-01 : f32
    %465 = vector.broadcast %cst_204 : f32 to vector<8x64xf32>
    %466 = arith.mulf %465, %464 : vector<8x64xf32>
    %467 = math.tanh %466 : vector<8x64xf32>
    %cst_205 = arith.constant 1.000000e+00 : f32
    %468 = vector.broadcast %cst_205 : f32 to vector<8x64xf32>
    %469 = arith.addf %467, %468 : vector<8x64xf32>
    %cst_206 = arith.constant 5.000000e-01 : f32
    %470 = vector.broadcast %cst_206 : f32 to vector<8x64xf32>
    %471 = arith.mulf %470, %469 : vector<8x64xf32>
    %472 = vector.extract_strided_slice %471 {offsets = [0, 0], sizes = [8, 32], strides = [1, 1]} : vector<8x64xf32> to vector<8x32xf32>
    %473 = vector.extract_strided_slice %471 {offsets = [0, 32], sizes = [8, 32], strides = [1, 1]} : vector<8x64xf32> to vector<8x32xf32>
    %474 = arith.addf %463, %38 : vector<8x32xf32>
    %475 = arith.mulf %472, %474 : vector<8x32xf32>
    %476 = arith.addf %461, %475 : vector<8x32xf32>
    %477 = math.tanh %476 : vector<8x32xf32>
    %478 = arith.subf %459, %477 : vector<8x32xf32>
    %479 = arith.mulf %473, %478 : vector<8x32xf32>
    %480 = arith.addf %477, %479 : vector<8x32xf32>
    %c168 = arith.constant 168 : index
    %c0_207 = arith.constant 0 : index
    %481 = vector.load %arg23[%c168, %c0_207] : memref<288x64xf32, #tpu.memory_space<vmem>>, vector<8x64xf32>
    %c168_208 = arith.constant 168 : index
    %c0_209 = arith.constant 0 : index
    %482 = vector.load %arg24[%c168_208, %c0_209] : memref<288x32xf32, #tpu.memory_space<vmem>>, vector<8x32xf32>
    %cst_210 = arith.constant dense<0.000000e+00> : vector<8x64xf32>
    %483 = tpu.matmul %480, %34, %cst_210 {dimension_numbers = #tpu.dot_dimension_numbers<[1], [0], [0], [1], [0, 0, 1, 1], [], []>} : vector<8x32xf32>, vector<32x64xf32>, vector<8x64xf32> -> vector<8x64xf32>
    %cst_211 = arith.constant dense<0.000000e+00> : vector<8x32xf32>
    %484 = tpu.matmul %480, %35, %cst_211 {dimension_numbers = #tpu.dot_dimension_numbers<[1], [0], [0], [1], [0, 0, 1, 1], [], []>} : vector<8x32xf32>, vector<32x32xf32>, vector<8x32xf32> -> vector<8x32xf32>
    %485 = arith.addf %481, %483 : vector<8x64xf32>
    %cst_212 = arith.constant 5.000000e-01 : f32
    %486 = vector.broadcast %cst_212 : f32 to vector<8x64xf32>
    %487 = arith.mulf %486, %485 : vector<8x64xf32>
    %488 = math.tanh %487 : vector<8x64xf32>
    %cst_213 = arith.constant 1.000000e+00 : f32
    %489 = vector.broadcast %cst_213 : f32 to vector<8x64xf32>
    %490 = arith.addf %488, %489 : vector<8x64xf32>
    %cst_214 = arith.constant 5.000000e-01 : f32
    %491 = vector.broadcast %cst_214 : f32 to vector<8x64xf32>
    %492 = arith.mulf %491, %490 : vector<8x64xf32>
    %493 = vector.extract_strided_slice %492 {offsets = [0, 0], sizes = [8, 32], strides = [1, 1]} : vector<8x64xf32> to vector<8x32xf32>
    %494 = vector.extract_strided_slice %492 {offsets = [0, 32], sizes = [8, 32], strides = [1, 1]} : vector<8x64xf32> to vector<8x32xf32>
    %495 = arith.addf %484, %38 : vector<8x32xf32>
    %496 = arith.mulf %493, %495 : vector<8x32xf32>
    %497 = arith.addf %482, %496 : vector<8x32xf32>
    %498 = math.tanh %497 : vector<8x32xf32>
    %499 = arith.subf %480, %498 : vector<8x32xf32>
    %500 = arith.mulf %494, %499 : vector<8x32xf32>
    %501 = arith.addf %498, %500 : vector<8x32xf32>
    %c176 = arith.constant 176 : index
    %c0_215 = arith.constant 0 : index
    %502 = vector.load %arg23[%c176, %c0_215] : memref<288x64xf32, #tpu.memory_space<vmem>>, vector<8x64xf32>
    %c176_216 = arith.constant 176 : index
    %c0_217 = arith.constant 0 : index
    %503 = vector.load %arg24[%c176_216, %c0_217] : memref<288x32xf32, #tpu.memory_space<vmem>>, vector<8x32xf32>
    %cst_218 = arith.constant dense<0.000000e+00> : vector<8x64xf32>
    %504 = tpu.matmul %501, %34, %cst_218 {dimension_numbers = #tpu.dot_dimension_numbers<[1], [0], [0], [1], [0, 0, 1, 1], [], []>} : vector<8x32xf32>, vector<32x64xf32>, vector<8x64xf32> -> vector<8x64xf32>
    %cst_219 = arith.constant dense<0.000000e+00> : vector<8x32xf32>
    %505 = tpu.matmul %501, %35, %cst_219 {dimension_numbers = #tpu.dot_dimension_numbers<[1], [0], [0], [1], [0, 0, 1, 1], [], []>} : vector<8x32xf32>, vector<32x32xf32>, vector<8x32xf32> -> vector<8x32xf32>
    %506 = arith.addf %502, %504 : vector<8x64xf32>
    %cst_220 = arith.constant 5.000000e-01 : f32
    %507 = vector.broadcast %cst_220 : f32 to vector<8x64xf32>
    %508 = arith.mulf %507, %506 : vector<8x64xf32>
    %509 = math.tanh %508 : vector<8x64xf32>
    %cst_221 = arith.constant 1.000000e+00 : f32
    %510 = vector.broadcast %cst_221 : f32 to vector<8x64xf32>
    %511 = arith.addf %509, %510 : vector<8x64xf32>
    %cst_222 = arith.constant 5.000000e-01 : f32
    %512 = vector.broadcast %cst_222 : f32 to vector<8x64xf32>
    %513 = arith.mulf %512, %511 : vector<8x64xf32>
    %514 = vector.extract_strided_slice %513 {offsets = [0, 0], sizes = [8, 32], strides = [1, 1]} : vector<8x64xf32> to vector<8x32xf32>
    %515 = vector.extract_strided_slice %513 {offsets = [0, 32], sizes = [8, 32], strides = [1, 1]} : vector<8x64xf32> to vector<8x32xf32>
    %516 = arith.addf %505, %38 : vector<8x32xf32>
    %517 = arith.mulf %514, %516 : vector<8x32xf32>
    %518 = arith.addf %503, %517 : vector<8x32xf32>
    %519 = math.tanh %518 : vector<8x32xf32>
    %520 = arith.subf %501, %519 : vector<8x32xf32>
    %521 = arith.mulf %515, %520 : vector<8x32xf32>
    %522 = arith.addf %519, %521 : vector<8x32xf32>
    %c184 = arith.constant 184 : index
    %c0_223 = arith.constant 0 : index
    %523 = vector.load %arg23[%c184, %c0_223] : memref<288x64xf32, #tpu.memory_space<vmem>>, vector<8x64xf32>
    %c184_224 = arith.constant 184 : index
    %c0_225 = arith.constant 0 : index
    %524 = vector.load %arg24[%c184_224, %c0_225] : memref<288x32xf32, #tpu.memory_space<vmem>>, vector<8x32xf32>
    %cst_226 = arith.constant dense<0.000000e+00> : vector<8x64xf32>
    %525 = tpu.matmul %522, %34, %cst_226 {dimension_numbers = #tpu.dot_dimension_numbers<[1], [0], [0], [1], [0, 0, 1, 1], [], []>} : vector<8x32xf32>, vector<32x64xf32>, vector<8x64xf32> -> vector<8x64xf32>
    %cst_227 = arith.constant dense<0.000000e+00> : vector<8x32xf32>
    %526 = tpu.matmul %522, %35, %cst_227 {dimension_numbers = #tpu.dot_dimension_numbers<[1], [0], [0], [1], [0, 0, 1, 1], [], []>} : vector<8x32xf32>, vector<32x32xf32>, vector<8x32xf32> -> vector<8x32xf32>
    %527 = arith.addf %523, %525 : vector<8x64xf32>
    %cst_228 = arith.constant 5.000000e-01 : f32
    %528 = vector.broadcast %cst_228 : f32 to vector<8x64xf32>
    %529 = arith.mulf %528, %527 : vector<8x64xf32>
    %530 = math.tanh %529 : vector<8x64xf32>
    %cst_229 = arith.constant 1.000000e+00 : f32
    %531 = vector.broadcast %cst_229 : f32 to vector<8x64xf32>
    %532 = arith.addf %530, %531 : vector<8x64xf32>
    %cst_230 = arith.constant 5.000000e-01 : f32
    %533 = vector.broadcast %cst_230 : f32 to vector<8x64xf32>
    %534 = arith.mulf %533, %532 : vector<8x64xf32>
    %535 = vector.extract_strided_slice %534 {offsets = [0, 0], sizes = [8, 32], strides = [1, 1]} : vector<8x64xf32> to vector<8x32xf32>
    %536 = vector.extract_strided_slice %534 {offsets = [0, 32], sizes = [8, 32], strides = [1, 1]} : vector<8x64xf32> to vector<8x32xf32>
    %537 = arith.addf %526, %38 : vector<8x32xf32>
    %538 = arith.mulf %535, %537 : vector<8x32xf32>
    %539 = arith.addf %524, %538 : vector<8x32xf32>
    %540 = math.tanh %539 : vector<8x32xf32>
    %541 = arith.subf %522, %540 : vector<8x32xf32>
    %542 = arith.mulf %536, %541 : vector<8x32xf32>
    %543 = arith.addf %540, %542 : vector<8x32xf32>
    %c192 = arith.constant 192 : index
    %c0_231 = arith.constant 0 : index
    %544 = vector.load %arg23[%c192, %c0_231] : memref<288x64xf32, #tpu.memory_space<vmem>>, vector<8x64xf32>
    %c192_232 = arith.constant 192 : index
    %c0_233 = arith.constant 0 : index
    %545 = vector.load %arg24[%c192_232, %c0_233] : memref<288x32xf32, #tpu.memory_space<vmem>>, vector<8x32xf32>
    %cst_234 = arith.constant dense<0.000000e+00> : vector<8x64xf32>
    %546 = tpu.matmul %543, %34, %cst_234 {dimension_numbers = #tpu.dot_dimension_numbers<[1], [0], [0], [1], [0, 0, 1, 1], [], []>} : vector<8x32xf32>, vector<32x64xf32>, vector<8x64xf32> -> vector<8x64xf32>
    %cst_235 = arith.constant dense<0.000000e+00> : vector<8x32xf32>
    %547 = tpu.matmul %543, %35, %cst_235 {dimension_numbers = #tpu.dot_dimension_numbers<[1], [0], [0], [1], [0, 0, 1, 1], [], []>} : vector<8x32xf32>, vector<32x32xf32>, vector<8x32xf32> -> vector<8x32xf32>
    %548 = arith.addf %544, %546 : vector<8x64xf32>
    %cst_236 = arith.constant 5.000000e-01 : f32
    %549 = vector.broadcast %cst_236 : f32 to vector<8x64xf32>
    %550 = arith.mulf %549, %548 : vector<8x64xf32>
    %551 = math.tanh %550 : vector<8x64xf32>
    %cst_237 = arith.constant 1.000000e+00 : f32
    %552 = vector.broadcast %cst_237 : f32 to vector<8x64xf32>
    %553 = arith.addf %551, %552 : vector<8x64xf32>
    %cst_238 = arith.constant 5.000000e-01 : f32
    %554 = vector.broadcast %cst_238 : f32 to vector<8x64xf32>
    %555 = arith.mulf %554, %553 : vector<8x64xf32>
    %556 = vector.extract_strided_slice %555 {offsets = [0, 0], sizes = [8, 32], strides = [1, 1]} : vector<8x64xf32> to vector<8x32xf32>
    %557 = vector.extract_strided_slice %555 {offsets = [0, 32], sizes = [8, 32], strides = [1, 1]} : vector<8x64xf32> to vector<8x32xf32>
    %558 = arith.addf %547, %38 : vector<8x32xf32>
    %559 = arith.mulf %556, %558 : vector<8x32xf32>
    %560 = arith.addf %545, %559 : vector<8x32xf32>
    %561 = math.tanh %560 : vector<8x32xf32>
    %562 = arith.subf %543, %561 : vector<8x32xf32>
    %563 = arith.mulf %557, %562 : vector<8x32xf32>
    %564 = arith.addf %561, %563 : vector<8x32xf32>
    %c200 = arith.constant 200 : index
    %c0_239 = arith.constant 0 : index
    %565 = vector.load %arg23[%c200, %c0_239] : memref<288x64xf32, #tpu.memory_space<vmem>>, vector<8x64xf32>
    %c200_240 = arith.constant 200 : index
    %c0_241 = arith.constant 0 : index
    %566 = vector.load %arg24[%c200_240, %c0_241] : memref<288x32xf32, #tpu.memory_space<vmem>>, vector<8x32xf32>
    %cst_242 = arith.constant dense<0.000000e+00> : vector<8x64xf32>
    %567 = tpu.matmul %564, %34, %cst_242 {dimension_numbers = #tpu.dot_dimension_numbers<[1], [0], [0], [1], [0, 0, 1, 1], [], []>} : vector<8x32xf32>, vector<32x64xf32>, vector<8x64xf32> -> vector<8x64xf32>
    %cst_243 = arith.constant dense<0.000000e+00> : vector<8x32xf32>
    %568 = tpu.matmul %564, %35, %cst_243 {dimension_numbers = #tpu.dot_dimension_numbers<[1], [0], [0], [1], [0, 0, 1, 1], [], []>} : vector<8x32xf32>, vector<32x32xf32>, vector<8x32xf32> -> vector<8x32xf32>
    %569 = arith.addf %565, %567 : vector<8x64xf32>
    %cst_244 = arith.constant 5.000000e-01 : f32
    %570 = vector.broadcast %cst_244 : f32 to vector<8x64xf32>
    %571 = arith.mulf %570, %569 : vector<8x64xf32>
    %572 = math.tanh %571 : vector<8x64xf32>
    %cst_245 = arith.constant 1.000000e+00 : f32
    %573 = vector.broadcast %cst_245 : f32 to vector<8x64xf32>
    %574 = arith.addf %572, %573 : vector<8x64xf32>
    %cst_246 = arith.constant 5.000000e-01 : f32
    %575 = vector.broadcast %cst_246 : f32 to vector<8x64xf32>
    %576 = arith.mulf %575, %574 : vector<8x64xf32>
    %577 = vector.extract_strided_slice %576 {offsets = [0, 0], sizes = [8, 32], strides = [1, 1]} : vector<8x64xf32> to vector<8x32xf32>
    %578 = vector.extract_strided_slice %576 {offsets = [0, 32], sizes = [8, 32], strides = [1, 1]} : vector<8x64xf32> to vector<8x32xf32>
    %579 = arith.addf %568, %38 : vector<8x32xf32>
    %580 = arith.mulf %577, %579 : vector<8x32xf32>
    %581 = arith.addf %566, %580 : vector<8x32xf32>
    %582 = math.tanh %581 : vector<8x32xf32>
    %583 = arith.subf %564, %582 : vector<8x32xf32>
    %584 = arith.mulf %578, %583 : vector<8x32xf32>
    %585 = arith.addf %582, %584 : vector<8x32xf32>
    %c208 = arith.constant 208 : index
    %c0_247 = arith.constant 0 : index
    %586 = vector.load %arg23[%c208, %c0_247] : memref<288x64xf32, #tpu.memory_space<vmem>>, vector<8x64xf32>
    %c208_248 = arith.constant 208 : index
    %c0_249 = arith.constant 0 : index
    %587 = vector.load %arg24[%c208_248, %c0_249] : memref<288x32xf32, #tpu.memory_space<vmem>>, vector<8x32xf32>
    %cst_250 = arith.constant dense<0.000000e+00> : vector<8x64xf32>
    %588 = tpu.matmul %585, %34, %cst_250 {dimension_numbers = #tpu.dot_dimension_numbers<[1], [0], [0], [1], [0, 0, 1, 1], [], []>} : vector<8x32xf32>, vector<32x64xf32>, vector<8x64xf32> -> vector<8x64xf32>
    %cst_251 = arith.constant dense<0.000000e+00> : vector<8x32xf32>
    %589 = tpu.matmul %585, %35, %cst_251 {dimension_numbers = #tpu.dot_dimension_numbers<[1], [0], [0], [1], [0, 0, 1, 1], [], []>} : vector<8x32xf32>, vector<32x32xf32>, vector<8x32xf32> -> vector<8x32xf32>
    %590 = arith.addf %586, %588 : vector<8x64xf32>
    %cst_252 = arith.constant 5.000000e-01 : f32
    %591 = vector.broadcast %cst_252 : f32 to vector<8x64xf32>
    %592 = arith.mulf %591, %590 : vector<8x64xf32>
    %593 = math.tanh %592 : vector<8x64xf32>
    %cst_253 = arith.constant 1.000000e+00 : f32
    %594 = vector.broadcast %cst_253 : f32 to vector<8x64xf32>
    %595 = arith.addf %593, %594 : vector<8x64xf32>
    %cst_254 = arith.constant 5.000000e-01 : f32
    %596 = vector.broadcast %cst_254 : f32 to vector<8x64xf32>
    %597 = arith.mulf %596, %595 : vector<8x64xf32>
    %598 = vector.extract_strided_slice %597 {offsets = [0, 0], sizes = [8, 32], strides = [1, 1]} : vector<8x64xf32> to vector<8x32xf32>
    %599 = vector.extract_strided_slice %597 {offsets = [0, 32], sizes = [8, 32], strides = [1, 1]} : vector<8x64xf32> to vector<8x32xf32>
    %600 = arith.addf %589, %38 : vector<8x32xf32>
    %601 = arith.mulf %598, %600 : vector<8x32xf32>
    %602 = arith.addf %587, %601 : vector<8x32xf32>
    %603 = math.tanh %602 : vector<8x32xf32>
    %604 = arith.subf %585, %603 : vector<8x32xf32>
    %605 = arith.mulf %599, %604 : vector<8x32xf32>
    %606 = arith.addf %603, %605 : vector<8x32xf32>
    %c216 = arith.constant 216 : index
    %c0_255 = arith.constant 0 : index
    %607 = vector.load %arg23[%c216, %c0_255] : memref<288x64xf32, #tpu.memory_space<vmem>>, vector<8x64xf32>
    %c216_256 = arith.constant 216 : index
    %c0_257 = arith.constant 0 : index
    %608 = vector.load %arg24[%c216_256, %c0_257] : memref<288x32xf32, #tpu.memory_space<vmem>>, vector<8x32xf32>
    %cst_258 = arith.constant dense<0.000000e+00> : vector<8x64xf32>
    %609 = tpu.matmul %606, %34, %cst_258 {dimension_numbers = #tpu.dot_dimension_numbers<[1], [0], [0], [1], [0, 0, 1, 1], [], []>} : vector<8x32xf32>, vector<32x64xf32>, vector<8x64xf32> -> vector<8x64xf32>
    %cst_259 = arith.constant dense<0.000000e+00> : vector<8x32xf32>
    %610 = tpu.matmul %606, %35, %cst_259 {dimension_numbers = #tpu.dot_dimension_numbers<[1], [0], [0], [1], [0, 0, 1, 1], [], []>} : vector<8x32xf32>, vector<32x32xf32>, vector<8x32xf32> -> vector<8x32xf32>
    %611 = arith.addf %607, %609 : vector<8x64xf32>
    %cst_260 = arith.constant 5.000000e-01 : f32
    %612 = vector.broadcast %cst_260 : f32 to vector<8x64xf32>
    %613 = arith.mulf %612, %611 : vector<8x64xf32>
    %614 = math.tanh %613 : vector<8x64xf32>
    %cst_261 = arith.constant 1.000000e+00 : f32
    %615 = vector.broadcast %cst_261 : f32 to vector<8x64xf32>
    %616 = arith.addf %614, %615 : vector<8x64xf32>
    %cst_262 = arith.constant 5.000000e-01 : f32
    %617 = vector.broadcast %cst_262 : f32 to vector<8x64xf32>
    %618 = arith.mulf %617, %616 : vector<8x64xf32>
    %619 = vector.extract_strided_slice %618 {offsets = [0, 0], sizes = [8, 32], strides = [1, 1]} : vector<8x64xf32> to vector<8x32xf32>
    %620 = vector.extract_strided_slice %618 {offsets = [0, 32], sizes = [8, 32], strides = [1, 1]} : vector<8x64xf32> to vector<8x32xf32>
    %621 = arith.addf %610, %38 : vector<8x32xf32>
    %622 = arith.mulf %619, %621 : vector<8x32xf32>
    %623 = arith.addf %608, %622 : vector<8x32xf32>
    %624 = math.tanh %623 : vector<8x32xf32>
    %625 = arith.subf %606, %624 : vector<8x32xf32>
    %626 = arith.mulf %620, %625 : vector<8x32xf32>
    %627 = arith.addf %624, %626 : vector<8x32xf32>
    %c224 = arith.constant 224 : index
    %c0_263 = arith.constant 0 : index
    %628 = vector.load %arg23[%c224, %c0_263] : memref<288x64xf32, #tpu.memory_space<vmem>>, vector<8x64xf32>
    %c224_264 = arith.constant 224 : index
    %c0_265 = arith.constant 0 : index
    %629 = vector.load %arg24[%c224_264, %c0_265] : memref<288x32xf32, #tpu.memory_space<vmem>>, vector<8x32xf32>
    %cst_266 = arith.constant dense<0.000000e+00> : vector<8x64xf32>
    %630 = tpu.matmul %627, %34, %cst_266 {dimension_numbers = #tpu.dot_dimension_numbers<[1], [0], [0], [1], [0, 0, 1, 1], [], []>} : vector<8x32xf32>, vector<32x64xf32>, vector<8x64xf32> -> vector<8x64xf32>
    %cst_267 = arith.constant dense<0.000000e+00> : vector<8x32xf32>
    %631 = tpu.matmul %627, %35, %cst_267 {dimension_numbers = #tpu.dot_dimension_numbers<[1], [0], [0], [1], [0, 0, 1, 1], [], []>} : vector<8x32xf32>, vector<32x32xf32>, vector<8x32xf32> -> vector<8x32xf32>
    %632 = arith.addf %628, %630 : vector<8x64xf32>
    %cst_268 = arith.constant 5.000000e-01 : f32
    %633 = vector.broadcast %cst_268 : f32 to vector<8x64xf32>
    %634 = arith.mulf %633, %632 : vector<8x64xf32>
    %635 = math.tanh %634 : vector<8x64xf32>
    %cst_269 = arith.constant 1.000000e+00 : f32
    %636 = vector.broadcast %cst_269 : f32 to vector<8x64xf32>
    %637 = arith.addf %635, %636 : vector<8x64xf32>
    %cst_270 = arith.constant 5.000000e-01 : f32
    %638 = vector.broadcast %cst_270 : f32 to vector<8x64xf32>
    %639 = arith.mulf %638, %637 : vector<8x64xf32>
    %640 = vector.extract_strided_slice %639 {offsets = [0, 0], sizes = [8, 32], strides = [1, 1]} : vector<8x64xf32> to vector<8x32xf32>
    %641 = vector.extract_strided_slice %639 {offsets = [0, 32], sizes = [8, 32], strides = [1, 1]} : vector<8x64xf32> to vector<8x32xf32>
    %642 = arith.addf %631, %38 : vector<8x32xf32>
    %643 = arith.mulf %640, %642 : vector<8x32xf32>
    %644 = arith.addf %629, %643 : vector<8x32xf32>
    %645 = math.tanh %644 : vector<8x32xf32>
    %646 = arith.subf %627, %645 : vector<8x32xf32>
    %647 = arith.mulf %641, %646 : vector<8x32xf32>
    %648 = arith.addf %645, %647 : vector<8x32xf32>
    %c232 = arith.constant 232 : index
    %c0_271 = arith.constant 0 : index
    %649 = vector.load %arg23[%c232, %c0_271] : memref<288x64xf32, #tpu.memory_space<vmem>>, vector<8x64xf32>
    %c232_272 = arith.constant 232 : index
    %c0_273 = arith.constant 0 : index
    %650 = vector.load %arg24[%c232_272, %c0_273] : memref<288x32xf32, #tpu.memory_space<vmem>>, vector<8x32xf32>
    %cst_274 = arith.constant dense<0.000000e+00> : vector<8x64xf32>
    %651 = tpu.matmul %648, %34, %cst_274 {dimension_numbers = #tpu.dot_dimension_numbers<[1], [0], [0], [1], [0, 0, 1, 1], [], []>} : vector<8x32xf32>, vector<32x64xf32>, vector<8x64xf32> -> vector<8x64xf32>
    %cst_275 = arith.constant dense<0.000000e+00> : vector<8x32xf32>
    %652 = tpu.matmul %648, %35, %cst_275 {dimension_numbers = #tpu.dot_dimension_numbers<[1], [0], [0], [1], [0, 0, 1, 1], [], []>} : vector<8x32xf32>, vector<32x32xf32>, vector<8x32xf32> -> vector<8x32xf32>
    %653 = arith.addf %649, %651 : vector<8x64xf32>
    %cst_276 = arith.constant 5.000000e-01 : f32
    %654 = vector.broadcast %cst_276 : f32 to vector<8x64xf32>
    %655 = arith.mulf %654, %653 : vector<8x64xf32>
    %656 = math.tanh %655 : vector<8x64xf32>
    %cst_277 = arith.constant 1.000000e+00 : f32
    %657 = vector.broadcast %cst_277 : f32 to vector<8x64xf32>
    %658 = arith.addf %656, %657 : vector<8x64xf32>
    %cst_278 = arith.constant 5.000000e-01 : f32
    %659 = vector.broadcast %cst_278 : f32 to vector<8x64xf32>
    %660 = arith.mulf %659, %658 : vector<8x64xf32>
    %661 = vector.extract_strided_slice %660 {offsets = [0, 0], sizes = [8, 32], strides = [1, 1]} : vector<8x64xf32> to vector<8x32xf32>
    %662 = vector.extract_strided_slice %660 {offsets = [0, 32], sizes = [8, 32], strides = [1, 1]} : vector<8x64xf32> to vector<8x32xf32>
    %663 = arith.addf %652, %38 : vector<8x32xf32>
    %664 = arith.mulf %661, %663 : vector<8x32xf32>
    %665 = arith.addf %650, %664 : vector<8x32xf32>
    %666 = math.tanh %665 : vector<8x32xf32>
    %667 = arith.subf %648, %666 : vector<8x32xf32>
    %668 = arith.mulf %662, %667 : vector<8x32xf32>
    %669 = arith.addf %666, %668 : vector<8x32xf32>
    %c240 = arith.constant 240 : index
    %c0_279 = arith.constant 0 : index
    %670 = vector.load %arg23[%c240, %c0_279] : memref<288x64xf32, #tpu.memory_space<vmem>>, vector<8x64xf32>
    %c240_280 = arith.constant 240 : index
    %c0_281 = arith.constant 0 : index
    %671 = vector.load %arg24[%c240_280, %c0_281] : memref<288x32xf32, #tpu.memory_space<vmem>>, vector<8x32xf32>
    %cst_282 = arith.constant dense<0.000000e+00> : vector<8x64xf32>
    %672 = tpu.matmul %669, %34, %cst_282 {dimension_numbers = #tpu.dot_dimension_numbers<[1], [0], [0], [1], [0, 0, 1, 1], [], []>} : vector<8x32xf32>, vector<32x64xf32>, vector<8x64xf32> -> vector<8x64xf32>
    %cst_283 = arith.constant dense<0.000000e+00> : vector<8x32xf32>
    %673 = tpu.matmul %669, %35, %cst_283 {dimension_numbers = #tpu.dot_dimension_numbers<[1], [0], [0], [1], [0, 0, 1, 1], [], []>} : vector<8x32xf32>, vector<32x32xf32>, vector<8x32xf32> -> vector<8x32xf32>
    %674 = arith.addf %670, %672 : vector<8x64xf32>
    %cst_284 = arith.constant 5.000000e-01 : f32
    %675 = vector.broadcast %cst_284 : f32 to vector<8x64xf32>
    %676 = arith.mulf %675, %674 : vector<8x64xf32>
    %677 = math.tanh %676 : vector<8x64xf32>
    %cst_285 = arith.constant 1.000000e+00 : f32
    %678 = vector.broadcast %cst_285 : f32 to vector<8x64xf32>
    %679 = arith.addf %677, %678 : vector<8x64xf32>
    %cst_286 = arith.constant 5.000000e-01 : f32
    %680 = vector.broadcast %cst_286 : f32 to vector<8x64xf32>
    %681 = arith.mulf %680, %679 : vector<8x64xf32>
    %682 = vector.extract_strided_slice %681 {offsets = [0, 0], sizes = [8, 32], strides = [1, 1]} : vector<8x64xf32> to vector<8x32xf32>
    %683 = vector.extract_strided_slice %681 {offsets = [0, 32], sizes = [8, 32], strides = [1, 1]} : vector<8x64xf32> to vector<8x32xf32>
    %684 = arith.addf %673, %38 : vector<8x32xf32>
    %685 = arith.mulf %682, %684 : vector<8x32xf32>
    %686 = arith.addf %671, %685 : vector<8x32xf32>
    %687 = math.tanh %686 : vector<8x32xf32>
    %688 = arith.subf %669, %687 : vector<8x32xf32>
    %689 = arith.mulf %683, %688 : vector<8x32xf32>
    %690 = arith.addf %687, %689 : vector<8x32xf32>
    %c248 = arith.constant 248 : index
    %c0_287 = arith.constant 0 : index
    %691 = vector.load %arg23[%c248, %c0_287] : memref<288x64xf32, #tpu.memory_space<vmem>>, vector<8x64xf32>
    %c248_288 = arith.constant 248 : index
    %c0_289 = arith.constant 0 : index
    %692 = vector.load %arg24[%c248_288, %c0_289] : memref<288x32xf32, #tpu.memory_space<vmem>>, vector<8x32xf32>
    %cst_290 = arith.constant dense<0.000000e+00> : vector<8x64xf32>
    %693 = tpu.matmul %690, %34, %cst_290 {dimension_numbers = #tpu.dot_dimension_numbers<[1], [0], [0], [1], [0, 0, 1, 1], [], []>} : vector<8x32xf32>, vector<32x64xf32>, vector<8x64xf32> -> vector<8x64xf32>
    %cst_291 = arith.constant dense<0.000000e+00> : vector<8x32xf32>
    %694 = tpu.matmul %690, %35, %cst_291 {dimension_numbers = #tpu.dot_dimension_numbers<[1], [0], [0], [1], [0, 0, 1, 1], [], []>} : vector<8x32xf32>, vector<32x32xf32>, vector<8x32xf32> -> vector<8x32xf32>
    %695 = arith.addf %691, %693 : vector<8x64xf32>
    %cst_292 = arith.constant 5.000000e-01 : f32
    %696 = vector.broadcast %cst_292 : f32 to vector<8x64xf32>
    %697 = arith.mulf %696, %695 : vector<8x64xf32>
    %698 = math.tanh %697 : vector<8x64xf32>
    %cst_293 = arith.constant 1.000000e+00 : f32
    %699 = vector.broadcast %cst_293 : f32 to vector<8x64xf32>
    %700 = arith.addf %698, %699 : vector<8x64xf32>
    %cst_294 = arith.constant 5.000000e-01 : f32
    %701 = vector.broadcast %cst_294 : f32 to vector<8x64xf32>
    %702 = arith.mulf %701, %700 : vector<8x64xf32>
    %703 = vector.extract_strided_slice %702 {offsets = [0, 0], sizes = [8, 32], strides = [1, 1]} : vector<8x64xf32> to vector<8x32xf32>
    %704 = vector.extract_strided_slice %702 {offsets = [0, 32], sizes = [8, 32], strides = [1, 1]} : vector<8x64xf32> to vector<8x32xf32>
    %705 = arith.addf %694, %38 : vector<8x32xf32>
    %706 = arith.mulf %703, %705 : vector<8x32xf32>
    %707 = arith.addf %692, %706 : vector<8x32xf32>
    %708 = math.tanh %707 : vector<8x32xf32>
    %709 = arith.subf %690, %708 : vector<8x32xf32>
    %710 = arith.mulf %704, %709 : vector<8x32xf32>
    %711 = arith.addf %708, %710 : vector<8x32xf32>
    %c256 = arith.constant 256 : index
    %c0_295 = arith.constant 0 : index
    %712 = vector.load %arg23[%c256, %c0_295] : memref<288x64xf32, #tpu.memory_space<vmem>>, vector<8x64xf32>
    %c256_296 = arith.constant 256 : index
    %c0_297 = arith.constant 0 : index
    %713 = vector.load %arg24[%c256_296, %c0_297] : memref<288x32xf32, #tpu.memory_space<vmem>>, vector<8x32xf32>
    %cst_298 = arith.constant dense<0.000000e+00> : vector<8x64xf32>
    %714 = tpu.matmul %711, %34, %cst_298 {dimension_numbers = #tpu.dot_dimension_numbers<[1], [0], [0], [1], [0, 0, 1, 1], [], []>} : vector<8x32xf32>, vector<32x64xf32>, vector<8x64xf32> -> vector<8x64xf32>
    %cst_299 = arith.constant dense<0.000000e+00> : vector<8x32xf32>
    %715 = tpu.matmul %711, %35, %cst_299 {dimension_numbers = #tpu.dot_dimension_numbers<[1], [0], [0], [1], [0, 0, 1, 1], [], []>} : vector<8x32xf32>, vector<32x32xf32>, vector<8x32xf32> -> vector<8x32xf32>
    %716 = arith.addf %712, %714 : vector<8x64xf32>
    %cst_300 = arith.constant 5.000000e-01 : f32
    %717 = vector.broadcast %cst_300 : f32 to vector<8x64xf32>
    %718 = arith.mulf %717, %716 : vector<8x64xf32>
    %719 = math.tanh %718 : vector<8x64xf32>
    %cst_301 = arith.constant 1.000000e+00 : f32
    %720 = vector.broadcast %cst_301 : f32 to vector<8x64xf32>
    %721 = arith.addf %719, %720 : vector<8x64xf32>
    %cst_302 = arith.constant 5.000000e-01 : f32
    %722 = vector.broadcast %cst_302 : f32 to vector<8x64xf32>
    %723 = arith.mulf %722, %721 : vector<8x64xf32>
    %724 = vector.extract_strided_slice %723 {offsets = [0, 0], sizes = [8, 32], strides = [1, 1]} : vector<8x64xf32> to vector<8x32xf32>
    %725 = vector.extract_strided_slice %723 {offsets = [0, 32], sizes = [8, 32], strides = [1, 1]} : vector<8x64xf32> to vector<8x32xf32>
    %726 = arith.addf %715, %38 : vector<8x32xf32>
    %727 = arith.mulf %724, %726 : vector<8x32xf32>
    %728 = arith.addf %713, %727 : vector<8x32xf32>
    %729 = math.tanh %728 : vector<8x32xf32>
    %730 = arith.subf %711, %729 : vector<8x32xf32>
    %731 = arith.mulf %725, %730 : vector<8x32xf32>
    %732 = arith.addf %729, %731 : vector<8x32xf32>
    %c264 = arith.constant 264 : index
    %c0_303 = arith.constant 0 : index
    %733 = vector.load %arg23[%c264, %c0_303] : memref<288x64xf32, #tpu.memory_space<vmem>>, vector<8x64xf32>
    %c264_304 = arith.constant 264 : index
    %c0_305 = arith.constant 0 : index
    %734 = vector.load %arg24[%c264_304, %c0_305] : memref<288x32xf32, #tpu.memory_space<vmem>>, vector<8x32xf32>
    %cst_306 = arith.constant dense<0.000000e+00> : vector<8x64xf32>
    %735 = tpu.matmul %732, %34, %cst_306 {dimension_numbers = #tpu.dot_dimension_numbers<[1], [0], [0], [1], [0, 0, 1, 1], [], []>} : vector<8x32xf32>, vector<32x64xf32>, vector<8x64xf32> -> vector<8x64xf32>
    %cst_307 = arith.constant dense<0.000000e+00> : vector<8x32xf32>
    %736 = tpu.matmul %732, %35, %cst_307 {dimension_numbers = #tpu.dot_dimension_numbers<[1], [0], [0], [1], [0, 0, 1, 1], [], []>} : vector<8x32xf32>, vector<32x32xf32>, vector<8x32xf32> -> vector<8x32xf32>
    %737 = arith.addf %733, %735 : vector<8x64xf32>
    %cst_308 = arith.constant 5.000000e-01 : f32
    %738 = vector.broadcast %cst_308 : f32 to vector<8x64xf32>
    %739 = arith.mulf %738, %737 : vector<8x64xf32>
    %740 = math.tanh %739 : vector<8x64xf32>
    %cst_309 = arith.constant 1.000000e+00 : f32
    %741 = vector.broadcast %cst_309 : f32 to vector<8x64xf32>
    %742 = arith.addf %740, %741 : vector<8x64xf32>
    %cst_310 = arith.constant 5.000000e-01 : f32
    %743 = vector.broadcast %cst_310 : f32 to vector<8x64xf32>
    %744 = arith.mulf %743, %742 : vector<8x64xf32>
    %745 = vector.extract_strided_slice %744 {offsets = [0, 0], sizes = [8, 32], strides = [1, 1]} : vector<8x64xf32> to vector<8x32xf32>
    %746 = vector.extract_strided_slice %744 {offsets = [0, 32], sizes = [8, 32], strides = [1, 1]} : vector<8x64xf32> to vector<8x32xf32>
    %747 = arith.addf %736, %38 : vector<8x32xf32>
    %748 = arith.mulf %745, %747 : vector<8x32xf32>
    %749 = arith.addf %734, %748 : vector<8x32xf32>
    %750 = math.tanh %749 : vector<8x32xf32>
    %751 = arith.subf %732, %750 : vector<8x32xf32>
    %752 = arith.mulf %746, %751 : vector<8x32xf32>
    %753 = arith.addf %750, %752 : vector<8x32xf32>
    %c272 = arith.constant 272 : index
    %c0_311 = arith.constant 0 : index
    %754 = vector.load %arg23[%c272, %c0_311] : memref<288x64xf32, #tpu.memory_space<vmem>>, vector<8x64xf32>
    %c272_312 = arith.constant 272 : index
    %c0_313 = arith.constant 0 : index
    %755 = vector.load %arg24[%c272_312, %c0_313] : memref<288x32xf32, #tpu.memory_space<vmem>>, vector<8x32xf32>
    %cst_314 = arith.constant dense<0.000000e+00> : vector<8x64xf32>
    %756 = tpu.matmul %753, %34, %cst_314 {dimension_numbers = #tpu.dot_dimension_numbers<[1], [0], [0], [1], [0, 0, 1, 1], [], []>} : vector<8x32xf32>, vector<32x64xf32>, vector<8x64xf32> -> vector<8x64xf32>
    %cst_315 = arith.constant dense<0.000000e+00> : vector<8x32xf32>
    %757 = tpu.matmul %753, %35, %cst_315 {dimension_numbers = #tpu.dot_dimension_numbers<[1], [0], [0], [1], [0, 0, 1, 1], [], []>} : vector<8x32xf32>, vector<32x32xf32>, vector<8x32xf32> -> vector<8x32xf32>
    %758 = arith.addf %754, %756 : vector<8x64xf32>
    %cst_316 = arith.constant 5.000000e-01 : f32
    %759 = vector.broadcast %cst_316 : f32 to vector<8x64xf32>
    %760 = arith.mulf %759, %758 : vector<8x64xf32>
    %761 = math.tanh %760 : vector<8x64xf32>
    %cst_317 = arith.constant 1.000000e+00 : f32
    %762 = vector.broadcast %cst_317 : f32 to vector<8x64xf32>
    %763 = arith.addf %761, %762 : vector<8x64xf32>
    %cst_318 = arith.constant 5.000000e-01 : f32
    %764 = vector.broadcast %cst_318 : f32 to vector<8x64xf32>
    %765 = arith.mulf %764, %763 : vector<8x64xf32>
    %766 = vector.extract_strided_slice %765 {offsets = [0, 0], sizes = [8, 32], strides = [1, 1]} : vector<8x64xf32> to vector<8x32xf32>
    %767 = vector.extract_strided_slice %765 {offsets = [0, 32], sizes = [8, 32], strides = [1, 1]} : vector<8x64xf32> to vector<8x32xf32>
    %768 = arith.addf %757, %38 : vector<8x32xf32>
    %769 = arith.mulf %766, %768 : vector<8x32xf32>
    %770 = arith.addf %755, %769 : vector<8x32xf32>
    %771 = math.tanh %770 : vector<8x32xf32>
    %772 = arith.subf %753, %771 : vector<8x32xf32>
    %773 = arith.mulf %767, %772 : vector<8x32xf32>
    %774 = arith.addf %771, %773 : vector<8x32xf32>
    %c280 = arith.constant 280 : index
    %c0_319 = arith.constant 0 : index
    %775 = vector.load %arg23[%c280, %c0_319] : memref<288x64xf32, #tpu.memory_space<vmem>>, vector<8x64xf32>
    %c280_320 = arith.constant 280 : index
    %c0_321 = arith.constant 0 : index
    %776 = vector.load %arg24[%c280_320, %c0_321] : memref<288x32xf32, #tpu.memory_space<vmem>>, vector<8x32xf32>
    %cst_322 = arith.constant dense<0.000000e+00> : vector<8x64xf32>
    %777 = tpu.matmul %774, %34, %cst_322 {dimension_numbers = #tpu.dot_dimension_numbers<[1], [0], [0], [1], [0, 0, 1, 1], [], []>} : vector<8x32xf32>, vector<32x64xf32>, vector<8x64xf32> -> vector<8x64xf32>
    %cst_323 = arith.constant dense<0.000000e+00> : vector<8x32xf32>
    %778 = tpu.matmul %774, %35, %cst_323 {dimension_numbers = #tpu.dot_dimension_numbers<[1], [0], [0], [1], [0, 0, 1, 1], [], []>} : vector<8x32xf32>, vector<32x32xf32>, vector<8x32xf32> -> vector<8x32xf32>
    %779 = arith.addf %775, %777 : vector<8x64xf32>
    %cst_324 = arith.constant 5.000000e-01 : f32
    %780 = vector.broadcast %cst_324 : f32 to vector<8x64xf32>
    %781 = arith.mulf %780, %779 : vector<8x64xf32>
    %782 = math.tanh %781 : vector<8x64xf32>
    %cst_325 = arith.constant 1.000000e+00 : f32
    %783 = vector.broadcast %cst_325 : f32 to vector<8x64xf32>
    %784 = arith.addf %782, %783 : vector<8x64xf32>
    %cst_326 = arith.constant 5.000000e-01 : f32
    %785 = vector.broadcast %cst_326 : f32 to vector<8x64xf32>
    %786 = arith.mulf %785, %784 : vector<8x64xf32>
    %787 = vector.extract_strided_slice %786 {offsets = [0, 0], sizes = [8, 32], strides = [1, 1]} : vector<8x64xf32> to vector<8x32xf32>
    %788 = vector.extract_strided_slice %786 {offsets = [0, 32], sizes = [8, 32], strides = [1, 1]} : vector<8x64xf32> to vector<8x32xf32>
    %789 = arith.addf %778, %38 : vector<8x32xf32>
    %790 = arith.mulf %787, %789 : vector<8x32xf32>
    %791 = arith.addf %776, %790 : vector<8x32xf32>
    %792 = math.tanh %791 : vector<8x32xf32>
    %793 = arith.subf %774, %792 : vector<8x32xf32>
    %794 = arith.mulf %788, %793 : vector<8x32xf32>
    %795 = arith.addf %792, %794 : vector<8x32xf32>
    %c0_327 = arith.constant 0 : index
    %c0_328 = arith.constant 0 : index
    %796 = vector.load %arg12[%c0_327, %c0_328] : memref<8x16xf32, #tpu.memory_space<vmem>>, vector<8x16xf32>
    %c0_329 = arith.constant 0 : index
    %c0_330 = arith.constant 0 : index
    %797 = vector.load %arg13[%c0_329, %c0_330] : memref<8x8xf32, #tpu.memory_space<vmem>>, vector<8x8xf32>
    %c0_331 = arith.constant 0 : index
    %c0_332 = arith.constant 0 : index
    %798 = vector.load %arg16[%c0_331, %c0_332] : memref<1x8xf32, #tpu.memory_space<vmem>>, vector<1x8xf32>
    %799 = vector.shape_cast %798 : vector<1x8xf32> to vector<1x8xf32>
    %800 = vector.broadcast %799 : vector<1x8xf32> to vector<8x8xf32>
    %cst_333 = arith.constant 0.000000e+00 : f32
    %801 = vector.broadcast %cst_333 : f32 to vector<8x8xf32>
    %c0_334 = arith.constant 0 : index
    %c0_335 = arith.constant 0 : index
    %802 = vector.load %arg25[%c0_334, %c0_335] : memref<40x16xf32, #tpu.memory_space<vmem>>, vector<8x16xf32>
    %c0_336 = arith.constant 0 : index
    %c0_337 = arith.constant 0 : index
    %803 = vector.load %arg26[%c0_336, %c0_337] : memref<40x8xf32, #tpu.memory_space<vmem>>, vector<8x8xf32>
    %cst_338 = arith.constant dense<0.000000e+00> : vector<8x16xf32>
    %804 = tpu.matmul %801, %796, %cst_338 {dimension_numbers = #tpu.dot_dimension_numbers<[1], [0], [0], [1], [0, 0, 1, 1], [], []>} : vector<8x8xf32>, vector<8x16xf32>, vector<8x16xf32> -> vector<8x16xf32>
    %cst_339 = arith.constant dense<0.000000e+00> : vector<8x8xf32>
    %805 = tpu.matmul %801, %797, %cst_339 {dimension_numbers = #tpu.dot_dimension_numbers<[1], [0], [0], [1], [0, 0, 1, 1], [], []>} : vector<8x8xf32>, vector<8x8xf32>, vector<8x8xf32> -> vector<8x8xf32>
    %806 = arith.addf %802, %804 : vector<8x16xf32>
    %cst_340 = arith.constant 5.000000e-01 : f32
    %807 = vector.broadcast %cst_340 : f32 to vector<8x16xf32>
    %808 = arith.mulf %807, %806 : vector<8x16xf32>
    %809 = math.tanh %808 : vector<8x16xf32>
    %cst_341 = arith.constant 1.000000e+00 : f32
    %810 = vector.broadcast %cst_341 : f32 to vector<8x16xf32>
    %811 = arith.addf %809, %810 : vector<8x16xf32>
    %cst_342 = arith.constant 5.000000e-01 : f32
    %812 = vector.broadcast %cst_342 : f32 to vector<8x16xf32>
    %813 = arith.mulf %812, %811 : vector<8x16xf32>
    %814 = vector.extract_strided_slice %813 {offsets = [0, 0], sizes = [8, 8], strides = [1, 1]} : vector<8x16xf32> to vector<8x8xf32>
    %815 = vector.extract_strided_slice %813 {offsets = [0, 8], sizes = [8, 8], strides = [1, 1]} : vector<8x16xf32> to vector<8x8xf32>
    %816 = arith.addf %805, %800 : vector<8x8xf32>
    %817 = arith.mulf %814, %816 : vector<8x8xf32>
    %818 = arith.addf %803, %817 : vector<8x8xf32>
    %819 = math.tanh %818 : vector<8x8xf32>
    %820 = arith.subf %801, %819 : vector<8x8xf32>
    %821 = arith.mulf %815, %820 : vector<8x8xf32>
    %822 = arith.addf %819, %821 : vector<8x8xf32>
    %c8_343 = arith.constant 8 : index
    %c0_344 = arith.constant 0 : index
    %823 = vector.load %arg25[%c8_343, %c0_344] : memref<40x16xf32, #tpu.memory_space<vmem>>, vector<8x16xf32>
    %c8_345 = arith.constant 8 : index
    %c0_346 = arith.constant 0 : index
    %824 = vector.load %arg26[%c8_345, %c0_346] : memref<40x8xf32, #tpu.memory_space<vmem>>, vector<8x8xf32>
    %cst_347 = arith.constant dense<0.000000e+00> : vector<8x16xf32>
    %825 = tpu.matmul %822, %796, %cst_347 {dimension_numbers = #tpu.dot_dimension_numbers<[1], [0], [0], [1], [0, 0, 1, 1], [], []>} : vector<8x8xf32>, vector<8x16xf32>, vector<8x16xf32> -> vector<8x16xf32>
    %cst_348 = arith.constant dense<0.000000e+00> : vector<8x8xf32>
    %826 = tpu.matmul %822, %797, %cst_348 {dimension_numbers = #tpu.dot_dimension_numbers<[1], [0], [0], [1], [0, 0, 1, 1], [], []>} : vector<8x8xf32>, vector<8x8xf32>, vector<8x8xf32> -> vector<8x8xf32>
    %827 = arith.addf %823, %825 : vector<8x16xf32>
    %cst_349 = arith.constant 5.000000e-01 : f32
    %828 = vector.broadcast %cst_349 : f32 to vector<8x16xf32>
    %829 = arith.mulf %828, %827 : vector<8x16xf32>
    %830 = math.tanh %829 : vector<8x16xf32>
    %cst_350 = arith.constant 1.000000e+00 : f32
    %831 = vector.broadcast %cst_350 : f32 to vector<8x16xf32>
    %832 = arith.addf %830, %831 : vector<8x16xf32>
    %cst_351 = arith.constant 5.000000e-01 : f32
    %833 = vector.broadcast %cst_351 : f32 to vector<8x16xf32>
    %834 = arith.mulf %833, %832 : vector<8x16xf32>
    %835 = vector.extract_strided_slice %834 {offsets = [0, 0], sizes = [8, 8], strides = [1, 1]} : vector<8x16xf32> to vector<8x8xf32>
    %836 = vector.extract_strided_slice %834 {offsets = [0, 8], sizes = [8, 8], strides = [1, 1]} : vector<8x16xf32> to vector<8x8xf32>
    %837 = arith.addf %826, %800 : vector<8x8xf32>
    %838 = arith.mulf %835, %837 : vector<8x8xf32>
    %839 = arith.addf %824, %838 : vector<8x8xf32>
    %840 = math.tanh %839 : vector<8x8xf32>
    %841 = arith.subf %822, %840 : vector<8x8xf32>
    %842 = arith.mulf %836, %841 : vector<8x8xf32>
    %843 = arith.addf %840, %842 : vector<8x8xf32>
    %c16_352 = arith.constant 16 : index
    %c0_353 = arith.constant 0 : index
    %844 = vector.load %arg25[%c16_352, %c0_353] : memref<40x16xf32, #tpu.memory_space<vmem>>, vector<8x16xf32>
    %c16_354 = arith.constant 16 : index
    %c0_355 = arith.constant 0 : index
    %845 = vector.load %arg26[%c16_354, %c0_355] : memref<40x8xf32, #tpu.memory_space<vmem>>, vector<8x8xf32>
    %cst_356 = arith.constant dense<0.000000e+00> : vector<8x16xf32>
    %846 = tpu.matmul %843, %796, %cst_356 {dimension_numbers = #tpu.dot_dimension_numbers<[1], [0], [0], [1], [0, 0, 1, 1], [], []>} : vector<8x8xf32>, vector<8x16xf32>, vector<8x16xf32> -> vector<8x16xf32>
    %cst_357 = arith.constant dense<0.000000e+00> : vector<8x8xf32>
    %847 = tpu.matmul %843, %797, %cst_357 {dimension_numbers = #tpu.dot_dimension_numbers<[1], [0], [0], [1], [0, 0, 1, 1], [], []>} : vector<8x8xf32>, vector<8x8xf32>, vector<8x8xf32> -> vector<8x8xf32>
    %848 = arith.addf %844, %846 : vector<8x16xf32>
    %cst_358 = arith.constant 5.000000e-01 : f32
    %849 = vector.broadcast %cst_358 : f32 to vector<8x16xf32>
    %850 = arith.mulf %849, %848 : vector<8x16xf32>
    %851 = math.tanh %850 : vector<8x16xf32>
    %cst_359 = arith.constant 1.000000e+00 : f32
    %852 = vector.broadcast %cst_359 : f32 to vector<8x16xf32>
    %853 = arith.addf %851, %852 : vector<8x16xf32>
    %cst_360 = arith.constant 5.000000e-01 : f32
    %854 = vector.broadcast %cst_360 : f32 to vector<8x16xf32>
    %855 = arith.mulf %854, %853 : vector<8x16xf32>
    %856 = vector.extract_strided_slice %855 {offsets = [0, 0], sizes = [8, 8], strides = [1, 1]} : vector<8x16xf32> to vector<8x8xf32>
    %857 = vector.extract_strided_slice %855 {offsets = [0, 8], sizes = [8, 8], strides = [1, 1]} : vector<8x16xf32> to vector<8x8xf32>
    %858 = arith.addf %847, %800 : vector<8x8xf32>
    %859 = arith.mulf %856, %858 : vector<8x8xf32>
    %860 = arith.addf %845, %859 : vector<8x8xf32>
    %861 = math.tanh %860 : vector<8x8xf32>
    %862 = arith.subf %843, %861 : vector<8x8xf32>
    %863 = arith.mulf %857, %862 : vector<8x8xf32>
    %864 = arith.addf %861, %863 : vector<8x8xf32>
    %c24_361 = arith.constant 24 : index
    %c0_362 = arith.constant 0 : index
    %865 = vector.load %arg25[%c24_361, %c0_362] : memref<40x16xf32, #tpu.memory_space<vmem>>, vector<8x16xf32>
    %c24_363 = arith.constant 24 : index
    %c0_364 = arith.constant 0 : index
    %866 = vector.load %arg26[%c24_363, %c0_364] : memref<40x8xf32, #tpu.memory_space<vmem>>, vector<8x8xf32>
    %cst_365 = arith.constant dense<0.000000e+00> : vector<8x16xf32>
    %867 = tpu.matmul %864, %796, %cst_365 {dimension_numbers = #tpu.dot_dimension_numbers<[1], [0], [0], [1], [0, 0, 1, 1], [], []>} : vector<8x8xf32>, vector<8x16xf32>, vector<8x16xf32> -> vector<8x16xf32>
    %cst_366 = arith.constant dense<0.000000e+00> : vector<8x8xf32>
    %868 = tpu.matmul %864, %797, %cst_366 {dimension_numbers = #tpu.dot_dimension_numbers<[1], [0], [0], [1], [0, 0, 1, 1], [], []>} : vector<8x8xf32>, vector<8x8xf32>, vector<8x8xf32> -> vector<8x8xf32>
    %869 = arith.addf %865, %867 : vector<8x16xf32>
    %cst_367 = arith.constant 5.000000e-01 : f32
    %870 = vector.broadcast %cst_367 : f32 to vector<8x16xf32>
    %871 = arith.mulf %870, %869 : vector<8x16xf32>
    %872 = math.tanh %871 : vector<8x16xf32>
    %cst_368 = arith.constant 1.000000e+00 : f32
    %873 = vector.broadcast %cst_368 : f32 to vector<8x16xf32>
    %874 = arith.addf %872, %873 : vector<8x16xf32>
    %cst_369 = arith.constant 5.000000e-01 : f32
    %875 = vector.broadcast %cst_369 : f32 to vector<8x16xf32>
    %876 = arith.mulf %875, %874 : vector<8x16xf32>
    %877 = vector.extract_strided_slice %876 {offsets = [0, 0], sizes = [8, 8], strides = [1, 1]} : vector<8x16xf32> to vector<8x8xf32>
    %878 = vector.extract_strided_slice %876 {offsets = [0, 8], sizes = [8, 8], strides = [1, 1]} : vector<8x16xf32> to vector<8x8xf32>
    %879 = arith.addf %868, %800 : vector<8x8xf32>
    %880 = arith.mulf %877, %879 : vector<8x8xf32>
    %881 = arith.addf %866, %880 : vector<8x8xf32>
    %882 = math.tanh %881 : vector<8x8xf32>
    %883 = arith.subf %864, %882 : vector<8x8xf32>
    %884 = arith.mulf %878, %883 : vector<8x8xf32>
    %885 = arith.addf %882, %884 : vector<8x8xf32>
    %c32_370 = arith.constant 32 : index
    %c0_371 = arith.constant 0 : index
    %886 = vector.load %arg25[%c32_370, %c0_371] : memref<40x16xf32, #tpu.memory_space<vmem>>, vector<8x16xf32>
    %c32_372 = arith.constant 32 : index
    %c0_373 = arith.constant 0 : index
    %887 = vector.load %arg26[%c32_372, %c0_373] : memref<40x8xf32, #tpu.memory_space<vmem>>, vector<8x8xf32>
    %cst_374 = arith.constant dense<0.000000e+00> : vector<8x16xf32>
    %888 = tpu.matmul %885, %796, %cst_374 {dimension_numbers = #tpu.dot_dimension_numbers<[1], [0], [0], [1], [0, 0, 1, 1], [], []>} : vector<8x8xf32>, vector<8x16xf32>, vector<8x16xf32> -> vector<8x16xf32>
    %cst_375 = arith.constant dense<0.000000e+00> : vector<8x8xf32>
    %889 = tpu.matmul %885, %797, %cst_375 {dimension_numbers = #tpu.dot_dimension_numbers<[1], [0], [0], [1], [0, 0, 1, 1], [], []>} : vector<8x8xf32>, vector<8x8xf32>, vector<8x8xf32> -> vector<8x8xf32>
    %890 = arith.addf %886, %888 : vector<8x16xf32>
    %cst_376 = arith.constant 5.000000e-01 : f32
    %891 = vector.broadcast %cst_376 : f32 to vector<8x16xf32>
    %892 = arith.mulf %891, %890 : vector<8x16xf32>
    %893 = math.tanh %892 : vector<8x16xf32>
    %cst_377 = arith.constant 1.000000e+00 : f32
    %894 = vector.broadcast %cst_377 : f32 to vector<8x16xf32>
    %895 = arith.addf %893, %894 : vector<8x16xf32>
    %cst_378 = arith.constant 5.000000e-01 : f32
    %896 = vector.broadcast %cst_378 : f32 to vector<8x16xf32>
    %897 = arith.mulf %896, %895 : vector<8x16xf32>
    %898 = vector.extract_strided_slice %897 {offsets = [0, 0], sizes = [8, 8], strides = [1, 1]} : vector<8x16xf32> to vector<8x8xf32>
    %899 = vector.extract_strided_slice %897 {offsets = [0, 8], sizes = [8, 8], strides = [1, 1]} : vector<8x16xf32> to vector<8x8xf32>
    %900 = arith.addf %889, %800 : vector<8x8xf32>
    %901 = arith.mulf %898, %900 : vector<8x8xf32>
    %902 = arith.addf %887, %901 : vector<8x8xf32>
    %903 = math.tanh %902 : vector<8x8xf32>
    %904 = arith.subf %885, %903 : vector<8x8xf32>
    %905 = arith.mulf %899, %904 : vector<8x8xf32>
    %906 = arith.addf %903, %905 : vector<8x8xf32>
    %c0_379 = arith.constant 0 : index
    %c0_380 = arith.constant 0 : index
    %907 = vector.load %arg17[%c0_379, %c0_380] : memref<32x4xf32, #tpu.memory_space<vmem>>, vector<32x4xf32>
    %cst_381 = arith.constant dense<0.000000e+00> : vector<8x4xf32>
    %908 = tpu.matmul %795, %907, %cst_381 {dimension_numbers = #tpu.dot_dimension_numbers<[1], [0], [0], [1], [0, 0, 1, 1], [], []>} : vector<8x32xf32>, vector<32x4xf32>, vector<8x4xf32> -> vector<8x4xf32>
    %c0_382 = arith.constant 0 : index
    %c0_383 = arith.constant 0 : index
    %909 = vector.load %arg18[%c0_382, %c0_383] : memref<8x4xf32, #tpu.memory_space<vmem>>, vector<8x4xf32>
    %cst_384 = arith.constant dense<0.000000e+00> : vector<8x4xf32>
    %910 = tpu.matmul %906, %909, %cst_384 {dimension_numbers = #tpu.dot_dimension_numbers<[1], [0], [0], [1], [0, 0, 1, 1], [], []>} : vector<8x8xf32>, vector<8x4xf32>, vector<8x4xf32> -> vector<8x4xf32>
    %911 = arith.addf %908, %910 : vector<8x4xf32>
    %c0_385 = arith.constant 0 : index
    %c0_386 = arith.constant 0 : index
    %912 = vector.load %arg19[%c0_385, %c0_386] : memref<1x4xf32, #tpu.memory_space<vmem>>, vector<1x4xf32>
    %913 = vector.broadcast %912 : vector<1x4xf32> to vector<8x4xf32>
    %914 = arith.addf %911, %913 : vector<8x4xf32>
    %cst_387 = arith.constant 0.000000e+00 : f32
    %915 = vector.broadcast %cst_387 : f32 to vector<8x4xf32>
    %916 = arith.maximumf %914, %915 : vector<8x4xf32>
    %c0_388 = arith.constant 0 : index
    %c0_389 = arith.constant 0 : index
    %917 = vector.load %arg20[%c0_388, %c0_389] : memref<4x1xf32, #tpu.memory_space<vmem>>, vector<4x1xf32>
    %cst_390 = arith.constant dense<0.000000e+00> : vector<8x1xf32>
    %918 = tpu.matmul %916, %917, %cst_390 {dimension_numbers = #tpu.dot_dimension_numbers<[1], [0], [0], [1], [0, 0, 1, 1], [], []>} : vector<8x4xf32>, vector<4x1xf32>, vector<8x1xf32> -> vector<8x1xf32>
    %c0_391 = arith.constant 0 : index
    %c0_392 = arith.constant 0 : index
    %919 = vector.load %arg21[%c0_391, %c0_392] : memref<1x1xf32, #tpu.memory_space<vmem>>, vector<1x1xf32>
    %920 = vector.broadcast %919 : vector<1x1xf32> to vector<8x1xf32>
    %921 = arith.addf %918, %920 : vector<8x1xf32>
    %c0_393 = arith.constant 0 : index
    %c0_394 = arith.constant 0 : index
    %922 = vector.load %arg22[%c0_393, %c0_394] : memref<8x1xf32, #tpu.memory_space<vmem>>, vector<8x1xf32>
    tpu.vector_store %arg22[%c0_393, %c0_394], %921 {strides = array<i32>} : memref<8x1xf32, #tpu.memory_space<vmem>>, vector<8x1xf32>,
    return
  }
  func.func @transform_0(%arg0: i32) -> (i32, i32, i32) {
    %c0_i32 = arith.constant 0 : i32
    %c0_i32_0 = arith.constant 0 : i32
    %c0_i32_1 = arith.constant 0 : i32
    return %c0_i32, %arg0, %c0_i32_0 : i32, i32, i32
  }
  func.func @transform_1(%arg0: i32) -> (i32, i32, i32) {
    %c0_i32 = arith.constant 0 : i32
    %c0_i32_0 = arith.constant 0 : i32
    %c0_i32_1 = arith.constant 0 : i32
    return %c0_i32, %arg0, %c0_i32_0 : i32, i32, i32
  }
  func.func @transform_2(%arg0: i32) -> (i32, i32) {
    %c0_i32 = arith.constant 0 : i32
    %c0_i32_0 = arith.constant 0 : i32
    %c0_i32_1 = arith.constant 0 : i32
    return %c0_i32, %c0_i32_0 : i32, i32
  }
  func.func @transform_3(%arg0: i32) -> (i32, i32) {
    %c0_i32 = arith.constant 0 : i32
    %c0_i32_0 = arith.constant 0 : i32
    %c0_i32_1 = arith.constant 0 : i32
    return %c0_i32, %c0_i32_0 : i32, i32
  }
  func.func @transform_4(%arg0: i32) -> (i32, i32) {
    %c0_i32 = arith.constant 0 : i32
    %c0_i32_0 = arith.constant 0 : i32
    %c0_i32_1 = arith.constant 0 : i32
    return %c0_i32, %c0_i32_0 : i32, i32
  }
  func.func @transform_5(%arg0: i32) -> (i32, i32) {
    %c0_i32 = arith.constant 0 : i32
    %c0_i32_0 = arith.constant 0 : i32
    %c0_i32_1 = arith.constant 0 : i32
    return %c0_i32, %c0_i32_0 : i32, i32
  }
  func.func @transform_6(%arg0: i32) -> (i32, i32) {
    %c0_i32 = arith.constant 0 : i32
    %c0_i32_0 = arith.constant 0 : i32
    %c0_i32_1 = arith.constant 0 : i32
    return %c0_i32, %c0_i32_0 : i32, i32
  }
  func.func @transform_7(%arg0: i32) -> (i32, i32) {
    %c0_i32 = arith.constant 0 : i32
    %c0_i32_0 = arith.constant 0 : i32
    %c0_i32_1 = arith.constant 0 : i32
    return %c0_i32, %c0_i32_0 : i32, i32
  }
  func.func @transform_8(%arg0: i32) -> (i32, i32) {
    %c0_i32 = arith.constant 0 : i32
    %c0_i32_0 = arith.constant 0 : i32
    %c0_i32_1 = arith.constant 0 : i32
    return %c0_i32, %c0_i32_0 : i32, i32
  }
  func.func @transform_9(%arg0: i32) -> (i32, i32) {
    %c0_i32 = arith.constant 0 : i32
    %c0_i32_0 = arith.constant 0 : i32
    %c0_i32_1 = arith.constant 0 : i32
    return %c0_i32, %c0_i32_0 : i32, i32
  }
  func.func @transform_10(%arg0: i32) -> (i32, i32) {
    %c0_i32 = arith.constant 0 : i32
    %c0_i32_0 = arith.constant 0 : i32
    %c0_i32_1 = arith.constant 0 : i32
    return %c0_i32, %c0_i32_0 : i32, i32
  }
  func.func @transform_11(%arg0: i32) -> (i32, i32) {
    %c0_i32 = arith.constant 0 : i32
    %c0_i32_0 = arith.constant 0 : i32
    %c0_i32_1 = arith.constant 0 : i32
    return %c0_i32, %c0_i32_0 : i32, i32
  }
  func.func @transform_12(%arg0: i32) -> (i32, i32) {
    %c0_i32 = arith.constant 0 : i32
    %c0_i32_0 = arith.constant 0 : i32
    %c0_i32_1 = arith.constant 0 : i32
    return %c0_i32, %c0_i32_0 : i32, i32
  }
  func.func @transform_13(%arg0: i32) -> (i32, i32) {
    %c0_i32 = arith.constant 0 : i32
    %c0_i32_0 = arith.constant 0 : i32
    %c0_i32_1 = arith.constant 0 : i32
    return %c0_i32, %c0_i32_0 : i32, i32
  }
  func.func @transform_14(%arg0: i32) -> (i32, i32) {
    %c0_i32 = arith.constant 0 : i32
    %c0_i32_0 = arith.constant 0 : i32
    %c0_i32_1 = arith.constant 0 : i32
    return %c0_i32, %c0_i32_0 : i32, i32
  }
  func.func @transform_15(%arg0: i32) -> (i32, i32) {
    %c0_i32 = arith.constant 0 : i32
    %c0_i32_0 = arith.constant 0 : i32
    %c0_i32_1 = arith.constant 0 : i32
    return %c0_i32, %c0_i32_0 : i32, i32
  }
  func.func @transform_16(%arg0: i32) -> (i32, i32) {
    %c0_i32 = arith.constant 0 : i32
    %c0_i32_0 = arith.constant 0 : i32
    %c0_i32_1 = arith.constant 0 : i32
    return %c0_i32, %c0_i32_0 : i32, i32
  }
  func.func @transform_17(%arg0: i32) -> (i32, i32) {
    %c0_i32 = arith.constant 0 : i32
    %c0_i32_0 = arith.constant 0 : i32
    %c0_i32_1 = arith.constant 0 : i32
    return %c0_i32, %c0_i32_0 : i32, i32
  }
  func.func @transform_18(%arg0: i32) -> (i32, i32) {
    %c0_i32 = arith.constant 0 : i32
    %c0_i32_0 = arith.constant 0 : i32
    %c0_i32_1 = arith.constant 0 : i32
    return %c0_i32, %c0_i32_0 : i32, i32
  }
  func.func @transform_19(%arg0: i32) -> (i32, i32) {
    %c0_i32 = arith.constant 0 : i32
    %c0_i32_0 = arith.constant 0 : i32
    %c0_i32_1 = arith.constant 0 : i32
    return %c0_i32, %c0_i32_0 : i32, i32
  }
  func.func @transform_20(%arg0: i32) -> (i32, i32) {
    %c0_i32 = arith.constant 0 : i32
    %c0_i32_0 = arith.constant 0 : i32
    %c0_i32_1 = arith.constant 0 : i32
    return %c0_i32, %c0_i32_0 : i32, i32
  }
  func.func @transform_21(%arg0: i32) -> (i32, i32) {
    %c0_i32 = arith.constant 0 : i32
    %c0_i32_0 = arith.constant 0 : i32
    return %arg0, %c0_i32 : i32, i32
  }
}

</mosaic_0001>

<llo_original>
// kernel: tpu_custom_call.1
$region0: #{tpu_custom_call.1}
  #allocation0 [shape = 'u32[]', space=smem, size = 0x4, offset = 0x4, fixed_abs, tag = 'smem constant byte address 0x4 - core index']
  #allocation1 [shape = 'u32[144,128]{1,0:T(1,128)}', space=vmem, size = 0x12000, scoped, tag = 'internal scratch']
  #allocation2 [shape = 'f32[288,64]{1,0:T(8,128)}', space=vmem, size = 0x24000, scoped, tag = 'scratch operand']
  #allocation3 [shape = 'f32[288,32]{1,0:T(8,128)}', space=vmem, size = 0x24000, scoped, tag = 'scratch operand']
  #allocation4 [shape = 'f32[40,16]{1,0:T(8,128)}', space=vmem, size = 0x5000, scoped, tag = 'scratch operand']
  #allocation5 [shape = 'f32[40,8]{1,0:T(8,128)}', space=vmem, size = 0x5000, scoped, tag = 'scratch operand']
  #allocation6 [shape = 'f32[1,1]{1,0:T(1,128)S(1)}', space=vmem, size = 0x200, scoped, tag = 'scoped memory for tpu_custom_call.1']
  %s0 = inlined_call_operand.vmem [shape: f32[36,8,7], index: 0, kind: input, shape index: {}]
  %s1 = inlined_call_operand.vmem [shape: f32[5,8,5], index: 1, kind: input, shape index: {}]
  %s2 = inlined_call_operand.vmem [shape: f32[7,64], index: 2, kind: input, shape index: {}]
  %s3 = inlined_call_operand.vmem [shape: f32[7,32], index: 3, kind: input, shape index: {}]
  %s4 = inlined_call_operand.vmem [shape: f32[32,64], index: 4, kind: input, shape index: {}]
  %s5 = inlined_call_operand.vmem [shape: f32[32,32], index: 5, kind: input, shape index: {}]
  %s6 = inlined_call_operand.vmem [shape: f32[1,64], index: 6, kind: input, shape index: {}]
  %s7 = inlined_call_operand.vmem [shape: f32[1,32], index: 7, kind: input, shape index: {}]
  %s8 = inlined_call_operand.vmem [shape: f32[1,32], index: 8, kind: input, shape index: {}]
  %s9 = inlined_call_operand.vmem [shape: f32[1,16], index: 9, kind: input, shape index: {}]
  %s10 = inlined_call_operand.vmem [shape: f32[1,8], index: 10, kind: input, shape index: {}]
  %s11 = inlined_call_operand.vmem [shape: f32[8,16], index: 11, kind: input, shape index: {}]
  %s12 = inlined_call_operand.vmem [shape: f32[8,8], index: 12, kind: input, shape index: {}]
  %s13 = inlined_call_operand.vmem [shape: f32[1,16], index: 13, kind: input, shape index: {}]
  %s14 = inlined_call_operand.vmem [shape: f32[1,8], index: 14, kind: input, shape index: {}]
  %s15 = inlined_call_operand.vmem [shape: f32[1,8], index: 15, kind: input, shape index: {}]
  %s16 = inlined_call_operand.vmem [shape: f32[32,4], index: 16, kind: input, shape index: {}]
  %s17 = inlined_call_operand.vmem [shape: f32[8,4], index: 17, kind: input, shape index: {}]
  %s18 = inlined_call_operand.vmem [shape: f32[1,4], index: 18, kind: input, shape index: {}]
  %s19 = inlined_call_operand.vmem [shape: f32[4,1], index: 19, kind: input, shape index: {}]
  %s20 = inlined_call_operand.<no memory space> [shape: f32[1,1], index: 20, kind: input, shape index: {}]
  %s21 = inlined_call_operand.vmem [shape: f32[8,1], index: 21, kind: output, shape index: {}]
  %s22 = sld [smem:[#allocation0]]
  $region94: #{tpu_custom_call.1} parent=0
    _
  %s24 = ssub.s32 1, %s22
  %s25 = scalar_select 0, %s24, %s22
  %v26 = vstv %s20
  %27 = vst [vmem:[#allocation6] sm:$0x1] %v26
  // Predicated region
  $region2: #{tpu_custom_call.1} parent=0 // pred_check
    _
  $region3: #{tpu_custom_call.1} parent=0 // pred_check_branch
    %29 = sbr.rel (0) target = $region5
  $region4: #{tpu_custom_call.1} parent=0 // pred_region
    _
  $region5: #{tpu_custom_call.1} parent=0 // pred_fallthru
    _
  // Predicated region
  $region6: #{tpu_custom_call.1} parent=0 // pred_check
    _
  $region7: #{tpu_custom_call.1} parent=0 // pred_check_branch
    %31 = sbr.rel (0) target = $region9
  $region8: #{tpu_custom_call.1} parent=0 // pred_region
    _
  $region9: #{tpu_custom_call.1} parent=0 // pred_fallthru
    _
  // Predicated region
  $region10: #{tpu_custom_call.1} parent=0 // pred_check
    _
  $region11: #{tpu_custom_call.1} parent=0 // pred_check_branch
    %33 = sbr.rel (0) target = $region13
  $region12: #{tpu_custom_call.1} parent=0 // pred_region
    _
  $region13: #{tpu_custom_call.1} parent=0 // pred_fallthru
    _
  // Predicated region
  $region14: #{tpu_custom_call.1} parent=0 // pred_check
    _
  $region15: #{tpu_custom_call.1} parent=0 // pred_check_branch
    %35 = sbr.rel (0) target = $region17
  $region16: #{tpu_custom_call.1} parent=0 // pred_region
    _
  $region17: #{tpu_custom_call.1} parent=0 // pred_fallthru
    _
  // Predicated region
  $region18: #{tpu_custom_call.1} parent=0 // pred_check
    _
  $region19: #{tpu_custom_call.1} parent=0 // pred_check_branch
    %37 = sbr.rel (0) target = $region21
  $region20: #{tpu_custom_call.1} parent=0 // pred_region
    _
  $region21: #{tpu_custom_call.1} parent=0 // pred_fallthru
    _
  // Predicated region
  $region22: #{tpu_custom_call.1} parent=0 // pred_check
    _
  $region23: #{tpu_custom_call.1} parent=0 // pred_check_branch
    %39 = sbr.rel (0) target = $region25
  $region24: #{tpu_custom_call.1} parent=0 // pred_region
    _
  $region25: #{tpu_custom_call.1} parent=0 // pred_fallthru
    _
  // Predicated region
  $region26: #{tpu_custom_call.1} parent=0 // pred_check
    _
  $region27: #{tpu_custom_call.1} parent=0 // pred_check_branch
    %41 = sbr.rel (0) target = $region29
  $region28: #{tpu_custom_call.1} parent=0 // pred_region
    _
  $region29: #{tpu_custom_call.1} parent=0 // pred_fallthru
    _
  // Predicated region
  $region30: #{tpu_custom_call.1} parent=0 // pred_check
    _
  $region31: #{tpu_custom_call.1} parent=0 // pred_check_branch
    %43 = sbr.rel (0) target = $region33
  $region32: #{tpu_custom_call.1} parent=0 // pred_region
    _
  $region33: #{tpu_custom_call.1} parent=0 // pred_fallthru
    _
  // Predicated region
  $region34: #{tpu_custom_call.1} parent=0 // pred_check
    _
  $region35: #{tpu_custom_call.1} parent=0 // pred_check_branch
    %45 = sbr.rel (0) target = $region37
  $region36: #{tpu_custom_call.1} parent=0 // pred_region
    _
  $region37: #{tpu_custom_call.1} parent=0 // pred_fallthru
    _
  // Predicated region
  $region38: #{tpu_custom_call.1} parent=0 // pred_check
    _
  $region39: #{tpu_custom_call.1} parent=0 // pred_check_branch
    %47 = sbr.rel (0) target = $region41
  $region40: #{tpu_custom_call.1} parent=0 // pred_region
    _
  $region41: #{tpu_custom_call.1} parent=0 // pred_fallthru
    _
  // Predicated region
  $region42: #{tpu_custom_call.1} parent=0 // pred_check
    _
  $region43: #{tpu_custom_call.1} parent=0 // pred_check_branch
    %49 = sbr.rel (0) target = $region45
  $region44: #{tpu_custom_call.1} parent=0 // pred_region
    _
  $region45: #{tpu_custom_call.1} parent=0 // pred_fallthru
    _
  // Predicated region
  $region46: #{tpu_custom_call.1} parent=0 // pred_check
    _
  $region47: #{tpu_custom_call.1} parent=0 // pred_check_branch
    %51 = sbr.rel (0) target = $region49
  $region48: #{tpu_custom_call.1} parent=0 // pred_region
    _
  $region49: #{tpu_custom_call.1} parent=0 // pred_fallthru
    _
  // Predicated region
  $region50: #{tpu_custom_call.1} parent=0 // pred_check
    _
  $region51: #{tpu_custom_call.1} parent=0 // pred_check_branch
    %53 = sbr.rel (0) target = $region53
  $region52: #{tpu_custom_call.1} parent=0 // pred_region
    _
  $region53: #{tpu_custom_call.1} parent=0 // pred_fallthru
    _
  // Predicated region
  $region54: #{tpu_custom_call.1} parent=0 // pred_check
    _
  $region55: #{tpu_custom_call.1} parent=0 // pred_check_branch
    %55 = sbr.rel (0) target = $region57
  $region56: #{tpu_custom_call.1} parent=0 // pred_region
    _
  $region57: #{tpu_custom_call.1} parent=0 // pred_fallthru
    _
  // Predicated region
  $region58: #{tpu_custom_call.1} parent=0 // pred_check
    _
  $region59: #{tpu_custom_call.1} parent=0 // pred_check_branch
    %57 = sbr.rel (0) target = $region61
  $region60: #{tpu_custom_call.1} parent=0 // pred_region
    _
  $region61: #{tpu_custom_call.1} parent=0 // pred_fallthru
    _
  // Predicated region
  $region62: #{tpu_custom_call.1} parent=0 // pred_check
    _
  $region63: #{tpu_custom_call.1} parent=0 // pred_check_branch
    %59 = sbr.rel (0) target = $region65
  $region64: #{tpu_custom_call.1} parent=0 // pred_region
    _
  $region65: #{tpu_custom_call.1} parent=0 // pred_fallthru
    _
  // Predicated region
  $region66: #{tpu_custom_call.1} parent=0 // pred_check
    _
  $region67: #{tpu_custom_call.1} parent=0 // pred_check_branch
    %61 = sbr.rel (0) target = $region69
  $region68: #{tpu_custom_call.1} parent=0 // pred_region
    _
  $region69: #{tpu_custom_call.1} parent=0 // pred_fallthru
    _
  // Predicated region
  $region70: #{tpu_custom_call.1} parent=0 // pred_check
    _
  $region71: #{tpu_custom_call.1} parent=0 // pred_check_branch
    %63 = sbr.rel (0) target = $region73
  $region72: #{tpu_custom_call.1} parent=0 // pred_region
    _
  $region73: #{tpu_custom_call.1} parent=0 // pred_fallthru
    _
  // Predicated region
  $region74: #{tpu_custom_call.1} parent=0 // pred_check
    _
  $region75: #{tpu_custom_call.1} parent=0 // pred_check_branch
    %65 = sbr.rel (0) target = $region77
  $region76: #{tpu_custom_call.1} parent=0 // pred_region
    _
  $region77: #{tpu_custom_call.1} parent=0 // pred_fallthru
    _
  // Predicated region
  $region78: #{tpu_custom_call.1} parent=0 // pred_check
    _
  $region79: #{tpu_custom_call.1} parent=0 // pred_check_branch
    %67 = sbr.rel (0) target = $region81
  $region80: #{tpu_custom_call.1} parent=0 // pred_region
    _
  $region81: #{tpu_custom_call.1} parent=0 // pred_fallthru
    _
  // Predicated region
  $region82: #{tpu_custom_call.1} parent=0 // pred_check
    _
  $region83: #{tpu_custom_call.1} parent=0 // pred_check_branch
    %69 = sbr.rel (0) target = $region85
  $region84: #{tpu_custom_call.1} parent=0 // pred_region
    _
  $region85: #{tpu_custom_call.1} parent=0 // pred_fallthru
    _
  %v70 = vld [vmem:[%s0] sm:$0xff]
  %v71 = vld [vmem:[%s0 + $0x8] sm:$0xff]
  %v72 = vld [vmem:[%s0 + $0x10] sm:$0xff]
  %v73 = vld [vmem:[%s0 + $0x18] sm:$0xff]
  %v74 = vld [vmem:[%s0 + $0x20] sm:$0xff]
  %v75 = vld [vmem:[%s0 + $0x28] sm:$0xff]
  %v76 = vld [vmem:[%s0 + $0x30] sm:$0xff]
  %v77 = vld [vmem:[%s0 + $0x38] sm:$0xff]
  %v78 = vld [vmem:[%s0 + $0x40] sm:$0xff]
  %v79 = vld [vmem:[%s0 + $0x48] sm:$0xff]
  %v80 = vld [vmem:[%s0 + $0x50] sm:$0xff]
  %v81 = vld [vmem:[%s0 + $0x58] sm:$0xff]
  %v82 = vld [vmem:[%s0 + $0x60] sm:$0xff]
  %v83 = vld [vmem:[%s0 + $0x68] sm:$0xff]
  %v84 = vld [vmem:[%s0 + $0x70] sm:$0xff]
  %v85 = vld [vmem:[%s0 + $0x78] sm:$0xff]
  %v86 = vld [vmem:[%s0 + $0x80] sm:$0xff]
  %v87 = vld [vmem:[%s0 + $0x88] sm:$0xff]
  %v88 = vld [vmem:[%s0 + $0x90] sm:$0xff]
  %v89 = vld [vmem:[%s0 + $0x98] sm:$0xff]
  %v90 = vld [vmem:[%s0 + $0xa0] sm:$0xff]
  %v91 = vld [vmem:[%s0 + $0xa8] sm:$0xff]
  %v92 = vld [vmem:[%s0 + $0xb0] sm:$0xff]
  %v93 = vld [vmem:[%s0 + $0xb8] sm:$0xff]
  %v94 = vld [vmem:[%s0 + $0xc0] sm:$0xff]
  %v95 = vld [vmem:[%s0 + $0xc8] sm:$0xff]
  %v96 = vld [vmem:[%s0 + $0xd0] sm:$0xff]
  %v97 = vld [vmem:[%s0 + $0xd8] sm:$0xff]
  %v98 = vld [vmem:[%s0 + $0xe0] sm:$0xff]
  %v99 = vld [vmem:[%s0 + $0xe8] sm:$0xff]
  %v100 = vld [vmem:[%s0 + $0xf0] sm:$0xff]
  %v101 = vld [vmem:[%s0 + $0xf8] sm:$0xff]
  %v102 = vld [vmem:[%s0 + $0x100] sm:$0xff]
  %v103 = vld [vmem:[%s0 + $0x108] sm:$0xff]
  %v104 = vld [vmem:[%s0 + $0x110] sm:$0xff]
  %v105 = vld [vmem:[%s0 + $0x118] sm:$0xff]
  %v106 = vld [vmem:[%s2] sm:$0x7f]
  %v107 = vld [vmem:[%s6] sm:$0x1]
  %v109 = vlaneseq
  %v110 = vshrl.u32 %v109, 7
  %v111 = vsub.s32 0, %v110
  %v112 = vrot.slane %v107, %v111
  %vm114 = vcmask 56320
  %v116 = vsel %vm114, %v70, 0
  %v119 = vsel %vm114, %v71, 0
  %v122 = vsel %vm114, %v72, 0
  %v125 = vsel %vm114, %v73, 0
  %v128 = vsel %vm114, %v74, 0
  %v131 = vsel %vm114, %v75, 0
  %v134 = vsel %vm114, %v76, 0
  %v137 = vsel %vm114, %v77, 0
  %v140 = vsel %vm114, %v78, 0
  %v143 = vsel %vm114, %v79, 0
  %v146 = vsel %vm114, %v80, 0
  %v149 = vsel %vm114, %v81, 0
  %v152 = vsel %vm114, %v82, 0
  %v155 = vsel %vm114, %v83, 0
  %v158 = vsel %vm114, %v84, 0
  %v161 = vsel %vm114, %v85, 0
  %v164 = vsel %vm114, %v86, 0
  %v167 = vsel %vm114, %v87, 0
  %v170 = vsel %vm114, %v88, 0
  %v173 = vsel %vm114, %v89, 0
  %v176 = vsel %vm114, %v90, 0
  %v179 = vsel %vm114, %v91, 0
  %v182 = vsel %vm114, %v92, 0
  %v185 = vsel %vm114, %v93, 0
  %v188 = vsel %vm114, %v94, 0
  %v191 = vsel %vm114, %v95, 0
  %v194 = vsel %vm114, %v96, 0
  %v197 = vsel %vm114, %v97, 0
  %v200 = vsel %vm114, %v98, 0
  %v203 = vsel %vm114, %v99, 0
  %v206 = vsel %vm114, %v100, 0
  %v209 = vsel %vm114, %v101, 0
  %v212 = vsel %vm114, %v102, 0
  %v215 = vsel %vm114, %v103, 0
  %v218 = vsel %vm114, %v104, 0
  %v221 = vsel %vm114, %v105, 0
  %vm223 = vcmask 1046528
  %v225 = vsel %vm223, %v106, 0
  %227 = vmatprep.subr.mxu0 0.0
  %228 = vmatpush1.msra.mxu0 0.0
  %229 = vmatprep.subr.mxu0 0.0
  %230 = vmatpush1.msra.mxu0 0.0
  %231 = vmatprep.subr.mxu0 0.0
  %232 = vmatpush1.msra.mxu0 0.0
  %233 = vmatprep.subr.mxu0 0.0
  %234 = vmatpush1.msra.mxu0 0.0
  %235 = vmatprep.subr.mxu0 0.0
  %236 = vmatpush1.msra.mxu0 0.0
  %237 = vmatprep.subr.mxu0 0.0
  %238 = vmatpush1.msra.mxu0 0.0
  %239 = vmatprep.subr.mxu0 0.0
  %240 = vmatpush1.msra.mxu0 0.0
  %241 = vmatprep.subr.mxu0 0.0
  %242 = vmatpush1.msra.mxu0 0.0
  %243 = vmatprep.subr.mxu0 0.0
  %244 = vmatpush1.msra.mxu0 0.0
  %245 = vmatprep.subr.mxu0 0.0
  %246 = vmatpush1.msra.mxu0 0.0
  %247 = vmatprep.subr.mxu0 0.0
  %248 = vmatpush1.msra.mxu0 0.0
  %249 = vmatprep.subr.mxu0 0.0
  %250 = vmatpush1.msra.mxu0 0.0
  %251 = vmatprep.subr.mxu0 0.0
  %252 = vmatpush1.msra.mxu0 0.0
  %253 = vmatprep.subr.mxu0 0.0
  %254 = vmatpush1.msra.mxu0 0.0
  %255 = vmatprep.subr.mxu0 0.0
  %256 = vmatpush1.msra.mxu0 0.0
  %257 = vmatprep.subr.mxu0 0.0
  %258 = vmatpush1.msra.mxu0 %v225
  %259 = vmatprep.subr.mxu0 0.0
  %260 = vmatpush2.msra.mxu0 0.0
  %261 = vmatprep.subr.mxu0 0.0
  %262 = vmatpush2.msra.mxu0 0.0
  %263 = vmatprep.subr.mxu0 0.0
  %264 = vmatpush2.msra.mxu0 0.0
  %265 = vmatprep.subr.mxu0 0.0
  %266 = vmatpush2.msra.mxu0 0.0
  %267 = vmatprep.subr.mxu0 0.0
  %268 = vmatpush2.msra.mxu0 0.0
  %269 = vmatprep.subr.mxu0 0.0
  %270 = vmatpush2.msra.mxu0 0.0
  %271 = vmatprep.subr.mxu0 0.0
  %272 = vmatpush2.msra.mxu0 0.0
  %273 = vmatprep.subr.mxu0 0.0
  %274 = vmatpush2.msra.mxu0 0.0
  %275 = vmatprep.subr.mxu0 0.0
  %276 = vmatpush2.msra.mxu0 0.0
  %277 = vmatprep.subr.mxu0 0.0
  %278 = vmatpush2.msra.mxu0 0.0
  %279 = vmatprep.subr.mxu0 0.0
  %280 = vmatpush2.msra.mxu0 0.0
  %281 = vmatprep.subr.mxu0 0.0
  %282 = vmatpush2.msra.mxu0 0.0
  %283 = vmatprep.subr.mxu0 0.0
  %284 = vmatpush2.msra.mxu0 0.0
  %285 = vmatprep.subr.mxu0 0.0
  %286 = vmatpush2.msra.mxu0 0.0
  %287 = vmatprep.subr.mxu0 0.0
  %288 = vmatpush2.msra.mxu0 0.0
  %289 = vmatprep.subr.mxu0 0.0
  %290 = vmatpush2.msra.mxu0 0.0
  %291 = vmatprep.mubr.f32.mxu0 0.0
  %292 = vmatmul.mubr.f32.gmra.mxu0 %v116
  %v293 = vpop.f32.mrf.mxu0
  %v294 = vadd.f32 %v112, %v293
  %v295 = vpop.f32.mrf.mxu0
  %296 = vmatprep.mubr.f32.mxu0 0.0
  %297 = vmatmul.mubr.f32.gmra.mxu0 %v119
  %v298 = vpop.f32.mrf.mxu0
  %v299 = vadd.f32 %v112, %v298
  %v300 = vpop.f32.mrf.mxu0
  %301 = vmatprep.mubr.f32.mxu0 0.0
  %302 = vmatmul.mubr.f32.gmra.mxu0 %v122
  %v303 = vpop.f32.mrf.mxu0
  %v304 = vadd.f32 %v112, %v303
  %v305 = vpop.f32.mrf.mxu0
  %306 = vmatprep.mubr.f32.mxu0 0.0
  %307 = vmatmul.mubr.f32.gmra.mxu0 %v125
  %v308 = vpop.f32.mrf.mxu0
  %v309 = vadd.f32 %v112, %v308
  %v310 = vpop.f32.mrf.mxu0
  %311 = vmatprep.mubr.f32.mxu0 0.0
  %312 = vmatmul.mubr.f32.gmra.mxu0 %v128
  %v313 = vpop.f32.mrf.mxu0
  %v314 = vadd.f32 %v112, %v313
  %v315 = vpop.f32.mrf.mxu0
  %316 = vmatprep.mubr.f32.mxu0 0.0
  %317 = vmatmul.mubr.f32.gmra.mxu0 %v131
  %v318 = vpop.f32.mrf.mxu0
  %v319 = vadd.f32 %v112, %v318
  %v320 = vpop.f32.mrf.mxu0
  %321 = vmatprep.mubr.f32.mxu0 0.0
  %322 = vmatmul.mubr.f32.gmra.mxu0 %v134
  %v323 = vpop.f32.mrf.mxu0
  %v324 = vadd.f32 %v112, %v323
  %v325 = vpop.f32.mrf.mxu0
  %326 = vmatprep.mubr.f32.mxu0 0.0
  %327 = vmatmul.mubr.f32.gmra.mxu0 %v137
  %v328 = vpop.f32.mrf.mxu0
  %v329 = vadd.f32 %v112, %v328
  %v330 = vpop.f32.mrf.mxu0
  %331 = vmatprep.mubr.f32.mxu0 0.0
  %332 = vmatmul.mubr.f32.gmra.mxu0 %v140
  %v333 = vpop.f32.mrf.mxu0
  %v334 = vadd.f32 %v112, %v333
  %v335 = vpop.f32.mrf.mxu0
  %336 = vmatprep.mubr.f32.mxu0 0.0
  %337 = vmatmul.mubr.f32.gmra.mxu0 %v143
  %v338 = vpop.f32.mrf.mxu0
  %v339 = vadd.f32 %v112, %v338
  %v340 = vpop.f32.mrf.mxu0
  %341 = vmatprep.mubr.f32.mxu0 0.0
  %342 = vmatmul.mubr.f32.gmra.mxu0 %v146
  %v343 = vpop.f32.mrf.mxu0
  %v344 = vadd.f32 %v112, %v343
  %v345 = vpop.f32.mrf.mxu0
  %346 = vmatprep.mubr.f32.mxu0 0.0
  %347 = vmatmul.mubr.f32.gmra.mxu0 %v149
  %v348 = vpop.f32.mrf.mxu0
  %v349 = vadd.f32 %v112, %v348
  %v350 = vpop.f32.mrf.mxu0
  %351 = vmatprep.mubr.f32.mxu0 0.0
  %352 = vmatmul.mubr.f32.gmra.mxu0 %v152
  %v353 = vpop.f32.mrf.mxu0
  %v354 = vadd.f32 %v112, %v353
  %v355 = vpop.f32.mrf.mxu0
  %356 = vmatprep.mubr.f32.mxu0 0.0
  %357 = vmatmul.mubr.f32.gmra.mxu0 %v155
  %v358 = vpop.f32.mrf.mxu0
  %v359 = vadd.f32 %v112, %v358
  %v360 = vpop.f32.mrf.mxu0
  %361 = vmatprep.mubr.f32.mxu0 0.0
  %362 = vmatmul.mubr.f32.gmra.mxu0 %v158
  %v363 = vpop.f32.mrf.mxu0
  %v364 = vadd.f32 %v112, %v363
  %v365 = vpop.f32.mrf.mxu0
  %366 = vmatprep.mubr.f32.mxu0 0.0
  %367 = vmatmul.mubr.f32.gmra.mxu0 %v161
  %v368 = vpop.f32.mrf.mxu0
  %v369 = vadd.f32 %v112, %v368
  %v370 = vpop.f32.mrf.mxu0
  %371 = vmatprep.mubr.f32.mxu0 0.0
  %372 = vmatmul.mubr.f32.gmra.mxu0 %v164
  %v373 = vpop.f32.mrf.mxu0
  %v374 = vadd.f32 %v112, %v373
  %v375 = vpop.f32.mrf.mxu0
  %376 = vmatprep.mubr.f32.mxu0 0.0
  %377 = vmatmul.mubr.f32.gmra.mxu0 %v167
  %v378 = vpop.f32.mrf.mxu0
  %v379 = vadd.f32 %v112, %v378
  %v380 = vpop.f32.mrf.mxu0
  %381 = vmatprep.mubr.f32.mxu0 0.0
  %382 = vmatmul.mubr.f32.gmra.mxu0 %v170
  %v383 = vpop.f32.mrf.mxu0
  %v384 = vadd.f32 %v112, %v383
  %v385 = vpop.f32.mrf.mxu0
  %386 = vmatprep.mubr.f32.mxu0 0.0
  %387 = vmatmul.mubr.f32.gmra.mxu0 %v173
  %v388 = vpop.f32.mrf.mxu0
  %v389 = vadd.f32 %v112, %v388
  %v390 = vpop.f32.mrf.mxu0
  %391 = vmatprep.mubr.f32.mxu0 0.0
  %392 = vmatmul.mubr.f32.gmra.mxu0 %v176
  %v393 = vpop.f32.mrf.mxu0
  %v394 = vadd.f32 %v112, %v393
  %v395 = vpop.f32.mrf.mxu0
  %396 = vmatprep.mubr.f32.mxu0 0.0
  %397 = vmatmul.mubr.f32.gmra.mxu0 %v179
  %v398 = vpop.f32.mrf.mxu0
  %v399 = vadd.f32 %v112, %v398
  %v400 = vpop.f32.mrf.mxu0
  %401 = vmatprep.mubr.f32.mxu0 0.0
  %402 = vmatmul.mubr.f32.gmra.mxu0 %v182
  %v403 = vpop.f32.mrf.mxu0
  %v404 = vadd.f32 %v112, %v403
  %v405 = vpop.f32.mrf.mxu0
  %406 = vmatprep.mubr.f32.mxu0 0.0
  %407 = vmatmul.mubr.f32.gmra.mxu0 %v185
  %v408 = vpop.f32.mrf.mxu0
  %v409 = vadd.f32 %v112, %v408
  %v410 = vpop.f32.mrf.mxu0
  %411 = vmatprep.mubr.f32.mxu0 0.0
  %412 = vmatmul.mubr.f32.gmra.mxu0 %v188
  %v413 = vpop.f32.mrf.mxu0
  %v414 = vadd.f32 %v112, %v413
  %v415 = vpop.f32.mrf.mxu0
  %416 = vmatprep.mubr.f32.mxu0 0.0
  %417 = vmatmul.mubr.f32.gmra.mxu0 %v191
  %v418 = vpop.f32.mrf.mxu0
  %v419 = vadd.f32 %v112, %v418
  %v420 = vpop.f32.mrf.mxu0
  %421 = vmatprep.mubr.f32.mxu0 0.0
  %422 = vmatmul.mubr.f32.gmra.mxu0 %v194
  %v423 = vpop.f32.mrf.mxu0
  %v424 = vadd.f32 %v112, %v423
  %v425 = vpop.f32.mrf.mxu0
  %426 = vmatprep.mubr.f32.mxu0 0.0
  %427 = vmatmul.mubr.f32.gmra.mxu0 %v197
  %v428 = vpop.f32.mrf.mxu0
  %v429 = vadd.f32 %v112, %v428
  %v430 = vpop.f32.mrf.mxu0
  %431 = vmatprep.mubr.f32.mxu0 0.0
  %432 = vmatmul.mubr.f32.gmra.mxu0 %v200
  %v433 = vpop.f32.mrf.mxu0
  %v434 = vadd.f32 %v112, %v433
  %v435 = vpop.f32.mrf.mxu0
  %436 = vmatprep.mubr.f32.mxu0 0.0
  %437 = vmatmul.mubr.f32.gmra.mxu0 %v203
  %v438 = vpop.f32.mrf.mxu0
  %v439 = vadd.f32 %v112, %v438
  %v440 = vpop.f32.mrf.mxu0
  %441 = vmatprep.mubr.f32.mxu0 0.0
  %442 = vmatmul.mubr.f32.gmra.mxu0 %v206
  %v443 = vpop.f32.mrf.mxu0
  %v444 = vadd.f32 %v112, %v443
  %v445 = vpop.f32.mrf.mxu0
  %446 = vmatprep.mubr.f32.mxu0 0.0
  %447 = vmatmul.mubr.f32.gmra.mxu0 %v209
  %v448 = vpop.f32.mrf.mxu0
  %v449 = vadd.f32 %v112, %v448
  %v450 = vpop.f32.mrf.mxu0
  %451 = vmatprep.mubr.f32.mxu0 0.0
  %452 = vmatmul.mubr.f32.gmra.mxu0 %v212
  %v453 = vpop.f32.mrf.mxu0
  %v454 = vadd.f32 %v112, %v453
  %v455 = vpop.f32.mrf.mxu0
  %456 = vmatprep.mubr.f32.mxu0 0.0
  %457 = vmatmul.mubr.f32.gmra.mxu0 %v215
  %v458 = vpop.f32.mrf.mxu0
  %v459 = vadd.f32 %v112, %v458
  %v460 = vpop.f32.mrf.mxu0
  %461 = vmatprep.mubr.f32.mxu0 0.0
  %462 = vmatmul.mubr.f32.gmra.mxu0 %v218
  %v463 = vpop.f32.mrf.mxu0
  %v464 = vadd.f32 %v112, %v463
  %v465 = vpop.f32.mrf.mxu0
  %466 = vmatprep.mubr.f32.mxu0 0.0
  %467 = vmatmul.mubr.f32.gmra.mxu0 %v221
  %v468 = vpop.f32.mrf.mxu0
  %v469 = vadd.f32 %v112, %v468
  %v470 = vpop.f32.mrf.mxu0
  %471 = vdwg.mxu0
  %vm472 = vcmask 523264
  %473 = vst.msk [vmem:[#allocation2] sm:$0xff] %vm472, %v294
  %474 = vst.msk [vmem:[#allocation2 + $0x8] sm:$0xff] %vm472, %v299
  %475 = vst.msk [vmem:[#allocation2 + $0x10] sm:$0xff] %vm472, %v304
  %476 = vst.msk [vmem:[#allocation2 + $0x18] sm:$0xff] %vm472, %v309
  %477 = vst.msk [vmem:[#allocation2 + $0x20] sm:$0xff] %vm472, %v314
  %478 = vst.msk [vmem:[#allocation2 + $0x28] sm:$0xff] %vm472, %v319
  %479 = vst.msk [vmem:[#allocation2 + $0x30] sm:$0xff] %vm472, %v324
  %480 = vst.msk [vmem:[#allocation2 + $0x38] sm:$0xff] %vm472, %v329
  %481 = vst.msk [vmem:[#allocation2 + $0x40] sm:$0xff] %vm472, %v334
  %482 = vst.msk [vmem:[#allocation2 + $0x48] sm:$0xff] %vm472, %v339
  %483 = vst.msk [vmem:[#allocation2 + $0x50] sm:$0xff] %vm472, %v344
  %484 = vst.msk [vmem:[#allocation2 + $0x58] sm:$0xff] %vm472, %v349
  %485 = vst.msk [vmem:[#allocation2 + $0x60] sm:$0xff] %vm472, %v354
  %486 = vst.msk [vmem:[#allocation2 + $0x68] sm:$0xff] %vm472, %v359
  %487 = vst.msk [vmem:[#allocation2 + $0x70] sm:$0xff] %vm472, %v364
  %488 = vst.msk [vmem:[#allocation2 + $0x78] sm:$0xff] %vm472, %v369
  %489 = vst.msk [vmem:[#allocation2 + $0x80] sm:$0xff] %vm472, %v374
  %490 = vst.msk [vmem:[#allocation2 + $0x88] sm:$0xff] %vm472, %v379
  %491 = vst.msk [vmem:[#allocation2 + $0x90] sm:$0xff] %vm472, %v384
  %492 = vst.msk [vmem:[#allocation2 + $0x98] sm:$0xff] %vm472, %v389
  %493 = vst.msk [vmem:[#allocation2 + $0xa0] sm:$0xff] %vm472, %v394
  %494 = vst.msk [vmem:[#allocation2 + $0xa8] sm:$0xff] %vm472, %v399
  %495 = vst.msk [vmem:[#allocation2 + $0xb0] sm:$0xff] %vm472, %v404
  %496 = vst.msk [vmem:[#allocation2 + $0xb8] sm:$0xff] %vm472, %v409
  %497 = vst.msk [vmem:[#allocation2 + $0xc0] sm:$0xff] %vm472, %v414
  %498 = vst.msk [vmem:[#allocation2 + $0xc8] sm:$0xff] %vm472, %v419
  %499 = vst.msk [vmem:[#allocation2 + $0xd0] sm:$0xff] %vm472, %v424
  %500 = vst.msk [vmem:[#allocation2 + $0xd8] sm:$0xff] %vm472, %v429
  %501 = vst.msk [vmem:[#allocation2 + $0xe0] sm:$0xff] %vm472, %v434
  %502 = vst.msk [vmem:[#allocation2 + $0xe8] sm:$0xff] %vm472, %v439
  %503 = vst.msk [vmem:[#allocation2 + $0xf0] sm:$0xff] %vm472, %v444
  %504 = vst.msk [vmem:[#allocation2 + $0xf8] sm:$0xff] %vm472, %v449
  %505 = vst.msk [vmem:[#allocation2 + $0x100] sm:$0xff] %vm472, %v454
  %506 = vst.msk [vmem:[#allocation2 + $0x108] sm:$0xff] %vm472, %v459
  %507 = vst.msk [vmem:[#allocation2 + $0x110] sm:$0xff] %vm472, %v464
  %508 = vst.msk [vmem:[#allocation2 + $0x118] sm:$0xff] %vm472, %v469
  %v509 = vld [vmem:[%s3] sm:$0x7f]
  %v510 = vld [vmem:[%s7] sm:$0x1]
  %v512 = vlaneseq
  %v513 = vshrl.u32 %v512, 7
  %v514 = vsub.s32 0, %v513
  %v515 = vrot.slane %v510, %v514
  %v518 = vsel %vm223, %v509, 0
  %520 = vmatprep.subr.mxu0 0.0
  %521 = vmatpush1.msra.mxu0 0.0
  %522 = vmatprep.subr.mxu0 0.0
  %523 = vmatpush1.msra.mxu0 0.0
  %524 = vmatprep.subr.mxu0 0.0
  %525 = vmatpush1.msra.mxu0 0.0
  %526 = vmatprep.subr.mxu0 0.0
  %527 = vmatpush1.msra.mxu0 0.0
  %528 = vmatprep.subr.mxu0 0.0
  %529 = vmatpush1.msra.mxu0 0.0
  %530 = vmatprep.subr.mxu0 0.0
  %531 = vmatpush1.msra.mxu0 0.0
  %532 = vmatprep.subr.mxu0 0.0
  %533 = vmatpush1.msra.mxu0 0.0
  %534 = vmatprep.subr.mxu0 0.0
  %535 = vmatpush1.msra.mxu0 0.0
  %536 = vmatprep.subr.mxu0 0.0
  %537 = vmatpush1.msra.mxu0 0.0
  %538 = vmatprep.subr.mxu0 0.0
  %539 = vmatpush1.msra.mxu0 0.0
  %540 = vmatprep.subr.mxu0 0.0
  %541 = vmatpush1.msra.mxu0 0.0
  %542 = vmatprep.subr.mxu0 0.0
  %543 = vmatpush1.msra.mxu0 0.0
  %544 = vmatprep.subr.mxu0 0.0
  %545 = vmatpush1.msra.mxu0 0.0
  %546 = vmatprep.subr.mxu0 0.0
  %547 = vmatpush1.msra.mxu0 0.0
  %548 = vmatprep.subr.mxu0 0.0
  %549 = vmatpush1.msra.mxu0 0.0
  %550 = vmatprep.subr.mxu0 0.0
  %551 = vmatpush1.msra.mxu0 %v518
  %552 = vmatprep.subr.mxu0 0.0
  %553 = vmatpush2.msra.mxu0 0.0
  %554 = vmatprep.subr.mxu0 0.0
  %555 = vmatpush2.msra.mxu0 0.0
  %556 = vmatprep.subr.mxu0 0.0
  %557 = vmatpush2.msra.mxu0 0.0
  %558 = vmatprep.subr.mxu0 0.0
  %559 = vmatpush2.msra.mxu0 0.0
  %560 = vmatprep.subr.mxu0 0.0
  %561 = vmatpush2.msra.mxu0 0.0
  %562 = vmatprep.subr.mxu0 0.0
  %563 = vmatpush2.msra.mxu0 0.0
  %564 = vmatprep.subr.mxu0 0.0
  %565 = vmatpush2.msra.mxu0 0.0
  %566 = vmatprep.subr.mxu0 0.0
  %567 = vmatpush2.msra.mxu0 0.0
  %568 = vmatprep.subr.mxu0 0.0
  %569 = vmatpush2.msra.mxu0 0.0
  %570 = vmatprep.subr.mxu0 0.0
  %571 = vmatpush2.msra.mxu0 0.0
  %572 = vmatprep.subr.mxu0 0.0
  %573 = vmatpush2.msra.mxu0 0.0
  %574 = vmatprep.subr.mxu0 0.0
  %575 = vmatpush2.msra.mxu0 0.0
  %576 = vmatprep.subr.mxu0 0.0
  %577 = vmatpush2.msra.mxu0 0.0
  %578 = vmatprep.subr.mxu0 0.0
  %579 = vmatpush2.msra.mxu0 0.0
  %580 = vmatprep.subr.mxu0 0.0
  %581 = vmatpush2.msra.mxu0 0.0
  %582 = vmatprep.subr.mxu0 0.0
  %583 = vmatpush2.msra.mxu0 0.0
  %584 = vmatprep.mubr.f32.mxu0 0.0
  %585 = vmatmul.mubr.f32.gmra.mxu0 %v116
  %v586 = vpop.f32.mrf.mxu0
  %v587 = vadd.f32 %v515, %v586
  %v588 = vpop.f32.mrf.mxu0
  %589 = vmatprep.mubr.f32.mxu0 0.0
  %590 = vmatmul.mubr.f32.gmra.mxu0 %v119
  %v591 = vpop.f32.mrf.mxu0
  %v592 = vadd.f32 %v515, %v591
  %v593 = vpop.f32.mrf.mxu0
  %594 = vmatprep.mubr.f32.mxu0 0.0
  %595 = vmatmul.mubr.f32.gmra.mxu0 %v122
  %v596 = vpop.f32.mrf.mxu0
  %v597 = vadd.f32 %v515, %v596
  %v598 = vpop.f32.mrf.mxu0
  %599 = vmatprep.mubr.f32.mxu0 0.0
  %600 = vmatmul.mubr.f32.gmra.mxu0 %v125
  %v601 = vpop.f32.mrf.mxu0
  %v602 = vadd.f32 %v515, %v601
  %v603 = vpop.f32.mrf.mxu0
  %604 = vmatprep.mubr.f32.mxu0 0.0
  %605 = vmatmul.mubr.f32.gmra.mxu0 %v128
  %v606 = vpop.f32.mrf.mxu0
  %v607 = vadd.f32 %v515, %v606
  %v608 = vpop.f32.mrf.mxu0
  %609 = vmatprep.mubr.f32.mxu0 0.0
  %610 = vmatmul.mubr.f32.gmra.mxu0 %v131
  %v611 = vpop.f32.mrf.mxu0
  %v612 = vadd.f32 %v515, %v611
  %v613 = vpop.f32.mrf.mxu0
  %614 = vmatprep.mubr.f32.mxu0 0.0
  %615 = vmatmul.mubr.f32.gmra.mxu0 %v134
  %v616 = vpop.f32.mrf.mxu0
  %v617 = vadd.f32 %v515, %v616
  %v618 = vpop.f32.mrf.mxu0
  %619 = vmatprep.mubr.f32.mxu0 0.0
  %620 = vmatmul.mubr.f32.gmra.mxu0 %v137
  %v621 = vpop.f32.mrf.mxu0
  %v622 = vadd.f32 %v515, %v621
  %v623 = vpop.f32.mrf.mxu0
  %624 = vmatprep.mubr.f32.mxu0 0.0
  %625 = vmatmul.mubr.f32.gmra.mxu0 %v140
  %v626 = vpop.f32.mrf.mxu0
  %v627 = vadd.f32 %v515, %v626
  %v628 = vpop.f32.mrf.mxu0
  %629 = vmatprep.mubr.f32.mxu0 0.0
  %630 = vmatmul.mubr.f32.gmra.mxu0 %v143
  %v631 = vpop.f32.mrf.mxu0
  %v632 = vadd.f32 %v515, %v631
  %v633 = vpop.f32.mrf.mxu0
  %634 = vmatprep.mubr.f32.mxu0 0.0
  %635 = vmatmul.mubr.f32.gmra.mxu0 %v146
  %v636 = vpop.f32.mrf.mxu0
  %v637 = vadd.f32 %v515, %v636
  %v638 = vpop.f32.mrf.mxu0
  %639 = vmatprep.mubr.f32.mxu0 0.0
  %640 = vmatmul.mubr.f32.gmra.mxu0 %v149
  %v641 = vpop.f32.mrf.mxu0
  %v642 = vadd.f32 %v515, %v641
  %v643 = vpop.f32.mrf.mxu0
  %644 = vmatprep.mubr.f32.mxu0 0.0
  %645 = vmatmul.mubr.f32.gmra.mxu0 %v152
  %v646 = vpop.f32.mrf.mxu0
  %v647 = vadd.f32 %v515, %v646
  %v648 = vpop.f32.mrf.mxu0
  %649 = vmatprep.mubr.f32.mxu0 0.0
  %650 = vmatmul.mubr.f32.gmra.mxu0 %v155
  %v651 = vpop.f32.mrf.mxu0
  %v652 = vadd.f32 %v515, %v651
  %v653 = vpop.f32.mrf.mxu0
  %654 = vmatprep.mubr.f32.mxu0 0.0
  %655 = vmatmul.mubr.f32.gmra.mxu0 %v158
  %v656 = vpop.f32.mrf.mxu0
  %v657 = vadd.f32 %v515, %v656
  %v658 = vpop.f32.mrf.mxu0
  %659 = vmatprep.mubr.f32.mxu0 0.0
  %660 = vmatmul.mubr.f32.gmra.mxu0 %v161
  %v661 = vpop.f32.mrf.mxu0
  %v662 = vadd.f32 %v515, %v661
  %v663 = vpop.f32.mrf.mxu0
  %664 = vmatprep.mubr.f32.mxu0 0.0
  %665 = vmatmul.mubr.f32.gmra.mxu0 %v164
  %v666 = vpop.f32.mrf.mxu0
  %v667 = vadd.f32 %v515, %v666
  %v668 = vpop.f32.mrf.mxu0
  %669 = vmatprep.mubr.f32.mxu0 0.0
  %670 = vmatmul.mubr.f32.gmra.mxu0 %v167
  %v671 = vpop.f32.mrf.mxu0
  %v672 = vadd.f32 %v515, %v671
  %v673 = vpop.f32.mrf.mxu0
  %674 = vmatprep.mubr.f32.mxu0 0.0
  %675 = vmatmul.mubr.f32.gmra.mxu0 %v170
  %v676 = vpop.f32.mrf.mxu0
  %v677 = vadd.f32 %v515, %v676
  %v678 = vpop.f32.mrf.mxu0
  %679 = vmatprep.mubr.f32.mxu0 0.0
  %680 = vmatmul.mubr.f32.gmra.mxu0 %v173
  %v681 = vpop.f32.mrf.mxu0
  %v682 = vadd.f32 %v515, %v681
  %v683 = vpop.f32.mrf.mxu0
  %684 = vmatprep.mubr.f32.mxu0 0.0
  %685 = vmatmul.mubr.f32.gmra.mxu0 %v176
  %v686 = vpop.f32.mrf.mxu0
  %v687 = vadd.f32 %v515, %v686
  %v688 = vpop.f32.mrf.mxu0
  %689 = vmatprep.mubr.f32.mxu0 0.0
  %690 = vmatmul.mubr.f32.gmra.mxu0 %v179
  %v691 = vpop.f32.mrf.mxu0
  %v692 = vadd.f32 %v515, %v691
  %v693 = vpop.f32.mrf.mxu0
  %694 = vmatprep.mubr.f32.mxu0 0.0
  %695 = vmatmul.mubr.f32.gmra.mxu0 %v182
  %v696 = vpop.f32.mrf.mxu0
  %v697 = vadd.f32 %v515, %v696
  %v698 = vpop.f32.mrf.mxu0
  %699 = vmatprep.mubr.f32.mxu0 0.0
  %700 = vmatmul.mubr.f32.gmra.mxu0 %v185
  %v701 = vpop.f32.mrf.mxu0
  %v702 = vadd.f32 %v515, %v701
  %v703 = vpop.f32.mrf.mxu0
  %704 = vmatprep.mubr.f32.mxu0 0.0
  %705 = vmatmul.mubr.f32.gmra.mxu0 %v188
  %v706 = vpop.f32.mrf.mxu0
  %v707 = vadd.f32 %v515, %v706
  %v708 = vpop.f32.mrf.mxu0
  %709 = vmatprep.mubr.f32.mxu0 0.0
  %710 = vmatmul.mubr.f32.gmra.mxu0 %v191
  %v711 = vpop.f32.mrf.mxu0
  %v712 = vadd.f32 %v515, %v711
  %v713 = vpop.f32.mrf.mxu0
  %714 = vmatprep.mubr.f32.mxu0 0.0
  %715 = vmatmul.mubr.f32.gmra.mxu0 %v194
  %v716 = vpop.f32.mrf.mxu0
  %v717 = vadd.f32 %v515, %v716
  %v718 = vpop.f32.mrf.mxu0
  %719 = vmatprep.mubr.f32.mxu0 0.0
  %720 = vmatmul.mubr.f32.gmra.mxu0 %v197
  %v721 = vpop.f32.mrf.mxu0
  %v722 = vadd.f32 %v515, %v721
  %v723 = vpop.f32.mrf.mxu0
  %724 = vmatprep.mubr.f32.mxu0 0.0
  %725 = vmatmul.mubr.f32.gmra.mxu0 %v200
  %v726 = vpop.f32.mrf.mxu0
  %v727 = vadd.f32 %v515, %v726
  %v728 = vpop.f32.mrf.mxu0
  %729 = vmatprep.mubr.f32.mxu0 0.0
  %730 = vmatmul.mubr.f32.gmra.mxu0 %v203
  %v731 = vpop.f32.mrf.mxu0
  %v732 = vadd.f32 %v515, %v731
  %v733 = vpop.f32.mrf.mxu0
  %734 = vmatprep.mubr.f32.mxu0 0.0
  %735 = vmatmul.mubr.f32.gmra.mxu0 %v206
  %v736 = vpop.f32.mrf.mxu0
  %v737 = vadd.f32 %v515, %v736
  %v738 = vpop.f32.mrf.mxu0
  %739 = vmatprep.mubr.f32.mxu0 0.0
  %740 = vmatmul.mubr.f32.gmra.mxu0 %v209
  %v741 = vpop.f32.mrf.mxu0
  %v742 = vadd.f32 %v515, %v741
  %v743 = vpop.f32.mrf.mxu0
  %744 = vmatprep.mubr.f32.mxu0 0.0
  %745 = vmatmul.mubr.f32.gmra.mxu0 %v212
  %v746 = vpop.f32.mrf.mxu0
  %v747 = vadd.f32 %v515, %v746
  %v748 = vpop.f32.mrf.mxu0
  %749 = vmatprep.mubr.f32.mxu0 0.0
  %750 = vmatmul.mubr.f32.gmra.mxu0 %v215
  %v751 = vpop.f32.mrf.mxu0
  %v752 = vadd.f32 %v515, %v751
  %v753 = vpop.f32.mrf.mxu0
  %754 = vmatprep.mubr.f32.mxu0 0.0
  %755 = vmatmul.mubr.f32.gmra.mxu0 %v218
  %v756 = vpop.f32.mrf.mxu0
  %v757 = vadd.f32 %v515, %v756
  %v758 = vpop.f32.mrf.mxu0
  %759 = vmatprep.mubr.f32.mxu0 0.0
  %760 = vmatmul.mubr.f32.gmra.mxu0 %v221
  %v761 = vpop.f32.mrf.mxu0
  %v762 = vadd.f32 %v515, %v761
  %v763 = vpop.f32.mrf.mxu0
  %764 = vdwg.mxu0
  %vm765 = vcmask 261120
  %766 = vst.msk [vmem:[#allocation3] sm:$0xff] %vm765, %v587
  %767 = vst.msk [vmem:[#allocation3 + $0x8] sm:$0xff] %vm765, %v592
  %768 = vst.msk [vmem:[#allocation3 + $0x10] sm:$0xff] %vm765, %v597
  %769 = vst.msk [vmem:[#allocation3 + $0x18] sm:$0xff] %vm765, %v602
  %770 = vst.msk [vmem:[#allocation3 + $0x20] sm:$0xff] %vm765, %v607
  %771 = vst.msk [vmem:[#allocation3 + $0x28] sm:$0xff] %vm765, %v612
  %772 = vst.msk [vmem:[#allocation3 + $0x30] sm:$0xff] %vm765, %v617
  %773 = vst.msk [vmem:[#allocation3 + $0x38] sm:$0xff] %vm765, %v622
  %774 = vst.msk [vmem:[#allocation3 + $0x40] sm:$0xff] %vm765, %v627
  %775 = vst.msk [vmem:[#allocation3 + $0x48] sm:$0xff] %vm765, %v632
  %776 = vst.msk [vmem:[#allocation3 + $0x50] sm:$0xff] %vm765, %v637
  %777 = vst.msk [vmem:[#allocation3 + $0x58] sm:$0xff] %vm765, %v642
  %778 = vst.msk [vmem:[#allocation3 + $0x60] sm:$0xff] %vm765, %v647
  %779 = vst.msk [vmem:[#allocation3 + $0x68] sm:$0xff] %vm765, %v652
  %780 = vst.msk [vmem:[#allocation3 + $0x70] sm:$0xff] %vm765, %v657
  %781 = vst.msk [vmem:[#allocation3 + $0x78] sm:$0xff] %vm765, %v662
  %782 = vst.msk [vmem:[#allocation3 + $0x80] sm:$0xff] %vm765, %v667
  %783 = vst.msk [vmem:[#allocation3 + $0x88] sm:$0xff] %vm765, %v672
  %784 = vst.msk [vmem:[#allocation3 + $0x90] sm:$0xff] %vm765, %v677
  %785 = vst.msk [vmem:[#allocation3 + $0x98] sm:$0xff] %vm765, %v682
  %786 = vst.msk [vmem:[#allocation3 + $0xa0] sm:$0xff] %vm765, %v687
  %787 = vst.msk [vmem:[#allocation3 + $0xa8] sm:$0xff] %vm765, %v692
  %788 = vst.msk [vmem:[#allocation3 + $0xb0] sm:$0xff] %vm765, %v697
  %789 = vst.msk [vmem:[#allocation3 + $0xb8] sm:$0xff] %vm765, %v702
  %790 = vst.msk [vmem:[#allocation3 + $0xc0] sm:$0xff] %vm765, %v707
  %791 = vst.msk [vmem:[#allocation3 + $0xc8] sm:$0xff] %vm765, %v712
  %792 = vst.msk [vmem:[#allocation3 + $0xd0] sm:$0xff] %vm765, %v717
  %793 = vst.msk [vmem:[#allocation3 + $0xd8] sm:$0xff] %vm765, %v722
  %794 = vst.msk [vmem:[#allocation3 + $0xe0] sm:$0xff] %vm765, %v727
  %795 = vst.msk [vmem:[#allocation3 + $0xe8] sm:$0xff] %vm765, %v732
  %796 = vst.msk [vmem:[#allocation3 + $0xf0] sm:$0xff] %vm765, %v737
  %797 = vst.msk [vmem:[#allocation3 + $0xf8] sm:$0xff] %vm765, %v742
  %798 = vst.msk [vmem:[#allocation3 + $0x100] sm:$0xff] %vm765, %v747
  %799 = vst.msk [vmem:[#allocation3 + $0x108] sm:$0xff] %vm765, %v752
  %800 = vst.msk [vmem:[#allocation3 + $0x110] sm:$0xff] %vm765, %v757
  %801 = vst.msk [vmem:[#allocation3 + $0x118] sm:$0xff] %vm765, %v762
  %v802 = vld [vmem:[%s1] sm:$0xff]
  %v803 = vld [vmem:[%s1 + $0x8] sm:$0xff]
  %v804 = vld [vmem:[%s1 + $0x10] sm:$0xff]
  %v805 = vld [vmem:[%s1 + $0x18] sm:$0xff]
  %v806 = vld [vmem:[%s1 + $0x20] sm:$0xff]
  %vm807 = vcmask 39936
  %v808 = vsel %vm807, %v802, -inf
  %809 = vmax.xlane.f32.xlu0 %v808
  %v810 = vpop.xlane.xlu0 %809
  %v811 = vsel %vm807, %v803, -inf
  %812 = vmax.xlane.f32.xlu0 %v811
  %v813 = vpop.xlane.xlu0 %812
  %v814 = vsel %vm807, %v804, -inf
  %815 = vmax.xlane.f32.xlu0 %v814
  %v816 = vpop.xlane.xlu0 %815
  %v817 = vsel %vm807, %v805, -inf
  %818 = vmax.xlane.f32.xlu0 %v817
  %v819 = vpop.xlane.xlu0 %818
  %v820 = vsel %vm807, %v806, -inf
  %821 = vmax.xlane.f32.xlu0 %v820
  %v822 = vpop.xlane.xlu0 %821
  %v823 = vld [vmem:[%s9] sm:$0x1]
  %v825 = vlaneseq
  %v826 = vshrl.u32 %v825, 7
  %v827 = vsub.s32 0, %v826
  %v828 = vrot.slane %v823, %v827
  %v830 = vmul.f32 %v810, %v828
  %v831 = vmul.f32 %v813, %v828
  %v832 = vmul.f32 %v816, %v828
  %v833 = vmul.f32 %v819, %v828
  %v834 = vmul.f32 %v822, %v828
  %v835 = vld [vmem:[%s13] sm:$0x1]
  %v837 = vlaneseq
  %v838 = vshrl.u32 %v837, 7
  %v839 = vsub.s32 0, %v838
  %v840 = vrot.slane %v835, %v839
  %v842 = vadd.f32 %v830, %v840
  %v843 = vadd.f32 %v831, %v840
  %v844 = vadd.f32 %v832, %v840
  %v845 = vadd.f32 %v833, %v840
  %v846 = vadd.f32 %v834, %v840
  %vm847 = vcmask 130048
  %848 = vst.msk [vmem:[#allocation4] sm:$0xff] %vm847, %v842
  %849 = vst.msk [vmem:[#allocation4 + $0x8] sm:$0xff] %vm847, %v843
  %850 = vst.msk [vmem:[#allocation4 + $0x10] sm:$0xff] %vm847, %v844
  %851 = vst.msk [vmem:[#allocation4 + $0x18] sm:$0xff] %vm847, %v845
  %852 = vst.msk [vmem:[#allocation4 + $0x20] sm:$0xff] %vm847, %v846
  %v853 = vld [vmem:[%s10] sm:$0x1]
  %v855 = vlaneseq
  %v856 = vshrl.u32 %v855, 7
  %v857 = vsub.s32 0, %v856
  %v858 = vrot.slane %v853, %v857
  %v860 = vmul.f32 %v810, %v858
  %v861 = vmul.f32 %v813, %v858
  %v862 = vmul.f32 %v816, %v858
  %v863 = vmul.f32 %v819, %v858
  %v864 = vmul.f32 %v822, %v858
  %v865 = vld [vmem:[%s14] sm:$0x1]
  %v867 = vlaneseq
  %v868 = vshrl.u32 %v867, 7
  %v869 = vsub.s32 0, %v868
  %v870 = vrot.slane %v865, %v869
  %v872 = vadd.f32 %v860, %v870
  %v873 = vadd.f32 %v861, %v870
  %v874 = vadd.f32 %v862, %v870
  %v875 = vadd.f32 %v863, %v870
  %v876 = vadd.f32 %v864, %v870
  %vm877 = vcmask 64512
  %878 = vst.msk [vmem:[#allocation5] sm:$0xff] %vm877, %v872
  %879 = vst.msk [vmem:[#allocation5 + $0x8] sm:$0xff] %vm877, %v873
  %880 = vst.msk [vmem:[#allocation5 + $0x10] sm:$0xff] %vm877, %v874
  %881 = vst.msk [vmem:[#allocation5 + $0x18] sm:$0xff] %vm877, %v875
  %882 = vst.msk [vmem:[#allocation5 + $0x20] sm:$0xff] %vm877, %v876
  %v883 = vld [vmem:[%s4] sm:$0xff]
  %v884 = vld [vmem:[%s4 + $0x8] sm:$0xff]
  %v885 = vld [vmem:[%s4 + $0x10] sm:$0xff]
  %v886 = vld [vmem:[%s4 + $0x18] sm:$0xff]
  %v887 = vld [vmem:[%s5] sm:$0xff]
  %v888 = vld [vmem:[%s5 + $0x8] sm:$0xff]
  %v889 = vld [vmem:[%s5 + $0x10] sm:$0xff]
  %v890 = vld [vmem:[%s5 + $0x18] sm:$0xff]
  %v891 = vld [vmem:[%s8] sm:$0x1]
  %v893 = vlaneseq
  %v894 = vshrl.u32 %v893, 7
  %v895 = vsub.s32 0, %v894
  %v896 = vrot.slane %v891, %v895
  %v898 = vld [vmem:[#allocation2] sm:$0xff]
  %v899 = vld [vmem:[#allocation3] sm:$0xff]
  %v901 = vsel %vm765, 0.0, 0
  %903 = vmatprep.subr.mxu0 0.0
  %904 = vmatpush1.msra.mxu0 0.0
  %905 = vmatprep.subr.mxu0 0.0
  %906 = vmatpush1.msra.mxu0 0.0
  %907 = vmatprep.subr.mxu0 0.0
  %908 = vmatpush1.msra.mxu0 0.0
  %909 = vmatprep.subr.mxu0 0.0
  %910 = vmatpush1.msra.mxu0 0.0
  %911 = vmatprep.subr.mxu0 0.0
  %912 = vmatpush1.msra.mxu0 0.0
  %913 = vmatprep.subr.mxu0 0.0
  %914 = vmatpush1.msra.mxu0 0.0
  %915 = vmatprep.subr.mxu0 0.0
  %916 = vmatpush1.msra.mxu0 0.0
  %917 = vmatprep.subr.mxu0 0.0
  %918 = vmatpush1.msra.mxu0 0.0
  %919 = vmatprep.subr.mxu0 0.0
  %920 = vmatpush1.msra.mxu0 0.0
  %921 = vmatprep.subr.mxu0 0.0
  %922 = vmatpush1.msra.mxu0 0.0
  %923 = vmatprep.subr.mxu0 0.0
  %924 = vmatpush1.msra.mxu0 0.0
  %925 = vmatprep.subr.mxu0 0.0
  %926 = vmatpush1.msra.mxu0 0.0
  %927 = vmatprep.subr.mxu0 0.0
  %928 = vmatpush1.msra.mxu0 %v886
  %929 = vmatprep.subr.mxu0 0.0
  %930 = vmatpush1.msra.mxu0 %v885
  %931 = vmatprep.subr.mxu0 0.0
  %932 = vmatpush1.msra.mxu0 %v884
  %933 = vmatprep.subr.mxu0 0.0
  %934 = vmatpush1.msra.mxu0 %v883
  %935 = vmatprep.subr.mxu0 0.0
  %936 = vmatpush2.msra.mxu0 0.0
  %937 = vmatprep.subr.mxu0 0.0
  %938 = vmatpush2.msra.mxu0 0.0
  %939 = vmatprep.subr.mxu0 0.0
  %940 = vmatpush2.msra.mxu0 0.0
  %941 = vmatprep.subr.mxu0 0.0
  %942 = vmatpush2.msra.mxu0 0.0
  %943 = vmatprep.subr.mxu0 0.0
  %944 = vmatpush2.msra.mxu0 0.0
  %945 = vmatprep.subr.mxu0 0.0
  %946 = vmatpush2.msra.mxu0 0.0
  %947 = vmatprep.subr.mxu0 0.0
  %948 = vmatpush2.msra.mxu0 0.0
  %949 = vmatprep.subr.mxu0 0.0
  %950 = vmatpush2.msra.mxu0 0.0
  %951 = vmatprep.subr.mxu0 0.0
  %952 = vmatpush2.msra.mxu0 0.0
  %953 = vmatprep.subr.mxu0 0.0
  %954 = vmatpush2.msra.mxu0 0.0
  %955 = vmatprep.subr.mxu0 0.0
  %956 = vmatpush2.msra.mxu0 0.0
  %957 = vmatprep.subr.mxu0 0.0
  %958 = vmatpush2.msra.mxu0 0.0
  %959 = vmatprep.subr.mxu0 0.0
  %960 = vmatpush2.msra.mxu0 0.0
  %961 = vmatprep.subr.mxu0 0.0
  %962 = vmatpush2.msra.mxu0 0.0
  %963 = vmatprep.subr.mxu0 0.0
  %964 = vmatpush2.msra.mxu0 0.0
  %965 = vmatprep.subr.mxu0 0.0
  %966 = vmatpush2.msra.mxu0 0.0
  %967 = vmatprep.mubr.f32.mxu0 0.0
  %968 = vmatmul.mubr.f32.gmra.mxu0 %v901
  %v969 = vpop.f32.mrf.mxu0
  %v970 = vadd.f32 0.0, %v969
  %v971 = vpop.f32.mrf.mxu0
  %972 = vdwg.mxu0
  %v973 = vadd.f32 %v898, %v970
  %v974 = vmul.f32 %v973, 0.5
  %v975 = vtanh.pop %v974
  %v976 = vadd.f32 %v975, 1.0
  %v977 = vmul.f32 %v976, 0.5
  %978 = vmatprep.subr.mxu0 0.0
  %979 = vmatpush1.msra.mxu0 0.0
  %980 = vmatprep.subr.mxu0 0.0
  %981 = vmatpush1.msra.mxu0 0.0
  %982 = vmatprep.subr.mxu0 0.0
  %983 = vmatpush1.msra.mxu0 0.0
  %984 = vmatprep.subr.mxu0 0.0
  %985 = vmatpush1.msra.mxu0 0.0
  %986 = vmatprep.subr.mxu0 0.0
  %987 = vmatpush1.msra.mxu0 0.0
  %988 = vmatprep.subr.mxu0 0.0
  %989 = vmatpush1.msra.mxu0 0.0
  %990 = vmatprep.subr.mxu0 0.0
  %991 = vmatpush1.msra.mxu0 0.0
  %992 = vmatprep.subr.mxu0 0.0
  %993 = vmatpush1.msra.mxu0 0.0
  %994 = vmatprep.subr.mxu0 0.0
  %995 = vmatpush1.msra.mxu0 0.0
  %996 = vmatprep.subr.mxu0 0.0
  %997 = vmatpush1.msra.mxu0 0.0
  %998 = vmatprep.subr.mxu0 0.0
  %999 = vmatpush1.msra.mxu0 0.0
  %1000 = vmatprep.subr.mxu0 0.0
  %1001 = vmatpush1.msra.mxu0 0.0
  %1002 = vmatprep.subr.mxu0 0.0
  %1003 = vmatpush1.msra.mxu0 %v890
  %1004 = vmatprep.subr.mxu0 0.0
  %1005 = vmatpush1.msra.mxu0 %v889
  %1006 = vmatprep.subr.mxu0 0.0
  %1007 = vmatpush1.msra.mxu0 %v888
  %1008 = vmatprep.subr.mxu0 0.0
  %1009 = vmatpush1.msra.mxu0 %v887
  %1010 = vmatprep.subr.mxu0 0.0
  %1011 = vmatpush2.msra.mxu0 0.0
  %1012 = vmatprep.subr.mxu0 0.0
  %1013 = vmatpush2.msra.mxu0 0.0
  %1014 = vmatprep.subr.mxu0 0.0
  %1015 = vmatpush2.msra.mxu0 0.0
  %1016 = vmatprep.subr.mxu0 0.0
  %1017 = vmatpush2.msra.mxu0 0.0
  %1018 = vmatprep.subr.mxu0 0.0
  %1019 = vmatpush2.msra.mxu0 0.0
  %1020 = vmatprep.subr.mxu0 0.0
  %1021 = vmatpush2.msra.mxu0 0.0
  %1022 = vmatprep.subr.mxu0 0.0
  %1023 = vmatpush2.msra.mxu0 0.0
  %1024 = vmatprep.subr.mxu0 0.0
  %1025 = vmatpush2.msra.mxu0 0.0
  %1026 = vmatprep.subr.mxu0 0.0
  %1027 = vmatpush2.msra.mxu0 0.0
  %1028 = vmatprep.subr.mxu0 0.0
  %1029 = vmatpush2.msra.mxu0 0.0
  %1030 = vmatprep.subr.mxu0 0.0
  %1031 = vmatpush2.msra.mxu0 0.0
  %1032 = vmatprep.subr.mxu0 0.0
  %1033 = vmatpush2.msra.mxu0 0.0
  %1034 = vmatprep.subr.mxu0 0.0
  %1035 = vmatpush2.msra.mxu0 0.0
  %1036 = vmatprep.subr.mxu0 0.0
  %1037 = vmatpush2.msra.mxu0 0.0
  %1038 = vmatprep.subr.mxu0 0.0
  %1039 = vmatpush2.msra.mxu0 0.0
  %1040 = vmatprep.subr.mxu0 0.0
  %1041 = vmatpush2.msra.mxu0 0.0
  %1042 = vmatprep.mubr.f32.mxu0 0.0
  %1043 = vmatmul.mubr.f32.gmra.mxu0 %v901
  %v1044 = vpop.f32.mrf.mxu0
  %v1045 = vadd.f32 %v896, %v1044
  %v1046 = vpop.f32.mrf.mxu0
  %1047 = vdwg.mxu0
  %v1048 = vmul.f32 %v977, %v1045
  %v1049 = vadd.f32 %v899, %v1048
  %v1050 = vtanh.pop %v1049
  %v1051 = vsub.f32 0.0, %v1050
  %1053 = vrot.lane.b32.xlu0 %v1051, 32
  %v1054 = vpop.permute.xlu0 %1053
  %v1056 = vmul.f32 %v977, %v1054
  %1058 = vrot.lane.b32.xlu0 %v1056, 96
  %v1059 = vpop.permute.xlu0 %1058
  %v1061 = vadd.f32 %v1050, %v1059
  %v1062 = vld [vmem:[#allocation2 + $0x8] sm:$0xff]
  %v1063 = vld [vmem:[#allocation3 + $0x8] sm:$0xff]
  %v1065 = vsel %vm765, %v1061, 0
  %1067 = vmatprep.subr.mxu0 0.0
  %1068 = vmatpush1.msra.mxu0 0.0
  %1069 = vmatprep.subr.mxu0 0.0
  %1070 = vmatpush1.msra.mxu0 0.0
  %1071 = vmatprep.subr.mxu0 0.0
  %1072 = vmatpush1.msra.mxu0 0.0
  %1073 = vmatprep.subr.mxu0 0.0
  %1074 = vmatpush1.msra.mxu0 0.0
  %1075 = vmatprep.subr.mxu0 0.0
  %1076 = vmatpush1.msra.mxu0 0.0
  %1077 = vmatprep.subr.mxu0 0.0
  %1078 = vmatpush1.msra.mxu0 0.0
  %1079 = vmatprep.subr.mxu0 0.0
  %1080 = vmatpush1.msra.mxu0 0.0
  %1081 = vmatprep.subr.mxu0 0.0
  %1082 = vmatpush1.msra.mxu0 0.0
  %1083 = vmatprep.subr.mxu0 0.0
  %1084 = vmatpush1.msra.mxu0 0.0
  %1085 = vmatprep.subr.mxu0 0.0
  %1086 = vmatpush1.msra.mxu0 0.0
  %1087 = vmatprep.subr.mxu0 0.0
  %1088 = vmatpush1.msra.mxu0 0.0
  %1089 = vmatprep.subr.mxu0 0.0
  %1090 = vmatpush1.msra.mxu0 0.0
  %1091 = vmatprep.subr.mxu0 0.0
  %1092 = vmatpush1.msra.mxu0 %v886
  %1093 = vmatprep.subr.mxu0 0.0
  %1094 = vmatpush1.msra.mxu0 %v885
  %1095 = vmatprep.subr.mxu0 0.0
  %1096 = vmatpush1.msra.mxu0 %v884
  %1097 = vmatprep.subr.mxu0 0.0
  %1098 = vmatpush1.msra.mxu0 %v883
  %1099 = vmatprep.subr.mxu0 0.0
  %1100 = vmatpush2.msra.mxu0 0.0
  %1101 = vmatprep.subr.mxu0 0.0
  %1102 = vmatpush2.msra.mxu0 0.0
  %1103 = vmatprep.subr.mxu0 0.0
  %1104 = vmatpush2.msra.mxu0 0.0
  %1105 = vmatprep.subr.mxu0 0.0
  %1106 = vmatpush2.msra.mxu0 0.0
  %1107 = vmatprep.subr.mxu0 0.0
  %1108 = vmatpush2.msra.mxu0 0.0
  %1109 = vmatprep.subr.mxu0 0.0
  %1110 = vmatpush2.msra.mxu0 0.0
  %1111 = vmatprep.subr.mxu0 0.0
  %1112 = vmatpush2.msra.mxu0 0.0
  %1113 = vmatprep.subr.mxu0 0.0
  %1114 = vmatpush2.msra.mxu0 0.0
  %1115 = vmatprep.subr.mxu0 0.0
  %1116 = vmatpush2.msra.mxu0 0.0
  %1117 = vmatprep.subr.mxu0 0.0
  %1118 = vmatpush2.msra.mxu0 0.0
  %1119 = vmatprep.subr.mxu0 0.0
  %1120 = vmatpush2.msra.mxu0 0.0
  %1121 = vmatprep.subr.mxu0 0.0
  %1122 = vmatpush2.msra.mxu0 0.0
  %1123 = vmatprep.subr.mxu0 0.0
  %1124 = vmatpush2.msra.mxu0 0.0
  %1125 = vmatprep.subr.mxu0 0.0
  %1126 = vmatpush2.msra.mxu0 0.0
  %1127 = vmatprep.subr.mxu0 0.0
  %1128 = vmatpush2.msra.mxu0 0.0
  %1129 = vmatprep.subr.mxu0 0.0
  %1130 = vmatpush2.msra.mxu0 0.0
  %1131 = vmatprep.mubr.f32.mxu0 0.0
  %1132 = vmatmul.mubr.f32.gmra.mxu0 %v1065
  %v1133 = vpop.f32.mrf.mxu0
  %v1134 = vadd.f32 0.0, %v1133
  %v1135 = vpop.f32.mrf.mxu0
  %1136 = vdwg.mxu0
  %v1137 = vadd.f32 %v1062, %v1134
  %v1138 = vmul.f32 %v1137, 0.5
  %v1139 = vtanh.pop %v1138
  %v1140 = vadd.f32 %v1139, 1.0
  %v1141 = vmul.f32 %v1140, 0.5
  %1142 = vmatprep.subr.mxu0 0.0
  %1143 = vmatpush1.msra.mxu0 0.0
  %1144 = vmatprep.subr.mxu0 0.0
  %1145 = vmatpush1.msra.mxu0 0.0
  %1146 = vmatprep.subr.mxu0 0.0
  %1147 = vmatpush1.msra.mxu0 0.0
  %1148 = vmatprep.subr.mxu0 0.0
  %1149 = vmatpush1.msra.mxu0 0.0
  %1150 = vmatprep.subr.mxu0 0.0
  %1151 = vmatpush1.msra.mxu0 0.0
  %1152 = vmatprep.subr.mxu0 0.0
  %1153 = vmatpush1.msra.mxu0 0.0
  %1154 = vmatprep.subr.mxu0 0.0
  %1155 = vmatpush1.msra.mxu0 0.0
  %1156 = vmatprep.subr.mxu0 0.0
  %1157 = vmatpush1.msra.mxu0 0.0
  %1158 = vmatprep.subr.mxu0 0.0
  %1159 = vmatpush1.msra.mxu0 0.0
  %1160 = vmatprep.subr.mxu0 0.0
  %1161 = vmatpush1.msra.mxu0 0.0
  %1162 = vmatprep.subr.mxu0 0.0
  %1163 = vmatpush1.msra.mxu0 0.0
  %1164 = vmatprep.subr.mxu0 0.0
  %1165 = vmatpush1.msra.mxu0 0.0
  %1166 = vmatprep.subr.mxu0 0.0
  %1167 = vmatpush1.msra.mxu0 %v890
  %1168 = vmatprep.subr.mxu0 0.0
  %1169 = vmatpush1.msra.mxu0 %v889
  %1170 = vmatprep.subr.mxu0 0.0
  %1171 = vmatpush1.msra.mxu0 %v888
  %1172 = vmatprep.subr.mxu0 0.0
  %1173 = vmatpush1.msra.mxu0 %v887
  %1174 = vmatprep.subr.mxu0 0.0
  %1175 = vmatpush2.msra.mxu0 0.0
  %1176 = vmatprep.subr.mxu0 0.0
  %1177 = vmatpush2.msra.mxu0 0.0
  %1178 = vmatprep.subr.mxu0 0.0
  %1179 = vmatpush2.msra.mxu0 0.0
  %1180 = vmatprep.subr.mxu0 0.0
  %1181 = vmatpush2.msra.mxu0 0.0
  %1182 = vmatprep.subr.mxu0 0.0
  %1183 = vmatpush2.msra.mxu0 0.0
  %1184 = vmatprep.subr.mxu0 0.0
  %1185 = vmatpush2.msra.mxu0 0.0
  %1186 = vmatprep.subr.mxu0 0.0
  %1187 = vmatpush2.msra.mxu0 0.0
  %1188 = vmatprep.subr.mxu0 0.0
  %1189 = vmatpush2.msra.mxu0 0.0
  %1190 = vmatprep.subr.mxu0 0.0
  %1191 = vmatpush2.msra.mxu0 0.0
  %1192 = vmatprep.subr.mxu0 0.0
  %1193 = vmatpush2.msra.mxu0 0.0
  %1194 = vmatprep.subr.mxu0 0.0
  %1195 = vmatpush2.msra.mxu0 0.0
  %1196 = vmatprep.subr.mxu0 0.0
  %1197 = vmatpush2.msra.mxu0 0.0
  %1198 = vmatprep.subr.mxu0 0.0
  %1199 = vmatpush2.msra.mxu0 0.0
  %1200 = vmatprep.subr.mxu0 0.0
  %1201 = vmatpush2.msra.mxu0 0.0
  %1202 = vmatprep.subr.mxu0 0.0
  %1203 = vmatpush2.msra.mxu0 0.0
  %1204 = vmatprep.subr.mxu0 0.0
  %1205 = vmatpush2.msra.mxu0 0.0
  %1206 = vmatprep.mubr.f32.mxu0 0.0
  %1207 = vmatmul.mubr.f32.gmra.mxu0 %v1065
  %v1208 = vpop.f32.mrf.mxu0
  %v1209 = vadd.f32 %v896, %v1208
  %v1210 = vpop.f32.mrf.mxu0
  %1211 = vdwg.mxu0
  %v1212 = vmul.f32 %v1141, %v1209
  %v1213 = vadd.f32 %v1063, %v1212
  %v1214 = vtanh.pop %v1213
  %v1215 = vsub.f32 %v1061, %v1214
  %1217 = vrot.lane.b32.xlu0 %v1215, 32
  %v1218 = vpop.permute.xlu0 %1217
  %v1220 = vmul.f32 %v1141, %v1218
  %1222 = vrot.lane.b32.xlu0 %v1220, 96
  %v1223 = vpop.permute.xlu0 %1222
  %v1225 = vadd.f32 %v1214, %v1223
  %v1226 = vld [vmem:[#allocation2 + $0x10] sm:$0xff]
  %v1227 = vld [vmem:[#allocation3 + $0x10] sm:$0xff]
  %v1229 = vsel %vm765, %v1225, 0
  %1231 = vmatprep.subr.mxu0 0.0
  %1232 = vmatpush1.msra.mxu0 0.0
  %1233 = vmatprep.subr.mxu0 0.0
  %1234 = vmatpush1.msra.mxu0 0.0
  %1235 = vmatprep.subr.mxu0 0.0
  %1236 = vmatpush1.msra.mxu0 0.0
  %1237 = vmatprep.subr.mxu0 0.0
  %1238 = vmatpush1.msra.mxu0 0.0
  %1239 = vmatprep.subr.mxu0 0.0
  %1240 = vmatpush1.msra.mxu0 0.0
  %1241 = vmatprep.subr.mxu0 0.0
  %1242 = vmatpush1.msra.mxu0 0.0
  %1243 = vmatprep.subr.mxu0 0.0
  %1244 = vmatpush1.msra.mxu0 0.0
  %1245 = vmatprep.subr.mxu0 0.0
  %1246 = vmatpush1.msra.mxu0 0.0
  %1247 = vmatprep.subr.mxu0 0.0
  %1248 = vmatpush1.msra.mxu0 0.0
  %1249 = vmatprep.subr.mxu0 0.0
  %1250 = vmatpush1.msra.mxu0 0.0
  %1251 = vmatprep.subr.mxu0 0.0
  %1252 = vmatpush1.msra.mxu0 0.0
  %1253 = vmatprep.subr.mxu0 0.0
  %1254 = vmatpush1.msra.mxu0 0.0
  %1255 = vmatprep.subr.mxu0 0.0
  %1256 = vmatpush1.msra.mxu0 %v886
  %1257 = vmatprep.subr.mxu0 0.0
  %1258 = vmatpush1.msra.mxu0 %v885
  %1259 = vmatprep.subr.mxu0 0.0
  %1260 = vmatpush1.msra.mxu0 %v884
  %1261 = vmatprep.subr.mxu0 0.0
  %1262 = vmatpush1.msra.mxu0 %v883
  %1263 = vmatprep.subr.mxu0 0.0
  %1264 = vmatpush2.msra.mxu0 0.0
  %1265 = vmatprep.subr.mxu0 0.0
  %1266 = vmatpush2.msra.mxu0 0.0
  %1267 = vmatprep.subr.mxu0 0.0
  %1268 = vmatpush2.msra.mxu0 0.0
  %1269 = vmatprep.subr.mxu0 0.0
  %1270 = vmatpush2.msra.mxu0 0.0
  %1271 = vmatprep.subr.mxu0 0.0
  %1272 = vmatpush2.msra.mxu0 0.0
  %1273 = vmatprep.subr.mxu0 0.0
  %1274 = vmatpush2.msra.mxu0 0.0
  %1275 = vmatprep.subr.mxu0 0.0
  %1276 = vmatpush2.msra.mxu0 0.0
  %1277 = vmatprep.subr.mxu0 0.0
  %1278 = vmatpush2.msra.mxu0 0.0
  %1279 = vmatprep.subr.mxu0 0.0
  %1280 = vmatpush2.msra.mxu0 0.0
  %1281 = vmatprep.subr.mxu0 0.0
  %1282 = vmatpush2.msra.mxu0 0.0
  %1283 = vmatprep.subr.mxu0 0.0
  %1284 = vmatpush2.msra.mxu0 0.0
  %1285 = vmatprep.subr.mxu0 0.0
  %1286 = vmatpush2.msra.mxu0 0.0
  %1287 = vmatprep.subr.mxu0 0.0
  %1288 = vmatpush2.msra.mxu0 0.0
  %1289 = vmatprep.subr.mxu0 0.0
  %1290 = vmatpush2.msra.mxu0 0.0
  %1291 = vmatprep.subr.mxu0 0.0
  %1292 = vmatpush2.msra.mxu0 0.0
  %1293 = vmatprep.subr.mxu0 0.0
  %1294 = vmatpush2.msra.mxu0 0.0
  %1295 = vmatprep.mubr.f32.mxu0 0.0
  %1296 = vmatmul.mubr.f32.gmra.mxu0 %v1229
  %v1297 = vpop.f32.mrf.mxu0
  %v1298 = vadd.f32 0.0, %v1297
  %v1299 = vpop.f32.mrf.mxu0
  %1300 = vdwg.mxu0
  %v1301 = vadd.f32 %v1226, %v1298
  %v1302 = vmul.f32 %v1301, 0.5
  %v1303 = vtanh.pop %v1302
  %v1304 = vadd.f32 %v1303, 1.0
  %v1305 = vmul.f32 %v1304, 0.5
  %1306 = vmatprep.subr.mxu0 0.0
  %1307 = vmatpush1.msra.mxu0 0.0
  %1308 = vmatprep.subr.mxu0 0.0
  %1309 = vmatpush1.msra.mxu0 0.0
  %1310 = vmatprep.subr.mxu0 0.0
  %1311 = vmatpush1.msra.mxu0 0.0
  %1312 = vmatprep.subr.mxu0 0.0
  %1313 = vmatpush1.msra.mxu0 0.0
  %1314 = vmatprep.subr.mxu0 0.0
  %1315 = vmatpush1.msra.mxu0 0.0
  %1316 = vmatprep.subr.mxu0 0.0
  %1317 = vmatpush1.msra.mxu0 0.0
  %1318 = vmatprep.subr.mxu0 0.0
  %1319 = vmatpush1.msra.mxu0 0.0
  %1320 = vmatprep.subr.mxu0 0.0
  %1321 = vmatpush1.msra.mxu0 0.0
  %1322 = vmatprep.subr.mxu0 0.0
  %1323 = vmatpush1.msra.mxu0 0.0
  %1324 = vmatprep.subr.mxu0 0.0
  %1325 = vmatpush1.msra.mxu0 0.0
  %1326 = vmatprep.subr.mxu0 0.0
  %1327 = vmatpush1.msra.mxu0 0.0
  %1328 = vmatprep.subr.mxu0 0.0
  %1329 = vmatpush1.msra.mxu0 0.0
  %1330 = vmatprep.subr.mxu0 0.0
  %1331 = vmatpush1.msra.mxu0 %v890
  %1332 = vmatprep.subr.mxu0 0.0
  %1333 = vmatpush1.msra.mxu0 %v889
  %1334 = vmatprep.subr.mxu0 0.0
  %1335 = vmatpush1.msra.mxu0 %v888
  %1336 = vmatprep.subr.mxu0 0.0
  %1337 = vmatpush1.msra.mxu0 %v887
  %1338 = vmatprep.subr.mxu0 0.0
  %1339 = vmatpush2.msra.mxu0 0.0
  %1340 = vmatprep.subr.mxu0 0.0
  %1341 = vmatpush2.msra.mxu0 0.0
  %1342 = vmatprep.subr.mxu0 0.0
  %1343 = vmatpush2.msra.mxu0 0.0
  %1344 = vmatprep.subr.mxu0 0.0
  %1345 = vmatpush2.msra.mxu0 0.0
  %1346 = vmatprep.subr.mxu0 0.0
  %1347 = vmatpush2.msra.mxu0 0.0
  %1348 = vmatprep.subr.mxu0 0.0
  %1349 = vmatpush2.msra.mxu0 0.0
  %1350 = vmatprep.subr.mxu0 0.0
  %1351 = vmatpush2.msra.mxu0 0.0
  %1352 = vmatprep.subr.mxu0 0.0
  %1353 = vmatpush2.msra.mxu0 0.0
  %1354 = vmatprep.subr.mxu0 0.0
  %1355 = vmatpush2.msra.mxu0 0.0
  %1356 = vmatprep.subr.mxu0 0.0
  %1357 = vmatpush2.msra.mxu0 0.0
  %1358 = vmatprep.subr.mxu0 0.0
  %1359 = vmatpush2.msra.mxu0 0.0
  %1360 = vmatprep.subr.mxu0 0.0
  %1361 = vmatpush2.msra.mxu0 0.0
  %1362 = vmatprep.subr.mxu0 0.0
  %1363 = vmatpush2.msra.mxu0 0.0
  %1364 = vmatprep.subr.mxu0 0.0
  %1365 = vmatpush2.msra.mxu0 0.0
  %1366 = vmatprep.subr.mxu0 0.0
  %1367 = vmatpush2.msra.mxu0 0.0
  %1368 = vmatprep.subr.mxu0 0.0
  %1369 = vmatpush2.msra.mxu0 0.0
  %1370 = vmatprep.mubr.f32.mxu0 0.0
  %1371 = vmatmul.mubr.f32.gmra.mxu0 %v1229
  %v1372 = vpop.f32.mrf.mxu0
  %v1373 = vadd.f32 %v896, %v1372
  %v1374 = vpop.f32.mrf.mxu0
  %1375 = vdwg.mxu0
  %v1376 = vmul.f32 %v1305, %v1373
  %v1377 = vadd.f32 %v1227, %v1376
  %v1378 = vtanh.pop %v1377
  %v1379 = vsub.f32 %v1225, %v1378
  %1381 = vrot.lane.b32.xlu0 %v1379, 32
  %v1382 = vpop.permute.xlu0 %1381
  %v1384 = vmul.f32 %v1305, %v1382
  %1386 = vrot.lane.b32.xlu0 %v1384, 96
  %v1387 = vpop.permute.xlu0 %1386
  %v1389 = vadd.f32 %v1378, %v1387
  %v1390 = vld [vmem:[#allocation2 + $0x18] sm:$0xff]
  %v1391 = vld [vmem:[#allocation3 + $0x18] sm:$0xff]
  %v1393 = vsel %vm765, %v1389, 0
  %1395 = vmatprep.subr.mxu0 0.0
  %1396 = vmatpush1.msra.mxu0 0.0
  %1397 = vmatprep.subr.mxu0 0.0
  %1398 = vmatpush1.msra.mxu0 0.0
  %1399 = vmatprep.subr.mxu0 0.0
  %1400 = vmatpush1.msra.mxu0 0.0
  %1401 = vmatprep.subr.mxu0 0.0
  %1402 = vmatpush1.msra.mxu0 0.0
  %1403 = vmatprep.subr.mxu0 0.0
  %1404 = vmatpush1.msra.mxu0 0.0
  %1405 = vmatprep.subr.mxu0 0.0
  %1406 = vmatpush1.msra.mxu0 0.0
  %1407 = vmatprep.subr.mxu0 0.0
  %1408 = vmatpush1.msra.mxu0 0.0
  %1409 = vmatprep.subr.mxu0 0.0
  %1410 = vmatpush1.msra.mxu0 0.0
  %1411 = vmatprep.subr.mxu0 0.0
  %1412 = vmatpush1.msra.mxu0 0.0
  %1413 = vmatprep.subr.mxu0 0.0
  %1414 = vmatpush1.msra.mxu0 0.0
  %1415 = vmatprep.subr.mxu0 0.0
  %1416 = vmatpush1.msra.mxu0 0.0
  %1417 = vmatprep.subr.mxu0 0.0
  %1418 = vmatpush1.msra.mxu0 0.0
  %1419 = vmatprep.subr.mxu0 0.0
  %1420 = vmatpush1.msra.mxu0 %v886
  %1421 = vmatprep.subr.mxu0 0.0
  %1422 = vmatpush1.msra.mxu0 %v885
  %1423 = vmatprep.subr.mxu0 0.0
  %1424 = vmatpush1.msra.mxu0 %v884
  %1425 = vmatprep.subr.mxu0 0.0
  %1426 = vmatpush1.msra.mxu0 %v883
  %1427 = vmatprep.subr.mxu0 0.0
  %1428 = vmatpush2.msra.mxu0 0.0
  %1429 = vmatprep.subr.mxu0 0.0
  %1430 = vmatpush2.msra.mxu0 0.0
  %1431 = vmatprep.subr.mxu0 0.0
  %1432 = vmatpush2.msra.mxu0 0.0
  %1433 = vmatprep.subr.mxu0 0.0
  %1434 = vmatpush2.msra.mxu0 0.0
  %1435 = vmatprep.subr.mxu0 0.0
  %1436 = vmatpush2.msra.mxu0 0.0
  %1437 = vmatprep.subr.mxu0 0.0
  %1438 = vmatpush2.msra.mxu0 0.0
  %1439 = vmatprep.subr.mxu0 0.0
  %1440 = vmatpush2.msra.mxu0 0.0
  %1441 = vmatprep.subr.mxu0 0.0
  %1442 = vmatpush2.msra.mxu0 0.0
  %1443 = vmatprep.subr.mxu0 0.0
  %1444 = vmatpush2.msra.mxu0 0.0
  %1445 = vmatprep.subr.mxu0 0.0
  %1446 = vmatpush2.msra.mxu0 0.0
  %1447 = vmatprep.subr.mxu0 0.0
  %1448 = vmatpush2.msra.mxu0 0.0
  %1449 = vmatprep.subr.mxu0 0.0
  %1450 = vmatpush2.msra.mxu0 0.0
  %1451 = vmatprep.subr.mxu0 0.0
  %1452 = vmatpush2.msra.mxu0 0.0
  %1453 = vmatprep.subr.mxu0 0.0
  %1454 = vmatpush2.msra.mxu0 0.0
  %1455 = vmatprep.subr.mxu0 0.0
  %1456 = vmatpush2.msra.mxu0 0.0
  %1457 = vmatprep.subr.mxu0 0.0
  %1458 = vmatpush2.msra.mxu0 0.0
  %1459 = vmatprep.mubr.f32.mxu0 0.0
  %1460 = vmatmul.mubr.f32.gmra.mxu0 %v1393
  %v1461 = vpop.f32.mrf.mxu0
  %v1462 = vadd.f32 0.0, %v1461
  %v1463 = vpop.f32.mrf.mxu0
  %1464 = vdwg.mxu0
  %v1465 = vadd.f32 %v1390, %v1462
  %v1466 = vmul.f32 %v1465, 0.5
  %v1467 = vtanh.pop %v1466
  %v1468 = vadd.f32 %v1467, 1.0
  %v1469 = vmul.f32 %v1468, 0.5
  %1470 = vmatprep.subr.mxu0 0.0
  %1471 = vmatpush1.msra.mxu0 0.0
  %1472 = vmatprep.subr.mxu0 0.0
  %1473 = vmatpush1.msra.mxu0 0.0
  %1474 = vmatprep.subr.mxu0 0.0
  %1475 = vmatpush1.msra.mxu0 0.0
  %1476 = vmatprep.subr.mxu0 0.0
  %1477 = vmatpush1.msra.mxu0 0.0
  %1478 = vmatprep.subr.mxu0 0.0
  %1479 = vmatpush1.msra.mxu0 0.0
  %1480 = vmatprep.subr.mxu0 0.0
  %1481 = vmatpush1.msra.mxu0 0.0
  %1482 = vmatprep.subr.mxu0 0.0
  %1483 = vmatpush1.msra.mxu0 0.0
  %1484 = vmatprep.subr.mxu0 0.0
  %1485 = vmatpush1.msra.mxu0 0.0
  %1486 = vmatprep.subr.mxu0 0.0
  %1487 = vmatpush1.msra.mxu0 0.0
  %1488 = vmatprep.subr.mxu0 0.0
  %1489 = vmatpush1.msra.mxu0 0.0
  %1490 = vmatprep.subr.mxu0 0.0
  %1491 = vmatpush1.msra.mxu0 0.0
  %1492 = vmatprep.subr.mxu0 0.0
  %1493 = vmatpush1.msra.mxu0 0.0
  %1494 = vmatprep.subr.mxu0 0.0
  %1495 = vmatpush1.msra.mxu0 %v890
  %1496 = vmatprep.subr.mxu0 0.0
  %1497 = vmatpush1.msra.mxu0 %v889
  %1498 = vmatprep.subr.mxu0 0.0
  %1499 = vmatpush1.msra.mxu0 %v888
  %1500 = vmatprep.subr.mxu0 0.0
  %1501 = vmatpush1.msra.mxu0 %v887
  %1502 = vmatprep.subr.mxu0 0.0
  %1503 = vmatpush2.msra.mxu0 0.0
  %1504 = vmatprep.subr.mxu0 0.0
  %1505 = vmatpush2.msra.mxu0 0.0
  %1506 = vmatprep.subr.mxu0 0.0
  %1507 = vmatpush2.msra.mxu0 0.0
  %1508 = vmatprep.subr.mxu0 0.0
  %1509 = vmatpush2.msra.mxu0 0.0
  %1510 = vmatprep.subr.mxu0 0.0
  %1511 = vmatpush2.msra.mxu0 0.0
  %1512 = vmatprep.subr.mxu0 0.0
  %1513 = vmatpush2.msra.mxu0 0.0
  %1514 = vmatprep.subr.mxu0 0.0
  %1515 = vmatpush2.msra.mxu0 0.0
  %1516 = vmatprep.subr.mxu0 0.0
  %1517 = vmatpush2.msra.mxu0 0.0
  %1518 = vmatprep.subr.mxu0 0.0
  %1519 = vmatpush2.msra.mxu0 0.0
  %1520 = vmatprep.subr.mxu0 0.0
  %1521 = vmatpush2.msra.mxu0 0.0
  %1522 = vmatprep.subr.mxu0 0.0
  %1523 = vmatpush2.msra.mxu0 0.0
  %1524 = vmatprep.subr.mxu0 0.0
  %1525 = vmatpush2.msra.mxu0 0.0
  %1526 = vmatprep.subr.mxu0 0.0
  %1527 = vmatpush2.msra.mxu0 0.0
  %1528 = vmatprep.subr.mxu0 0.0
  %1529 = vmatpush2.msra.mxu0 0.0
  %1530 = vmatprep.subr.mxu0 0.0
  %1531 = vmatpush2.msra.mxu0 0.0
  %1532 = vmatprep.subr.mxu0 0.0
  %1533 = vmatpush2.msra.mxu0 0.0
  %1534 = vmatprep.mubr.f32.mxu0 0.0
  %1535 = vmatmul.mubr.f32.gmra.mxu0 %v1393
  %v1536 = vpop.f32.mrf.mxu0
  %v1537 = vadd.f32 %v896, %v1536
  %v1538 = vpop.f32.mrf.mxu0
  %1539 = vdwg.mxu0
  %v1540 = vmul.f32 %v1469, %v1537
  %v1541 = vadd.f32 %v1391, %v1540
  %v1542 = vtanh.pop %v1541
  %v1543 = vsub.f32 %v1389, %v1542
  %1545 = vrot.lane.b32.xlu0 %v1543, 32
  %v1546 = vpop.permute.xlu0 %1545
  %v1548 = vmul.f32 %v1469, %v1546
  %1550 = vrot.lane.b32.xlu0 %v1548, 96
  %v1551 = vpop.permute.xlu0 %1550
  %v1553 = vadd.f32 %v1542, %v1551
  %v1554 = vld [vmem:[#allocation2 + $0x20] sm:$0xff]
  %v1555 = vld [vmem:[#allocation3 + $0x20] sm:$0xff]
  %v1557 = vsel %vm765, %v1553, 0
  %1559 = vmatprep.subr.mxu0 0.0
  %1560 = vmatpush1.msra.mxu0 0.0
  %1561 = vmatprep.subr.mxu0 0.0
  %1562 = vmatpush1.msra.mxu0 0.0
  %1563 = vmatprep.subr.mxu0 0.0
  %1564 = vmatpush1.msra.mxu0 0.0
  %1565 = vmatprep.subr.mxu0 0.0
  %1566 = vmatpush1.msra.mxu0 0.0
  %1567 = vmatprep.subr.mxu0 0.0
  %1568 = vmatpush1.msra.mxu0 0.0
  %1569 = vmatprep.subr.mxu0 0.0
  %1570 = vmatpush1.msra.mxu0 0.0
  %1571 = vmatprep.subr.mxu0 0.0
  %1572 = vmatpush1.msra.mxu0 0.0
  %1573 = vmatprep.subr.mxu0 0.0
  %1574 = vmatpush1.msra.mxu0 0.0
  %1575 = vmatprep.subr.mxu0 0.0
  %1576 = vmatpush1.msra.mxu0 0.0
  %1577 = vmatprep.subr.mxu0 0.0
  %1578 = vmatpush1.msra.mxu0 0.0
  %1579 = vmatprep.subr.mxu0 0.0
  %1580 = vmatpush1.msra.mxu0 0.0
  %1581 = vmatprep.subr.mxu0 0.0
  %1582 = vmatpush1.msra.mxu0 0.0
  %1583 = vmatprep.subr.mxu0 0.0
  %1584 = vmatpush1.msra.mxu0 %v886
  %1585 = vmatprep.subr.mxu0 0.0
  %1586 = vmatpush1.msra.mxu0 %v885
  %1587 = vmatprep.subr.mxu0 0.0
  %1588 = vmatpush1.msra.mxu0 %v884
  %1589 = vmatprep.subr.mxu0 0.0
  %1590 = vmatpush1.msra.mxu0 %v883
  %1591 = vmatprep.subr.mxu0 0.0
  %1592 = vmatpush2.msra.mxu0 0.0
  %1593 = vmatprep.subr.mxu0 0.0
  %1594 = vmatpush2.msra.mxu0 0.0
  %1595 = vmatprep.subr.mxu0 0.0
  %1596 = vmatpush2.msra.mxu0 0.0
  %1597 = vmatprep.subr.mxu0 0.0
  %1598 = vmatpush2.msra.mxu0 0.0
  %1599 = vmatprep.subr.mxu0 0.0
  %1600 = vmatpush2.msra.mxu0 0.0
  %1601 = vmatprep.subr.mxu0 0.0
  %1602 = vmatpush2.msra.mxu0 0.0
  %1603 = vmatprep.subr.mxu0 0.0
  %1604 = vmatpush2.msra.mxu0 0.0
  %1605 = vmatprep.subr.mxu0 0.0
  %1606 = vmatpush2.msra.mxu0 0.0
  %1607 = vmatprep.subr.mxu0 0.0
  %1608 = vmatpush2.msra.mxu0 0.0
  %1609 = vmatprep.subr.mxu0 0.0
  %1610 = vmatpush2.msra.mxu0 0.0
  %1611 = vmatprep.subr.mxu0 0.0
  %1612 = vmatpush2.msra.mxu0 0.0
  %1613 = vmatprep.subr.mxu0 0.0
  %1614 = vmatpush2.msra.mxu0 0.0
  %1615 = vmatprep.subr.mxu0 0.0
  %1616 = vmatpush2.msra.mxu0 0.0
  %1617 = vmatprep.subr.mxu0 0.0
  %1618 = vmatpush2.msra.mxu0 0.0
  %1619 = vmatprep.subr.mxu0 0.0
  %1620 = vmatpush2.msra.mxu0 0.0
  %1621 = vmatprep.subr.mxu0 0.0
  %1622 = vmatpush2.msra.mxu0 0.0
  %1623 = vmatprep.mubr.f32.mxu0 0.0
  %1624 = vmatmul.mubr.f32.gmra.mxu0 %v1557
  %v1625 = vpop.f32.mrf.mxu0
  %v1626 = vadd.f32 0.0, %v1625
  %v1627 = vpop.f32.mrf.mxu0
  %1628 = vdwg.mxu0
  %v1629 = vadd.f32 %v1554, %v1626
  %v1630 = vmul.f32 %v1629, 0.5
  %v1631 = vtanh.pop %v1630
  %v1632 = vadd.f32 %v1631, 1.0
  %v1633 = vmul.f32 %v1632, 0.5
  %1634 = vmatprep.subr.mxu0 0.0
  %1635 = vmatpush1.msra.mxu0 0.0
  %1636 = vmatprep.subr.mxu0 0.0
  %1637 = vmatpush1.msra.mxu0 0.0
  %1638 = vmatprep.subr.mxu0 0.0
  %1639 = vmatpush1.msra.mxu0 0.0
  %1640 = vmatprep.subr.mxu0 0.0
  %1641 = vmatpush1.msra.mxu0 0.0
  %1642 = vmatprep.subr.mxu0 0.0
  %1643 = vmatpush1.msra.mxu0 0.0
  %1644 = vmatprep.subr.mxu0 0.0
  %1645 = vmatpush1.msra.mxu0 0.0
  %1646 = vmatprep.subr.mxu0 0.0
  %1647 = vmatpush1.msra.mxu0 0.0
  %1648 = vmatprep.subr.mxu0 0.0
  %1649 = vmatpush1.msra.mxu0 0.0
  %1650 = vmatprep.subr.mxu0 0.0
  %1651 = vmatpush1.msra.mxu0 0.0
  %1652 = vmatprep.subr.mxu0 0.0
  %1653 = vmatpush1.msra.mxu0 0.0
  %1654 = vmatprep.subr.mxu0 0.0
  %1655 = vmatpush1.msra.mxu0 0.0
  %1656 = vmatprep.subr.mxu0 0.0
  %1657 = vmatpush1.msra.mxu0 0.0
  %1658 = vmatprep.subr.mxu0 0.0
  %1659 = vmatpush1.msra.mxu0 %v890
  %1660 = vmatprep.subr.mxu0 0.0
  %1661 = vmatpush1.msra.mxu0 %v889
  %1662 = vmatprep.subr.mxu0 0.0
  %1663 = vmatpush1.msra.mxu0 %v888
  %1664 = vmatprep.subr.mxu0 0.0
  %1665 = vmatpush1.msra.mxu0 %v887
  %1666 = vmatprep.subr.mxu0 0.0
  %1667 = vmatpush2.msra.mxu0 0.0
  %1668 = vmatprep.subr.mxu0 0.0
  %1669 = vmatpush2.msra.mxu0 0.0
  %1670 = vmatprep.subr.mxu0 0.0
  %1671 = vmatpush2.msra.mxu0 0.0
  %1672 = vmatprep.subr.mxu0 0.0
  %1673 = vmatpush2.msra.mxu0 0.0
  %1674 = vmatprep.subr.mxu0 0.0
  %1675 = vmatpush2.msra.mxu0 0.0
  %1676 = vmatprep.subr.mxu0 0.0
  %1677 = vmatpush2.msra.mxu0 0.0
  %1678 = vmatprep.subr.mxu0 0.0
  %1679 = vmatpush2.msra.mxu0 0.0
  %1680 = vmatprep.subr.mxu0 0.0
  %1681 = vmatpush2.msra.mxu0 0.0
  %1682 = vmatprep.subr.mxu0 0.0
  %1683 = vmatpush2.msra.mxu0 0.0
  %1684 = vmatprep.subr.mxu0 0.0
  %1685 = vmatpush2.msra.mxu0 0.0
  %1686 = vmatprep.subr.mxu0 0.0
  %1687 = vmatpush2.msra.mxu0 0.0
  %1688 = vmatprep.subr.mxu0 0.0
  %1689 = vmatpush2.msra.mxu0 0.0
  %1690 = vmatprep.subr.mxu0 0.0
  %1691 = vmatpush2.msra.mxu0 0.0
  %1692 = vmatprep.subr.mxu0 0.0
  %1693 = vmatpush2.msra.mxu0 0.0
  %1694 = vmatprep.subr.mxu0 0.0
  %1695 = vmatpush2.msra.mxu0 0.0
  %1696 = vmatprep.subr.mxu0 0.0
  %1697 = vmatpush2.msra.mxu0 0.0
  %1698 = vmatprep.mubr.f32.mxu0 0.0
  %1699 = vmatmul.mubr.f32.gmra.mxu0 %v1557
  %v1700 = vpop.f32.mrf.mxu0
  %v1701 = vadd.f32 %v896, %v1700
  %v1702 = vpop.f32.mrf.mxu0
  %1703 = vdwg.mxu0
  %v1704 = vmul.f32 %v1633, %v1701
  %v1705 = vadd.f32 %v1555, %v1704
  %v1706 = vtanh.pop %v1705
  %v1707 = vsub.f32 %v1553, %v1706
  %1709 = vrot.lane.b32.xlu0 %v1707, 32
  %v1710 = vpop.permute.xlu0 %1709
  %v1712 = vmul.f32 %v1633, %v1710
  %1714 = vrot.lane.b32.xlu0 %v1712, 96
  %v1715 = vpop.permute.xlu0 %1714
  %v1717 = vadd.f32 %v1706, %v1715
  %v1718 = vld [vmem:[#allocation2 + $0x28] sm:$0xff]
  %v1719 = vld [vmem:[#allocation3 + $0x28] sm:$0xff]
  %v1721 = vsel %vm765, %v1717, 0
  %1723 = vmatprep.subr.mxu0 0.0
  %1724 = vmatpush1.msra.mxu0 0.0
  %1725 = vmatprep.subr.mxu0 0.0
  %1726 = vmatpush1.msra.mxu0 0.0
  %1727 = vmatprep.subr.mxu0 0.0
  %1728 = vmatpush1.msra.mxu0 0.0
  %1729 = vmatprep.subr.mxu0 0.0
  %1730 = vmatpush1.msra.mxu0 0.0
  %1731 = vmatprep.subr.mxu0 0.0
  %1732 = vmatpush1.msra.mxu0 0.0
  %1733 = vmatprep.subr.mxu0 0.0
  %1734 = vmatpush1.msra.mxu0 0.0
  %1735 = vmatprep.subr.mxu0 0.0
  %1736 = vmatpush1.msra.mxu0 0.0
  %1737 = vmatprep.subr.mxu0 0.0
  %1738 = vmatpush1.msra.mxu0 0.0
  %1739 = vmatprep.subr.mxu0 0.0
  %1740 = vmatpush1.msra.mxu0 0.0
  %1741 = vmatprep.subr.mxu0 0.0
  %1742 = vmatpush1.msra.mxu0 0.0
  %1743 = vmatprep.subr.mxu0 0.0
  %1744 = vmatpush1.msra.mxu0 0.0
  %1745 = vmatprep.subr.mxu0 0.0
  %1746 = vmatpush1.msra.mxu0 0.0
  %1747 = vmatprep.subr.mxu0 0.0
  %1748 = vmatpush1.msra.mxu0 %v886
  %1749 = vmatprep.subr.mxu0 0.0
  %1750 = vmatpush1.msra.mxu0 %v885
  %1751 = vmatprep.subr.mxu0 0.0
  %1752 = vmatpush1.msra.mxu0 %v884
  %1753 = vmatprep.subr.mxu0 0.0
  %1754 = vmatpush1.msra.mxu0 %v883
  %1755 = vmatprep.subr.mxu0 0.0
  %1756 = vmatpush2.msra.mxu0 0.0
  %1757 = vmatprep.subr.mxu0 0.0
  %1758 = vmatpush2.msra.mxu0 0.0
  %1759 = vmatprep.subr.mxu0 0.0
  %1760 = vmatpush2.msra.mxu0 0.0
  %1761 = vmatprep.subr.mxu0 0.0
  %1762 = vmatpush2.msra.mxu0 0.0
  %1763 = vmatprep.subr.mxu0 0.0
  %1764 = vmatpush2.msra.mxu0 0.0
  %1765 = vmatprep.subr.mxu0 0.0
  %1766 = vmatpush2.msra.mxu0 0.0
  %1767 = vmatprep.subr.mxu0 0.0
  %1768 = vmatpush2.msra.mxu0 0.0
  %1769 = vmatprep.subr.mxu0 0.0
  %1770 = vmatpush2.msra.mxu0 0.0
  %1771 = vmatprep.subr.mxu0 0.0
  %1772 = vmatpush2.msra.mxu0 0.0
  %1773 = vmatprep.subr.mxu0 0.0
  %1774 = vmatpush2.msra.mxu0 0.0
  %1775 = vmatprep.subr.mxu0 0.0
  %1776 = vmatpush2.msra.mxu0 0.0
  %1777 = vmatprep.subr.mxu0 0.0
  %1778 = vmatpush2.msra.mxu0 0.0
  %1779 = vmatprep.subr.mxu0 0.0
  %1780 = vmatpush2.msra.mxu0 0.0
  %1781 = vmatprep.subr.mxu0 0.0
  %1782 = vmatpush2.msra.mxu0 0.0
  %1783 = vmatprep.subr.mxu0 0.0
  %1784 = vmatpush2.msra.mxu0 0.0
  %1785 = vmatprep.subr.mxu0 0.0
  %1786 = vmatpush2.msra.mxu0 0.0
  %1787 = vmatprep.mubr.f32.mxu0 0.0
  %1788 = vmatmul.mubr.f32.gmra.mxu0 %v1721
  %v1789 = vpop.f32.mrf.mxu0
  %v1790 = vadd.f32 0.0, %v1789
  %v1791 = vpop.f32.mrf.mxu0
  %1792 = vdwg.mxu0
  %v1793 = vadd.f32 %v1718, %v1790
  %v1794 = vmul.f32 %v1793, 0.5
  %v1795 = vtanh.pop %v1794
  %v1796 = vadd.f32 %v1795, 1.0
  %v1797 = vmul.f32 %v1796, 0.5
  %1798 = vmatprep.subr.mxu0 0.0
  %1799 = vmatpush1.msra.mxu0 0.0
  %1800 = vmatprep.subr.mxu0 0.0
  %1801 = vmatpush1.msra.mxu0 0.0
  %1802 = vmatprep.subr.mxu0 0.0
  %1803 = vmatpush1.msra.mxu0 0.0
  %1804 = vmatprep.subr.mxu0 0.0
  %1805 = vmatpush1.msra.mxu0 0.0
  %1806 = vmatprep.subr.mxu0 0.0
  %1807 = vmatpush1.msra.mxu0 0.0
  %1808 = vmatprep.subr.mxu0 0.0
  %1809 = vmatpush1.msra.mxu0 0.0
  %1810 = vmatprep.subr.mxu0 0.0
  %1811 = vmatpush1.msra.mxu0 0.0
  %1812 = vmatprep.subr.mxu0 0.0
  %1813 = vmatpush1.msra.mxu0 0.0
  %1814 = vmatprep.subr.mxu0 0.0
  %1815 = vmatpush1.msra.mxu0 0.0
  %1816 = vmatprep.subr.mxu0 0.0
  %1817 = vmatpush1.msra.mxu0 0.0
  %1818 = vmatprep.subr.mxu0 0.0
  %1819 = vmatpush1.msra.mxu0 0.0
  %1820 = vmatprep.subr.mxu0 0.0
  %1821 = vmatpush1.msra.mxu0 0.0
  %1822 = vmatprep.subr.mxu0 0.0
  %1823 = vmatpush1.msra.mxu0 %v890
  %1824 = vmatprep.subr.mxu0 0.0
  %1825 = vmatpush1.msra.mxu0 %v889
  %1826 = vmatprep.subr.mxu0 0.0
  %1827 = vmatpush1.msra.mxu0 %v888
  %1828 = vmatprep.subr.mxu0 0.0
  %1829 = vmatpush1.msra.mxu0 %v887
  %1830 = vmatprep.subr.mxu0 0.0
  %1831 = vmatpush2.msra.mxu0 0.0
  %1832 = vmatprep.subr.mxu0 0.0
  %1833 = vmatpush2.msra.mxu0 0.0
  %1834 = vmatprep.subr.mxu0 0.0
  %1835 = vmatpush2.msra.mxu0 0.0
  %1836 = vmatprep.subr.mxu0 0.0
  %1837 = vmatpush2.msra.mxu0 0.0
  %1838 = vmatprep.subr.mxu0 0.0
  %1839 = vmatpush2.msra.mxu0 0.0
  %1840 = vmatprep.subr.mxu0 0.0
  %1841 = vmatpush2.msra.mxu0 0.0
  %1842 = vmatprep.subr.mxu0 0.0
  %1843 = vmatpush2.msra.mxu0 0.0
  %1844 = vmatprep.subr.mxu0 0.0
  %1845 = vmatpush2.msra.mxu0 0.0
  %1846 = vmatprep.subr.mxu0 0.0
  %1847 = vmatpush2.msra.mxu0 0.0
  %1848 = vmatprep.subr.mxu0 0.0
  %1849 = vmatpush2.msra.mxu0 0.0
  %1850 = vmatprep.subr.mxu0 0.0
  %1851 = vmatpush2.msra.mxu0 0.0
  %1852 = vmatprep.subr.mxu0 0.0
  %1853 = vmatpush2.msra.mxu0 0.0
  %1854 = vmatprep.subr.mxu0 0.0
  %1855 = vmatpush2.msra.mxu0 0.0
  %1856 = vmatprep.subr.mxu0 0.0
  %1857 = vmatpush2.msra.mxu0 0.0
  %1858 = vmatprep.subr.mxu0 0.0
  %1859 = vmatpush2.msra.mxu0 0.0
  %1860 = vmatprep.subr.mxu0 0.0
  %1861 = vmatpush2.msra.mxu0 0.0
  %1862 = vmatprep.mubr.f32.mxu0 0.0
  %1863 = vmatmul.mubr.f32.gmra.mxu0 %v1721
  %v1864 = vpop.f32.mrf.mxu0
  %v1865 = vadd.f32 %v896, %v1864
  %v1866 = vpop.f32.mrf.mxu0
  %1867 = vdwg.mxu0
  %v1868 = vmul.f32 %v1797, %v1865
  %v1869 = vadd.f32 %v1719, %v1868
  %v1870 = vtanh.pop %v1869
  %v1871 = vsub.f32 %v1717, %v1870
  %1873 = vrot.lane.b32.xlu0 %v1871, 32
  %v1874 = vpop.permute.xlu0 %1873
  %v1876 = vmul.f32 %v1797, %v1874
  %1878 = vrot.lane.b32.xlu0 %v1876, 96
  %v1879 = vpop.permute.xlu0 %1878
  %v1881 = vadd.f32 %v1870, %v1879
  %v1882 = vld [vmem:[#allocation2 + $0x30] sm:$0xff]
  %v1883 = vld [vmem:[#allocation3 + $0x30] sm:$0xff]
  %v1885 = vsel %vm765, %v1881, 0
  %1887 = vmatprep.subr.mxu0 0.0
  %1888 = vmatpush1.msra.mxu0 0.0
  %1889 = vmatprep.subr.mxu0 0.0
  %1890 = vmatpush1.msra.mxu0 0.0
  %1891 = vmatprep.subr.mxu0 0.0
  %1892 = vmatpush1.msra.mxu0 0.0
  %1893 = vmatprep.subr.mxu0 0.0
  %1894 = vmatpush1.msra.mxu0 0.0
  %1895 = vmatprep.subr.mxu0 0.0
  %1896 = vmatpush1.msra.mxu0 0.0
  %1897 = vmatprep.subr.mxu0 0.0
  %1898 = vmatpush1.msra.mxu0 0.0
  %1899 = vmatprep.subr.mxu0 0.0
  %1900 = vmatpush1.msra.mxu0 0.0
  %1901 = vmatprep.subr.mxu0 0.0
  %1902 = vmatpush1.msra.mxu0 0.0
  %1903 = vmatprep.subr.mxu0 0.0
  %1904 = vmatpush1.msra.mxu0 0.0
  %1905 = vmatprep.subr.mxu0 0.0
  %1906 = vmatpush1.msra.mxu0 0.0
  %1907 = vmatprep.subr.mxu0 0.0
  %1908 = vmatpush1.msra.mxu0 0.0
  %1909 = vmatprep.subr.mxu0 0.0
  %1910 = vmatpush1.msra.mxu0 0.0
  %1911 = vmatprep.subr.mxu0 0.0
  %1912 = vmatpush1.msra.mxu0 %v886
  %1913 = vmatprep.subr.mxu0 0.0
  %1914 = vmatpush1.msra.mxu0 %v885
  %1915 = vmatprep.subr.mxu0 0.0
  %1916 = vmatpush1.msra.mxu0 %v884
  %1917 = vmatprep.subr.mxu0 0.0
  %1918 = vmatpush1.msra.mxu0 %v883
  %1919 = vmatprep.subr.mxu0 0.0
  %1920 = vmatpush2.msra.mxu0 0.0
  %1921 = vmatprep.subr.mxu0 0.0
  %1922 = vmatpush2.msra.mxu0 0.0
  %1923 = vmatprep.subr.mxu0 0.0
  %1924 = vmatpush2.msra.mxu0 0.0
  %1925 = vmatprep.subr.mxu0 0.0
  %1926 = vmatpush2.msra.mxu0 0.0
  %1927 = vmatprep.subr.mxu0 0.0
  %1928 = vmatpush2.msra.mxu0 0.0
  %1929 = vmatprep.subr.mxu0 0.0
  %1930 = vmatpush2.msra.mxu0 0.0
  %1931 = vmatprep.subr.mxu0 0.0
  %1932 = vmatpush2.msra.mxu0 0.0
  %1933 = vmatprep.subr.mxu0 0.0
  %1934 = vmatpush2.msra.mxu0 0.0
  %1935 = vmatprep.subr.mxu0 0.0
  %1936 = vmatpush2.msra.mxu0 0.0
  %1937 = vmatprep.subr.mxu0 0.0
  %1938 = vmatpush2.msra.mxu0 0.0
  %1939 = vmatprep.subr.mxu0 0.0
  %1940 = vmatpush2.msra.mxu0 0.0
  %1941 = vmatprep.subr.mxu0 0.0
  %1942 = vmatpush2.msra.mxu0 0.0
  %1943 = vmatprep.subr.mxu0 0.0
  %1944 = vmatpush2.msra.mxu0 0.0
  %1945 = vmatprep.subr.mxu0 0.0
  %1946 = vmatpush2.msra.mxu0 0.0
  %1947 = vmatprep.subr.mxu0 0.0
  %1948 = vmatpush2.msra.mxu0 0.0
  %1949 = vmatprep.subr.mxu0 0.0
  %1950 = vmatpush2.msra.mxu0 0.0
  %1951 = vmatprep.mubr.f32.mxu0 0.0
  %1952 = vmatmul.mubr.f32.gmra.mxu0 %v1885
  %v1953 = vpop.f32.mrf.mxu0
  %v1954 = vadd.f32 0.0, %v1953
  %v1955 = vpop.f32.mrf.mxu0
  %1956 = vdwg.mxu0
  %v1957 = vadd.f32 %v1882, %v1954
  %v1958 = vmul.f32 %v1957, 0.5
  %v1959 = vtanh.pop %v1958
  %v1960 = vadd.f32 %v1959, 1.0
  %v1961 = vmul.f32 %v1960, 0.5
  %1962 = vmatprep.subr.mxu0 0.0
  %1963 = vmatpush1.msra.mxu0 0.0
  %1964 = vmatprep.subr.mxu0 0.0
  %1965 = vmatpush1.msra.mxu0 0.0
  %1966 = vmatprep.subr.mxu0 0.0
  %1967 = vmatpush1.msra.mxu0 0.0
  %1968 = vmatprep.subr.mxu0 0.0
  %1969 = vmatpush1.msra.mxu0 0.0
  %1970 = vmatprep.subr.mxu0 0.0
  %1971 = vmatpush1.msra.mxu0 0.0
  %1972 = vmatprep.subr.mxu0 0.0
  %1973 = vmatpush1.msra.mxu0 0.0
  %1974 = vmatprep.subr.mxu0 0.0
  %1975 = vmatpush1.msra.mxu0 0.0
  %1976 = vmatprep.subr.mxu0 0.0
  %1977 = vmatpush1.msra.mxu0 0.0
  %1978 = vmatprep.subr.mxu0 0.0
  %1979 = vmatpush1.msra.mxu0 0.0
  %1980 = vmatprep.subr.mxu0 0.0
  %1981 = vmatpush1.msra.mxu0 0.0
  %1982 = vmatprep.subr.mxu0 0.0
  %1983 = vmatpush1.msra.mxu0 0.0
  %1984 = vmatprep.subr.mxu0 0.0
  %1985 = vmatpush1.msra.mxu0 0.0
  %1986 = vmatprep.subr.mxu0 0.0
  %1987 = vmatpush1.msra.mxu0 %v890
  %1988 = vmatprep.subr.mxu0 0.0
  %1989 = vmatpush1.msra.mxu0 %v889
  %1990 = vmatprep.subr.mxu0 0.0
  %1991 = vmatpush1.msra.mxu0 %v888
  %1992 = vmatprep.subr.mxu0 0.0
  %1993 = vmatpush1.msra.mxu0 %v887
  %1994 = vmatprep.subr.mxu0 0.0
  %1995 = vmatpush2.msra.mxu0 0.0
  %1996 = vmatprep.subr.mxu0 0.0
  %1997 = vmatpush2.msra.mxu0 0.0
  %1998 = vmatprep.subr.mxu0 0.0
  %1999 = vmatpush2.msra.mxu0 0.0
  %2000 = vmatprep.subr.mxu0 0.0
  %2001 = vmatpush2.msra.mxu0 0.0
  %2002 = vmatprep.subr.mxu0 0.0
  %2003 = vmatpush2.msra.mxu0 0.0
  %2004 = vmatprep.subr.mxu0 0.0
  %2005 = vmatpush2.msra.mxu0 0.0
  %2006 = vmatprep.subr.mxu0 0.0
  %2007 = vmatpush2.msra.mxu0 0.0
  %2008 = vmatprep.subr.mxu0 0.0
  %2009 = vmatpush2.msra.mxu0 0.0
  %2010 = vmatprep.subr.mxu0 0.0
  %2011 = vmatpush2.msra.mxu0 0.0
  %2012 = vmatprep.subr.mxu0 0.0
  %2013 = vmatpush2.msra.mxu0 0.0
  %2014 = vmatprep.subr.mxu0 0.0
  %2015 = vmatpush2.msra.mxu0 0.0
  %2016 = vmatprep.subr.mxu0 0.0
  %2017 = vmatpush2.msra.mxu0 0.0
  %2018 = vmatprep.subr.mxu0 0.0
  %2019 = vmatpush2.msra.mxu0 0.0
  %2020 = vmatprep.subr.mxu0 0.0
  %2021 = vmatpush2.msra.mxu0 0.0
  %2022 = vmatprep.subr.mxu0 0.0
  %2023 = vmatpush2.msra.mxu0 0.0
  %2024 = vmatprep.subr.mxu0 0.0
  %2025 = vmatpush2.msra.mxu0 0.0
  %2026 = vmatprep.mubr.f32.mxu0 0.0
  %2027 = vmatmul.mubr.f32.gmra.mxu0 %v1885
  %v2028 = vpop.f32.mrf.mxu0
  %v2029 = vadd.f32 %v896, %v2028
  %v2030 = vpop.f32.mrf.mxu0
  %2031 = vdwg.mxu0
  %v2032 = vmul.f32 %v1961, %v2029
  %v2033 = vadd.f32 %v1883, %v2032
  %v2034 = vtanh.pop %v2033
  %v2035 = vsub.f32 %v1881, %v2034
  %2037 = vrot.lane.b32.xlu0 %v2035, 32
  %v2038 = vpop.permute.xlu0 %2037
  %v2040 = vmul.f32 %v1961, %v2038
  %2042 = vrot.lane.b32.xlu0 %v2040, 96
  %v2043 = vpop.permute.xlu0 %2042
  %v2045 = vadd.f32 %v2034, %v2043
  %v2046 = vld [vmem:[#allocation2 + $0x38] sm:$0xff]
  %v2047 = vld [vmem:[#allocation3 + $0x38] sm:$0xff]
  %v2049 = vsel %vm765, %v2045, 0
  %2051 = vmatprep.subr.mxu0 0.0
  %2052 = vmatpush1.msra.mxu0 0.0
  %2053 = vmatprep.subr.mxu0 0.0
  %2054 = vmatpush1.msra.mxu0 0.0
  %2055 = vmatprep.subr.mxu0 0.0
  %2056 = vmatpush1.msra.mxu0 0.0
  %2057 = vmatprep.subr.mxu0 0.0
  %2058 = vmatpush1.msra.mxu0 0.0
  %2059 = vmatprep.subr.mxu0 0.0
  %2060 = vmatpush1.msra.mxu0 0.0
  %2061 = vmatprep.subr.mxu0 0.0
  %2062 = vmatpush1.msra.mxu0 0.0
  %2063 = vmatprep.subr.mxu0 0.0
  %2064 = vmatpush1.msra.mxu0 0.0
  %2065 = vmatprep.subr.mxu0 0.0
  %2066 = vmatpush1.msra.mxu0 0.0
  %2067 = vmatprep.subr.mxu0 0.0
  %2068 = vmatpush1.msra.mxu0 0.0
  %2069 = vmatprep.subr.mxu0 0.0
  %2070 = vmatpush1.msra.mxu0 0.0
  %2071 = vmatprep.subr.mxu0 0.0
  %2072 = vmatpush1.msra.mxu0 0.0
  %2073 = vmatprep.subr.mxu0 0.0
  %2074 = vmatpush1.msra.mxu0 0.0
  %2075 = vmatprep.subr.mxu0 0.0
  %2076 = vmatpush1.msra.mxu0 %v886
  %2077 = vmatprep.subr.mxu0 0.0
  %2078 = vmatpush1.msra.mxu0 %v885
  %2079 = vmatprep.subr.mxu0 0.0
  %2080 = vmatpush1.msra.mxu0 %v884
  %2081 = vmatprep.subr.mxu0 0.0
  %2082 = vmatpush1.msra.mxu0 %v883
  %2083 = vmatprep.subr.mxu0 0.0
  %2084 = vmatpush2.msra.mxu0 0.0
  %2085 = vmatprep.subr.mxu0 0.0
  %2086 = vmatpush2.msra.mxu0 0.0
  %2087 = vmatprep.subr.mxu0 0.0
  %2088 = vmatpush2.msra.mxu0 0.0
  %2089 = vmatprep.subr.mxu0 0.0
  %2090 = vmatpush2.msra.mxu0 0.0
  %2091 = vmatprep.subr.mxu0 0.0
  %2092 = vmatpush2.msra.mxu0 0.0
  %2093 = vmatprep.subr.mxu0 0.0
  %2094 = vmatpush2.msra.mxu0 0.0
  %2095 = vmatprep.subr.mxu0 0.0
  %2096 = vmatpush2.msra.mxu0 0.0
  %2097 = vmatprep.subr.mxu0 0.0
  %2098 = vmatpush2.msra.mxu0 0.0
  %2099 = vmatprep.subr.mxu0 0.0
  %2100 = vmatpush2.msra.mxu0 0.0
  %2101 = vmatprep.subr.mxu0 0.0
  %2102 = vmatpush2.msra.mxu0 0.0
  %2103 = vmatprep.subr.mxu0 0.0
  %2104 = vmatpush2.msra.mxu0 0.0
  %2105 = vmatprep.subr.mxu0 0.0
  %2106 = vmatpush2.msra.mxu0 0.0
  %2107 = vmatprep.subr.mxu0 0.0
  %2108 = vmatpush2.msra.mxu0 0.0
  %2109 = vmatprep.subr.mxu0 0.0
  %2110 = vmatpush2.msra.mxu0 0.0
  %2111 = vmatprep.subr.mxu0 0.0
  %2112 = vmatpush2.msra.mxu0 0.0
  %2113 = vmatprep.subr.mxu0 0.0
  %2114 = vmatpush2.msra.mxu0 0.0
  %2115 = vmatprep.mubr.f32.mxu0 0.0
  %2116 = vmatmul.mubr.f32.gmra.mxu0 %v2049
  %v2117 = vpop.f32.mrf.mxu0
  %v2118 = vadd.f32 0.0, %v2117
  %v2119 = vpop.f32.mrf.mxu0
  %2120 = vdwg.mxu0
  %v2121 = vadd.f32 %v2046, %v2118
  %v2122 = vmul.f32 %v2121, 0.5
  %v2123 = vtanh.pop %v2122
  %v2124 = vadd.f32 %v2123, 1.0
  %v2125 = vmul.f32 %v2124, 0.5
  %2126 = vmatprep.subr.mxu0 0.0
  %2127 = vmatpush1.msra.mxu0 0.0
  %2128 = vmatprep.subr.mxu0 0.0
  %2129 = vmatpush1.msra.mxu0 0.0
  %2130 = vmatprep.subr.mxu0 0.0
  %2131 = vmatpush1.msra.mxu0 0.0
  %2132 = vmatprep.subr.mxu0 0.0
  %2133 = vmatpush1.msra.mxu0 0.0
  %2134 = vmatprep.subr.mxu0 0.0
  %2135 = vmatpush1.msra.mxu0 0.0
  %2136 = vmatprep.subr.mxu0 0.0
  %2137 = vmatpush1.msra.mxu0 0.0
  %2138 = vmatprep.subr.mxu0 0.0
  %2139 = vmatpush1.msra.mxu0 0.0
  %2140 = vmatprep.subr.mxu0 0.0
  %2141 = vmatpush1.msra.mxu0 0.0
  %2142 = vmatprep.subr.mxu0 0.0
  %2143 = vmatpush1.msra.mxu0 0.0
  %2144 = vmatprep.subr.mxu0 0.0
  %2145 = vmatpush1.msra.mxu0 0.0
  %2146 = vmatprep.subr.mxu0 0.0
  %2147 = vmatpush1.msra.mxu0 0.0
  %2148 = vmatprep.subr.mxu0 0.0
  %2149 = vmatpush1.msra.mxu0 0.0
  %2150 = vmatprep.subr.mxu0 0.0
  %2151 = vmatpush1.msra.mxu0 %v890
  %2152 = vmatprep.subr.mxu0 0.0
  %2153 = vmatpush1.msra.mxu0 %v889
  %2154 = vmatprep.subr.mxu0 0.0
  %2155 = vmatpush1.msra.mxu0 %v888
  %2156 = vmatprep.subr.mxu0 0.0
  %2157 = vmatpush1.msra.mxu0 %v887
  %2158 = vmatprep.subr.mxu0 0.0
  %2159 = vmatpush2.msra.mxu0 0.0
  %2160 = vmatprep.subr.mxu0 0.0
  %2161 = vmatpush2.msra.mxu0 0.0
  %2162 = vmatprep.subr.mxu0 0.0
  %2163 = vmatpush2.msra.mxu0 0.0
  %2164 = vmatprep.subr.mxu0 0.0
  %2165 = vmatpush2.msra.mxu0 0.0
  %2166 = vmatprep.subr.mxu0 0.0
  %2167 = vmatpush2.msra.mxu0 0.0
  %2168 = vmatprep.subr.mxu0 0.0
  %2169 = vmatpush2.msra.mxu0 0.0
  %2170 = vmatprep.subr.mxu0 0.0
  %2171 = vmatpush2.msra.mxu0 0.0
  %2172 = vmatprep.subr.mxu0 0.0
  %2173 = vmatpush2.msra.mxu0 0.0
  %2174 = vmatprep.subr.mxu0 0.0
  %2175 = vmatpush2.msra.mxu0 0.0
  %2176 = vmatprep.subr.mxu0 0.0
  %2177 = vmatpush2.msra.mxu0 0.0
  %2178 = vmatprep.subr.mxu0 0.0
  %2179 = vmatpush2.msra.mxu0 0.0
  %2180 = vmatprep.subr.mxu0 0.0
  %2181 = vmatpush2.msra.mxu0 0.0
  %2182 = vmatprep.subr.mxu0 0.0
  %2183 = vmatpush2.msra.mxu0 0.0
  %2184 = vmatprep.subr.mxu0 0.0
  %2185 = vmatpush2.msra.mxu0 0.0
  %2186 = vmatprep.subr.mxu0 0.0
  %2187 = vmatpush2.msra.mxu0 0.0
  %2188 = vmatprep.subr.mxu0 0.0
  %2189 = vmatpush2.msra.mxu0 0.0
  %2190 = vmatprep.mubr.f32.mxu0 0.0
  %2191 = vmatmul.mubr.f32.gmra.mxu0 %v2049
  %v2192 = vpop.f32.mrf.mxu0
  %v2193 = vadd.f32 %v896, %v2192
  %v2194 = vpop.f32.mrf.mxu0
  %2195 = vdwg.mxu0
  %v2196 = vmul.f32 %v2125, %v2193
  %v2197 = vadd.f32 %v2047, %v2196
  %v2198 = vtanh.pop %v2197
  %v2199 = vsub.f32 %v2045, %v2198
  %2201 = vrot.lane.b32.xlu0 %v2199, 32
  %v2202 = vpop.permute.xlu0 %2201
  %v2204 = vmul.f32 %v2125, %v2202
  %2206 = vrot.lane.b32.xlu0 %v2204, 96
  %v2207 = vpop.permute.xlu0 %2206
  %v2209 = vadd.f32 %v2198, %v2207
  %v2210 = vld [vmem:[#allocation2 + $0x40] sm:$0xff]
  %v2211 = vld [vmem:[#allocation3 + $0x40] sm:$0xff]
  %v2213 = vsel %vm765, %v2209, 0
  %2215 = vmatprep.subr.mxu0 0.0
  %2216 = vmatpush1.msra.mxu0 0.0
  %2217 = vmatprep.subr.mxu0 0.0
  %2218 = vmatpush1.msra.mxu0 0.0
  %2219 = vmatprep.subr.mxu0 0.0
  %2220 = vmatpush1.msra.mxu0 0.0
  %2221 = vmatprep.subr.mxu0 0.0
  %2222 = vmatpush1.msra.mxu0 0.0
  %2223 = vmatprep.subr.mxu0 0.0
  %2224 = vmatpush1.msra.mxu0 0.0
  %2225 = vmatprep.subr.mxu0 0.0
  %2226 = vmatpush1.msra.mxu0 0.0
  %2227 = vmatprep.subr.mxu0 0.0
  %2228 = vmatpush1.msra.mxu0 0.0
  %2229 = vmatprep.subr.mxu0 0.0
  %2230 = vmatpush1.msra.mxu0 0.0
  %2231 = vmatprep.subr.mxu0 0.0
  %2232 = vmatpush1.msra.mxu0 0.0
  %2233 = vmatprep.subr.mxu0 0.0
  %2234 = vmatpush1.msra.mxu0 0.0
  %2235 = vmatprep.subr.mxu0 0.0
  %2236 = vmatpush1.msra.mxu0 0.0
  %2237 = vmatprep.subr.mxu0 0.0
  %2238 = vmatpush1.msra.mxu0 0.0
  %2239 = vmatprep.subr.mxu0 0.0
  %2240 = vmatpush1.msra.mxu0 %v886
  %2241 = vmatprep.subr.mxu0 0.0
  %2242 = vmatpush1.msra.mxu0 %v885
  %2243 = vmatprep.subr.mxu0 0.0
  %2244 = vmatpush1.msra.mxu0 %v884
  %2245 = vmatprep.subr.mxu0 0.0
  %2246 = vmatpush1.msra.mxu0 %v883
  %2247 = vmatprep.subr.mxu0 0.0
  %2248 = vmatpush2.msra.mxu0 0.0
  %2249 = vmatprep.subr.mxu0 0.0
  %2250 = vmatpush2.msra.mxu0 0.0
  %2251 = vmatprep.subr.mxu0 0.0
  %2252 = vmatpush2.msra.mxu0 0.0
  %2253 = vmatprep.subr.mxu0 0.0
  %2254 = vmatpush2.msra.mxu0 0.0
  %2255 = vmatprep.subr.mxu0 0.0
  %2256 = vmatpush2.msra.mxu0 0.0
  %2257 = vmatprep.subr.mxu0 0.0
  %2258 = vmatpush2.msra.mxu0 0.0
  %2259 = vmatprep.subr.mxu0 0.0
  %2260 = vmatpush2.msra.mxu0 0.0
  %2261 = vmatprep.subr.mxu0 0.0
  %2262 = vmatpush2.msra.mxu0 0.0
  %2263 = vmatprep.subr.mxu0 0.0
  %2264 = vmatpush2.msra.mxu0 0.0
  %2265 = vmatprep.subr.mxu0 0.0
  %2266 = vmatpush2.msra.mxu0 0.0
  %2267 = vmatprep.subr.mxu0 0.0
  %2268 = vmatpush2.msra.mxu0 0.0
  %2269 = vmatprep.subr.mxu0 0.0
  %2270 = vmatpush2.msra.mxu0 0.0
  %2271 = vmatprep.subr.mxu0 0.0
  %2272 = vmatpush2.msra.mxu0 0.0
  %2273 = vmatprep.subr.mxu0 0.0
  %2274 = vmatpush2.msra.mxu0 0.0
  %2275 = vmatprep.subr.mxu0 0.0
  %2276 = vmatpush2.msra.mxu0 0.0
  %2277 = vmatprep.subr.mxu0 0.0
  %2278 = vmatpush2.msra.mxu0 0.0
  %2279 = vmatprep.mubr.f32.mxu0 0.0
  %2280 = vmatmul.mubr.f32.gmra.mxu0 %v2213
  %v2281 = vpop.f32.mrf.mxu0
  %v2282 = vadd.f32 0.0, %v2281
  %v2283 = vpop.f32.mrf.mxu0
  %2284 = vdwg.mxu0
  %v2285 = vadd.f32 %v2210, %v2282
  %v2286 = vmul.f32 %v2285, 0.5
  %v2287 = vtanh.pop %v2286
  %v2288 = vadd.f32 %v2287, 1.0
  %v2289 = vmul.f32 %v2288, 0.5
  %2290 = vmatprep.subr.mxu0 0.0
  %2291 = vmatpush1.msra.mxu0 0.0
  %2292 = vmatprep.subr.mxu0 0.0
  %2293 = vmatpush1.msra.mxu0 0.0
  %2294 = vmatprep.subr.mxu0 0.0
  %2295 = vmatpush1.msra.mxu0 0.0
  %2296 = vmatprep.subr.mxu0 0.0
  %2297 = vmatpush1.msra.mxu0 0.0
  %2298 = vmatprep.subr.mxu0 0.0
  %2299 = vmatpush1.msra.mxu0 0.0
  %2300 = vmatprep.subr.mxu0 0.0
  %2301 = vmatpush1.msra.mxu0 0.0
  %2302 = vmatprep.subr.mxu0 0.0
  %2303 = vmatpush1.msra.mxu0 0.0
  %2304 = vmatprep.subr.mxu0 0.0
  %2305 = vmatpush1.msra.mxu0 0.0
  %2306 = vmatprep.subr.mxu0 0.0
  %2307 = vmatpush1.msra.mxu0 0.0
  %2308 = vmatprep.subr.mxu0 0.0
  %2309 = vmatpush1.msra.mxu0 0.0
  %2310 = vmatprep.subr.mxu0 0.0
  %2311 = vmatpush1.msra.mxu0 0.0
  %2312 = vmatprep.subr.mxu0 0.0
  %2313 = vmatpush1.msra.mxu0 0.0
  %2314 = vmatprep.subr.mxu0 0.0
  %2315 = vmatpush1.msra.mxu0 %v890
  %2316 = vmatprep.subr.mxu0 0.0
  %2317 = vmatpush1.msra.mxu0 %v889
  %2318 = vmatprep.subr.mxu0 0.0
  %2319 = vmatpush1.msra.mxu0 %v888
  %2320 = vmatprep.subr.mxu0 0.0
  %2321 = vmatpush1.msra.mxu0 %v887
  %2322 = vmatprep.subr.mxu0 0.0
  %2323 = vmatpush2.msra.mxu0 0.0
  %2324 = vmatprep.subr.mxu0 0.0
  %2325 = vmatpush2.msra.mxu0 0.0
  %2326 = vmatprep.subr.mxu0 0.0
  %2327 = vmatpush2.msra.mxu0 0.0
  %2328 = vmatprep.subr.mxu0 0.0
  %2329 = vmatpush2.msra.mxu0 0.0
  %2330 = vmatprep.subr.mxu0 0.0
  %2331 = vmatpush2.msra.mxu0 0.0
  %2332 = vmatprep.subr.mxu0 0.0
  %2333 = vmatpush2.msra.mxu0 0.0
  %2334 = vmatprep.subr.mxu0 0.0
  %2335 = vmatpush2.msra.mxu0 0.0
  %2336 = vmatprep.subr.mxu0 0.0
  %2337 = vmatpush2.msra.mxu0 0.0
  %2338 = vmatprep.subr.mxu0 0.0
  %2339 = vmatpush2.msra.mxu0 0.0
  %2340 = vmatprep.subr.mxu0 0.0
  %2341 = vmatpush2.msra.mxu0 0.0
  %2342 = vmatprep.subr.mxu0 0.0
  %2343 = vmatpush2.msra.mxu0 0.0
  %2344 = vmatprep.subr.mxu0 0.0
  %2345 = vmatpush2.msra.mxu0 0.0
  %2346 = vmatprep.subr.mxu0 0.0
  %2347 = vmatpush2.msra.mxu0 0.0
  %2348 = vmatprep.subr.mxu0 0.0
  %2349 = vmatpush2.msra.mxu0 0.0
  %2350 = vmatprep.subr.mxu0 0.0
  %2351 = vmatpush2.msra.mxu0 0.0
  %2352 = vmatprep.subr.mxu0 0.0
  %2353 = vmatpush2.msra.mxu0 0.0
  %2354 = vmatprep.mubr.f32.mxu0 0.0
  %2355 = vmatmul.mubr.f32.gmra.mxu0 %v2213
  %v2356 = vpop.f32.mrf.mxu0
  %v2357 = vadd.f32 %v896, %v2356
  %v2358 = vpop.f32.mrf.mxu0
  %2359 = vdwg.mxu0
  %v2360 = vmul.f32 %v2289, %v2357
  %v2361 = vadd.f32 %v2211, %v2360
  %v2362 = vtanh.pop %v2361
  %v2363 = vsub.f32 %v2209, %v2362
  %2365 = vrot.lane.b32.xlu0 %v2363, 32
  %v2366 = vpop.permute.xlu0 %2365
  %v2368 = vmul.f32 %v2289, %v2366
  %2370 = vrot.lane.b32.xlu0 %v2368, 96
  %v2371 = vpop.permute.xlu0 %2370
  %v2373 = vadd.f32 %v2362, %v2371
  %v2374 = vld [vmem:[#allocation2 + $0x48] sm:$0xff]
  %v2375 = vld [vmem:[#allocation3 + $0x48] sm:$0xff]
  %v2377 = vsel %vm765, %v2373, 0
  %2379 = vmatprep.subr.mxu0 0.0
  %2380 = vmatpush1.msra.mxu0 0.0
  %2381 = vmatprep.subr.mxu0 0.0
  %2382 = vmatpush1.msra.mxu0 0.0
  %2383 = vmatprep.subr.mxu0 0.0
  %2384 = vmatpush1.msra.mxu0 0.0
  %2385 = vmatprep.subr.mxu0 0.0
  %2386 = vmatpush1.msra.mxu0 0.0
  %2387 = vmatprep.subr.mxu0 0.0
  %2388 = vmatpush1.msra.mxu0 0.0
  %2389 = vmatprep.subr.mxu0 0.0
  %2390 = vmatpush1.msra.mxu0 0.0
  %2391 = vmatprep.subr.mxu0 0.0
  %2392 = vmatpush1.msra.mxu0 0.0
  %2393 = vmatprep.subr.mxu0 0.0
  %2394 = vmatpush1.msra.mxu0 0.0
  %2395 = vmatprep.subr.mxu0 0.0
  %2396 = vmatpush1.msra.mxu0 0.0
  %2397 = vmatprep.subr.mxu0 0.0
  %2398 = vmatpush1.msra.mxu0 0.0
  %2399 = vmatprep.subr.mxu0 0.0
  %2400 = vmatpush1.msra.mxu0 0.0
  %2401 = vmatprep.subr.mxu0 0.0
  %2402 = vmatpush1.msra.mxu0 0.0
  %2403 = vmatprep.subr.mxu0 0.0
  %2404 = vmatpush1.msra.mxu0 %v886
  %2405 = vmatprep.subr.mxu0 0.0
  %2406 = vmatpush1.msra.mxu0 %v885
  %2407 = vmatprep.subr.mxu0 0.0
  %2408 = vmatpush1.msra.mxu0 %v884
  %2409 = vmatprep.subr.mxu0 0.0
  %2410 = vmatpush1.msra.mxu0 %v883
  %2411 = vmatprep.subr.mxu0 0.0
  %2412 = vmatpush2.msra.mxu0 0.0
  %2413 = vmatprep.subr.mxu0 0.0
  %2414 = vmatpush2.msra.mxu0 0.0
  %2415 = vmatprep.subr.mxu0 0.0
  %2416 = vmatpush2.msra.mxu0 0.0
  %2417 = vmatprep.subr.mxu0 0.0
  %2418 = vmatpush2.msra.mxu0 0.0
  %2419 = vmatprep.subr.mxu0 0.0
  %2420 = vmatpush2.msra.mxu0 0.0
  %2421 = vmatprep.subr.mxu0 0.0
  %2422 = vmatpush2.msra.mxu0 0.0
  %2423 = vmatprep.subr.mxu0 0.0
  %2424 = vmatpush2.msra.mxu0 0.0
  %2425 = vmatprep.subr.mxu0 0.0
  %2426 = vmatpush2.msra.mxu0 0.0
  %2427 = vmatprep.subr.mxu0 0.0
  %2428 = vmatpush2.msra.mxu0 0.0
  %2429 = vmatprep.subr.mxu0 0.0
  %2430 = vmatpush2.msra.mxu0 0.0
  %2431 = vmatprep.subr.mxu0 0.0
  %2432 = vmatpush2.msra.mxu0 0.0
  %2433 = vmatprep.subr.mxu0 0.0
  %2434 = vmatpush2.msra.mxu0 0.0
  %2435 = vmatprep.subr.mxu0 0.0
  %2436 = vmatpush2.msra.mxu0 0.0
  %2437 = vmatprep.subr.mxu0 0.0
  %2438 = vmatpush2.msra.mxu0 0.0
  %2439 = vmatprep.subr.mxu0 0.0
  %2440 = vmatpush2.msra.mxu0 0.0
  %2441 = vmatprep.subr.mxu0 0.0
  %2442 = vmatpush2.msra.mxu0 0.0
  %2443 = vmatprep.mubr.f32.mxu0 0.0
  %2444 = vmatmul.mubr.f32.gmra.mxu0 %v2377
  %v2445 = vpop.f32.mrf.mxu0
  %v2446 = vadd.f32 0.0, %v2445
  %v2447 = vpop.f32.mrf.mxu0
  %2448 = vdwg.mxu0
  %v2449 = vadd.f32 %v2374, %v2446
  %v2450 = vmul.f32 %v2449, 0.5
  %v2451 = vtanh.pop %v2450
  %v2452 = vadd.f32 %v2451, 1.0
  %v2453 = vmul.f32 %v2452, 0.5
  %2454 = vmatprep.subr.mxu0 0.0
  %2455 = vmatpush1.msra.mxu0 0.0
  %2456 = vmatprep.subr.mxu0 0.0
  %2457 = vmatpush1.msra.mxu0 0.0
  %2458 = vmatprep.subr.mxu0 0.0
  %2459 = vmatpush1.msra.mxu0 0.0
  %2460 = vmatprep.subr.mxu0 0.0
  %2461 = vmatpush1.msra.mxu0 0.0
  %2462 = vmatprep.subr.mxu0 0.0
  %2463 = vmatpush1.msra.mxu0 0.0
  %2464 = vmatprep.subr.mxu0 0.0
  %2465 = vmatpush1.msra.mxu0 0.0
  %2466 = vmatprep.subr.mxu0 0.0
  %2467 = vmatpush1.msra.mxu0 0.0
  %2468 = vmatprep.subr.mxu0 0.0
  %2469 = vmatpush1.msra.mxu0 0.0
  %2470 = vmatprep.subr.mxu0 0.0
  %2471 = vmatpush1.msra.mxu0 0.0
  %2472 = vmatprep.subr.mxu0 0.0
  %2473 = vmatpush1.msra.mxu0 0.0
  %2474 = vmatprep.subr.mxu0 0.0
  %2475 = vmatpush1.msra.mxu0 0.0
  %2476 = vmatprep.subr.mxu0 0.0
  %2477 = vmatpush1.msra.mxu0 0.0
  %2478 = vmatprep.subr.mxu0 0.0
  %2479 = vmatpush1.msra.mxu0 %v890
  %2480 = vmatprep.subr.mxu0 0.0
  %2481 = vmatpush1.msra.mxu0 %v889
  %2482 = vmatprep.subr.mxu0 0.0
  %2483 = vmatpush1.msra.mxu0 %v888
  %2484 = vmatprep.subr.mxu0 0.0
  %2485 = vmatpush1.msra.mxu0 %v887
  %2486 = vmatprep.subr.mxu0 0.0
  %2487 = vmatpush2.msra.mxu0 0.0
  %2488 = vmatprep.subr.mxu0 0.0
  %2489 = vmatpush2.msra.mxu0 0.0
  %2490 = vmatprep.subr.mxu0 0.0
  %2491 = vmatpush2.msra.mxu0 0.0
  %2492 = vmatprep.subr.mxu0 0.0
  %2493 = vmatpush2.msra.mxu0 0.0
  %2494 = vmatprep.subr.mxu0 0.0
  %2495 = vmatpush2.msra.mxu0 0.0
  %2496 = vmatprep.subr.mxu0 0.0
  %2497 = vmatpush2.msra.mxu0 0.0
  %2498 = vmatprep.subr.mxu0 0.0
  %2499 = vmatpush2.msra.mxu0 0.0
  %2500 = vmatprep.subr.mxu0 0.0
  %2501 = vmatpush2.msra.mxu0 0.0
  %2502 = vmatprep.subr.mxu0 0.0
  %2503 = vmatpush2.msra.mxu0 0.0
  %2504 = vmatprep.subr.mxu0 0.0
  %2505 = vmatpush2.msra.mxu0 0.0
  %2506 = vmatprep.subr.mxu0 0.0
  %2507 = vmatpush2.msra.mxu0 0.0
  %2508 = vmatprep.subr.mxu0 0.0
  %2509 = vmatpush2.msra.mxu0 0.0
  %2510 = vmatprep.subr.mxu0 0.0
  %2511 = vmatpush2.msra.mxu0 0.0
  %2512 = vmatprep.subr.mxu0 0.0
  %2513 = vmatpush2.msra.mxu0 0.0
  %2514 = vmatprep.subr.mxu0 0.0
  %2515 = vmatpush2.msra.mxu0 0.0
  %2516 = vmatprep.subr.mxu0 0.0
  %2517 = vmatpush2.msra.mxu0 0.0
  %2518 = vmatprep.mubr.f32.mxu0 0.0
  %2519 = vmatmul.mubr.f32.gmra.mxu0 %v2377
  %v2520 = vpop.f32.mrf.mxu0
  %v2521 = vadd.f32 %v896, %v2520
  %v2522 = vpop.f32.mrf.mxu0
  %2523 = vdwg.mxu0
  %v2524 = vmul.f32 %v2453, %v2521
  %v2525 = vadd.f32 %v2375, %v2524
  %v2526 = vtanh.pop %v2525
  %v2527 = vsub.f32 %v2373, %v2526
  %2529 = vrot.lane.b32.xlu0 %v2527, 32
  %v2530 = vpop.permute.xlu0 %2529
  %v2532 = vmul.f32 %v2453, %v2530
  %2534 = vrot.lane.b32.xlu0 %v2532, 96
  %v2535 = vpop.permute.xlu0 %2534
  %v2537 = vadd.f32 %v2526, %v2535
  %v2538 = vld [vmem:[#allocation2 + $0x50] sm:$0xff]
  %v2539 = vld [vmem:[#allocation3 + $0x50] sm:$0xff]
  %v2541 = vsel %vm765, %v2537, 0
  %2543 = vmatprep.subr.mxu0 0.0
  %2544 = vmatpush1.msra.mxu0 0.0
  %2545 = vmatprep.subr.mxu0 0.0
  %2546 = vmatpush1.msra.mxu0 0.0
  %2547 = vmatprep.subr.mxu0 0.0
  %2548 = vmatpush1.msra.mxu0 0.0
  %2549 = vmatprep.subr.mxu0 0.0
  %2550 = vmatpush1.msra.mxu0 0.0
  %2551 = vmatprep.subr.mxu0 0.0
  %2552 = vmatpush1.msra.mxu0 0.0
  %2553 = vmatprep.subr.mxu0 0.0
  %2554 = vmatpush1.msra.mxu0 0.0
  %2555 = vmatprep.subr.mxu0 0.0
  %2556 = vmatpush1.msra.mxu0 0.0
  %2557 = vmatprep.subr.mxu0 0.0
  %2558 = vmatpush1.msra.mxu0 0.0
  %2559 = vmatprep.subr.mxu0 0.0
  %2560 = vmatpush1.msra.mxu0 0.0
  %2561 = vmatprep.subr.mxu0 0.0
  %2562 = vmatpush1.msra.mxu0 0.0
  %2563 = vmatprep.subr.mxu0 0.0
  %2564 = vmatpush1.msra.mxu0 0.0
  %2565 = vmatprep.subr.mxu0 0.0
  %2566 = vmatpush1.msra.mxu0 0.0
  %2567 = vmatprep.subr.mxu0 0.0
  %2568 = vmatpush1.msra.mxu0 %v886
  %2569 = vmatprep.subr.mxu0 0.0
  %2570 = vmatpush1.msra.mxu0 %v885
  %2571 = vmatprep.subr.mxu0 0.0
  %2572 = vmatpush1.msra.mxu0 %v884
  %2573 = vmatprep.subr.mxu0 0.0
  %2574 = vmatpush1.msra.mxu0 %v883
  %2575 = vmatprep.subr.mxu0 0.0
  %2576 = vmatpush2.msra.mxu0 0.0
  %2577 = vmatprep.subr.mxu0 0.0
  %2578 = vmatpush2.msra.mxu0 0.0
  %2579 = vmatprep.subr.mxu0 0.0
  %2580 = vmatpush2.msra.mxu0 0.0
  %2581 = vmatprep.subr.mxu0 0.0
  %2582 = vmatpush2.msra.mxu0 0.0
  %2583 = vmatprep.subr.mxu0 0.0
  %2584 = vmatpush2.msra.mxu0 0.0
  %2585 = vmatprep.subr.mxu0 0.0
  %2586 = vmatpush2.msra.mxu0 0.0
  %2587 = vmatprep.subr.mxu0 0.0
  %2588 = vmatpush2.msra.mxu0 0.0
  %2589 = vmatprep.subr.mxu0 0.0
  %2590 = vmatpush2.msra.mxu0 0.0
  %2591 = vmatprep.subr.mxu0 0.0
  %2592 = vmatpush2.msra.mxu0 0.0
  %2593 = vmatprep.subr.mxu0 0.0
  %2594 = vmatpush2.msra.mxu0 0.0
  %2595 = vmatprep.subr.mxu0 0.0
  %2596 = vmatpush2.msra.mxu0 0.0
  %2597 = vmatprep.subr.mxu0 0.0
  %2598 = vmatpush2.msra.mxu0 0.0
  %2599 = vmatprep.subr.mxu0 0.0
  %2600 = vmatpush2.msra.mxu0 0.0
  %2601 = vmatprep.subr.mxu0 0.0
  %2602 = vmatpush2.msra.mxu0 0.0
  %2603 = vmatprep.subr.mxu0 0.0
  %2604 = vmatpush2.msra.mxu0 0.0
  %2605 = vmatprep.subr.mxu0 0.0
  %2606 = vmatpush2.msra.mxu0 0.0
  %2607 = vmatprep.mubr.f32.mxu0 0.0
  %2608 = vmatmul.mubr.f32.gmra.mxu0 %v2541
  %v2609 = vpop.f32.mrf.mxu0
  %v2610 = vadd.f32 0.0, %v2609
  %v2611 = vpop.f32.mrf.mxu0
  %2612 = vdwg.mxu0
  %v2613 = vadd.f32 %v2538, %v2610
  %v2614 = vmul.f32 %v2613, 0.5
  %v2615 = vtanh.pop %v2614
  %v2616 = vadd.f32 %v2615, 1.0
  %v2617 = vmul.f32 %v2616, 0.5
  %2618 = vmatprep.subr.mxu0 0.0
  %2619 = vmatpush1.msra.mxu0 0.0
  %2620 = vmatprep.subr.mxu0 0.0
  %2621 = vmatpush1.msra.mxu0 0.0
  %2622 = vmatprep.subr.mxu0 0.0
  %2623 = vmatpush1.msra.mxu0 0.0
  %2624 = vmatprep.subr.mxu0 0.0
  %2625 = vmatpush1.msra.mxu0 0.0
  %2626 = vmatprep.subr.mxu0 0.0
  %2627 = vmatpush1.msra.mxu0 0.0
  %2628 = vmatprep.subr.mxu0 0.0
  %2629 = vmatpush1.msra.mxu0 0.0
  %2630 = vmatprep.subr.mxu0 0.0
  %2631 = vmatpush1.msra.mxu0 0.0
  %2632 = vmatprep.subr.mxu0 0.0
  %2633 = vmatpush1.msra.mxu0 0.0
  %2634 = vmatprep.subr.mxu0 0.0
  %2635 = vmatpush1.msra.mxu0 0.0
  %2636 = vmatprep.subr.mxu0 0.0
  %2637 = vmatpush1.msra.mxu0 0.0
  %2638 = vmatprep.subr.mxu0 0.0
  %2639 = vmatpush1.msra.mxu0 0.0
  %2640 = vmatprep.subr.mxu0 0.0
  %2641 = vmatpush1.msra.mxu0 0.0
  %2642 = vmatprep.subr.mxu0 0.0
  %2643 = vmatpush1.msra.mxu0 %v890
  %2644 = vmatprep.subr.mxu0 0.0
  %2645 = vmatpush1.msra.mxu0 %v889
  %2646 = vmatprep.subr.mxu0 0.0
  %2647 = vmatpush1.msra.mxu0 %v888
  %2648 = vmatprep.subr.mxu0 0.0
  %2649 = vmatpush1.msra.mxu0 %v887
  %2650 = vmatprep.subr.mxu0 0.0
  %2651 = vmatpush2.msra.mxu0 0.0
  %2652 = vmatprep.subr.mxu0 0.0
  %2653 = vmatpush2.msra.mxu0 0.0
  %2654 = vmatprep.subr.mxu0 0.0
  %2655 = vmatpush2.msra.mxu0 0.0
  %2656 = vmatprep.subr.mxu0 0.0
  %2657 = vmatpush2.msra.mxu0 0.0
  %2658 = vmatprep.subr.mxu0 0.0
  %2659 = vmatpush2.msra.mxu0 0.0
  %2660 = vmatprep.subr.mxu0 0.0
  %2661 = vmatpush2.msra.mxu0 0.0
  %2662 = vmatprep.subr.mxu0 0.0
  %2663 = vmatpush2.msra.mxu0 0.0
  %2664 = vmatprep.subr.mxu0 0.0
  %2665 = vmatpush2.msra.mxu0 0.0
  %2666 = vmatprep.subr.mxu0 0.0
  %2667 = vmatpush2.msra.mxu0 0.0
  %2668 = vmatprep.subr.mxu0 0.0
  %2669 = vmatpush2.msra.mxu0 0.0
  %2670 = vmatprep.subr.mxu0 0.0
  %2671 = vmatpush2.msra.mxu0 0.0
  %2672 = vmatprep.subr.mxu0 0.0
  %2673 = vmatpush2.msra.mxu0 0.0
  %2674 = vmatprep.subr.mxu0 0.0
  %2675 = vmatpush2.msra.mxu0 0.0
  %2676 = vmatprep.subr.mxu0 0.0
  %2677 = vmatpush2.msra.mxu0 0.0
  %2678 = vmatprep.subr.mxu0 0.0
  %2679 = vmatpush2.msra.mxu0 0.0
  %2680 = vmatprep.subr.mxu0 0.0
  %2681 = vmatpush2.msra.mxu0 0.0
  %2682 = vmatprep.mubr.f32.mxu0 0.0
  %2683 = vmatmul.mubr.f32.gmra.mxu0 %v2541
  %v2684 = vpop.f32.mrf.mxu0
  %v2685 = vadd.f32 %v896, %v2684
  %v2686 = vpop.f32.mrf.mxu0
  %2687 = vdwg.mxu0
  %v2688 = vmul.f32 %v2617, %v2685
  %v2689 = vadd.f32 %v2539, %v2688
  %v2690 = vtanh.pop %v2689
  %v2691 = vsub.f32 %v2537, %v2690
  %2693 = vrot.lane.b32.xlu0 %v2691, 32
  %v2694 = vpop.permute.xlu0 %2693
  %v2696 = vmul.f32 %v2617, %v2694
  %2698 = vrot.lane.b32.xlu0 %v2696, 96
  %v2699 = vpop.permute.xlu0 %2698
  %v2701 = vadd.f32 %v2690, %v2699
  %v2702 = vld [vmem:[#allocation2 + $0x58] sm:$0xff]
  %v2703 = vld [vmem:[#allocation3 + $0x58] sm:$0xff]
  %v2705 = vsel %vm765, %v2701, 0
  %2707 = vmatprep.subr.mxu0 0.0
  %2708 = vmatpush1.msra.mxu0 0.0
  %2709 = vmatprep.subr.mxu0 0.0
  %2710 = vmatpush1.msra.mxu0 0.0
  %2711 = vmatprep.subr.mxu0 0.0
  %2712 = vmatpush1.msra.mxu0 0.0
  %2713 = vmatprep.subr.mxu0 0.0
  %2714 = vmatpush1.msra.mxu0 0.0
  %2715 = vmatprep.subr.mxu0 0.0
  %2716 = vmatpush1.msra.mxu0 0.0
  %2717 = vmatprep.subr.mxu0 0.0
  %2718 = vmatpush1.msra.mxu0 0.0
  %2719 = vmatprep.subr.mxu0 0.0
  %2720 = vmatpush1.msra.mxu0 0.0
  %2721 = vmatprep.subr.mxu0 0.0
  %2722 = vmatpush1.msra.mxu0 0.0
  %2723 = vmatprep.subr.mxu0 0.0
  %2724 = vmatpush1.msra.mxu0 0.0
  %2725 = vmatprep.subr.mxu0 0.0
  %2726 = vmatpush1.msra.mxu0 0.0
  %2727 = vmatprep.subr.mxu0 0.0
  %2728 = vmatpush1.msra.mxu0 0.0
  %2729 = vmatprep.subr.mxu0 0.0
  %2730 = vmatpush1.msra.mxu0 0.0
  %2731 = vmatprep.subr.mxu0 0.0
  %2732 = vmatpush1.msra.mxu0 %v886
  %2733 = vmatprep.subr.mxu0 0.0
  %2734 = vmatpush1.msra.mxu0 %v885
  %2735 = vmatprep.subr.mxu0 0.0
  %2736 = vmatpush1.msra.mxu0 %v884
  %2737 = vmatprep.subr.mxu0 0.0
  %2738 = vmatpush1.msra.mxu0 %v883
  %2739 = vmatprep.subr.mxu0 0.0
  %2740 = vmatpush2.msra.mxu0 0.0
  %2741 = vmatprep.subr.mxu0 0.0
  %2742 = vmatpush2.msra.mxu0 0.0
  %2743 = vmatprep.subr.mxu0 0.0
  %2744 = vmatpush2.msra.mxu0 0.0
  %2745 = vmatprep.subr.mxu0 0.0
  %2746 = vmatpush2.msra.mxu0 0.0
  %2747 = vmatprep.subr.mxu0 0.0
  %2748 = vmatpush2.msra.mxu0 0.0
  %2749 = vmatprep.subr.mxu0 0.0
  %2750 = vmatpush2.msra.mxu0 0.0
  %2751 = vmatprep.subr.mxu0 0.0
  %2752 = vmatpush2.msra.mxu0 0.0
  %2753 = vmatprep.subr.mxu0 0.0
  %2754 = vmatpush2.msra.mxu0 0.0
  %2755 = vmatprep.subr.mxu0 0.0
  %2756 = vmatpush2.msra.mxu0 0.0
  %2757 = vmatprep.subr.mxu0 0.0
  %2758 = vmatpush2.msra.mxu0 0.0
  %2759 = vmatprep.subr.mxu0 0.0
  %2760 = vmatpush2.msra.mxu0 0.0
  %2761 = vmatprep.subr.mxu0 0.0
  %2762 = vmatpush2.msra.mxu0 0.0
  %2763 = vmatprep.subr.mxu0 0.0
  %2764 = vmatpush2.msra.mxu0 0.0
  %2765 = vmatprep.subr.mxu0 0.0
  %2766 = vmatpush2.msra.mxu0 0.0
  %2767 = vmatprep.subr.mxu0 0.0
  %2768 = vmatpush2.msra.mxu0 0.0
  %2769 = vmatprep.subr.mxu0 0.0
  %2770 = vmatpush2.msra.mxu0 0.0
  %2771 = vmatprep.mubr.f32.mxu0 0.0
  %2772 = vmatmul.mubr.f32.gmra.mxu0 %v2705
  %v2773 = vpop.f32.mrf.mxu0
  %v2774 = vadd.f32 0.0, %v2773
  %v2775 = vpop.f32.mrf.mxu0
  %2776 = vdwg.mxu0
  %v2777 = vadd.f32 %v2702, %v2774
  %v2778 = vmul.f32 %v2777, 0.5
  %v2779 = vtanh.pop %v2778
  %v2780 = vadd.f32 %v2779, 1.0
  %v2781 = vmul.f32 %v2780, 0.5
  %2782 = vmatprep.subr.mxu0 0.0
  %2783 = vmatpush1.msra.mxu0 0.0
  %2784 = vmatprep.subr.mxu0 0.0
  %2785 = vmatpush1.msra.mxu0 0.0
  %2786 = vmatprep.subr.mxu0 0.0
  %2787 = vmatpush1.msra.mxu0 0.0
  %2788 = vmatprep.subr.mxu0 0.0
  %2789 = vmatpush1.msra.mxu0 0.0
  %2790 = vmatprep.subr.mxu0 0.0
  %2791 = vmatpush1.msra.mxu0 0.0
  %2792 = vmatprep.subr.mxu0 0.0
  %2793 = vmatpush1.msra.mxu0 0.0
  %2794 = vmatprep.subr.mxu0 0.0
  %2795 = vmatpush1.msra.mxu0 0.0
  %2796 = vmatprep.subr.mxu0 0.0
  %2797 = vmatpush1.msra.mxu0 0.0
  %2798 = vmatprep.subr.mxu0 0.0
  %2799 = vmatpush1.msra.mxu0 0.0
  %2800 = vmatprep.subr.mxu0 0.0
  %2801 = vmatpush1.msra.mxu0 0.0
  %2802 = vmatprep.subr.mxu0 0.0
  %2803 = vmatpush1.msra.mxu0 0.0
  %2804 = vmatprep.subr.mxu0 0.0
  %2805 = vmatpush1.msra.mxu0 0.0
  %2806 = vmatprep.subr.mxu0 0.0
  %2807 = vmatpush1.msra.mxu0 %v890
  %2808 = vmatprep.subr.mxu0 0.0
  %2809 = vmatpush1.msra.mxu0 %v889
  %2810 = vmatprep.subr.mxu0 0.0
  %2811 = vmatpush1.msra.mxu0 %v888
  %2812 = vmatprep.subr.mxu0 0.0
  %2813 = vmatpush1.msra.mxu0 %v887
  %2814 = vmatprep.subr.mxu0 0.0
  %2815 = vmatpush2.msra.mxu0 0.0
  %2816 = vmatprep.subr.mxu0 0.0
  %2817 = vmatpush2.msra.mxu0 0.0
  %2818 = vmatprep.subr.mxu0 0.0
  %2819 = vmatpush2.msra.mxu0 0.0
  %2820 = vmatprep.subr.mxu0 0.0
  %2821 = vmatpush2.msra.mxu0 0.0
  %2822 = vmatprep.subr.mxu0 0.0
  %2823 = vmatpush2.msra.mxu0 0.0
  %2824 = vmatprep.subr.mxu0 0.0
  %2825 = vmatpush2.msra.mxu0 0.0
  %2826 = vmatprep.subr.mxu0 0.0
  %2827 = vmatpush2.msra.mxu0 0.0
  %2828 = vmatprep.subr.mxu0 0.0
  %2829 = vmatpush2.msra.mxu0 0.0
  %2830 = vmatprep.subr.mxu0 0.0
  %2831 = vmatpush2.msra.mxu0 0.0
  %2832 = vmatprep.subr.mxu0 0.0
  %2833 = vmatpush2.msra.mxu0 0.0
  %2834 = vmatprep.subr.mxu0 0.0
  %2835 = vmatpush2.msra.mxu0 0.0
  %2836 = vmatprep.subr.mxu0 0.0
  %2837 = vmatpush2.msra.mxu0 0.0
  %2838 = vmatprep.subr.mxu0 0.0
  %2839 = vmatpush2.msra.mxu0 0.0
  %2840 = vmatprep.subr.mxu0 0.0
  %2841 = vmatpush2.msra.mxu0 0.0
  %2842 = vmatprep.subr.mxu0 0.0
  %2843 = vmatpush2.msra.mxu0 0.0
  %2844 = vmatprep.subr.mxu0 0.0
  %2845 = vmatpush2.msra.mxu0 0.0
  %2846 = vmatprep.mubr.f32.mxu0 0.0
  %2847 = vmatmul.mubr.f32.gmra.mxu0 %v2705
  %v2848 = vpop.f32.mrf.mxu0
  %v2849 = vadd.f32 %v896, %v2848
  %v2850 = vpop.f32.mrf.mxu0
  %2851 = vdwg.mxu0
  %v2852 = vmul.f32 %v2781, %v2849
  %v2853 = vadd.f32 %v2703, %v2852
  %v2854 = vtanh.pop %v2853
  %v2855 = vsub.f32 %v2701, %v2854
  %2857 = vrot.lane.b32.xlu0 %v2855, 32
  %v2858 = vpop.permute.xlu0 %2857
  %v2860 = vmul.f32 %v2781, %v2858
  %2862 = vrot.lane.b32.xlu0 %v2860, 96
  %v2863 = vpop.permute.xlu0 %2862
  %v2865 = vadd.f32 %v2854, %v2863
  %v2866 = vld [vmem:[#allocation2 + $0x60] sm:$0xff]
  %v2867 = vld [vmem:[#allocation3 + $0x60] sm:$0xff]
  %v2869 = vsel %vm765, %v2865, 0
  %2871 = vmatprep.subr.mxu0 0.0
  %2872 = vmatpush1.msra.mxu0 0.0
  %2873 = vmatprep.subr.mxu0 0.0
  %2874 = vmatpush1.msra.mxu0 0.0
  %2875 = vmatprep.subr.mxu0 0.0
  %2876 = vmatpush1.msra.mxu0 0.0
  %2877 = vmatprep.subr.mxu0 0.0
  %2878 = vmatpush1.msra.mxu0 0.0
  %2879 = vmatprep.subr.mxu0 0.0
  %2880 = vmatpush1.msra.mxu0 0.0
  %2881 = vmatprep.subr.mxu0 0.0
  %2882 = vmatpush1.msra.mxu0 0.0
  %2883 = vmatprep.subr.mxu0 0.0
  %2884 = vmatpush1.msra.mxu0 0.0
  %2885 = vmatprep.subr.mxu0 0.0
  %2886 = vmatpush1.msra.mxu0 0.0
  %2887 = vmatprep.subr.mxu0 0.0
  %2888 = vmatpush1.msra.mxu0 0.0
  %2889 = vmatprep.subr.mxu0 0.0
  %2890 = vmatpush1.msra.mxu0 0.0
  %2891 = vmatprep.subr.mxu0 0.0
  %2892 = vmatpush1.msra.mxu0 0.0
  %2893 = vmatprep.subr.mxu0 0.0
  %2894 = vmatpush1.msra.mxu0 0.0
  %2895 = vmatprep.subr.mxu0 0.0
  %2896 = vmatpush1.msra.mxu0 %v886
  %2897 = vmatprep.subr.mxu0 0.0
  %2898 = vmatpush1.msra.mxu0 %v885
  %2899 = vmatprep.subr.mxu0 0.0
  %2900 = vmatpush1.msra.mxu0 %v884
  %2901 = vmatprep.subr.mxu0 0.0
  %2902 = vmatpush1.msra.mxu0 %v883
  %2903 = vmatprep.subr.mxu0 0.0
  %2904 = vmatpush2.msra.mxu0 0.0
  %2905 = vmatprep.subr.mxu0 0.0
  %2906 = vmatpush2.msra.mxu0 0.0
  %2907 = vmatprep.subr.mxu0 0.0
  %2908 = vmatpush2.msra.mxu0 0.0
  %2909 = vmatprep.subr.mxu0 0.0
  %2910 = vmatpush2.msra.mxu0 0.0
  %2911 = vmatprep.subr.mxu0 0.0
  %2912 = vmatpush2.msra.mxu0 0.0
  %2913 = vmatprep.subr.mxu0 0.0
  %2914 = vmatpush2.msra.mxu0 0.0
  %2915 = vmatprep.subr.mxu0 0.0
  %2916 = vmatpush2.msra.mxu0 0.0
  %2917 = vmatprep.subr.mxu0 0.0
  %2918 = vmatpush2.msra.mxu0 0.0
  %2919 = vmatprep.subr.mxu0 0.0
  %2920 = vmatpush2.msra.mxu0 0.0
  %2921 = vmatprep.subr.mxu0 0.0
  %2922 = vmatpush2.msra.mxu0 0.0
  %2923 = vmatprep.subr.mxu0 0.0
  %2924 = vmatpush2.msra.mxu0 0.0
  %2925 = vmatprep.subr.mxu0 0.0
  %2926 = vmatpush2.msra.mxu0 0.0
  %2927 = vmatprep.subr.mxu0 0.0
  %2928 = vmatpush2.msra.mxu0 0.0
  %2929 = vmatprep.subr.mxu0 0.0
  %2930 = vmatpush2.msra.mxu0 0.0
  %2931 = vmatprep.subr.mxu0 0.0
  %2932 = vmatpush2.msra.mxu0 0.0
  %2933 = vmatprep.subr.mxu0 0.0
  %2934 = vmatpush2.msra.mxu0 0.0
  %2935 = vmatprep.mubr.f32.mxu0 0.0
  %2936 = vmatmul.mubr.f32.gmra.mxu0 %v2869
  %v2937 = vpop.f32.mrf.mxu0
  %v2938 = vadd.f32 0.0, %v2937
  %v2939 = vpop.f32.mrf.mxu0
  %2940 = vdwg.mxu0
  %v2941 = vadd.f32 %v2866, %v2938
  %v2942 = vmul.f32 %v2941, 0.5
  %v2943 = vtanh.pop %v2942
  %v2944 = vadd.f32 %v2943, 1.0
  %v2945 = vmul.f32 %v2944, 0.5
  %2946 = vmatprep.subr.mxu0 0.0
  %2947 = vmatpush1.msra.mxu0 0.0
  %2948 = vmatprep.subr.mxu0 0.0
  %2949 = vmatpush1.msra.mxu0 0.0
  %2950 = vmatprep.subr.mxu0 0.0
  %2951 = vmatpush1.msra.mxu0 0.0
  %2952 = vmatprep.subr.mxu0 0.0
  %2953 = vmatpush1.msra.mxu0 0.0
  %2954 = vmatprep.subr.mxu0 0.0
  %2955 = vmatpush1.msra.mxu0 0.0
  %2956 = vmatprep.subr.mxu0 0.0
  %2957 = vmatpush1.msra.mxu0 0.0
  %2958 = vmatprep.subr.mxu0 0.0
  %2959 = vmatpush1.msra.mxu0 0.0
  %2960 = vmatprep.subr.mxu0 0.0
  %2961 = vmatpush1.msra.mxu0 0.0
  %2962 = vmatprep.subr.mxu0 0.0
  %2963 = vmatpush1.msra.mxu0 0.0
  %2964 = vmatprep.subr.mxu0 0.0
  %2965 = vmatpush1.msra.mxu0 0.0
  %2966 = vmatprep.subr.mxu0 0.0
  %2967 = vmatpush1.msra.mxu0 0.0
  %2968 = vmatprep.subr.mxu0 0.0
  %2969 = vmatpush1.msra.mxu0 0.0
  %2970 = vmatprep.subr.mxu0 0.0
  %2971 = vmatpush1.msra.mxu0 %v890
  %2972 = vmatprep.subr.mxu0 0.0
  %2973 = vmatpush1.msra.mxu0 %v889
  %2974 = vmatprep.subr.mxu0 0.0
  %2975 = vmatpush1.msra.mxu0 %v888
  %2976 = vmatprep.subr.mxu0 0.0
  %2977 = vmatpush1.msra.mxu0 %v887
  %2978 = vmatprep.subr.mxu0 0.0
  %2979 = vmatpush2.msra.mxu0 0.0
  %2980 = vmatprep.subr.mxu0 0.0
  %2981 = vmatpush2.msra.mxu0 0.0
  %2982 = vmatprep.subr.mxu0 0.0
  %2983 = vmatpush2.msra.mxu0 0.0
  %2984 = vmatprep.subr.mxu0 0.0
  %2985 = vmatpush2.msra.mxu0 0.0
  %2986 = vmatprep.subr.mxu0 0.0
  %2987 = vmatpush2.msra.mxu0 0.0
  %2988 = vmatprep.subr.mxu0 0.0
  %2989 = vmatpush2.msra.mxu0 0.0
  %2990 = vmatprep.subr.mxu0 0.0
  %2991 = vmatpush2.msra.mxu0 0.0
  %2992 = vmatprep.subr.mxu0 0.0
  %2993 = vmatpush2.msra.mxu0 0.0
  %2994 = vmatprep.subr.mxu0 0.0
  %2995 = vmatpush2.msra.mxu0 0.0
  %2996 = vmatprep.subr.mxu0 0.0
  %2997 = vmatpush2.msra.mxu0 0.0
  %2998 = vmatprep.subr.mxu0 0.0
  %2999 = vmatpush2.msra.mxu0 0.0
  %3000 = vmatprep.subr.mxu0 0.0
  %3001 = vmatpush2.msra.mxu0 0.0
  %3002 = vmatprep.subr.mxu0 0.0
  %3003 = vmatpush2.msra.mxu0 0.0
  %3004 = vmatprep.subr.mxu0 0.0
  %3005 = vmatpush2.msra.mxu0 0.0
  %3006 = vmatprep.subr.mxu0 0.0
  %3007 = vmatpush2.msra.mxu0 0.0
  %3008 = vmatprep.subr.mxu0 0.0
  %3009 = vmatpush2.msra.mxu0 0.0
  %3010 = vmatprep.mubr.f32.mxu0 0.0
  %3011 = vmatmul.mubr.f32.gmra.mxu0 %v2869
  %v3012 = vpop.f32.mrf.mxu0
  %v3013 = vadd.f32 %v896, %v3012
  %v3014 = vpop.f32.mrf.mxu0
  %3015 = vdwg.mxu0
  %v3016 = vmul.f32 %v2945, %v3013
  %v3017 = vadd.f32 %v2867, %v3016
  %v3018 = vtanh.pop %v3017
  %v3019 = vsub.f32 %v2865, %v3018
  %3021 = vrot.lane.b32.xlu0 %v3019, 32
  %v3022 = vpop.permute.xlu0 %3021
  %v3024 = vmul.f32 %v2945, %v3022
  %3026 = vrot.lane.b32.xlu0 %v3024, 96
  %v3027 = vpop.permute.xlu0 %3026
  %v3029 = vadd.f32 %v3018, %v3027
  %v3030 = vld [vmem:[#allocation2 + $0x68] sm:$0xff]
  %v3031 = vld [vmem:[#allocation3 + $0x68] sm:$0xff]
  %v3033 = vsel %vm765, %v3029, 0
  %3035 = vmatprep.subr.mxu0 0.0
  %3036 = vmatpush1.msra.mxu0 0.0
  %3037 = vmatprep.subr.mxu0 0.0
  %3038 = vmatpush1.msra.mxu0 0.0
  %3039 = vmatprep.subr.mxu0 0.0
  %3040 = vmatpush1.msra.mxu0 0.0
  %3041 = vmatprep.subr.mxu0 0.0
  %3042 = vmatpush1.msra.mxu0 0.0
  %3043 = vmatprep.subr.mxu0 0.0
  %3044 = vmatpush1.msra.mxu0 0.0
  %3045 = vmatprep.subr.mxu0 0.0
  %3046 = vmatpush1.msra.mxu0 0.0
  %3047 = vmatprep.subr.mxu0 0.0
  %3048 = vmatpush1.msra.mxu0 0.0
  %3049 = vmatprep.subr.mxu0 0.0
  %3050 = vmatpush1.msra.mxu0 0.0
  %3051 = vmatprep.subr.mxu0 0.0
  %3052 = vmatpush1.msra.mxu0 0.0
  %3053 = vmatprep.subr.mxu0 0.0
  %3054 = vmatpush1.msra.mxu0 0.0
  %3055 = vmatprep.subr.mxu0 0.0
  %3056 = vmatpush1.msra.mxu0 0.0
  %3057 = vmatprep.subr.mxu0 0.0
  %3058 = vmatpush1.msra.mxu0 0.0
  %3059 = vmatprep.subr.mxu0 0.0
  %3060 = vmatpush1.msra.mxu0 %v886
  %3061 = vmatprep.subr.mxu0 0.0
  %3062 = vmatpush1.msra.mxu0 %v885
  %3063 = vmatprep.subr.mxu0 0.0
  %3064 = vmatpush1.msra.mxu0 %v884
  %3065 = vmatprep.subr.mxu0 0.0
  %3066 = vmatpush1.msra.mxu0 %v883
  %3067 = vmatprep.subr.mxu0 0.0
  %3068 = vmatpush2.msra.mxu0 0.0
  %3069 = vmatprep.subr.mxu0 0.0
  %3070 = vmatpush2.msra.mxu0 0.0
  %3071 = vmatprep.subr.mxu0 0.0
  %3072 = vmatpush2.msra.mxu0 0.0
  %3073 = vmatprep.subr.mxu0 0.0
  %3074 = vmatpush2.msra.mxu0 0.0
  %3075 = vmatprep.subr.mxu0 0.0
  %3076 = vmatpush2.msra.mxu0 0.0
  %3077 = vmatprep.subr.mxu0 0.0
  %3078 = vmatpush2.msra.mxu0 0.0
  %3079 = vmatprep.subr.mxu0 0.0
  %3080 = vmatpush2.msra.mxu0 0.0
  %3081 = vmatprep.subr.mxu0 0.0
  %3082 = vmatpush2.msra.mxu0 0.0
  %3083 = vmatprep.subr.mxu0 0.0
  %3084 = vmatpush2.msra.mxu0 0.0
  %3085 = vmatprep.subr.mxu0 0.0
  %3086 = vmatpush2.msra.mxu0 0.0
  %3087 = vmatprep.subr.mxu0 0.0
  %3088 = vmatpush2.msra.mxu0 0.0
  %3089 = vmatprep.subr.mxu0 0.0
  %3090 = vmatpush2.msra.mxu0 0.0
  %3091 = vmatprep.subr.mxu0 0.0
  %3092 = vmatpush2.msra.mxu0 0.0
  %3093 = vmatprep.subr.mxu0 0.0
  %3094 = vmatpush2.msra.mxu0 0.0
  %3095 = vmatprep.subr.mxu0 0.0
  %3096 = vmatpush2.msra.mxu0 0.0
  %3097 = vmatprep.subr.mxu0 0.0
  %3098 = vmatpush2.msra.mxu0 0.0
  %3099 = vmatprep.mubr.f32.mxu0 0.0
  %3100 = vmatmul.mubr.f32.gmra.mxu0 %v3033
  %v3101 = vpop.f32.mrf.mxu0
  %v3102 = vadd.f32 0.0, %v3101
  %v3103 = vpop.f32.mrf.mxu0
  %3104 = vdwg.mxu0
  %v3105 = vadd.f32 %v3030, %v3102
  %v3106 = vmul.f32 %v3105, 0.5
  %v3107 = vtanh.pop %v3106
  %v3108 = vadd.f32 %v3107, 1.0
  %v3109 = vmul.f32 %v3108, 0.5
  %3110 = vmatprep.subr.mxu0 0.0
  %3111 = vmatpush1.msra.mxu0 0.0
  %3112 = vmatprep.subr.mxu0 0.0
  %3113 = vmatpush1.msra.mxu0 0.0
  %3114 = vmatprep.subr.mxu0 0.0
  %3115 = vmatpush1.msra.mxu0 0.0
  %3116 = vmatprep.subr.mxu0 0.0
  %3117 = vmatpush1.msra.mxu0 0.0
  %3118 = vmatprep.subr.mxu0 0.0
  %3119 = vmatpush1.msra.mxu0 0.0
  %3120 = vmatprep.subr.mxu0 0.0
  %3121 = vmatpush1.msra.mxu0 0.0
  %3122 = vmatprep.subr.mxu0 0.0
  %3123 = vmatpush1.msra.mxu0 0.0
  %3124 = vmatprep.subr.mxu0 0.0
  %3125 = vmatpush1.msra.mxu0 0.0
  %3126 = vmatprep.subr.mxu0 0.0
  %3127 = vmatpush1.msra.mxu0 0.0
  %3128 = vmatprep.subr.mxu0 0.0
  %3129 = vmatpush1.msra.mxu0 0.0
  %3130 = vmatprep.subr.mxu0 0.0
  %3131 = vmatpush1.msra.mxu0 0.0
  %3132 = vmatprep.subr.mxu0 0.0
  %3133 = vmatpush1.msra.mxu0 0.0
  %3134 = vmatprep.subr.mxu0 0.0
  %3135 = vmatpush1.msra.mxu0 %v890
  %3136 = vmatprep.subr.mxu0 0.0
  %3137 = vmatpush1.msra.mxu0 %v889
  %3138 = vmatprep.subr.mxu0 0.0
  %3139 = vmatpush1.msra.mxu0 %v888
  %3140 = vmatprep.subr.mxu0 0.0
  %3141 = vmatpush1.msra.mxu0 %v887
  %3142 = vmatprep.subr.mxu0 0.0
  %3143 = vmatpush2.msra.mxu0 0.0
  %3144 = vmatprep.subr.mxu0 0.0
  %3145 = vmatpush2.msra.mxu0 0.0
  %3146 = vmatprep.subr.mxu0 0.0
  %3147 = vmatpush2.msra.mxu0 0.0
  %3148 = vmatprep.subr.mxu0 0.0
  %3149 = vmatpush2.msra.mxu0 0.0
  %3150 = vmatprep.subr.mxu0 0.0
  %3151 = vmatpush2.msra.mxu0 0.0
  %3152 = vmatprep.subr.mxu0 0.0
  %3153 = vmatpush2.msra.mxu0 0.0
  %3154 = vmatprep.subr.mxu0 0.0
  %3155 = vmatpush2.msra.mxu0 0.0
  %3156 = vmatprep.subr.mxu0 0.0
  %3157 = vmatpush2.msra.mxu0 0.0
  %3158 = vmatprep.subr.mxu0 0.0
  %3159 = vmatpush2.msra.mxu0 0.0
  %3160 = vmatprep.subr.mxu0 0.0
  %3161 = vmatpush2.msra.mxu0 0.0
  %3162 = vmatprep.subr.mxu0 0.0
  %3163 = vmatpush2.msra.mxu0 0.0
  %3164 = vmatprep.subr.mxu0 0.0
  %3165 = vmatpush2.msra.mxu0 0.0
  %3166 = vmatprep.subr.mxu0 0.0
  %3167 = vmatpush2.msra.mxu0 0.0
  %3168 = vmatprep.subr.mxu0 0.0
  %3169 = vmatpush2.msra.mxu0 0.0
  %3170 = vmatprep.subr.mxu0 0.0
  %3171 = vmatpush2.msra.mxu0 0.0
  %3172 = vmatprep.subr.mxu0 0.0
  %3173 = vmatpush2.msra.mxu0 0.0
  %3174 = vmatprep.mubr.f32.mxu0 0.0
  %3175 = vmatmul.mubr.f32.gmra.mxu0 %v3033
  %v3176 = vpop.f32.mrf.mxu0
  %v3177 = vadd.f32 %v896, %v3176
  %v3178 = vpop.f32.mrf.mxu0
  %3179 = vdwg.mxu0
  %v3180 = vmul.f32 %v3109, %v3177
  %v3181 = vadd.f32 %v3031, %v3180
  %v3182 = vtanh.pop %v3181
  %v3183 = vsub.f32 %v3029, %v3182
  %3185 = vrot.lane.b32.xlu0 %v3183, 32
  %v3186 = vpop.permute.xlu0 %3185
  %v3188 = vmul.f32 %v3109, %v3186
  %3190 = vrot.lane.b32.xlu0 %v3188, 96
  %v3191 = vpop.permute.xlu0 %3190
  %v3193 = vadd.f32 %v3182, %v3191
  %v3194 = vld [vmem:[#allocation2 + $0x70] sm:$0xff]
  %v3195 = vld [vmem:[#allocation3 + $0x70] sm:$0xff]
  %v3197 = vsel %vm765, %v3193, 0
  %3199 = vmatprep.subr.mxu0 0.0
  %3200 = vmatpush1.msra.mxu0 0.0
  %3201 = vmatprep.subr.mxu0 0.0
  %3202 = vmatpush1.msra.mxu0 0.0
  %3203 = vmatprep.subr.mxu0 0.0
  %3204 = vmatpush1.msra.mxu0 0.0
  %3205 = vmatprep.subr.mxu0 0.0
  %3206 = vmatpush1.msra.mxu0 0.0
  %3207 = vmatprep.subr.mxu0 0.0
  %3208 = vmatpush1.msra.mxu0 0.0
  %3209 = vmatprep.subr.mxu0 0.0
  %3210 = vmatpush1.msra.mxu0 0.0
  %3211 = vmatprep.subr.mxu0 0.0
  %3212 = vmatpush1.msra.mxu0 0.0
  %3213 = vmatprep.subr.mxu0 0.0
  %3214 = vmatpush1.msra.mxu0 0.0
  %3215 = vmatprep.subr.mxu0 0.0
  %3216 = vmatpush1.msra.mxu0 0.0
  %3217 = vmatprep.subr.mxu0 0.0
  %3218 = vmatpush1.msra.mxu0 0.0
  %3219 = vmatprep.subr.mxu0 0.0
  %3220 = vmatpush1.msra.mxu0 0.0
  %3221 = vmatprep.subr.mxu0 0.0
  %3222 = vmatpush1.msra.mxu0 0.0
  %3223 = vmatprep.subr.mxu0 0.0
  %3224 = vmatpush1.msra.mxu0 %v886
  %3225 = vmatprep.subr.mxu0 0.0
  %3226 = vmatpush1.msra.mxu0 %v885
  %3227 = vmatprep.subr.mxu0 0.0
  %3228 = vmatpush1.msra.mxu0 %v884
  %3229 = vmatprep.subr.mxu0 0.0
  %3230 = vmatpush1.msra.mxu0 %v883
  %3231 = vmatprep.subr.mxu0 0.0
  %3232 = vmatpush2.msra.mxu0 0.0
  %3233 = vmatprep.subr.mxu0 0.0
  %3234 = vmatpush2.msra.mxu0 0.0
  %3235 = vmatprep.subr.mxu0 0.0
  %3236 = vmatpush2.msra.mxu0 0.0
  %3237 = vmatprep.subr.mxu0 0.0
  %3238 = vmatpush2.msra.mxu0 0.0
  %3239 = vmatprep.subr.mxu0 0.0
  %3240 = vmatpush2.msra.mxu0 0.0
  %3241 = vmatprep.subr.mxu0 0.0
  %3242 = vmatpush2.msra.mxu0 0.0
  %3243 = vmatprep.subr.mxu0 0.0
  %3244 = vmatpush2.msra.mxu0 0.0
  %3245 = vmatprep.subr.mxu0 0.0
  %3246 = vmatpush2.msra.mxu0 0.0
  %3247 = vmatprep.subr.mxu0 0.0
  %3248 = vmatpush2.msra.mxu0 0.0
  %3249 = vmatprep.subr.mxu0 0.0
  %3250 = vmatpush2.msra.mxu0 0.0
  %3251 = vmatprep.subr.mxu0 0.0
  %3252 = vmatpush2.msra.mxu0 0.0
  %3253 = vmatprep.subr.mxu0 0.0
  %3254 = vmatpush2.msra.mxu0 0.0
  %3255 = vmatprep.subr.mxu0 0.0
  %3256 = vmatpush2.msra.mxu0 0.0
  %3257 = vmatprep.subr.mxu0 0.0
  %3258 = vmatpush2.msra.mxu0 0.0
  %3259 = vmatprep.subr.mxu0 0.0
  %3260 = vmatpush2.msra.mxu0 0.0
  %3261 = vmatprep.subr.mxu0 0.0
  %3262 = vmatpush2.msra.mxu0 0.0
  %3263 = vmatprep.mubr.f32.mxu0 0.0
  %3264 = vmatmul.mubr.f32.gmra.mxu0 %v3197
  %v3265 = vpop.f32.mrf.mxu0
  %v3266 = vadd.f32 0.0, %v3265
  %v3267 = vpop.f32.mrf.mxu0
  %3268 = vdwg.mxu0
  %v3269 = vadd.f32 %v3194, %v3266
  %v3270 = vmul.f32 %v3269, 0.5
  %v3271 = vtanh.pop %v3270
  %v3272 = vadd.f32 %v3271, 1.0
  %v3273 = vmul.f32 %v3272, 0.5
  %3274 = vmatprep.subr.mxu0 0.0
  %3275 = vmatpush1.msra.mxu0 0.0
  %3276 = vmatprep.subr.mxu0 0.0
  %3277 = vmatpush1.msra.mxu0 0.0
  %3278 = vmatprep.subr.mxu0 0.0
  %3279 = vmatpush1.msra.mxu0 0.0
  %3280 = vmatprep.subr.mxu0 0.0
  %3281 = vmatpush1.msra.mxu0 0.0
  %3282 = vmatprep.subr.mxu0 0.0
  %3283 = vmatpush1.msra.mxu0 0.0
  %3284 = vmatprep.subr.mxu0 0.0
  %3285 = vmatpush1.msra.mxu0 0.0
  %3286 = vmatprep.subr.mxu0 0.0
  %3287 = vmatpush1.msra.mxu0 0.0
  %3288 = vmatprep.subr.mxu0 0.0
  %3289 = vmatpush1.msra.mxu0 0.0
  %3290 = vmatprep.subr.mxu0 0.0
  %3291 = vmatpush1.msra.mxu0 0.0
  %3292 = vmatprep.subr.mxu0 0.0
  %3293 = vmatpush1.msra.mxu0 0.0
  %3294 = vmatprep.subr.mxu0 0.0
  %3295 = vmatpush1.msra.mxu0 0.0
  %3296 = vmatprep.subr.mxu0 0.0
  %3297 = vmatpush1.msra.mxu0 0.0
  %3298 = vmatprep.subr.mxu0 0.0
  %3299 = vmatpush1.msra.mxu0 %v890
  %3300 = vmatprep.subr.mxu0 0.0
  %3301 = vmatpush1.msra.mxu0 %v889
  %3302 = vmatprep.subr.mxu0 0.0
  %3303 = vmatpush1.msra.mxu0 %v888
  %3304 = vmatprep.subr.mxu0 0.0
  %3305 = vmatpush1.msra.mxu0 %v887
  %3306 = vmatprep.subr.mxu0 0.0
  %3307 = vmatpush2.msra.mxu0 0.0
  %3308 = vmatprep.subr.mxu0 0.0
  %3309 = vmatpush2.msra.mxu0 0.0
  %3310 = vmatprep.subr.mxu0 0.0
  %3311 = vmatpush2.msra.mxu0 0.0
  %3312 = vmatprep.subr.mxu0 0.0
  %3313 = vmatpush2.msra.mxu0 0.0
  %3314 = vmatprep.subr.mxu0 0.0
  %3315 = vmatpush2.msra.mxu0 0.0
  %3316 = vmatprep.subr.mxu0 0.0
  %3317 = vmatpush2.msra.mxu0 0.0
  %3318 = vmatprep.subr.mxu0 0.0
  %3319 = vmatpush2.msra.mxu0 0.0
  %3320 = vmatprep.subr.mxu0 0.0
  %3321 = vmatpush2.msra.mxu0 0.0
  %3322 = vmatprep.subr.mxu0 0.0
  %3323 = vmatpush2.msra.mxu0 0.0
  %3324 = vmatprep.subr.mxu0 0.0
  %3325 = vmatpush2.msra.mxu0 0.0
  %3326 = vmatprep.subr.mxu0 0.0
  %3327 = vmatpush2.msra.mxu0 0.0
  %3328 = vmatprep.subr.mxu0 0.0
  %3329 = vmatpush2.msra.mxu0 0.0
  %3330 = vmatprep.subr.mxu0 0.0
  %3331 = vmatpush2.msra.mxu0 0.0
  %3332 = vmatprep.subr.mxu0 0.0
  %3333 = vmatpush2.msra.mxu0 0.0
  %3334 = vmatprep.subr.mxu0 0.0
  %3335 = vmatpush2.msra.mxu0 0.0
  %3336 = vmatprep.subr.mxu0 0.0
  %3337 = vmatpush2.msra.mxu0 0.0
  %3338 = vmatprep.mubr.f32.mxu0 0.0
  %3339 = vmatmul.mubr.f32.gmra.mxu0 %v3197
  %v3340 = vpop.f32.mrf.mxu0
  %v3341 = vadd.f32 %v896, %v3340
  %v3342 = vpop.f32.mrf.mxu0
  %3343 = vdwg.mxu0
  %v3344 = vmul.f32 %v3273, %v3341
  %v3345 = vadd.f32 %v3195, %v3344
  %v3346 = vtanh.pop %v3345
  %v3347 = vsub.f32 %v3193, %v3346
  %3349 = vrot.lane.b32.xlu0 %v3347, 32
  %v3350 = vpop.permute.xlu0 %3349
  %v3352 = vmul.f32 %v3273, %v3350
  %3354 = vrot.lane.b32.xlu0 %v3352, 96
  %v3355 = vpop.permute.xlu0 %3354
  %v3357 = vadd.f32 %v3346, %v3355
  %v3358 = vld [vmem:[#allocation2 + $0x78] sm:$0xff]
  %v3359 = vld [vmem:[#allocation3 + $0x78] sm:$0xff]
  %v3361 = vsel %vm765, %v3357, 0
  %3363 = vmatprep.subr.mxu0 0.0
  %3364 = vmatpush1.msra.mxu0 0.0
  %3365 = vmatprep.subr.mxu0 0.0
  %3366 = vmatpush1.msra.mxu0 0.0
  %3367 = vmatprep.subr.mxu0 0.0
  %3368 = vmatpush1.msra.mxu0 0.0
  %3369 = vmatprep.subr.mxu0 0.0
  %3370 = vmatpush1.msra.mxu0 0.0
  %3371 = vmatprep.subr.mxu0 0.0
  %3372 = vmatpush1.msra.mxu0 0.0
  %3373 = vmatprep.subr.mxu0 0.0
  %3374 = vmatpush1.msra.mxu0 0.0
  %3375 = vmatprep.subr.mxu0 0.0
  %3376 = vmatpush1.msra.mxu0 0.0
  %3377 = vmatprep.subr.mxu0 0.0
  %3378 = vmatpush1.msra.mxu0 0.0
  %3379 = vmatprep.subr.mxu0 0.0
  %3380 = vmatpush1.msra.mxu0 0.0
  %3381 = vmatprep.subr.mxu0 0.0
  %3382 = vmatpush1.msra.mxu0 0.0
  %3383 = vmatprep.subr.mxu0 0.0
  %3384 = vmatpush1.msra.mxu0 0.0
  %3385 = vmatprep.subr.mxu0 0.0
  %3386 = vmatpush1.msra.mxu0 0.0
  %3387 = vmatprep.subr.mxu0 0.0
  %3388 = vmatpush1.msra.mxu0 %v886
  %3389 = vmatprep.subr.mxu0 0.0
  %3390 = vmatpush1.msra.mxu0 %v885
  %3391 = vmatprep.subr.mxu0 0.0
  %3392 = vmatpush1.msra.mxu0 %v884
  %3393 = vmatprep.subr.mxu0 0.0
  %3394 = vmatpush1.msra.mxu0 %v883
  %3395 = vmatprep.subr.mxu0 0.0
  %3396 = vmatpush2.msra.mxu0 0.0
  %3397 = vmatprep.subr.mxu0 0.0
  %3398 = vmatpush2.msra.mxu0 0.0
  %3399 = vmatprep.subr.mxu0 0.0
  %3400 = vmatpush2.msra.mxu0 0.0
  %3401 = vmatprep.subr.mxu0 0.0
  %3402 = vmatpush2.msra.mxu0 0.0
  %3403 = vmatprep.subr.mxu0 0.0
  %3404 = vmatpush2.msra.mxu0 0.0
  %3405 = vmatprep.subr.mxu0 0.0
  %3406 = vmatpush2.msra.mxu0 0.0
  %3407 = vmatprep.subr.mxu0 0.0
  %3408 = vmatpush2.msra.mxu0 0.0
  %3409 = vmatprep.subr.mxu0 0.0
  %3410 = vmatpush2.msra.mxu0 0.0
  %3411 = vmatprep.subr.mxu0 0.0
  %3412 = vmatpush2.msra.mxu0 0.0
  %3413 = vmatprep.subr.mxu0 0.0
  %3414 = vmatpush2.msra.mxu0 0.0
  %3415 = vmatprep.subr.mxu0 0.0
  %3416 = vmatpush2.msra.mxu0 0.0
  %3417 = vmatprep.subr.mxu0 0.0
  %3418 = vmatpush2.msra.mxu0 0.0
  %3419 = vmatprep.subr.mxu0 0.0
  %3420 = vmatpush2.msra.mxu0 0.0
  %3421 = vmatprep.subr.mxu0 0.0
  %3422 = vmatpush2.msra.mxu0 0.0
  %3423 = vmatprep.subr.mxu0 0.0
  %3424 = vmatpush2.msra.mxu0 0.0
  %3425 = vmatprep.subr.mxu0 0.0
  %3426 = vmatpush2.msra.mxu0 0.0
  %3427 = vmatprep.mubr.f32.mxu0 0.0
  %3428 = vmatmul.mubr.f32.gmra.mxu0 %v3361
  %v3429 = vpop.f32.mrf.mxu0
  %v3430 = vadd.f32 0.0, %v3429
  %v3431 = vpop.f32.mrf.mxu0
  %3432 = vdwg.mxu0
  %v3433 = vadd.f32 %v3358, %v3430
  %v3434 = vmul.f32 %v3433, 0.5
  %v3435 = vtanh.pop %v3434
  %v3436 = vadd.f32 %v3435, 1.0
  %v3437 = vmul.f32 %v3436, 0.5
  %3438 = vmatprep.subr.mxu0 0.0
  %3439 = vmatpush1.msra.mxu0 0.0
  %3440 = vmatprep.subr.mxu0 0.0
  %3441 = vmatpush1.msra.mxu0 0.0
  %3442 = vmatprep.subr.mxu0 0.0
  %3443 = vmatpush1.msra.mxu0 0.0
  %3444 = vmatprep.subr.mxu0 0.0
  %3445 = vmatpush1.msra.mxu0 0.0
  %3446 = vmatprep.subr.mxu0 0.0
  %3447 = vmatpush1.msra.mxu0 0.0
  %3448 = vmatprep.subr.mxu0 0.0
  %3449 = vmatpush1.msra.mxu0 0.0
  %3450 = vmatprep.subr.mxu0 0.0
  %3451 = vmatpush1.msra.mxu0 0.0
  %3452 = vmatprep.subr.mxu0 0.0
  %3453 = vmatpush1.msra.mxu0 0.0
  %3454 = vmatprep.subr.mxu0 0.0
  %3455 = vmatpush1.msra.mxu0 0.0
  %3456 = vmatprep.subr.mxu0 0.0
  %3457 = vmatpush1.msra.mxu0 0.0
  %3458 = vmatprep.subr.mxu0 0.0
  %3459 = vmatpush1.msra.mxu0 0.0
  %3460 = vmatprep.subr.mxu0 0.0
  %3461 = vmatpush1.msra.mxu0 0.0
  %3462 = vmatprep.subr.mxu0 0.0
  %3463 = vmatpush1.msra.mxu0 %v890
  %3464 = vmatprep.subr.mxu0 0.0
  %3465 = vmatpush1.msra.mxu0 %v889
  %3466 = vmatprep.subr.mxu0 0.0
  %3467 = vmatpush1.msra.mxu0 %v888
  %3468 = vmatprep.subr.mxu0 0.0
  %3469 = vmatpush1.msra.mxu0 %v887
  %3470 = vmatprep.subr.mxu0 0.0
  %3471 = vmatpush2.msra.mxu0 0.0
  %3472 = vmatprep.subr.mxu0 0.0
  %3473 = vmatpush2.msra.mxu0 0.0
  %3474 = vmatprep.subr.mxu0 0.0
  %3475 = vmatpush2.msra.mxu0 0.0
  %3476 = vmatprep.subr.mxu0 0.0
  %3477 = vmatpush2.msra.mxu0 0.0
  %3478 = vmatprep.subr.mxu0 0.0
  %3479 = vmatpush2.msra.mxu0 0.0
  %3480 = vmatprep.subr.mxu0 0.0
  %3481 = vmatpush2.msra.mxu0 0.0
  %3482 = vmatprep.subr.mxu0 0.0
  %3483 = vmatpush2.msra.mxu0 0.0
  %3484 = vmatprep.subr.mxu0 0.0
  %3485 = vmatpush2.msra.mxu0 0.0
  %3486 = vmatprep.subr.mxu0 0.0
  %3487 = vmatpush2.msra.mxu0 0.0
  %3488 = vmatprep.subr.mxu0 0.0
  %3489 = vmatpush2.msra.mxu0 0.0
  %3490 = vmatprep.subr.mxu0 0.0
  %3491 = vmatpush2.msra.mxu0 0.0
  %3492 = vmatprep.subr.mxu0 0.0
  %3493 = vmatpush2.msra.mxu0 0.0
  %3494 = vmatprep.subr.mxu0 0.0
  %3495 = vmatpush2.msra.mxu0 0.0
  %3496 = vmatprep.subr.mxu0 0.0
  %3497 = vmatpush2.msra.mxu0 0.0
  %3498 = vmatprep.subr.mxu0 0.0
  %3499 = vmatpush2.msra.mxu0 0.0
  %3500 = vmatprep.subr.mxu0 0.0
  %3501 = vmatpush2.msra.mxu0 0.0
  %3502 = vmatprep.mubr.f32.mxu0 0.0
  %3503 = vmatmul.mubr.f32.gmra.mxu0 %v3361
  %v3504 = vpop.f32.mrf.mxu0
  %v3505 = vadd.f32 %v896, %v3504
  %v3506 = vpop.f32.mrf.mxu0
  %3507 = vdwg.mxu0
  %v3508 = vmul.f32 %v3437, %v3505
  %v3509 = vadd.f32 %v3359, %v3508
  %v3510 = vtanh.pop %v3509
  %v3511 = vsub.f32 %v3357, %v3510
  %3513 = vrot.lane.b32.xlu0 %v3511, 32
  %v3514 = vpop.permute.xlu0 %3513
  %v3516 = vmul.f32 %v3437, %v3514
  %3518 = vrot.lane.b32.xlu0 %v3516, 96
  %v3519 = vpop.permute.xlu0 %3518
  %v3521 = vadd.f32 %v3510, %v3519
  %v3522 = vld [vmem:[#allocation2 + $0x80] sm:$0xff]
  %v3523 = vld [vmem:[#allocation3 + $0x80] sm:$0xff]
  %v3525 = vsel %vm765, %v3521, 0
  %3527 = vmatprep.subr.mxu0 0.0
  %3528 = vmatpush1.msra.mxu0 0.0
  %3529 = vmatprep.subr.mxu0 0.0
  %3530 = vmatpush1.msra.mxu0 0.0
  %3531 = vmatprep.subr.mxu0 0.0
  %3532 = vmatpush1.msra.mxu0 0.0
  %3533 = vmatprep.subr.mxu0 0.0
  %3534 = vmatpush1.msra.mxu0 0.0
  %3535 = vmatprep.subr.mxu0 0.0
  %3536 = vmatpush1.msra.mxu0 0.0
  %3537 = vmatprep.subr.mxu0 0.0
  %3538 = vmatpush1.msra.mxu0 0.0
  %3539 = vmatprep.subr.mxu0 0.0
  %3540 = vmatpush1.msra.mxu0 0.0
  %3541 = vmatprep.subr.mxu0 0.0
  %3542 = vmatpush1.msra.mxu0 0.0
  %3543 = vmatprep.subr.mxu0 0.0
  %3544 = vmatpush1.msra.mxu0 0.0
  %3545 = vmatprep.subr.mxu0 0.0
  %3546 = vmatpush1.msra.mxu0 0.0
  %3547 = vmatprep.subr.mxu0 0.0
  %3548 = vmatpush1.msra.mxu0 0.0
  %3549 = vmatprep.subr.mxu0 0.0
  %3550 = vmatpush1.msra.mxu0 0.0
  %3551 = vmatprep.subr.mxu0 0.0
  %3552 = vmatpush1.msra.mxu0 %v886
  %3553 = vmatprep.subr.mxu0 0.0
  %3554 = vmatpush1.msra.mxu0 %v885
  %3555 = vmatprep.subr.mxu0 0.0
  %3556 = vmatpush1.msra.mxu0 %v884
  %3557 = vmatprep.subr.mxu0 0.0
  %3558 = vmatpush1.msra.mxu0 %v883
  %3559 = vmatprep.subr.mxu0 0.0
  %3560 = vmatpush2.msra.mxu0 0.0
  %3561 = vmatprep.subr.mxu0 0.0
  %3562 = vmatpush2.msra.mxu0 0.0
  %3563 = vmatprep.subr.mxu0 0.0
  %3564 = vmatpush2.msra.mxu0 0.0
  %3565 = vmatprep.subr.mxu0 0.0
  %3566 = vmatpush2.msra.mxu0 0.0
  %3567 = vmatprep.subr.mxu0 0.0
  %3568 = vmatpush2.msra.mxu0 0.0
  %3569 = vmatprep.subr.mxu0 0.0
  %3570 = vmatpush2.msra.mxu0 0.0
  %3571 = vmatprep.subr.mxu0 0.0
  %3572 = vmatpush2.msra.mxu0 0.0
  %3573 = vmatprep.subr.mxu0 0.0
  %3574 = vmatpush2.msra.mxu0 0.0
  %3575 = vmatprep.subr.mxu0 0.0
  %3576 = vmatpush2.msra.mxu0 0.0
  %3577 = vmatprep.subr.mxu0 0.0
  %3578 = vmatpush2.msra.mxu0 0.0
  %3579 = vmatprep.subr.mxu0 0.0
  %3580 = vmatpush2.msra.mxu0 0.0
  %3581 = vmatprep.subr.mxu0 0.0
  %3582 = vmatpush2.msra.mxu0 0.0
  %3583 = vmatprep.subr.mxu0 0.0
  %3584 = vmatpush2.msra.mxu0 0.0
  %3585 = vmatprep.subr.mxu0 0.0
  %3586 = vmatpush2.msra.mxu0 0.0
  %3587 = vmatprep.subr.mxu0 0.0
  %3588 = vmatpush2.msra.mxu0 0.0
  %3589 = vmatprep.subr.mxu0 0.0
  %3590 = vmatpush2.msra.mxu0 0.0
  %3591 = vmatprep.mubr.f32.mxu0 0.0
  %3592 = vmatmul.mubr.f32.gmra.mxu0 %v3525
  %v3593 = vpop.f32.mrf.mxu0
  %v3594 = vadd.f32 0.0, %v3593
  %v3595 = vpop.f32.mrf.mxu0
  %3596 = vdwg.mxu0
  %v3597 = vadd.f32 %v3522, %v3594
  %v3598 = vmul.f32 %v3597, 0.5
  %v3599 = vtanh.pop %v3598
  %v3600 = vadd.f32 %v3599, 1.0
  %v3601 = vmul.f32 %v3600, 0.5
  %3602 = vmatprep.subr.mxu0 0.0
  %3603 = vmatpush1.msra.mxu0 0.0
  %3604 = vmatprep.subr.mxu0 0.0
  %3605 = vmatpush1.msra.mxu0 0.0
  %3606 = vmatprep.subr.mxu0 0.0
  %3607 = vmatpush1.msra.mxu0 0.0
  %3608 = vmatprep.subr.mxu0 0.0
  %3609 = vmatpush1.msra.mxu0 0.0
  %3610 = vmatprep.subr.mxu0 0.0
  %3611 = vmatpush1.msra.mxu0 0.0
  %3612 = vmatprep.subr.mxu0 0.0
  %3613 = vmatpush1.msra.mxu0 0.0
  %3614 = vmatprep.subr.mxu0 0.0
  %3615 = vmatpush1.msra.mxu0 0.0
  %3616 = vmatprep.subr.mxu0 0.0
  %3617 = vmatpush1.msra.mxu0 0.0
  %3618 = vmatprep.subr.mxu0 0.0
  %3619 = vmatpush1.msra.mxu0 0.0
  %3620 = vmatprep.subr.mxu0 0.0
  %3621 = vmatpush1.msra.mxu0 0.0
  %3622 = vmatprep.subr.mxu0 0.0
  %3623 = vmatpush1.msra.mxu0 0.0
  %3624 = vmatprep.subr.mxu0 0.0
  %3625 = vmatpush1.msra.mxu0 0.0
  %3626 = vmatprep.subr.mxu0 0.0
  %3627 = vmatpush1.msra.mxu0 %v890
  %3628 = vmatprep.subr.mxu0 0.0
  %3629 = vmatpush1.msra.mxu0 %v889
  %3630 = vmatprep.subr.mxu0 0.0
  %3631 = vmatpush1.msra.mxu0 %v888
  %3632 = vmatprep.subr.mxu0 0.0
  %3633 = vmatpush1.msra.mxu0 %v887
  %3634 = vmatprep.subr.mxu0 0.0
  %3635 = vmatpush2.msra.mxu0 0.0
  %3636 = vmatprep.subr.mxu0 0.0
  %3637 = vmatpush2.msra.mxu0 0.0
  %3638 = vmatprep.subr.mxu0 0.0
  %3639 = vmatpush2.msra.mxu0 0.0
  %3640 = vmatprep.subr.mxu0 0.0
  %3641 = vmatpush2.msra.mxu0 0.0
  %3642 = vmatprep.subr.mxu0 0.0
  %3643 = vmatpush2.msra.mxu0 0.0
  %3644 = vmatprep.subr.mxu0 0.0
  %3645 = vmatpush2.msra.mxu0 0.0
  %3646 = vmatprep.subr.mxu0 0.0
  %3647 = vmatpush2.msra.mxu0 0.0
  %3648 = vmatprep.subr.mxu0 0.0
  %3649 = vmatpush2.msra.mxu0 0.0
  %3650 = vmatprep.subr.mxu0 0.0
  %3651 = vmatpush2.msra.mxu0 0.0
  %3652 = vmatprep.subr.mxu0 0.0
  %3653 = vmatpush2.msra.mxu0 0.0
  %3654 = vmatprep.subr.mxu0 0.0
  %3655 = vmatpush2.msra.mxu0 0.0
  %3656 = vmatprep.subr.mxu0 0.0
  %3657 = vmatpush2.msra.mxu0 0.0
  %3658 = vmatprep.subr.mxu0 0.0
  %3659 = vmatpush2.msra.mxu0 0.0
  %3660 = vmatprep.subr.mxu0 0.0
  %3661 = vmatpush2.msra.mxu0 0.0
  %3662 = vmatprep.subr.mxu0 0.0
  %3663 = vmatpush2.msra.mxu0 0.0
  %3664 = vmatprep.subr.mxu0 0.0
  %3665 = vmatpush2.msra.mxu0 0.0
  %3666 = vmatprep.mubr.f32.mxu0 0.0
  %3667 = vmatmul.mubr.f32.gmra.mxu0 %v3525
  %v3668 = vpop.f32.mrf.mxu0
  %v3669 = vadd.f32 %v896, %v3668
  %v3670 = vpop.f32.mrf.mxu0
  %3671 = vdwg.mxu0
  %v3672 = vmul.f32 %v3601, %v3669
  %v3673 = vadd.f32 %v3523, %v3672
  %v3674 = vtanh.pop %v3673
  %v3675 = vsub.f32 %v3521, %v3674
  %3677 = vrot.lane.b32.xlu0 %v3675, 32
  %v3678 = vpop.permute.xlu0 %3677
  %v3680 = vmul.f32 %v3601, %v3678
  %3682 = vrot.lane.b32.xlu0 %v3680, 96
  %v3683 = vpop.permute.xlu0 %3682
  %v3685 = vadd.f32 %v3674, %v3683
  %v3686 = vld [vmem:[#allocation2 + $0x88] sm:$0xff]
  %v3687 = vld [vmem:[#allocation3 + $0x88] sm:$0xff]
  %v3689 = vsel %vm765, %v3685, 0
  %3691 = vmatprep.subr.mxu0 0.0
  %3692 = vmatpush1.msra.mxu0 0.0
  %3693 = vmatprep.subr.mxu0 0.0
  %3694 = vmatpush1.msra.mxu0 0.0
  %3695 = vmatprep.subr.mxu0 0.0
  %3696 = vmatpush1.msra.mxu0 0.0
  %3697 = vmatprep.subr.mxu0 0.0
  %3698 = vmatpush1.msra.mxu0 0.0
  %3699 = vmatprep.subr.mxu0 0.0
  %3700 = vmatpush1.msra.mxu0 0.0
  %3701 = vmatprep.subr.mxu0 0.0
  %3702 = vmatpush1.msra.mxu0 0.0
  %3703 = vmatprep.subr.mxu0 0.0
  %3704 = vmatpush1.msra.mxu0 0.0
  %3705 = vmatprep.subr.mxu0 0.0
  %3706 = vmatpush1.msra.mxu0 0.0
  %3707 = vmatprep.subr.mxu0 0.0
  %3708 = vmatpush1.msra.mxu0 0.0
  %3709 = vmatprep.subr.mxu0 0.0
  %3710 = vmatpush1.msra.mxu0 0.0
  %3711 = vmatprep.subr.mxu0 0.0
  %3712 = vmatpush1.msra.mxu0 0.0
  %3713 = vmatprep.subr.mxu0 0.0
  %3714 = vmatpush1.msra.mxu0 0.0
  %3715 = vmatprep.subr.mxu0 0.0
  %3716 = vmatpush1.msra.mxu0 %v886
  %3717 = vmatprep.subr.mxu0 0.0
  %3718 = vmatpush1.msra.mxu0 %v885
  %3719 = vmatprep.subr.mxu0 0.0
  %3720 = vmatpush1.msra.mxu0 %v884
  %3721 = vmatprep.subr.mxu0 0.0
  %3722 = vmatpush1.msra.mxu0 %v883
  %3723 = vmatprep.subr.mxu0 0.0
  %3724 = vmatpush2.msra.mxu0 0.0
  %3725 = vmatprep.subr.mxu0 0.0
  %3726 = vmatpush2.msra.mxu0 0.0
  %3727 = vmatprep.subr.mxu0 0.0
  %3728 = vmatpush2.msra.mxu0 0.0
  %3729 = vmatprep.subr.mxu0 0.0
  %3730 = vmatpush2.msra.mxu0 0.0
  %3731 = vmatprep.subr.mxu0 0.0
  %3732 = vmatpush2.msra.mxu0 0.0
  %3733 = vmatprep.subr.mxu0 0.0
  %3734 = vmatpush2.msra.mxu0 0.0
  %3735 = vmatprep.subr.mxu0 0.0
  %3736 = vmatpush2.msra.mxu0 0.0
  %3737 = vmatprep.subr.mxu0 0.0
  %3738 = vmatpush2.msra.mxu0 0.0
  %3739 = vmatprep.subr.mxu0 0.0
  %3740 = vmatpush2.msra.mxu0 0.0
  %3741 = vmatprep.subr.mxu0 0.0
  %3742 = vmatpush2.msra.mxu0 0.0
  %3743 = vmatprep.subr.mxu0 0.0
  %3744 = vmatpush2.msra.mxu0 0.0
  %3745 = vmatprep.subr.mxu0 0.0
  %3746 = vmatpush2.msra.mxu0 0.0
  %3747 = vmatprep.subr.mxu0 0.0
  %3748 = vmatpush2.msra.mxu0 0.0
  %3749 = vmatprep.subr.mxu0 0.0
  %3750 = vmatpush2.msra.mxu0 0.0
  %3751 = vmatprep.subr.mxu0 0.0
  %3752 = vmatpush2.msra.mxu0 0.0
  %3753 = vmatprep.subr.mxu0 0.0
  %3754 = vmatpush2.msra.mxu0 0.0
  %3755 = vmatprep.mubr.f32.mxu0 0.0
  %3756 = vmatmul.mubr.f32.gmra.mxu0 %v3689
  %v3757 = vpop.f32.mrf.mxu0
  %v3758 = vadd.f32 0.0, %v3757
  %v3759 = vpop.f32.mrf.mxu0
  %3760 = vdwg.mxu0
  %v3761 = vadd.f32 %v3686, %v3758
  %v3762 = vmul.f32 %v3761, 0.5
  %v3763 = vtanh.pop %v3762
  %v3764 = vadd.f32 %v3763, 1.0
  %v3765 = vmul.f32 %v3764, 0.5
  %3766 = vmatprep.subr.mxu0 0.0
  %3767 = vmatpush1.msra.mxu0 0.0
  %3768 = vmatprep.subr.mxu0 0.0
  %3769 = vmatpush1.msra.mxu0 0.0
  %3770 = vmatprep.subr.mxu0 0.0
  %3771 = vmatpush1.msra.mxu0 0.0
  %3772 = vmatprep.subr.mxu0 0.0
  %3773 = vmatpush1.msra.mxu0 0.0
  %3774 = vmatprep.subr.mxu0 0.0
  %3775 = vmatpush1.msra.mxu0 0.0
  %3776 = vmatprep.subr.mxu0 0.0
  %3777 = vmatpush1.msra.mxu0 0.0
  %3778 = vmatprep.subr.mxu0 0.0
  %3779 = vmatpush1.msra.mxu0 0.0
  %3780 = vmatprep.subr.mxu0 0.0
  %3781 = vmatpush1.msra.mxu0 0.0
  %3782 = vmatprep.subr.mxu0 0.0
  %3783 = vmatpush1.msra.mxu0 0.0
  %3784 = vmatprep.subr.mxu0 0.0
  %3785 = vmatpush1.msra.mxu0 0.0
  %3786 = vmatprep.subr.mxu0 0.0
  %3787 = vmatpush1.msra.mxu0 0.0
  %3788 = vmatprep.subr.mxu0 0.0
  %3789 = vmatpush1.msra.mxu0 0.0
  %3790 = vmatprep.subr.mxu0 0.0
  %3791 = vmatpush1.msra.mxu0 %v890
  %3792 = vmatprep.subr.mxu0 0.0
  %3793 = vmatpush1.msra.mxu0 %v889
  %3794 = vmatprep.subr.mxu0 0.0
  %3795 = vmatpush1.msra.mxu0 %v888
  %3796 = vmatprep.subr.mxu0 0.0
  %3797 = vmatpush1.msra.mxu0 %v887
  %3798 = vmatprep.subr.mxu0 0.0
  %3799 = vmatpush2.msra.mxu0 0.0
  %3800 = vmatprep.subr.mxu0 0.0
  %3801 = vmatpush2.msra.mxu0 0.0
  %3802 = vmatprep.subr.mxu0 0.0
  %3803 = vmatpush2.msra.mxu0 0.0
  %3804 = vmatprep.subr.mxu0 0.0
  %3805 = vmatpush2.msra.mxu0 0.0
  %3806 = vmatprep.subr.mxu0 0.0
  %3807 = vmatpush2.msra.mxu0 0.0
  %3808 = vmatprep.subr.mxu0 0.0
  %3809 = vmatpush2.msra.mxu0 0.0
  %3810 = vmatprep.subr.mxu0 0.0
  %3811 = vmatpush2.msra.mxu0 0.0
  %3812 = vmatprep.subr.mxu0 0.0
  %3813 = vmatpush2.msra.mxu0 0.0
  %3814 = vmatprep.subr.mxu0 0.0
  %3815 = vmatpush2.msra.mxu0 0.0
  %3816 = vmatprep.subr.mxu0 0.0
  %3817 = vmatpush2.msra.mxu0 0.0
  %3818 = vmatprep.subr.mxu0 0.0
  %3819 = vmatpush2.msra.mxu0 0.0
  %3820 = vmatprep.subr.mxu0 0.0
  %3821 = vmatpush2.msra.mxu0 0.0
  %3822 = vmatprep.subr.mxu0 0.0
  %3823 = vmatpush2.msra.mxu0 0.0
  %3824 = vmatprep.subr.mxu0 0.0
  %3825 = vmatpush2.msra.mxu0 0.0
  %3826 = vmatprep.subr.mxu0 0.0
  %3827 = vmatpush2.msra.mxu0 0.0
  %3828 = vmatprep.subr.mxu0 0.0
  %3829 = vmatpush2.msra.mxu0 0.0
  %3830 = vmatprep.mubr.f32.mxu0 0.0
  %3831 = vmatmul.mubr.f32.gmra.mxu0 %v3689
  %v3832 = vpop.f32.mrf.mxu0
  %v3833 = vadd.f32 %v896, %v3832
  %v3834 = vpop.f32.mrf.mxu0
  %3835 = vdwg.mxu0
  %v3836 = vmul.f32 %v3765, %v3833
  %v3837 = vadd.f32 %v3687, %v3836
  %v3838 = vtanh.pop %v3837
  %v3839 = vsub.f32 %v3685, %v3838
  %3841 = vrot.lane.b32.xlu0 %v3839, 32
  %v3842 = vpop.permute.xlu0 %3841
  %v3844 = vmul.f32 %v3765, %v3842
  %3846 = vrot.lane.b32.xlu0 %v3844, 96
  %v3847 = vpop.permute.xlu0 %3846
  %v3849 = vadd.f32 %v3838, %v3847
  %v3850 = vld [vmem:[#allocation2 + $0x90] sm:$0xff]
  %v3851 = vld [vmem:[#allocation3 + $0x90] sm:$0xff]
  %v3853 = vsel %vm765, %v3849, 0
  %3855 = vmatprep.subr.mxu0 0.0
  %3856 = vmatpush1.msra.mxu0 0.0
  %3857 = vmatprep.subr.mxu0 0.0
  %3858 = vmatpush1.msra.mxu0 0.0
  %3859 = vmatprep.subr.mxu0 0.0
  %3860 = vmatpush1.msra.mxu0 0.0
  %3861 = vmatprep.subr.mxu0 0.0
  %3862 = vmatpush1.msra.mxu0 0.0
  %3863 = vmatprep.subr.mxu0 0.0
  %3864 = vmatpush1.msra.mxu0 0.0
  %3865 = vmatprep.subr.mxu0 0.0
  %3866 = vmatpush1.msra.mxu0 0.0
  %3867 = vmatprep.subr.mxu0 0.0
  %3868 = vmatpush1.msra.mxu0 0.0
  %3869 = vmatprep.subr.mxu0 0.0
  %3870 = vmatpush1.msra.mxu0 0.0
  %3871 = vmatprep.subr.mxu0 0.0
  %3872 = vmatpush1.msra.mxu0 0.0
  %3873 = vmatprep.subr.mxu0 0.0
  %3874 = vmatpush1.msra.mxu0 0.0
  %3875 = vmatprep.subr.mxu0 0.0
  %3876 = vmatpush1.msra.mxu0 0.0
  %3877 = vmatprep.subr.mxu0 0.0
  %3878 = vmatpush1.msra.mxu0 0.0
  %3879 = vmatprep.subr.mxu0 0.0
  %3880 = vmatpush1.msra.mxu0 %v886
  %3881 = vmatprep.subr.mxu0 0.0
  %3882 = vmatpush1.msra.mxu0 %v885
  %3883 = vmatprep.subr.mxu0 0.0
  %3884 = vmatpush1.msra.mxu0 %v884
  %3885 = vmatprep.subr.mxu0 0.0
  %3886 = vmatpush1.msra.mxu0 %v883
  %3887 = vmatprep.subr.mxu0 0.0
  %3888 = vmatpush2.msra.mxu0 0.0
  %3889 = vmatprep.subr.mxu0 0.0
  %3890 = vmatpush2.msra.mxu0 0.0
  %3891 = vmatprep.subr.mxu0 0.0
  %3892 = vmatpush2.msra.mxu0 0.0
  %3893 = vmatprep.subr.mxu0 0.0
  %3894 = vmatpush2.msra.mxu0 0.0
  %3895 = vmatprep.subr.mxu0 0.0
  %3896 = vmatpush2.msra.mxu0 0.0
  %3897 = vmatprep.subr.mxu0 0.0
  %3898 = vmatpush2.msra.mxu0 0.0
  %3899 = vmatprep.subr.mxu0 0.0
  %3900 = vmatpush2.msra.mxu0 0.0
  %3901 = vmatprep.subr.mxu0 0.0
  %3902 = vmatpush2.msra.mxu0 0.0
  %3903 = vmatprep.subr.mxu0 0.0
  %3904 = vmatpush2.msra.mxu0 0.0
  %3905 = vmatprep.subr.mxu0 0.0
  %3906 = vmatpush2.msra.mxu0 0.0
  %3907 = vmatprep.subr.mxu0 0.0
  %3908 = vmatpush2.msra.mxu0 0.0
  %3909 = vmatprep.subr.mxu0 0.0
  %3910 = vmatpush2.msra.mxu0 0.0
  %3911 = vmatprep.subr.mxu0 0.0
  %3912 = vmatpush2.msra.mxu0 0.0
  %3913 = vmatprep.subr.mxu0 0.0
  %3914 = vmatpush2.msra.mxu0 0.0
  %3915 = vmatprep.subr.mxu0 0.0
  %3916 = vmatpush2.msra.mxu0 0.0
  %3917 = vmatprep.subr.mxu0 0.0
  %3918 = vmatpush2.msra.mxu0 0.0
  %3919 = vmatprep.mubr.f32.mxu0 0.0
  %3920 = vmatmul.mubr.f32.gmra.mxu0 %v3853
  %v3921 = vpop.f32.mrf.mxu0
  %v3922 = vadd.f32 0.0, %v3921
  %v3923 = vpop.f32.mrf.mxu0
  %3924 = vdwg.mxu0
  %v3925 = vadd.f32 %v3850, %v3922
  %v3926 = vmul.f32 %v3925, 0.5
  %v3927 = vtanh.pop %v3926
  %v3928 = vadd.f32 %v3927, 1.0
  %v3929 = vmul.f32 %v3928, 0.5
  %3930 = vmatprep.subr.mxu0 0.0
  %3931 = vmatpush1.msra.mxu0 0.0
  %3932 = vmatprep.subr.mxu0 0.0
  %3933 = vmatpush1.msra.mxu0 0.0
  %3934 = vmatprep.subr.mxu0 0.0
  %3935 = vmatpush1.msra.mxu0 0.0
  %3936 = vmatprep.subr.mxu0 0.0
  %3937 = vmatpush1.msra.mxu0 0.0
  %3938 = vmatprep.subr.mxu0 0.0
  %3939 = vmatpush1.msra.mxu0 0.0
  %3940 = vmatprep.subr.mxu0 0.0
  %3941 = vmatpush1.msra.mxu0 0.0
  %3942 = vmatprep.subr.mxu0 0.0
  %3943 = vmatpush1.msra.mxu0 0.0
  %3944 = vmatprep.subr.mxu0 0.0
  %3945 = vmatpush1.msra.mxu0 0.0
  %3946 = vmatprep.subr.mxu0 0.0
  %3947 = vmatpush1.msra.mxu0 0.0
  %3948 = vmatprep.subr.mxu0 0.0
  %3949 = vmatpush1.msra.mxu0 0.0
  %3950 = vmatprep.subr.mxu0 0.0
  %3951 = vmatpush1.msra.mxu0 0.0
  %3952 = vmatprep.subr.mxu0 0.0
  %3953 = vmatpush1.msra.mxu0 0.0
  %3954 = vmatprep.subr.mxu0 0.0
  %3955 = vmatpush1.msra.mxu0 %v890
  %3956 = vmatprep.subr.mxu0 0.0
  %3957 = vmatpush1.msra.mxu0 %v889
  %3958 = vmatprep.subr.mxu0 0.0
  %3959 = vmatpush1.msra.mxu0 %v888
  %3960 = vmatprep.subr.mxu0 0.0
  %3961 = vmatpush1.msra.mxu0 %v887
  %3962 = vmatprep.subr.mxu0 0.0
  %3963 = vmatpush2.msra.mxu0 0.0
  %3964 = vmatprep.subr.mxu0 0.0
  %3965 = vmatpush2.msra.mxu0 0.0
  %3966 = vmatprep.subr.mxu0 0.0
  %3967 = vmatpush2.msra.mxu0 0.0
  %3968 = vmatprep.subr.mxu0 0.0
  %3969 = vmatpush2.msra.mxu0 0.0
  %3970 = vmatprep.subr.mxu0 0.0
  %3971 = vmatpush2.msra.mxu0 0.0
  %3972 = vmatprep.subr.mxu0 0.0
  %3973 = vmatpush2.msra.mxu0 0.0
  %3974 = vmatprep.subr.mxu0 0.0
  %3975 = vmatpush2.msra.mxu0 0.0
  %3976 = vmatprep.subr.mxu0 0.0
  %3977 = vmatpush2.msra.mxu0 0.0
  %3978 = vmatprep.subr.mxu0 0.0
  %3979 = vmatpush2.msra.mxu0 0.0
  %3980 = vmatprep.subr.mxu0 0.0
  %3981 = vmatpush2.msra.mxu0 0.0
  %3982 = vmatprep.subr.mxu0 0.0
  %3983 = vmatpush2.msra.mxu0 0.0
  %3984 = vmatprep.subr.mxu0 0.0
  %3985 = vmatpush2.msra.mxu0 0.0
  %3986 = vmatprep.subr.mxu0 0.0
  %3987 = vmatpush2.msra.mxu0 0.0
  %3988 = vmatprep.subr.mxu0 0.0
  %3989 = vmatpush2.msra.mxu0 0.0
  %3990 = vmatprep.subr.mxu0 0.0
  %3991 = vmatpush2.msra.mxu0 0.0
  %3992 = vmatprep.subr.mxu0 0.0
  %3993 = vmatpush2.msra.mxu0 0.0
  %3994 = vmatprep.mubr.f32.mxu0 0.0
  %3995 = vmatmul.mubr.f32.gmra.mxu0 %v3853
  %v3996 = vpop.f32.mrf.mxu0
  %v3997 = vadd.f32 %v896, %v3996
  %v3998 = vpop.f32.mrf.mxu0
  %3999 = vdwg.mxu0
  %v4000 = vmul.f32 %v3929, %v3997
  %v4001 = vadd.f32 %v3851, %v4000
  %v4002 = vtanh.pop %v4001
  %v4003 = vsub.f32 %v3849, %v4002
  %4005 = vrot.lane.b32.xlu0 %v4003, 32
  %v4006 = vpop.permute.xlu0 %4005
  %v4008 = vmul.f32 %v3929, %v4006
  %4010 = vrot.lane.b32.xlu0 %v4008, 96
  %v4011 = vpop.permute.xlu0 %4010
  %v4013 = vadd.f32 %v4002, %v4011
  %v4014 = vld [vmem:[#allocation2 + $0x98] sm:$0xff]
  %v4015 = vld [vmem:[#allocation3 + $0x98] sm:$0xff]
  %v4017 = vsel %vm765, %v4013, 0
  %4019 = vmatprep.subr.mxu0 0.0
  %4020 = vmatpush1.msra.mxu0 0.0
  %4021 = vmatprep.subr.mxu0 0.0
  %4022 = vmatpush1.msra.mxu0 0.0
  %4023 = vmatprep.subr.mxu0 0.0
  %4024 = vmatpush1.msra.mxu0 0.0
  %4025 = vmatprep.subr.mxu0 0.0
  %4026 = vmatpush1.msra.mxu0 0.0
  %4027 = vmatprep.subr.mxu0 0.0
  %4028 = vmatpush1.msra.mxu0 0.0
  %4029 = vmatprep.subr.mxu0 0.0
  %4030 = vmatpush1.msra.mxu0 0.0
  %4031 = vmatprep.subr.mxu0 0.0
  %4032 = vmatpush1.msra.mxu0 0.0
  %4033 = vmatprep.subr.mxu0 0.0
  %4034 = vmatpush1.msra.mxu0 0.0
  %4035 = vmatprep.subr.mxu0 0.0
  %4036 = vmatpush1.msra.mxu0 0.0
  %4037 = vmatprep.subr.mxu0 0.0
  %4038 = vmatpush1.msra.mxu0 0.0
  %4039 = vmatprep.subr.mxu0 0.0
  %4040 = vmatpush1.msra.mxu0 0.0
  %4041 = vmatprep.subr.mxu0 0.0
  %4042 = vmatpush1.msra.mxu0 0.0
  %4043 = vmatprep.subr.mxu0 0.0
  %4044 = vmatpush1.msra.mxu0 %v886
  %4045 = vmatprep.subr.mxu0 0.0
  %4046 = vmatpush1.msra.mxu0 %v885
  %4047 = vmatprep.subr.mxu0 0.0
  %4048 = vmatpush1.msra.mxu0 %v884
  %4049 = vmatprep.subr.mxu0 0.0
  %4050 = vmatpush1.msra.mxu0 %v883
  %4051 = vmatprep.subr.mxu0 0.0
  %4052 = vmatpush2.msra.mxu0 0.0
  %4053 = vmatprep.subr.mxu0 0.0
  %4054 = vmatpush2.msra.mxu0 0.0
  %4055 = vmatprep.subr.mxu0 0.0
  %4056 = vmatpush2.msra.mxu0 0.0
  %4057 = vmatprep.subr.mxu0 0.0
  %4058 = vmatpush2.msra.mxu0 0.0
  %4059 = vmatprep.subr.mxu0 0.0
  %4060 = vmatpush2.msra.mxu0 0.0
  %4061 = vmatprep.subr.mxu0 0.0
  %4062 = vmatpush2.msra.mxu0 0.0
  %4063 = vmatprep.subr.mxu0 0.0
  %4064 = vmatpush2.msra.mxu0 0.0
  %4065 = vmatprep.subr.mxu0 0.0
  %4066 = vmatpush2.msra.mxu0 0.0
  %4067 = vmatprep.subr.mxu0 0.0
  %4068 = vmatpush2.msra.mxu0 0.0
  %4069 = vmatprep.subr.mxu0 0.0
  %4070 = vmatpush2.msra.mxu0 0.0
  %4071 = vmatprep.subr.mxu0 0.0
  %4072 = vmatpush2.msra.mxu0 0.0
  %4073 = vmatprep.subr.mxu0 0.0
  %4074 = vmatpush2.msra.mxu0 0.0
  %4075 = vmatprep.subr.mxu0 0.0
  %4076 = vmatpush2.msra.mxu0 0.0
  %4077 = vmatprep.subr.mxu0 0.0
  %4078 = vmatpush2.msra.mxu0 0.0
  %4079 = vmatprep.subr.mxu0 0.0
  %4080 = vmatpush2.msra.mxu0 0.0
  %4081 = vmatprep.subr.mxu0 0.0
  %4082 = vmatpush2.msra.mxu0 0.0
  %4083 = vmatprep.mubr.f32.mxu0 0.0
  %4084 = vmatmul.mubr.f32.gmra.mxu0 %v4017
  %v4085 = vpop.f32.mrf.mxu0
  %v4086 = vadd.f32 0.0, %v4085
  %v4087 = vpop.f32.mrf.mxu0
  %4088 = vdwg.mxu0
  %v4089 = vadd.f32 %v4014, %v4086
  %v4090 = vmul.f32 %v4089, 0.5
  %v4091 = vtanh.pop %v4090
  %v4092 = vadd.f32 %v4091, 1.0
  %v4093 = vmul.f32 %v4092, 0.5
  %4094 = vmatprep.subr.mxu0 0.0
  %4095 = vmatpush1.msra.mxu0 0.0
  %4096 = vmatprep.subr.mxu0 0.0
  %4097 = vmatpush1.msra.mxu0 0.0
  %4098 = vmatprep.subr.mxu0 0.0
  %4099 = vmatpush1.msra.mxu0 0.0
  %4100 = vmatprep.subr.mxu0 0.0
  %4101 = vmatpush1.msra.mxu0 0.0
  %4102 = vmatprep.subr.mxu0 0.0
  %4103 = vmatpush1.msra.mxu0 0.0
  %4104 = vmatprep.subr.mxu0 0.0
  %4105 = vmatpush1.msra.mxu0 0.0
  %4106 = vmatprep.subr.mxu0 0.0
  %4107 = vmatpush1.msra.mxu0 0.0
  %4108 = vmatprep.subr.mxu0 0.0
  %4109 = vmatpush1.msra.mxu0 0.0
  %4110 = vmatprep.subr.mxu0 0.0
  %4111 = vmatpush1.msra.mxu0 0.0
  %4112 = vmatprep.subr.mxu0 0.0
  %4113 = vmatpush1.msra.mxu0 0.0
  %4114 = vmatprep.subr.mxu0 0.0
  %4115 = vmatpush1.msra.mxu0 0.0
  %4116 = vmatprep.subr.mxu0 0.0
  %4117 = vmatpush1.msra.mxu0 0.0
  %4118 = vmatprep.subr.mxu0 0.0
  %4119 = vmatpush1.msra.mxu0 %v890
  %4120 = vmatprep.subr.mxu0 0.0
  %4121 = vmatpush1.msra.mxu0 %v889
  %4122 = vmatprep.subr.mxu0 0.0
  %4123 = vmatpush1.msra.mxu0 %v888
  %4124 = vmatprep.subr.mxu0 0.0
  %4125 = vmatpush1.msra.mxu0 %v887
  %4126 = vmatprep.subr.mxu0 0.0
  %4127 = vmatpush2.msra.mxu0 0.0
  %4128 = vmatprep.subr.mxu0 0.0
  %4129 = vmatpush2.msra.mxu0 0.0
  %4130 = vmatprep.subr.mxu0 0.0
  %4131 = vmatpush2.msra.mxu0 0.0
  %4132 = vmatprep.subr.mxu0 0.0
  %4133 = vmatpush2.msra.mxu0 0.0
  %4134 = vmatprep.subr.mxu0 0.0
  %4135 = vmatpush2.msra.mxu0 0.0
  %4136 = vmatprep.subr.mxu0 0.0
  %4137 = vmatpush2.msra.mxu0 0.0
  %4138 = vmatprep.subr.mxu0 0.0
  %4139 = vmatpush2.msra.mxu0 0.0
  %4140 = vmatprep.subr.mxu0 0.0
  %4141 = vmatpush2.msra.mxu0 0.0
  %4142 = vmatprep.subr.mxu0 0.0
  %4143 = vmatpush2.msra.mxu0 0.0
  %4144 = vmatprep.subr.mxu0 0.0
  %4145 = vmatpush2.msra.mxu0 0.0
  %4146 = vmatprep.subr.mxu0 0.0
  %4147 = vmatpush2.msra.mxu0 0.0
  %4148 = vmatprep.subr.mxu0 0.0
  %4149 = vmatpush2.msra.mxu0 0.0
  %4150 = vmatprep.subr.mxu0 0.0
  %4151 = vmatpush2.msra.mxu0 0.0
  %4152 = vmatprep.subr.mxu0 0.0
  %4153 = vmatpush2.msra.mxu0 0.0
  %4154 = vmatprep.subr.mxu0 0.0
  %4155 = vmatpush2.msra.mxu0 0.0
  %4156 = vmatprep.subr.mxu0 0.0
  %4157 = vmatpush2.msra.mxu0 0.0
  %4158 = vmatprep.mubr.f32.mxu0 0.0
  %4159 = vmatmul.mubr.f32.gmra.mxu0 %v4017
  %v4160 = vpop.f32.mrf.mxu0
  %v4161 = vadd.f32 %v896, %v4160
  %v4162 = vpop.f32.mrf.mxu0
  %4163 = vdwg.mxu0
  %v4164 = vmul.f32 %v4093, %v4161
  %v4165 = vadd.f32 %v4015, %v4164
  %v4166 = vtanh.pop %v4165
  %v4167 = vsub.f32 %v4013, %v4166
  %4169 = vrot.lane.b32.xlu0 %v4167, 32
  %v4170 = vpop.permute.xlu0 %4169
  %v4172 = vmul.f32 %v4093, %v4170
  %4174 = vrot.lane.b32.xlu0 %v4172, 96
  %v4175 = vpop.permute.xlu0 %4174
  %v4177 = vadd.f32 %v4166, %v4175
  %v4178 = vld [vmem:[#allocation2 + $0xa0] sm:$0xff]
  %v4179 = vld [vmem:[#allocation3 + $0xa0] sm:$0xff]
  %v4181 = vsel %vm765, %v4177, 0
  %4183 = vmatprep.subr.mxu0 0.0
  %4184 = vmatpush1.msra.mxu0 0.0
  %4185 = vmatprep.subr.mxu0 0.0
  %4186 = vmatpush1.msra.mxu0 0.0
  %4187 = vmatprep.subr.mxu0 0.0
  %4188 = vmatpush1.msra.mxu0 0.0
  %4189 = vmatprep.subr.mxu0 0.0
  %4190 = vmatpush1.msra.mxu0 0.0
  %4191 = vmatprep.subr.mxu0 0.0
  %4192 = vmatpush1.msra.mxu0 0.0
  %4193 = vmatprep.subr.mxu0 0.0
  %4194 = vmatpush1.msra.mxu0 0.0
  %4195 = vmatprep.subr.mxu0 0.0
  %4196 = vmatpush1.msra.mxu0 0.0
  %4197 = vmatprep.subr.mxu0 0.0
  %4198 = vmatpush1.msra.mxu0 0.0
  %4199 = vmatprep.subr.mxu0 0.0
  %4200 = vmatpush1.msra.mxu0 0.0
  %4201 = vmatprep.subr.mxu0 0.0
  %4202 = vmatpush1.msra.mxu0 0.0
  %4203 = vmatprep.subr.mxu0 0.0
  %4204 = vmatpush1.msra.mxu0 0.0
  %4205 = vmatprep.subr.mxu0 0.0
  %4206 = vmatpush1.msra.mxu0 0.0
  %4207 = vmatprep.subr.mxu0 0.0
  %4208 = vmatpush1.msra.mxu0 %v886
  %4209 = vmatprep.subr.mxu0 0.0
  %4210 = vmatpush1.msra.mxu0 %v885
  %4211 = vmatprep.subr.mxu0 0.0
  %4212 = vmatpush1.msra.mxu0 %v884
  %4213 = vmatprep.subr.mxu0 0.0
  %4214 = vmatpush1.msra.mxu0 %v883
  %4215 = vmatprep.subr.mxu0 0.0
  %4216 = vmatpush2.msra.mxu0 0.0
  %4217 = vmatprep.subr.mxu0 0.0
  %4218 = vmatpush2.msra.mxu0 0.0
  %4219 = vmatprep.subr.mxu0 0.0
  %4220 = vmatpush2.msra.mxu0 0.0
  %4221 = vmatprep.subr.mxu0 0.0
  %4222 = vmatpush2.msra.mxu0 0.0
  %4223 = vmatprep.subr.mxu0 0.0
  %4224 = vmatpush2.msra.mxu0 0.0
  %4225 = vmatprep.subr.mxu0 0.0
  %4226 = vmatpush2.msra.mxu0 0.0
  %4227 = vmatprep.subr.mxu0 0.0
  %4228 = vmatpush2.msra.mxu0 0.0
  %4229 = vmatprep.subr.mxu0 0.0
  %4230 = vmatpush2.msra.mxu0 0.0
  %4231 = vmatprep.subr.mxu0 0.0
  %4232 = vmatpush2.msra.mxu0 0.0
  %4233 = vmatprep.subr.mxu0 0.0
  %4234 = vmatpush2.msra.mxu0 0.0
  %4235 = vmatprep.subr.mxu0 0.0
  %4236 = vmatpush2.msra.mxu0 0.0
  %4237 = vmatprep.subr.mxu0 0.0
  %4238 = vmatpush2.msra.mxu0 0.0
  %4239 = vmatprep.subr.mxu0 0.0
  %4240 = vmatpush2.msra.mxu0 0.0
  %4241 = vmatprep.subr.mxu0 0.0
  %4242 = vmatpush2.msra.mxu0 0.0
  %4243 = vmatprep.subr.mxu0 0.0
  %4244 = vmatpush2.msra.mxu0 0.0
  %4245 = vmatprep.subr.mxu0 0.0
  %4246 = vmatpush2.msra.mxu0 0.0
  %4247 = vmatprep.mubr.f32.mxu0 0.0
  %4248 = vmatmul.mubr.f32.gmra.mxu0 %v4181
  %v4249 = vpop.f32.mrf.mxu0
  %v4250 = vadd.f32 0.0, %v4249
  %v4251 = vpop.f32.mrf.mxu0
  %4252 = vdwg.mxu0
  %v4253 = vadd.f32 %v4178, %v4250
  %v4254 = vmul.f32 %v4253, 0.5
  %v4255 = vtanh.pop %v4254
  %v4256 = vadd.f32 %v4255, 1.0
  %v4257 = vmul.f32 %v4256, 0.5
  %4258 = vmatprep.subr.mxu0 0.0
  %4259 = vmatpush1.msra.mxu0 0.0
  %4260 = vmatprep.subr.mxu0 0.0
  %4261 = vmatpush1.msra.mxu0 0.0
  %4262 = vmatprep.subr.mxu0 0.0
  %4263 = vmatpush1.msra.mxu0 0.0
  %4264 = vmatprep.subr.mxu0 0.0
  %4265 = vmatpush1.msra.mxu0 0.0
  %4266 = vmatprep.subr.mxu0 0.0
  %4267 = vmatpush1.msra.mxu0 0.0
  %4268 = vmatprep.subr.mxu0 0.0
  %4269 = vmatpush1.msra.mxu0 0.0
  %4270 = vmatprep.subr.mxu0 0.0
  %4271 = vmatpush1.msra.mxu0 0.0
  %4272 = vmatprep.subr.mxu0 0.0
  %4273 = vmatpush1.msra.mxu0 0.0
  %4274 = vmatprep.subr.mxu0 0.0
  %4275 = vmatpush1.msra.mxu0 0.0
  %4276 = vmatprep.subr.mxu0 0.0
  %4277 = vmatpush1.msra.mxu0 0.0
  %4278 = vmatprep.subr.mxu0 0.0
  %4279 = vmatpush1.msra.mxu0 0.0
  %4280 = vmatprep.subr.mxu0 0.0
  %4281 = vmatpush1.msra.mxu0 0.0
  %4282 = vmatprep.subr.mxu0 0.0
  %4283 = vmatpush1.msra.mxu0 %v890
  %4284 = vmatprep.subr.mxu0 0.0
  %4285 = vmatpush1.msra.mxu0 %v889
  %4286 = vmatprep.subr.mxu0 0.0
  %4287 = vmatpush1.msra.mxu0 %v888
  %4288 = vmatprep.subr.mxu0 0.0
  %4289 = vmatpush1.msra.mxu0 %v887
  %4290 = vmatprep.subr.mxu0 0.0
  %4291 = vmatpush2.msra.mxu0 0.0
  %4292 = vmatprep.subr.mxu0 0.0
  %4293 = vmatpush2.msra.mxu0 0.0
  %4294 = vmatprep.subr.mxu0 0.0
  %4295 = vmatpush2.msra.mxu0 0.0
  %4296 = vmatprep.subr.mxu0 0.0
  %4297 = vmatpush2.msra.mxu0 0.0
  %4298 = vmatprep.subr.mxu0 0.0
  %4299 = vmatpush2.msra.mxu0 0.0
  %4300 = vmatprep.subr.mxu0 0.0
  %4301 = vmatpush2.msra.mxu0 0.0
  %4302 = vmatprep.subr.mxu0 0.0
  %4303 = vmatpush2.msra.mxu0 0.0
  %4304 = vmatprep.subr.mxu0 0.0
  %4305 = vmatpush2.msra.mxu0 0.0
  %4306 = vmatprep.subr.mxu0 0.0
  %4307 = vmatpush2.msra.mxu0 0.0
  %4308 = vmatprep.subr.mxu0 0.0
  %4309 = vmatpush2.msra.mxu0 0.0
  %4310 = vmatprep.subr.mxu0 0.0
  %4311 = vmatpush2.msra.mxu0 0.0
  %4312 = vmatprep.subr.mxu0 0.0
  %4313 = vmatpush2.msra.mxu0 0.0
  %4314 = vmatprep.subr.mxu0 0.0
  %4315 = vmatpush2.msra.mxu0 0.0
  %4316 = vmatprep.subr.mxu0 0.0
  %4317 = vmatpush2.msra.mxu0 0.0
  %4318 = vmatprep.subr.mxu0 0.0
  %4319 = vmatpush2.msra.mxu0 0.0
  %4320 = vmatprep.subr.mxu0 0.0
  %4321 = vmatpush2.msra.mxu0 0.0
  %4322 = vmatprep.mubr.f32.mxu0 0.0
  %4323 = vmatmul.mubr.f32.gmra.mxu0 %v4181
  %v4324 = vpop.f32.mrf.mxu0
  %v4325 = vadd.f32 %v896, %v4324
  %v4326 = vpop.f32.mrf.mxu0
  %4327 = vdwg.mxu0
  %v4328 = vmul.f32 %v4257, %v4325
  %v4329 = vadd.f32 %v4179, %v4328
  %v4330 = vtanh.pop %v4329
  %v4331 = vsub.f32 %v4177, %v4330
  %4333 = vrot.lane.b32.xlu0 %v4331, 32
  %v4334 = vpop.permute.xlu0 %4333
  %v4336 = vmul.f32 %v4257, %v4334
  %4338 = vrot.lane.b32.xlu0 %v4336, 96
  %v4339 = vpop.permute.xlu0 %4338
  %v4341 = vadd.f32 %v4330, %v4339
  %v4342 = vld [vmem:[#allocation2 + $0xa8] sm:$0xff]
  %v4343 = vld [vmem:[#allocation3 + $0xa8] sm:$0xff]
  %v4345 = vsel %vm765, %v4341, 0
  %4347 = vmatprep.subr.mxu0 0.0
  %4348 = vmatpush1.msra.mxu0 0.0
  %4349 = vmatprep.subr.mxu0 0.0
  %4350 = vmatpush1.msra.mxu0 0.0
  %4351 = vmatprep.subr.mxu0 0.0
  %4352 = vmatpush1.msra.mxu0 0.0
  %4353 = vmatprep.subr.mxu0 0.0
  %4354 = vmatpush1.msra.mxu0 0.0
  %4355 = vmatprep.subr.mxu0 0.0
  %4356 = vmatpush1.msra.mxu0 0.0
  %4357 = vmatprep.subr.mxu0 0.0
  %4358 = vmatpush1.msra.mxu0 0.0
  %4359 = vmatprep.subr.mxu0 0.0
  %4360 = vmatpush1.msra.mxu0 0.0
  %4361 = vmatprep.subr.mxu0 0.0
  %4362 = vmatpush1.msra.mxu0 0.0
  %4363 = vmatprep.subr.mxu0 0.0
  %4364 = vmatpush1.msra.mxu0 0.0
  %4365 = vmatprep.subr.mxu0 0.0
  %4366 = vmatpush1.msra.mxu0 0.0
  %4367 = vmatprep.subr.mxu0 0.0
  %4368 = vmatpush1.msra.mxu0 0.0
  %4369 = vmatprep.subr.mxu0 0.0
  %4370 = vmatpush1.msra.mxu0 0.0
  %4371 = vmatprep.subr.mxu0 0.0
  %4372 = vmatpush1.msra.mxu0 %v886
  %4373 = vmatprep.subr.mxu0 0.0
  %4374 = vmatpush1.msra.mxu0 %v885
  %4375 = vmatprep.subr.mxu0 0.0
  %4376 = vmatpush1.msra.mxu0 %v884
  %4377 = vmatprep.subr.mxu0 0.0
  %4378 = vmatpush1.msra.mxu0 %v883
  %4379 = vmatprep.subr.mxu0 0.0
  %4380 = vmatpush2.msra.mxu0 0.0
  %4381 = vmatprep.subr.mxu0 0.0
  %4382 = vmatpush2.msra.mxu0 0.0
  %4383 = vmatprep.subr.mxu0 0.0
  %4384 = vmatpush2.msra.mxu0 0.0
  %4385 = vmatprep.subr.mxu0 0.0
  %4386 = vmatpush2.msra.mxu0 0.0
  %4387 = vmatprep.subr.mxu0 0.0
  %4388 = vmatpush2.msra.mxu0 0.0
  %4389 = vmatprep.subr.mxu0 0.0
  %4390 = vmatpush2.msra.mxu0 0.0
  %4391 = vmatprep.subr.mxu0 0.0
  %4392 = vmatpush2.msra.mxu0 0.0
  %4393 = vmatprep.subr.mxu0 0.0
  %4394 = vmatpush2.msra.mxu0 0.0
  %4395 = vmatprep.subr.mxu0 0.0
  %4396 = vmatpush2.msra.mxu0 0.0
  %4397 = vmatprep.subr.mxu0 0.0
  %4398 = vmatpush2.msra.mxu0 0.0
  %4399 = vmatprep.subr.mxu0 0.0
  %4400 = vmatpush2.msra.mxu0 0.0
  %4401 = vmatprep.subr.mxu0 0.0
  %4402 = vmatpush2.msra.mxu0 0.0
  %4403 = vmatprep.subr.mxu0 0.0
  %4404 = vmatpush2.msra.mxu0 0.0
  %4405 = vmatprep.subr.mxu0 0.0
  %4406 = vmatpush2.msra.mxu0 0.0
  %4407 = vmatprep.subr.mxu0 0.0
  %4408 = vmatpush2.msra.mxu0 0.0
  %4409 = vmatprep.subr.mxu0 0.0
  %4410 = vmatpush2.msra.mxu0 0.0
  %4411 = vmatprep.mubr.f32.mxu0 0.0
  %4412 = vmatmul.mubr.f32.gmra.mxu0 %v4345
  %v4413 = vpop.f32.mrf.mxu0
  %v4414 = vadd.f32 0.0, %v4413
  %v4415 = vpop.f32.mrf.mxu0
  %4416 = vdwg.mxu0
  %v4417 = vadd.f32 %v4342, %v4414
  %v4418 = vmul.f32 %v4417, 0.5
  %v4419 = vtanh.pop %v4418
  %v4420 = vadd.f32 %v4419, 1.0
  %v4421 = vmul.f32 %v4420, 0.5
  %4422 = vmatprep.subr.mxu0 0.0
  %4423 = vmatpush1.msra.mxu0 0.0
  %4424 = vmatprep.subr.mxu0 0.0
  %4425 = vmatpush1.msra.mxu0 0.0
  %4426 = vmatprep.subr.mxu0 0.0
  %4427 = vmatpush1.msra.mxu0 0.0
  %4428 = vmatprep.subr.mxu0 0.0
  %4429 = vmatpush1.msra.mxu0 0.0
  %4430 = vmatprep.subr.mxu0 0.0
  %4431 = vmatpush1.msra.mxu0 0.0
  %4432 = vmatprep.subr.mxu0 0.0
  %4433 = vmatpush1.msra.mxu0 0.0
  %4434 = vmatprep.subr.mxu0 0.0
  %4435 = vmatpush1.msra.mxu0 0.0
  %4436 = vmatprep.subr.mxu0 0.0
  %4437 = vmatpush1.msra.mxu0 0.0
  %4438 = vmatprep.subr.mxu0 0.0
  %4439 = vmatpush1.msra.mxu0 0.0
  %4440 = vmatprep.subr.mxu0 0.0
  %4441 = vmatpush1.msra.mxu0 0.0
  %4442 = vmatprep.subr.mxu0 0.0
  %4443 = vmatpush1.msra.mxu0 0.0
  %4444 = vmatprep.subr.mxu0 0.0
  %4445 = vmatpush1.msra.mxu0 0.0
  %4446 = vmatprep.subr.mxu0 0.0
  %4447 = vmatpush1.msra.mxu0 %v890
  %4448 = vmatprep.subr.mxu0 0.0
  %4449 = vmatpush1.msra.mxu0 %v889
  %4450 = vmatprep.subr.mxu0 0.0
  %4451 = vmatpush1.msra.mxu0 %v888
  %4452 = vmatprep.subr.mxu0 0.0
  %4453 = vmatpush1.msra.mxu0 %v887
  %4454 = vmatprep.subr.mxu0 0.0
  %4455 = vmatpush2.msra.mxu0 0.0
  %4456 = vmatprep.subr.mxu0 0.0
  %4457 = vmatpush2.msra.mxu0 0.0
  %4458 = vmatprep.subr.mxu0 0.0
  %4459 = vmatpush2.msra.mxu0 0.0
  %4460 = vmatprep.subr.mxu0 0.0
  %4461 = vmatpush2.msra.mxu0 0.0
  %4462 = vmatprep.subr.mxu0 0.0
  %4463 = vmatpush2.msra.mxu0 0.0
  %4464 = vmatprep.subr.mxu0 0.0
  %4465 = vmatpush2.msra.mxu0 0.0
  %4466 = vmatprep.subr.mxu0 0.0
  %4467 = vmatpush2.msra.mxu0 0.0
  %4468 = vmatprep.subr.mxu0 0.0
  %4469 = vmatpush2.msra.mxu0 0.0
  %4470 = vmatprep.subr.mxu0 0.0
  %4471 = vmatpush2.msra.mxu0 0.0
  %4472 = vmatprep.subr.mxu0 0.0
  %4473 = vmatpush2.msra.mxu0 0.0
  %4474 = vmatprep.subr.mxu0 0.0
  %4475 = vmatpush2.msra.mxu0 0.0
  %4476 = vmatprep.subr.mxu0 0.0
  %4477 = vmatpush2.msra.mxu0 0.0
  %4478 = vmatprep.subr.mxu0 0.0
  %4479 = vmatpush2.msra.mxu0 0.0
  %4480 = vmatprep.subr.mxu0 0.0
  %4481 = vmatpush2.msra.mxu0 0.0
  %4482 = vmatprep.subr.mxu0 0.0
  %4483 = vmatpush2.msra.mxu0 0.0
  %4484 = vmatprep.subr.mxu0 0.0
  %4485 = vmatpush2.msra.mxu0 0.0
  %4486 = vmatprep.mubr.f32.mxu0 0.0
  %4487 = vmatmul.mubr.f32.gmra.mxu0 %v4345
  %v4488 = vpop.f32.mrf.mxu0
  %v4489 = vadd.f32 %v896, %v4488
  %v4490 = vpop.f32.mrf.mxu0
  %4491 = vdwg.mxu0
  %v4492 = vmul.f32 %v4421, %v4489
  %v4493 = vadd.f32 %v4343, %v4492
  %v4494 = vtanh.pop %v4493
  %v4495 = vsub.f32 %v4341, %v4494
  %4497 = vrot.lane.b32.xlu0 %v4495, 32
  %v4498 = vpop.permute.xlu0 %4497
  %v4500 = vmul.f32 %v4421, %v4498
  %4502 = vrot.lane.b32.xlu0 %v4500, 96
  %v4503 = vpop.permute.xlu0 %4502
  %v4505 = vadd.f32 %v4494, %v4503
  %v4506 = vld [vmem:[#allocation2 + $0xb0] sm:$0xff]
  %v4507 = vld [vmem:[#allocation3 + $0xb0] sm:$0xff]
  %v4509 = vsel %vm765, %v4505, 0
  %4511 = vmatprep.subr.mxu0 0.0
  %4512 = vmatpush1.msra.mxu0 0.0
  %4513 = vmatprep.subr.mxu0 0.0
  %4514 = vmatpush1.msra.mxu0 0.0
  %4515 = vmatprep.subr.mxu0 0.0
  %4516 = vmatpush1.msra.mxu0 0.0
  %4517 = vmatprep.subr.mxu0 0.0
  %4518 = vmatpush1.msra.mxu0 0.0
  %4519 = vmatprep.subr.mxu0 0.0
  %4520 = vmatpush1.msra.mxu0 0.0
  %4521 = vmatprep.subr.mxu0 0.0
  %4522 = vmatpush1.msra.mxu0 0.0
  %4523 = vmatprep.subr.mxu0 0.0
  %4524 = vmatpush1.msra.mxu0 0.0
  %4525 = vmatprep.subr.mxu0 0.0
  %4526 = vmatpush1.msra.mxu0 0.0
  %4527 = vmatprep.subr.mxu0 0.0
  %4528 = vmatpush1.msra.mxu0 0.0
  %4529 = vmatprep.subr.mxu0 0.0
  %4530 = vmatpush1.msra.mxu0 0.0
  %4531 = vmatprep.subr.mxu0 0.0
  %4532 = vmatpush1.msra.mxu0 0.0
  %4533 = vmatprep.subr.mxu0 0.0
  %4534 = vmatpush1.msra.mxu0 0.0
  %4535 = vmatprep.subr.mxu0 0.0
  %4536 = vmatpush1.msra.mxu0 %v886
  %4537 = vmatprep.subr.mxu0 0.0
  %4538 = vmatpush1.msra.mxu0 %v885
  %4539 = vmatprep.subr.mxu0 0.0
  %4540 = vmatpush1.msra.mxu0 %v884
  %4541 = vmatprep.subr.mxu0 0.0
  %4542 = vmatpush1.msra.mxu0 %v883
  %4543 = vmatprep.subr.mxu0 0.0
  %4544 = vmatpush2.msra.mxu0 0.0
  %4545 = vmatprep.subr.mxu0 0.0
  %4546 = vmatpush2.msra.mxu0 0.0
  %4547 = vmatprep.subr.mxu0 0.0
  %4548 = vmatpush2.msra.mxu0 0.0
  %4549 = vmatprep.subr.mxu0 0.0
  %4550 = vmatpush2.msra.mxu0 0.0
  %4551 = vmatprep.subr.mxu0 0.0
  %4552 = vmatpush2.msra.mxu0 0.0
  %4553 = vmatprep.subr.mxu0 0.0
  %4554 = vmatpush2.msra.mxu0 0.0
  %4555 = vmatprep.subr.mxu0 0.0
  %4556 = vmatpush2.msra.mxu0 0.0
  %4557 = vmatprep.subr.mxu0 0.0
  %4558 = vmatpush2.msra.mxu0 0.0
  %4559 = vmatprep.subr.mxu0 0.0
  %4560 = vmatpush2.msra.mxu0 0.0
  %4561 = vmatprep.subr.mxu0 0.0
  %4562 = vmatpush2.msra.mxu0 0.0
  %4563 = vmatprep.subr.mxu0 0.0
  %4564 = vmatpush2.msra.mxu0 0.0
  %4565 = vmatprep.subr.mxu0 0.0
  %4566 = vmatpush2.msra.mxu0 0.0
  %4567 = vmatprep.subr.mxu0 0.0
  %4568 = vmatpush2.msra.mxu0 0.0
  %4569 = vmatprep.subr.mxu0 0.0
  %4570 = vmatpush2.msra.mxu0 0.0
  %4571 = vmatprep.subr.mxu0 0.0
  %4572 = vmatpush2.msra.mxu0 0.0
  %4573 = vmatprep.subr.mxu0 0.0
  %4574 = vmatpush2.msra.mxu0 0.0
  %4575 = vmatprep.mubr.f32.mxu0 0.0
  %4576 = vmatmul.mubr.f32.gmra.mxu0 %v4509
  %v4577 = vpop.f32.mrf.mxu0
  %v4578 = vadd.f32 0.0, %v4577
  %v4579 = vpop.f32.mrf.mxu0
  %4580 = vdwg.mxu0
  %v4581 = vadd.f32 %v4506, %v4578
  %v4582 = vmul.f32 %v4581, 0.5
  %v4583 = vtanh.pop %v4582
  %v4584 = vadd.f32 %v4583, 1.0
  %v4585 = vmul.f32 %v4584, 0.5
  %4586 = vmatprep.subr.mxu0 0.0
  %4587 = vmatpush1.msra.mxu0 0.0
  %4588 = vmatprep.subr.mxu0 0.0
  %4589 = vmatpush1.msra.mxu0 0.0
  %4590 = vmatprep.subr.mxu0 0.0
  %4591 = vmatpush1.msra.mxu0 0.0
  %4592 = vmatprep.subr.mxu0 0.0
  %4593 = vmatpush1.msra.mxu0 0.0
  %4594 = vmatprep.subr.mxu0 0.0
  %4595 = vmatpush1.msra.mxu0 0.0
  %4596 = vmatprep.subr.mxu0 0.0
  %4597 = vmatpush1.msra.mxu0 0.0
  %4598 = vmatprep.subr.mxu0 0.0
  %4599 = vmatpush1.msra.mxu0 0.0
  %4600 = vmatprep.subr.mxu0 0.0
  %4601 = vmatpush1.msra.mxu0 0.0
  %4602 = vmatprep.subr.mxu0 0.0
  %4603 = vmatpush1.msra.mxu0 0.0
  %4604 = vmatprep.subr.mxu0 0.0
  %4605 = vmatpush1.msra.mxu0 0.0
  %4606 = vmatprep.subr.mxu0 0.0
  %4607 = vmatpush1.msra.mxu0 0.0
  %4608 = vmatprep.subr.mxu0 0.0
  %4609 = vmatpush1.msra.mxu0 0.0
  %4610 = vmatprep.subr.mxu0 0.0
  %4611 = vmatpush1.msra.mxu0 %v890
  %4612 = vmatprep.subr.mxu0 0.0
  %4613 = vmatpush1.msra.mxu0 %v889
  %4614 = vmatprep.subr.mxu0 0.0
  %4615 = vmatpush1.msra.mxu0 %v888
  %4616 = vmatprep.subr.mxu0 0.0
  %4617 = vmatpush1.msra.mxu0 %v887
  %4618 = vmatprep.subr.mxu0 0.0
  %4619 = vmatpush2.msra.mxu0 0.0
  %4620 = vmatprep.subr.mxu0 0.0
  %4621 = vmatpush2.msra.mxu0 0.0
  %4622 = vmatprep.subr.mxu0 0.0
  %4623 = vmatpush2.msra.mxu0 0.0
  %4624 = vmatprep.subr.mxu0 0.0
  %4625 = vmatpush2.msra.mxu0 0.0
  %4626 = vmatprep.subr.mxu0 0.0
  %4627 = vmatpush2.msra.mxu0 0.0
  %4628 = vmatprep.subr.mxu0 0.0
  %4629 = vmatpush2.msra.mxu0 0.0
  %4630 = vmatprep.subr.mxu0 0.0
  %4631 = vmatpush2.msra.mxu0 0.0
  %4632 = vmatprep.subr.mxu0 0.0
  %4633 = vmatpush2.msra.mxu0 0.0
  %4634 = vmatprep.subr.mxu0 0.0
  %4635 = vmatpush2.msra.mxu0 0.0
  %4636 = vmatprep.subr.mxu0 0.0
  %4637 = vmatpush2.msra.mxu0 0.0
  %4638 = vmatprep.subr.mxu0 0.0
  %4639 = vmatpush2.msra.mxu0 0.0
  %4640 = vmatprep.subr.mxu0 0.0
  %4641 = vmatpush2.msra.mxu0 0.0
  %4642 = vmatprep.subr.mxu0 0.0
  %4643 = vmatpush2.msra.mxu0 0.0
  %4644 = vmatprep.subr.mxu0 0.0
  %4645 = vmatpush2.msra.mxu0 0.0
  %4646 = vmatprep.subr.mxu0 0.0
  %4647 = vmatpush2.msra.mxu0 0.0
  %4648 = vmatprep.subr.mxu0 0.0
  %4649 = vmatpush2.msra.mxu0 0.0
  %4650 = vmatprep.mubr.f32.mxu0 0.0
  %4651 = vmatmul.mubr.f32.gmra.mxu0 %v4509
  %v4652 = vpop.f32.mrf.mxu0
  %v4653 = vadd.f32 %v896, %v4652
  %v4654 = vpop.f32.mrf.mxu0
  %4655 = vdwg.mxu0
  %v4656 = vmul.f32 %v4585, %v4653
  %v4657 = vadd.f32 %v4507, %v4656
  %v4658 = vtanh.pop %v4657
  %v4659 = vsub.f32 %v4505, %v4658
  %4661 = vrot.lane.b32.xlu0 %v4659, 32
  %v4662 = vpop.permute.xlu0 %4661
  %v4664 = vmul.f32 %v4585, %v4662
  %4666 = vrot.lane.b32.xlu0 %v4664, 96
  %v4667 = vpop.permute.xlu0 %4666
  %v4669 = vadd.f32 %v4658, %v4667
  %v4670 = vld [vmem:[#allocation2 + $0xb8] sm:$0xff]
  %v4671 = vld [vmem:[#allocation3 + $0xb8] sm:$0xff]
  %v4673 = vsel %vm765, %v4669, 0
  %4675 = vmatprep.subr.mxu0 0.0
  %4676 = vmatpush1.msra.mxu0 0.0
  %4677 = vmatprep.subr.mxu0 0.0
  %4678 = vmatpush1.msra.mxu0 0.0
  %4679 = vmatprep.subr.mxu0 0.0
  %4680 = vmatpush1.msra.mxu0 0.0
  %4681 = vmatprep.subr.mxu0 0.0
  %4682 = vmatpush1.msra.mxu0 0.0
  %4683 = vmatprep.subr.mxu0 0.0
  %4684 = vmatpush1.msra.mxu0 0.0
  %4685 = vmatprep.subr.mxu0 0.0
  %4686 = vmatpush1.msra.mxu0 0.0
  %4687 = vmatprep.subr.mxu0 0.0
  %4688 = vmatpush1.msra.mxu0 0.0
  %4689 = vmatprep.subr.mxu0 0.0
  %4690 = vmatpush1.msra.mxu0 0.0
  %4691 = vmatprep.subr.mxu0 0.0
  %4692 = vmatpush1.msra.mxu0 0.0
  %4693 = vmatprep.subr.mxu0 0.0
  %4694 = vmatpush1.msra.mxu0 0.0
  %4695 = vmatprep.subr.mxu0 0.0
  %4696 = vmatpush1.msra.mxu0 0.0
  %4697 = vmatprep.subr.mxu0 0.0
  %4698 = vmatpush1.msra.mxu0 0.0
  %4699 = vmatprep.subr.mxu0 0.0
  %4700 = vmatpush1.msra.mxu0 %v886
  %4701 = vmatprep.subr.mxu0 0.0
  %4702 = vmatpush1.msra.mxu0 %v885
  %4703 = vmatprep.subr.mxu0 0.0
  %4704 = vmatpush1.msra.mxu0 %v884
  %4705 = vmatprep.subr.mxu0 0.0
  %4706 = vmatpush1.msra.mxu0 %v883
  %4707 = vmatprep.subr.mxu0 0.0
  %4708 = vmatpush2.msra.mxu0 0.0
  %4709 = vmatprep.subr.mxu0 0.0
  %4710 = vmatpush2.msra.mxu0 0.0
  %4711 = vmatprep.subr.mxu0 0.0
  %4712 = vmatpush2.msra.mxu0 0.0
  %4713 = vmatprep.subr.mxu0 0.0
  %4714 = vmatpush2.msra.mxu0 0.0
  %4715 = vmatprep.subr.mxu0 0.0
  %4716 = vmatpush2.msra.mxu0 0.0
  %4717 = vmatprep.subr.mxu0 0.0
  %4718 = vmatpush2.msra.mxu0 0.0
  %4719 = vmatprep.subr.mxu0 0.0
  %4720 = vmatpush2.msra.mxu0 0.0
  %4721 = vmatprep.subr.mxu0 0.0
  %4722 = vmatpush2.msra.mxu0 0.0
  %4723 = vmatprep.subr.mxu0 0.0
  %4724 = vmatpush2.msra.mxu0 0.0
  %4725 = vmatprep.subr.mxu0 0.0
  %4726 = vmatpush2.msra.mxu0 0.0
  %4727 = vmatprep.subr.mxu0 0.0
  %4728 = vmatpush2.msra.mxu0 0.0
  %4729 = vmatprep.subr.mxu0 0.0
  %4730 = vmatpush2.msra.mxu0 0.0
  %4731 = vmatprep.subr.mxu0 0.0
  %4732 = vmatpush2.msra.mxu0 0.0
  %4733 = vmatprep.subr.mxu0 0.0
  %4734 = vmatpush2.msra.mxu0 0.0
  %4735 = vmatprep.subr.mxu0 0.0
  %4736 = vmatpush2.msra.mxu0 0.0
  %4737 = vmatprep.subr.mxu0 0.0
  %4738 = vmatpush2.msra.mxu0 0.0
  %4739 = vmatprep.mubr.f32.mxu0 0.0
  %4740 = vmatmul.mubr.f32.gmra.mxu0 %v4673
  %v4741 = vpop.f32.mrf.mxu0
  %v4742 = vadd.f32 0.0, %v4741
  %v4743 = vpop.f32.mrf.mxu0
  %4744 = vdwg.mxu0
  %v4745 = vadd.f32 %v4670, %v4742
  %v4746 = vmul.f32 %v4745, 0.5
  %v4747 = vtanh.pop %v4746
  %v4748 = vadd.f32 %v4747, 1.0
  %v4749 = vmul.f32 %v4748, 0.5
  %4750 = vmatprep.subr.mxu0 0.0
  %4751 = vmatpush1.msra.mxu0 0.0
  %4752 = vmatprep.subr.mxu0 0.0
  %4753 = vmatpush1.msra.mxu0 0.0
  %4754 = vmatprep.subr.mxu0 0.0
  %4755 = vmatpush1.msra.mxu0 0.0
  %4756 = vmatprep.subr.mxu0 0.0
  %4757 = vmatpush1.msra.mxu0 0.0
  %4758 = vmatprep.subr.mxu0 0.0
  %4759 = vmatpush1.msra.mxu0 0.0
  %4760 = vmatprep.subr.mxu0 0.0
  %4761 = vmatpush1.msra.mxu0 0.0
  %4762 = vmatprep.subr.mxu0 0.0
  %4763 = vmatpush1.msra.mxu0 0.0
  %4764 = vmatprep.subr.mxu0 0.0
  %4765 = vmatpush1.msra.mxu0 0.0
  %4766 = vmatprep.subr.mxu0 0.0
  %4767 = vmatpush1.msra.mxu0 0.0
  %4768 = vmatprep.subr.mxu0 0.0
  %4769 = vmatpush1.msra.mxu0 0.0
  %4770 = vmatprep.subr.mxu0 0.0
  %4771 = vmatpush1.msra.mxu0 0.0
  %4772 = vmatprep.subr.mxu0 0.0
  %4773 = vmatpush1.msra.mxu0 0.0
  %4774 = vmatprep.subr.mxu0 0.0
  %4775 = vmatpush1.msra.mxu0 %v890
  %4776 = vmatprep.subr.mxu0 0.0
  %4777 = vmatpush1.msra.mxu0 %v889
  %4778 = vmatprep.subr.mxu0 0.0
  %4779 = vmatpush1.msra.mxu0 %v888
  %4780 = vmatprep.subr.mxu0 0.0
  %4781 = vmatpush1.msra.mxu0 %v887
  %4782 = vmatprep.subr.mxu0 0.0
  %4783 = vmatpush2.msra.mxu0 0.0
  %4784 = vmatprep.subr.mxu0 0.0
  %4785 = vmatpush2.msra.mxu0 0.0
  %4786 = vmatprep.subr.mxu0 0.0
  %4787 = vmatpush2.msra.mxu0 0.0
  %4788 = vmatprep.subr.mxu0 0.0
  %4789 = vmatpush2.msra.mxu0 0.0
  %4790 = vmatprep.subr.mxu0 0.0
  %4791 = vmatpush2.msra.mxu0 0.0
  %4792 = vmatprep.subr.mxu0 0.0
  %4793 = vmatpush2.msra.mxu0 0.0
  %4794 = vmatprep.subr.mxu0 0.0
  %4795 = vmatpush2.msra.mxu0 0.0
  %4796 = vmatprep.subr.mxu0 0.0
  %4797 = vmatpush2.msra.mxu0 0.0
  %4798 = vmatprep.subr.mxu0 0.0
  %4799 = vmatpush2.msra.mxu0 0.0
  %4800 = vmatprep.subr.mxu0 0.0
  %4801 = vmatpush2.msra.mxu0 0.0
  %4802 = vmatprep.subr.mxu0 0.0
  %4803 = vmatpush2.msra.mxu0 0.0
  %4804 = vmatprep.subr.mxu0 0.0
  %4805 = vmatpush2.msra.mxu0 0.0
  %4806 = vmatprep.subr.mxu0 0.0
  %4807 = vmatpush2.msra.mxu0 0.0
  %4808 = vmatprep.subr.mxu0 0.0
  %4809 = vmatpush2.msra.mxu0 0.0
  %4810 = vmatprep.subr.mxu0 0.0
  %4811 = vmatpush2.msra.mxu0 0.0
  %4812 = vmatprep.subr.mxu0 0.0
  %4813 = vmatpush2.msra.mxu0 0.0
  %4814 = vmatprep.mubr.f32.mxu0 0.0
  %4815 = vmatmul.mubr.f32.gmra.mxu0 %v4673
  %v4816 = vpop.f32.mrf.mxu0
  %v4817 = vadd.f32 %v896, %v4816
  %v4818 = vpop.f32.mrf.mxu0
  %4819 = vdwg.mxu0
  %v4820 = vmul.f32 %v4749, %v4817
  %v4821 = vadd.f32 %v4671, %v4820
  %v4822 = vtanh.pop %v4821
  %v4823 = vsub.f32 %v4669, %v4822
  %4825 = vrot.lane.b32.xlu0 %v4823, 32
  %v4826 = vpop.permute.xlu0 %4825
  %v4828 = vmul.f32 %v4749, %v4826
  %4830 = vrot.lane.b32.xlu0 %v4828, 96
  %v4831 = vpop.permute.xlu0 %4830
  %v4833 = vadd.f32 %v4822, %v4831
  %v4834 = vld [vmem:[#allocation2 + $0xc0] sm:$0xff]
  %v4835 = vld [vmem:[#allocation3 + $0xc0] sm:$0xff]
  %v4837 = vsel %vm765, %v4833, 0
  %4839 = vmatprep.subr.mxu0 0.0
  %4840 = vmatpush1.msra.mxu0 0.0
  %4841 = vmatprep.subr.mxu0 0.0
  %4842 = vmatpush1.msra.mxu0 0.0
  %4843 = vmatprep.subr.mxu0 0.0
  %4844 = vmatpush1.msra.mxu0 0.0
  %4845 = vmatprep.subr.mxu0 0.0
  %4846 = vmatpush1.msra.mxu0 0.0
  %4847 = vmatprep.subr.mxu0 0.0
  %4848 = vmatpush1.msra.mxu0 0.0
  %4849 = vmatprep.subr.mxu0 0.0
  %4850 = vmatpush1.msra.mxu0 0.0
  %4851 = vmatprep.subr.mxu0 0.0
  %4852 = vmatpush1.msra.mxu0 0.0
  %4853 = vmatprep.subr.mxu0 0.0
  %4854 = vmatpush1.msra.mxu0 0.0
  %4855 = vmatprep.subr.mxu0 0.0
  %4856 = vmatpush1.msra.mxu0 0.0
  %4857 = vmatprep.subr.mxu0 0.0
  %4858 = vmatpush1.msra.mxu0 0.0
  %4859 = vmatprep.subr.mxu0 0.0
  %4860 = vmatpush1.msra.mxu0 0.0
  %4861 = vmatprep.subr.mxu0 0.0
  %4862 = vmatpush1.msra.mxu0 0.0
  %4863 = vmatprep.subr.mxu0 0.0
  %4864 = vmatpush1.msra.mxu0 %v886
  %4865 = vmatprep.subr.mxu0 0.0
  %4866 = vmatpush1.msra.mxu0 %v885
  %4867 = vmatprep.subr.mxu0 0.0
  %4868 = vmatpush1.msra.mxu0 %v884
  %4869 = vmatprep.subr.mxu0 0.0
  %4870 = vmatpush1.msra.mxu0 %v883
  %4871 = vmatprep.subr.mxu0 0.0
  %4872 = vmatpush2.msra.mxu0 0.0
  %4873 = vmatprep.subr.mxu0 0.0
  %4874 = vmatpush2.msra.mxu0 0.0
  %4875 = vmatprep.subr.mxu0 0.0
  %4876 = vmatpush2.msra.mxu0 0.0
  %4877 = vmatprep.subr.mxu0 0.0
  %4878 = vmatpush2.msra.mxu0 0.0
  %4879 = vmatprep.subr.mxu0 0.0
  %4880 = vmatpush2.msra.mxu0 0.0
  %4881 = vmatprep.subr.mxu0 0.0
  %4882 = vmatpush2.msra.mxu0 0.0
  %4883 = vmatprep.subr.mxu0 0.0
  %4884 = vmatpush2.msra.mxu0 0.0
  %4885 = vmatprep.subr.mxu0 0.0
  %4886 = vmatpush2.msra.mxu0 0.0
  %4887 = vmatprep.subr.mxu0 0.0
  %4888 = vmatpush2.msra.mxu0 0.0
  %4889 = vmatprep.subr.mxu0 0.0
  %4890 = vmatpush2.msra.mxu0 0.0
  %4891 = vmatprep.subr.mxu0 0.0
  %4892 = vmatpush2.msra.mxu0 0.0
  %4893 = vmatprep.subr.mxu0 0.0
  %4894 = vmatpush2.msra.mxu0 0.0
  %4895 = vmatprep.subr.mxu0 0.0
  %4896 = vmatpush2.msra.mxu0 0.0
  %4897 = vmatprep.subr.mxu0 0.0
  %4898 = vmatpush2.msra.mxu0 0.0
  %4899 = vmatprep.subr.mxu0 0.0
  %4900 = vmatpush2.msra.mxu0 0.0
  %4901 = vmatprep.subr.mxu0 0.0
  %4902 = vmatpush2.msra.mxu0 0.0
  %4903 = vmatprep.mubr.f32.mxu0 0.0
  %4904 = vmatmul.mubr.f32.gmra.mxu0 %v4837
  %v4905 = vpop.f32.mrf.mxu0
  %v4906 = vadd.f32 0.0, %v4905
  %v4907 = vpop.f32.mrf.mxu0
  %4908 = vdwg.mxu0
  %v4909 = vadd.f32 %v4834, %v4906
  %v4910 = vmul.f32 %v4909, 0.5
  %v4911 = vtanh.pop %v4910
  %v4912 = vadd.f32 %v4911, 1.0
  %v4913 = vmul.f32 %v4912, 0.5
  %4914 = vmatprep.subr.mxu0 0.0
  %4915 = vmatpush1.msra.mxu0 0.0
  %4916 = vmatprep.subr.mxu0 0.0
  %4917 = vmatpush1.msra.mxu0 0.0
  %4918 = vmatprep.subr.mxu0 0.0
  %4919 = vmatpush1.msra.mxu0 0.0
  %4920 = vmatprep.subr.mxu0 0.0
  %4921 = vmatpush1.msra.mxu0 0.0
  %4922 = vmatprep.subr.mxu0 0.0
  %4923 = vmatpush1.msra.mxu0 0.0
  %4924 = vmatprep.subr.mxu0 0.0
  %4925 = vmatpush1.msra.mxu0 0.0
  %4926 = vmatprep.subr.mxu0 0.0
  %4927 = vmatpush1.msra.mxu0 0.0
  %4928 = vmatprep.subr.mxu0 0.0
  %4929 = vmatpush1.msra.mxu0 0.0
  %4930 = vmatprep.subr.mxu0 0.0
  %4931 = vmatpush1.msra.mxu0 0.0
  %4932 = vmatprep.subr.mxu0 0.0
  %4933 = vmatpush1.msra.mxu0 0.0
  %4934 = vmatprep.subr.mxu0 0.0
  %4935 = vmatpush1.msra.mxu0 0.0
  %4936 = vmatprep.subr.mxu0 0.0
  %4937 = vmatpush1.msra.mxu0 0.0
  %4938 = vmatprep.subr.mxu0 0.0
  %4939 = vmatpush1.msra.mxu0 %v890
  %4940 = vmatprep.subr.mxu0 0.0
  %4941 = vmatpush1.msra.mxu0 %v889
  %4942 = vmatprep.subr.mxu0 0.0
  %4943 = vmatpush1.msra.mxu0 %v888
  %4944 = vmatprep.subr.mxu0 0.0
  %4945 = vmatpush1.msra.mxu0 %v887
  %4946 = vmatprep.subr.mxu0 0.0
  %4947 = vmatpush2.msra.mxu0 0.0
  %4948 = vmatprep.subr.mxu0 0.0
  %4949 = vmatpush2.msra.mxu0 0.0
  %4950 = vmatprep.subr.mxu0 0.0
  %4951 = vmatpush2.msra.mxu0 0.0
  %4952 = vmatprep.subr.mxu0 0.0
  %4953 = vmatpush2.msra.mxu0 0.0
  %4954 = vmatprep.subr.mxu0 0.0
  %4955 = vmatpush2.msra.mxu0 0.0
  %4956 = vmatprep.subr.mxu0 0.0
  %4957 = vmatpush2.msra.mxu0 0.0
  %4958 = vmatprep.subr.mxu0 0.0
  %4959 = vmatpush2.msra.mxu0 0.0
  %4960 = vmatprep.subr.mxu0 0.0
  %4961 = vmatpush2.msra.mxu0 0.0
  %4962 = vmatprep.subr.mxu0 0.0
  %4963 = vmatpush2.msra.mxu0 0.0
  %4964 = vmatprep.subr.mxu0 0.0
  %4965 = vmatpush2.msra.mxu0 0.0
  %4966 = vmatprep.subr.mxu0 0.0
  %4967 = vmatpush2.msra.mxu0 0.0
  %4968 = vmatprep.subr.mxu0 0.0
  %4969 = vmatpush2.msra.mxu0 0.0
  %4970 = vmatprep.subr.mxu0 0.0
  %4971 = vmatpush2.msra.mxu0 0.0
  %4972 = vmatprep.subr.mxu0 0.0
  %4973 = vmatpush2.msra.mxu0 0.0
  %4974 = vmatprep.subr.mxu0 0.0
  %4975 = vmatpush2.msra.mxu0 0.0
  %4976 = vmatprep.subr.mxu0 0.0
  %4977 = vmatpush2.msra.mxu0 0.0
  %4978 = vmatprep.mubr.f32.mxu0 0.0
  %4979 = vmatmul.mubr.f32.gmra.mxu0 %v4837
  %v4980 = vpop.f32.mrf.mxu0
  %v4981 = vadd.f32 %v896, %v4980
  %v4982 = vpop.f32.mrf.mxu0
  %4983 = vdwg.mxu0
  %v4984 = vmul.f32 %v4913, %v4981
  %v4985 = vadd.f32 %v4835, %v4984
  %v4986 = vtanh.pop %v4985
  %v4987 = vsub.f32 %v4833, %v4986
  %4989 = vrot.lane.b32.xlu0 %v4987, 32
  %v4990 = vpop.permute.xlu0 %4989
  %v4992 = vmul.f32 %v4913, %v4990
  %4994 = vrot.lane.b32.xlu0 %v4992, 96
  %v4995 = vpop.permute.xlu0 %4994
  %v4997 = vadd.f32 %v4986, %v4995
  %v4998 = vld [vmem:[#allocation2 + $0xc8] sm:$0xff]
  %v4999 = vld [vmem:[#allocation3 + $0xc8] sm:$0xff]
  %v5001 = vsel %vm765, %v4997, 0
  %5003 = vmatprep.subr.mxu0 0.0
  %5004 = vmatpush1.msra.mxu0 0.0
  %5005 = vmatprep.subr.mxu0 0.0
  %5006 = vmatpush1.msra.mxu0 0.0
  %5007 = vmatprep.subr.mxu0 0.0
  %5008 = vmatpush1.msra.mxu0 0.0
  %5009 = vmatprep.subr.mxu0 0.0
  %5010 = vmatpush1.msra.mxu0 0.0
  %5011 = vmatprep.subr.mxu0 0.0
  %5012 = vmatpush1.msra.mxu0 0.0
  %5013 = vmatprep.subr.mxu0 0.0
  %5014 = vmatpush1.msra.mxu0 0.0
  %5015 = vmatprep.subr.mxu0 0.0
  %5016 = vmatpush1.msra.mxu0 0.0
  %5017 = vmatprep.subr.mxu0 0.0
  %5018 = vmatpush1.msra.mxu0 0.0
  %5019 = vmatprep.subr.mxu0 0.0
  %5020 = vmatpush1.msra.mxu0 0.0
  %5021 = vmatprep.subr.mxu0 0.0
  %5022 = vmatpush1.msra.mxu0 0.0
  %5023 = vmatprep.subr.mxu0 0.0
  %5024 = vmatpush1.msra.mxu0 0.0
  %5025 = vmatprep.subr.mxu0 0.0
  %5026 = vmatpush1.msra.mxu0 0.0
  %5027 = vmatprep.subr.mxu0 0.0
  %5028 = vmatpush1.msra.mxu0 %v886
  %5029 = vmatprep.subr.mxu0 0.0
  %5030 = vmatpush1.msra.mxu0 %v885
  %5031 = vmatprep.subr.mxu0 0.0
  %5032 = vmatpush1.msra.mxu0 %v884
  %5033 = vmatprep.subr.mxu0 0.0
  %5034 = vmatpush1.msra.mxu0 %v883
  %5035 = vmatprep.subr.mxu0 0.0
  %5036 = vmatpush2.msra.mxu0 0.0
  %5037 = vmatprep.subr.mxu0 0.0
  %5038 = vmatpush2.msra.mxu0 0.0
  %5039 = vmatprep.subr.mxu0 0.0
  %5040 = vmatpush2.msra.mxu0 0.0
  %5041 = vmatprep.subr.mxu0 0.0
  %5042 = vmatpush2.msra.mxu0 0.0
  %5043 = vmatprep.subr.mxu0 0.0
  %5044 = vmatpush2.msra.mxu0 0.0
  %5045 = vmatprep.subr.mxu0 0.0
  %5046 = vmatpush2.msra.mxu0 0.0
  %5047 = vmatprep.subr.mxu0 0.0
  %5048 = vmatpush2.msra.mxu0 0.0
  %5049 = vmatprep.subr.mxu0 0.0
  %5050 = vmatpush2.msra.mxu0 0.0
  %5051 = vmatprep.subr.mxu0 0.0
  %5052 = vmatpush2.msra.mxu0 0.0
  %5053 = vmatprep.subr.mxu0 0.0
  %5054 = vmatpush2.msra.mxu0 0.0
  %5055 = vmatprep.subr.mxu0 0.0
  %5056 = vmatpush2.msra.mxu0 0.0
  %5057 = vmatprep.subr.mxu0 0.0
  %5058 = vmatpush2.msra.mxu0 0.0
  %5059 = vmatprep.subr.mxu0 0.0
  %5060 = vmatpush2.msra.mxu0 0.0
  %5061 = vmatprep.subr.mxu0 0.0
  %5062 = vmatpush2.msra.mxu0 0.0
  %5063 = vmatprep.subr.mxu0 0.0
  %5064 = vmatpush2.msra.mxu0 0.0
  %5065 = vmatprep.subr.mxu0 0.0
  %5066 = vmatpush2.msra.mxu0 0.0
  %5067 = vmatprep.mubr.f32.mxu0 0.0
  %5068 = vmatmul.mubr.f32.gmra.mxu0 %v5001
  %v5069 = vpop.f32.mrf.mxu0
  %v5070 = vadd.f32 0.0, %v5069
  %v5071 = vpop.f32.mrf.mxu0
  %5072 = vdwg.mxu0
  %v5073 = vadd.f32 %v4998, %v5070
  %v5074 = vmul.f32 %v5073, 0.5
  %v5075 = vtanh.pop %v5074
  %v5076 = vadd.f32 %v5075, 1.0
  %v5077 = vmul.f32 %v5076, 0.5
  %5078 = vmatprep.subr.mxu0 0.0
  %5079 = vmatpush1.msra.mxu0 0.0
  %5080 = vmatprep.subr.mxu0 0.0
  %5081 = vmatpush1.msra.mxu0 0.0
  %5082 = vmatprep.subr.mxu0 0.0
  %5083 = vmatpush1.msra.mxu0 0.0
  %5084 = vmatprep.subr.mxu0 0.0
  %5085 = vmatpush1.msra.mxu0 0.0
  %5086 = vmatprep.subr.mxu0 0.0
  %5087 = vmatpush1.msra.mxu0 0.0
  %5088 = vmatprep.subr.mxu0 0.0
  %5089 = vmatpush1.msra.mxu0 0.0
  %5090 = vmatprep.subr.mxu0 0.0
  %5091 = vmatpush1.msra.mxu0 0.0
  %5092 = vmatprep.subr.mxu0 0.0
  %5093 = vmatpush1.msra.mxu0 0.0
  %5094 = vmatprep.subr.mxu0 0.0
  %5095 = vmatpush1.msra.mxu0 0.0
  %5096 = vmatprep.subr.mxu0 0.0
  %5097 = vmatpush1.msra.mxu0 0.0
  %5098 = vmatprep.subr.mxu0 0.0
  %5099 = vmatpush1.msra.mxu0 0.0
  %5100 = vmatprep.subr.mxu0 0.0
  %5101 = vmatpush1.msra.mxu0 0.0
  %5102 = vmatprep.subr.mxu0 0.0
  %5103 = vmatpush1.msra.mxu0 %v890
  %5104 = vmatprep.subr.mxu0 0.0
  %5105 = vmatpush1.msra.mxu0 %v889
  %5106 = vmatprep.subr.mxu0 0.0
  %5107 = vmatpush1.msra.mxu0 %v888
  %5108 = vmatprep.subr.mxu0 0.0
  %5109 = vmatpush1.msra.mxu0 %v887
  %5110 = vmatprep.subr.mxu0 0.0
  %5111 = vmatpush2.msra.mxu0 0.0
  %5112 = vmatprep.subr.mxu0 0.0
  %5113 = vmatpush2.msra.mxu0 0.0
  %5114 = vmatprep.subr.mxu0 0.0
  %5115 = vmatpush2.msra.mxu0 0.0
  %5116 = vmatprep.subr.mxu0 0.0
  %5117 = vmatpush2.msra.mxu0 0.0
  %5118 = vmatprep.subr.mxu0 0.0
  %5119 = vmatpush2.msra.mxu0 0.0
  %5120 = vmatprep.subr.mxu0 0.0
  %5121 = vmatpush2.msra.mxu0 0.0
  %5122 = vmatprep.subr.mxu0 0.0
  %5123 = vmatpush2.msra.mxu0 0.0
  %5124 = vmatprep.subr.mxu0 0.0
  %5125 = vmatpush2.msra.mxu0 0.0
  %5126 = vmatprep.subr.mxu0 0.0
  %5127 = vmatpush2.msra.mxu0 0.0
  %5128 = vmatprep.subr.mxu0 0.0
  %5129 = vmatpush2.msra.mxu0 0.0
  %5130 = vmatprep.subr.mxu0 0.0
  %5131 = vmatpush2.msra.mxu0 0.0
  %5132 = vmatprep.subr.mxu0 0.0
  %5133 = vmatpush2.msra.mxu0 0.0
  %5134 = vmatprep.subr.mxu0 0.0
  %5135 = vmatpush2.msra.mxu0 0.0
  %5136 = vmatprep.subr.mxu0 0.0
  %5137 = vmatpush2.msra.mxu0 0.0
  %5138 = vmatprep.subr.mxu0 0.0
  %5139 = vmatpush2.msra.mxu0 0.0
  %5140 = vmatprep.subr.mxu0 0.0
  %5141 = vmatpush2.msra.mxu0 0.0
  %5142 = vmatprep.mubr.f32.mxu0 0.0
  %5143 = vmatmul.mubr.f32.gmra.mxu0 %v5001
  %v5144 = vpop.f32.mrf.mxu0
  %v5145 = vadd.f32 %v896, %v5144
  %v5146 = vpop.f32.mrf.mxu0
  %5147 = vdwg.mxu0
  %v5148 = vmul.f32 %v5077, %v5145
  %v5149 = vadd.f32 %v4999, %v5148
  %v5150 = vtanh.pop %v5149
  %v5151 = vsub.f32 %v4997, %v5150
  %5153 = vrot.lane.b32.xlu0 %v5151, 32
  %v5154 = vpop.permute.xlu0 %5153
  %v5156 = vmul.f32 %v5077, %v5154
  %5158 = vrot.lane.b32.xlu0 %v5156, 96
  %v5159 = vpop.permute.xlu0 %5158
  %v5161 = vadd.f32 %v5150, %v5159
  %v5162 = vld [vmem:[#allocation2 + $0xd0] sm:$0xff]
  %v5163 = vld [vmem:[#allocation3 + $0xd0] sm:$0xff]
  %v5165 = vsel %vm765, %v5161, 0
  %5167 = vmatprep.subr.mxu0 0.0
  %5168 = vmatpush1.msra.mxu0 0.0
  %5169 = vmatprep.subr.mxu0 0.0
  %5170 = vmatpush1.msra.mxu0 0.0
  %5171 = vmatprep.subr.mxu0 0.0
  %5172 = vmatpush1.msra.mxu0 0.0
  %5173 = vmatprep.subr.mxu0 0.0
  %5174 = vmatpush1.msra.mxu0 0.0
  %5175 = vmatprep.subr.mxu0 0.0
  %5176 = vmatpush1.msra.mxu0 0.0
  %5177 = vmatprep.subr.mxu0 0.0
  %5178 = vmatpush1.msra.mxu0 0.0
  %5179 = vmatprep.subr.mxu0 0.0
  %5180 = vmatpush1.msra.mxu0 0.0
  %5181 = vmatprep.subr.mxu0 0.0
  %5182 = vmatpush1.msra.mxu0 0.0
  %5183 = vmatprep.subr.mxu0 0.0
  %5184 = vmatpush1.msra.mxu0 0.0
  %5185 = vmatprep.subr.mxu0 0.0
  %5186 = vmatpush1.msra.mxu0 0.0
  %5187 = vmatprep.subr.mxu0 0.0
  %5188 = vmatpush1.msra.mxu0 0.0
  %5189 = vmatprep.subr.mxu0 0.0
  %5190 = vmatpush1.msra.mxu0 0.0
  %5191 = vmatprep.subr.mxu0 0.0
  %5192 = vmatpush1.msra.mxu0 %v886
  %5193 = vmatprep.subr.mxu0 0.0
  %5194 = vmatpush1.msra.mxu0 %v885
  %5195 = vmatprep.subr.mxu0 0.0
  %5196 = vmatpush1.msra.mxu0 %v884
  %5197 = vmatprep.subr.mxu0 0.0
  %5198 = vmatpush1.msra.mxu0 %v883
  %5199 = vmatprep.subr.mxu0 0.0
  %5200 = vmatpush2.msra.mxu0 0.0
  %5201 = vmatprep.subr.mxu0 0.0
  %5202 = vmatpush2.msra.mxu0 0.0
  %5203 = vmatprep.subr.mxu0 0.0
  %5204 = vmatpush2.msra.mxu0 0.0
  %5205 = vmatprep.subr.mxu0 0.0
  %5206 = vmatpush2.msra.mxu0 0.0
  %5207 = vmatprep.subr.mxu0 0.0
  %5208 = vmatpush2.msra.mxu0 0.0
  %5209 = vmatprep.subr.mxu0 0.0
  %5210 = vmatpush2.msra.mxu0 0.0
  %5211 = vmatprep.subr.mxu0 0.0
  %5212 = vmatpush2.msra.mxu0 0.0
  %5213 = vmatprep.subr.mxu0 0.0
  %5214 = vmatpush2.msra.mxu0 0.0
  %5215 = vmatprep.subr.mxu0 0.0
  %5216 = vmatpush2.msra.mxu0 0.0
  %5217 = vmatprep.subr.mxu0 0.0
  %5218 = vmatpush2.msra.mxu0 0.0
  %5219 = vmatprep.subr.mxu0 0.0
  %5220 = vmatpush2.msra.mxu0 0.0
  %5221 = vmatprep.subr.mxu0 0.0
  %5222 = vmatpush2.msra.mxu0 0.0
  %5223 = vmatprep.subr.mxu0 0.0
  %5224 = vmatpush2.msra.mxu0 0.0
  %5225 = vmatprep.subr.mxu0 0.0
  %5226 = vmatpush2.msra.mxu0 0.0
  %5227 = vmatprep.subr.mxu0 0.0
  %5228 = vmatpush2.msra.mxu0 0.0
  %5229 = vmatprep.subr.mxu0 0.0
  %5230 = vmatpush2.msra.mxu0 0.0
  %5231 = vmatprep.mubr.f32.mxu0 0.0
  %5232 = vmatmul.mubr.f32.gmra.mxu0 %v5165
  %v5233 = vpop.f32.mrf.mxu0
  %v5234 = vadd.f32 0.0, %v5233
  %v5235 = vpop.f32.mrf.mxu0
  %5236 = vdwg.mxu0
  %v5237 = vadd.f32 %v5162, %v5234
  %v5238 = vmul.f32 %v5237, 0.5
  %v5239 = vtanh.pop %v5238
  %v5240 = vadd.f32 %v5239, 1.0
  %v5241 = vmul.f32 %v5240, 0.5
  %5242 = vmatprep.subr.mxu0 0.0
  %5243 = vmatpush1.msra.mxu0 0.0
  %5244 = vmatprep.subr.mxu0 0.0
  %5245 = vmatpush1.msra.mxu0 0.0
  %5246 = vmatprep.subr.mxu0 0.0
  %5247 = vmatpush1.msra.mxu0 0.0
  %5248 = vmatprep.subr.mxu0 0.0
  %5249 = vmatpush1.msra.mxu0 0.0
  %5250 = vmatprep.subr.mxu0 0.0
  %5251 = vmatpush1.msra.mxu0 0.0
  %5252 = vmatprep.subr.mxu0 0.0
  %5253 = vmatpush1.msra.mxu0 0.0
  %5254 = vmatprep.subr.mxu0 0.0
  %5255 = vmatpush1.msra.mxu0 0.0
  %5256 = vmatprep.subr.mxu0 0.0
  %5257 = vmatpush1.msra.mxu0 0.0
  %5258 = vmatprep.subr.mxu0 0.0
  %5259 = vmatpush1.msra.mxu0 0.0
  %5260 = vmatprep.subr.mxu0 0.0
  %5261 = vmatpush1.msra.mxu0 0.0
  %5262 = vmatprep.subr.mxu0 0.0
  %5263 = vmatpush1.msra.mxu0 0.0
  %5264 = vmatprep.subr.mxu0 0.0
  %5265 = vmatpush1.msra.mxu0 0.0
  %5266 = vmatprep.subr.mxu0 0.0
  %5267 = vmatpush1.msra.mxu0 %v890
  %5268 = vmatprep.subr.mxu0 0.0
  %5269 = vmatpush1.msra.mxu0 %v889
  %5270 = vmatprep.subr.mxu0 0.0
  %5271 = vmatpush1.msra.mxu0 %v888
  %5272 = vmatprep.subr.mxu0 0.0
  %5273 = vmatpush1.msra.mxu0 %v887
  %5274 = vmatprep.subr.mxu0 0.0
  %5275 = vmatpush2.msra.mxu0 0.0
  %5276 = vmatprep.subr.mxu0 0.0
  %5277 = vmatpush2.msra.mxu0 0.0
  %5278 = vmatprep.subr.mxu0 0.0
  %5279 = vmatpush2.msra.mxu0 0.0
  %5280 = vmatprep.subr.mxu0 0.0
  %5281 = vmatpush2.msra.mxu0 0.0
  %5282 = vmatprep.subr.mxu0 0.0
  %5283 = vmatpush2.msra.mxu0 0.0
  %5284 = vmatprep.subr.mxu0 0.0
  %5285 = vmatpush2.msra.mxu0 0.0
  %5286 = vmatprep.subr.mxu0 0.0
  %5287 = vmatpush2.msra.mxu0 0.0
  %5288 = vmatprep.subr.mxu0 0.0
  %5289 = vmatpush2.msra.mxu0 0.0
  %5290 = vmatprep.subr.mxu0 0.0
  %5291 = vmatpush2.msra.mxu0 0.0
  %5292 = vmatprep.subr.mxu0 0.0
  %5293 = vmatpush2.msra.mxu0 0.0
  %5294 = vmatprep.subr.mxu0 0.0
  %5295 = vmatpush2.msra.mxu0 0.0
  %5296 = vmatprep.subr.mxu0 0.0
  %5297 = vmatpush2.msra.mxu0 0.0
  %5298 = vmatprep.subr.mxu0 0.0
  %5299 = vmatpush2.msra.mxu0 0.0
  %5300 = vmatprep.subr.mxu0 0.0
  %5301 = vmatpush2.msra.mxu0 0.0
  %5302 = vmatprep.subr.mxu0 0.0
  %5303 = vmatpush2.msra.mxu0 0.0
  %5304 = vmatprep.subr.mxu0 0.0
  %5305 = vmatpush2.msra.mxu0 0.0
  %5306 = vmatprep.mubr.f32.mxu0 0.0
  %5307 = vmatmul.mubr.f32.gmra.mxu0 %v5165
  %v5308 = vpop.f32.mrf.mxu0
  %v5309 = vadd.f32 %v896, %v5308
  %v5310 = vpop.f32.mrf.mxu0
  %5311 = vdwg.mxu0
  %v5312 = vmul.f32 %v5241, %v5309
  %v5313 = vadd.f32 %v5163, %v5312
  %v5314 = vtanh.pop %v5313
  %v5315 = vsub.f32 %v5161, %v5314
  %5317 = vrot.lane.b32.xlu0 %v5315, 32
  %v5318 = vpop.permute.xlu0 %5317
  %v5320 = vmul.f32 %v5241, %v5318
  %5322 = vrot.lane.b32.xlu0 %v5320, 96
  %v5323 = vpop.permute.xlu0 %5322
  %v5325 = vadd.f32 %v5314, %v5323
  %v5326 = vld [vmem:[#allocation2 + $0xd8] sm:$0xff]
  %v5327 = vld [vmem:[#allocation3 + $0xd8] sm:$0xff]
  %v5329 = vsel %vm765, %v5325, 0
  %5331 = vmatprep.subr.mxu0 0.0
  %5332 = vmatpush1.msra.mxu0 0.0
  %5333 = vmatprep.subr.mxu0 0.0
  %5334 = vmatpush1.msra.mxu0 0.0
  %5335 = vmatprep.subr.mxu0 0.0
  %5336 = vmatpush1.msra.mxu0 0.0
  %5337 = vmatprep.subr.mxu0 0.0
  %5338 = vmatpush1.msra.mxu0 0.0
  %5339 = vmatprep.subr.mxu0 0.0
  %5340 = vmatpush1.msra.mxu0 0.0
  %5341 = vmatprep.subr.mxu0 0.0
  %5342 = vmatpush1.msra.mxu0 0.0
  %5343 = vmatprep.subr.mxu0 0.0
  %5344 = vmatpush1.msra.mxu0 0.0
  %5345 = vmatprep.subr.mxu0 0.0
  %5346 = vmatpush1.msra.mxu0 0.0
  %5347 = vmatprep.subr.mxu0 0.0
  %5348 = vmatpush1.msra.mxu0 0.0
  %5349 = vmatprep.subr.mxu0 0.0
  %5350 = vmatpush1.msra.mxu0 0.0
  %5351 = vmatprep.subr.mxu0 0.0
  %5352 = vmatpush1.msra.mxu0 0.0
  %5353 = vmatprep.subr.mxu0 0.0
  %5354 = vmatpush1.msra.mxu0 0.0
  %5355 = vmatprep.subr.mxu0 0.0
  %5356 = vmatpush1.msra.mxu0 %v886
  %5357 = vmatprep.subr.mxu0 0.0
  %5358 = vmatpush1.msra.mxu0 %v885
  %5359 = vmatprep.subr.mxu0 0.0
  %5360 = vmatpush1.msra.mxu0 %v884
  %5361 = vmatprep.subr.mxu0 0.0
  %5362 = vmatpush1.msra.mxu0 %v883
  %5363 = vmatprep.subr.mxu0 0.0
  %5364 = vmatpush2.msra.mxu0 0.0
  %5365 = vmatprep.subr.mxu0 0.0
  %5366 = vmatpush2.msra.mxu0 0.0
  %5367 = vmatprep.subr.mxu0 0.0
  %5368 = vmatpush2.msra.mxu0 0.0
  %5369 = vmatprep.subr.mxu0 0.0
  %5370 = vmatpush2.msra.mxu0 0.0
  %5371 = vmatprep.subr.mxu0 0.0
  %5372 = vmatpush2.msra.mxu0 0.0
  %5373 = vmatprep.subr.mxu0 0.0
  %5374 = vmatpush2.msra.mxu0 0.0
  %5375 = vmatprep.subr.mxu0 0.0
  %5376 = vmatpush2.msra.mxu0 0.0
  %5377 = vmatprep.subr.mxu0 0.0
  %5378 = vmatpush2.msra.mxu0 0.0
  %5379 = vmatprep.subr.mxu0 0.0
  %5380 = vmatpush2.msra.mxu0 0.0
  %5381 = vmatprep.subr.mxu0 0.0
  %5382 = vmatpush2.msra.mxu0 0.0
  %5383 = vmatprep.subr.mxu0 0.0
  %5384 = vmatpush2.msra.mxu0 0.0
  %5385 = vmatprep.subr.mxu0 0.0
  %5386 = vmatpush2.msra.mxu0 0.0
  %5387 = vmatprep.subr.mxu0 0.0
  %5388 = vmatpush2.msra.mxu0 0.0
  %5389 = vmatprep.subr.mxu0 0.0
  %5390 = vmatpush2.msra.mxu0 0.0
  %5391 = vmatprep.subr.mxu0 0.0
  %5392 = vmatpush2.msra.mxu0 0.0
  %5393 = vmatprep.subr.mxu0 0.0
  %5394 = vmatpush2.msra.mxu0 0.0
  %5395 = vmatprep.mubr.f32.mxu0 0.0
  %5396 = vmatmul.mubr.f32.gmra.mxu0 %v5329
  %v5397 = vpop.f32.mrf.mxu0
  %v5398 = vadd.f32 0.0, %v5397
  %v5399 = vpop.f32.mrf.mxu0
  %5400 = vdwg.mxu0
  %v5401 = vadd.f32 %v5326, %v5398
  %v5402 = vmul.f32 %v5401, 0.5
  %v5403 = vtanh.pop %v5402
  %v5404 = vadd.f32 %v5403, 1.0
  %v5405 = vmul.f32 %v5404, 0.5
  %5406 = vmatprep.subr.mxu0 0.0
  %5407 = vmatpush1.msra.mxu0 0.0
  %5408 = vmatprep.subr.mxu0 0.0
  %5409 = vmatpush1.msra.mxu0 0.0
  %5410 = vmatprep.subr.mxu0 0.0
  %5411 = vmatpush1.msra.mxu0 0.0
  %5412 = vmatprep.subr.mxu0 0.0
  %5413 = vmatpush1.msra.mxu0 0.0
  %5414 = vmatprep.subr.mxu0 0.0
  %5415 = vmatpush1.msra.mxu0 0.0
  %5416 = vmatprep.subr.mxu0 0.0
  %5417 = vmatpush1.msra.mxu0 0.0
  %5418 = vmatprep.subr.mxu0 0.0
  %5419 = vmatpush1.msra.mxu0 0.0
  %5420 = vmatprep.subr.mxu0 0.0
  %5421 = vmatpush1.msra.mxu0 0.0
  %5422 = vmatprep.subr.mxu0 0.0
  %5423 = vmatpush1.msra.mxu0 0.0
  %5424 = vmatprep.subr.mxu0 0.0
  %5425 = vmatpush1.msra.mxu0 0.0
  %5426 = vmatprep.subr.mxu0 0.0
  %5427 = vmatpush1.msra.mxu0 0.0
  %5428 = vmatprep.subr.mxu0 0.0
  %5429 = vmatpush1.msra.mxu0 0.0
  %5430 = vmatprep.subr.mxu0 0.0
  %5431 = vmatpush1.msra.mxu0 %v890
  %5432 = vmatprep.subr.mxu0 0.0
  %5433 = vmatpush1.msra.mxu0 %v889
  %5434 = vmatprep.subr.mxu0 0.0
  %5435 = vmatpush1.msra.mxu0 %v888
  %5436 = vmatprep.subr.mxu0 0.0
  %5437 = vmatpush1.msra.mxu0 %v887
  %5438 = vmatprep.subr.mxu0 0.0
  %5439 = vmatpush2.msra.mxu0 0.0
  %5440 = vmatprep.subr.mxu0 0.0
  %5441 = vmatpush2.msra.mxu0 0.0
  %5442 = vmatprep.subr.mxu0 0.0
  %5443 = vmatpush2.msra.mxu0 0.0
  %5444 = vmatprep.subr.mxu0 0.0
  %5445 = vmatpush2.msra.mxu0 0.0
  %5446 = vmatprep.subr.mxu0 0.0
  %5447 = vmatpush2.msra.mxu0 0.0
  %5448 = vmatprep.subr.mxu0 0.0
  %5449 = vmatpush2.msra.mxu0 0.0
  %5450 = vmatprep.subr.mxu0 0.0
  %5451 = vmatpush2.msra.mxu0 0.0
  %5452 = vmatprep.subr.mxu0 0.0
  %5453 = vmatpush2.msra.mxu0 0.0
  %5454 = vmatprep.subr.mxu0 0.0
  %5455 = vmatpush2.msra.mxu0 0.0
  %5456 = vmatprep.subr.mxu0 0.0
  %5457 = vmatpush2.msra.mxu0 0.0
  %5458 = vmatprep.subr.mxu0 0.0
  %5459 = vmatpush2.msra.mxu0 0.0
  %5460 = vmatprep.subr.mxu0 0.0
  %5461 = vmatpush2.msra.mxu0 0.0
  %5462 = vmatprep.subr.mxu0 0.0
  %5463 = vmatpush2.msra.mxu0 0.0
  %5464 = vmatprep.subr.mxu0 0.0
  %5465 = vmatpush2.msra.mxu0 0.0
  %5466 = vmatprep.subr.mxu0 0.0
  %5467 = vmatpush2.msra.mxu0 0.0
  %5468 = vmatprep.subr.mxu0 0.0
  %5469 = vmatpush2.msra.mxu0 0.0
  %5470 = vmatprep.mubr.f32.mxu0 0.0
  %5471 = vmatmul.mubr.f32.gmra.mxu0 %v5329
  %v5472 = vpop.f32.mrf.mxu0
  %v5473 = vadd.f32 %v896, %v5472
  %v5474 = vpop.f32.mrf.mxu0
  %5475 = vdwg.mxu0
  %v5476 = vmul.f32 %v5405, %v5473
  %v5477 = vadd.f32 %v5327, %v5476
  %v5478 = vtanh.pop %v5477
  %v5479 = vsub.f32 %v5325, %v5478
  %5481 = vrot.lane.b32.xlu0 %v5479, 32
  %v5482 = vpop.permute.xlu0 %5481
  %v5484 = vmul.f32 %v5405, %v5482
  %5486 = vrot.lane.b32.xlu0 %v5484, 96
  %v5487 = vpop.permute.xlu0 %5486
  %v5489 = vadd.f32 %v5478, %v5487
  %v5490 = vld [vmem:[#allocation2 + $0xe0] sm:$0xff]
  %v5491 = vld [vmem:[#allocation3 + $0xe0] sm:$0xff]
  %v5493 = vsel %vm765, %v5489, 0
  %5495 = vmatprep.subr.mxu0 0.0
  %5496 = vmatpush1.msra.mxu0 0.0
  %5497 = vmatprep.subr.mxu0 0.0
  %5498 = vmatpush1.msra.mxu0 0.0
  %5499 = vmatprep.subr.mxu0 0.0
  %5500 = vmatpush1.msra.mxu0 0.0
  %5501 = vmatprep.subr.mxu0 0.0
  %5502 = vmatpush1.msra.mxu0 0.0
  %5503 = vmatprep.subr.mxu0 0.0
  %5504 = vmatpush1.msra.mxu0 0.0
  %5505 = vmatprep.subr.mxu0 0.0
  %5506 = vmatpush1.msra.mxu0 0.0
  %5507 = vmatprep.subr.mxu0 0.0
  %5508 = vmatpush1.msra.mxu0 0.0
  %5509 = vmatprep.subr.mxu0 0.0
  %5510 = vmatpush1.msra.mxu0 0.0
  %5511 = vmatprep.subr.mxu0 0.0
  %5512 = vmatpush1.msra.mxu0 0.0
  %5513 = vmatprep.subr.mxu0 0.0
  %5514 = vmatpush1.msra.mxu0 0.0
  %5515 = vmatprep.subr.mxu0 0.0
  %5516 = vmatpush1.msra.mxu0 0.0
  %5517 = vmatprep.subr.mxu0 0.0
  %5518 = vmatpush1.msra.mxu0 0.0
  %5519 = vmatprep.subr.mxu0 0.0
  %5520 = vmatpush1.msra.mxu0 %v886
  %5521 = vmatprep.subr.mxu0 0.0
  %5522 = vmatpush1.msra.mxu0 %v885
  %5523 = vmatprep.subr.mxu0 0.0
  %5524 = vmatpush1.msra.mxu0 %v884
  %5525 = vmatprep.subr.mxu0 0.0
  %5526 = vmatpush1.msra.mxu0 %v883
  %5527 = vmatprep.subr.mxu0 0.0
  %5528 = vmatpush2.msra.mxu0 0.0
  %5529 = vmatprep.subr.mxu0 0.0
  %5530 = vmatpush2.msra.mxu0 0.0
  %5531 = vmatprep.subr.mxu0 0.0
  %5532 = vmatpush2.msra.mxu0 0.0
  %5533 = vmatprep.subr.mxu0 0.0
  %5534 = vmatpush2.msra.mxu0 0.0
  %5535 = vmatprep.subr.mxu0 0.0
  %5536 = vmatpush2.msra.mxu0 0.0
  %5537 = vmatprep.subr.mxu0 0.0
  %5538 = vmatpush2.msra.mxu0 0.0
  %5539 = vmatprep.subr.mxu0 0.0
  %5540 = vmatpush2.msra.mxu0 0.0
  %5541 = vmatprep.subr.mxu0 0.0
  %5542 = vmatpush2.msra.mxu0 0.0
  %5543 = vmatprep.subr.mxu0 0.0
  %5544 = vmatpush2.msra.mxu0 0.0
  %5545 = vmatprep.subr.mxu0 0.0
  %5546 = vmatpush2.msra.mxu0 0.0
  %5547 = vmatprep.subr.mxu0 0.0
  %5548 = vmatpush2.msra.mxu0 0.0
  %5549 = vmatprep.subr.mxu0 0.0
  %5550 = vmatpush2.msra.mxu0 0.0
  %5551 = vmatprep.subr.mxu0 0.0
  %5552 = vmatpush2.msra.mxu0 0.0
  %5553 = vmatprep.subr.mxu0 0.0
  %5554 = vmatpush2.msra.mxu0 0.0
  %5555 = vmatprep.subr.mxu0 0.0
  %5556 = vmatpush2.msra.mxu0 0.0
  %5557 = vmatprep.subr.mxu0 0.0
  %5558 = vmatpush2.msra.mxu0 0.0
  %5559 = vmatprep.mubr.f32.mxu0 0.0
  %5560 = vmatmul.mubr.f32.gmra.mxu0 %v5493
  %v5561 = vpop.f32.mrf.mxu0
  %v5562 = vadd.f32 0.0, %v5561
  %v5563 = vpop.f32.mrf.mxu0
  %5564 = vdwg.mxu0
  %v5565 = vadd.f32 %v5490, %v5562
  %v5566 = vmul.f32 %v5565, 0.5
  %v5567 = vtanh.pop %v5566
  %v5568 = vadd.f32 %v5567, 1.0
  %v5569 = vmul.f32 %v5568, 0.5
  %5570 = vmatprep.subr.mxu0 0.0
  %5571 = vmatpush1.msra.mxu0 0.0
  %5572 = vmatprep.subr.mxu0 0.0
  %5573 = vmatpush1.msra.mxu0 0.0
  %5574 = vmatprep.subr.mxu0 0.0
  %5575 = vmatpush1.msra.mxu0 0.0
  %5576 = vmatprep.subr.mxu0 0.0
  %5577 = vmatpush1.msra.mxu0 0.0
  %5578 = vmatprep.subr.mxu0 0.0
  %5579 = vmatpush1.msra.mxu0 0.0
  %5580 = vmatprep.subr.mxu0 0.0
  %5581 = vmatpush1.msra.mxu0 0.0
  %5582 = vmatprep.subr.mxu0 0.0
  %5583 = vmatpush1.msra.mxu0 0.0
  %5584 = vmatprep.subr.mxu0 0.0
  %5585 = vmatpush1.msra.mxu0 0.0
  %5586 = vmatprep.subr.mxu0 0.0
  %5587 = vmatpush1.msra.mxu0 0.0
  %5588 = vmatprep.subr.mxu0 0.0
  %5589 = vmatpush1.msra.mxu0 0.0
  %5590 = vmatprep.subr.mxu0 0.0
  %5591 = vmatpush1.msra.mxu0 0.0
  %5592 = vmatprep.subr.mxu0 0.0
  %5593 = vmatpush1.msra.mxu0 0.0
  %5594 = vmatprep.subr.mxu0 0.0
  %5595 = vmatpush1.msra.mxu0 %v890
  %5596 = vmatprep.subr.mxu0 0.0
  %5597 = vmatpush1.msra.mxu0 %v889
  %5598 = vmatprep.subr.mxu0 0.0
  %5599 = vmatpush1.msra.mxu0 %v888
  %5600 = vmatprep.subr.mxu0 0.0
  %5601 = vmatpush1.msra.mxu0 %v887
  %5602 = vmatprep.subr.mxu0 0.0
  %5603 = vmatpush2.msra.mxu0 0.0
  %5604 = vmatprep.subr.mxu0 0.0
  %5605 = vmatpush2.msra.mxu0 0.0
  %5606 = vmatprep.subr.mxu0 0.0
  %5607 = vmatpush2.msra.mxu0 0.0
  %5608 = vmatprep.subr.mxu0 0.0
  %5609 = vmatpush2.msra.mxu0 0.0
  %5610 = vmatprep.subr.mxu0 0.0
  %5611 = vmatpush2.msra.mxu0 0.0
  %5612 = vmatprep.subr.mxu0 0.0
  %5613 = vmatpush2.msra.mxu0 0.0
  %5614 = vmatprep.subr.mxu0 0.0
  %5615 = vmatpush2.msra.mxu0 0.0
  %5616 = vmatprep.subr.mxu0 0.0
  %5617 = vmatpush2.msra.mxu0 0.0
  %5618 = vmatprep.subr.mxu0 0.0
  %5619 = vmatpush2.msra.mxu0 0.0
  %5620 = vmatprep.subr.mxu0 0.0
  %5621 = vmatpush2.msra.mxu0 0.0
  %5622 = vmatprep.subr.mxu0 0.0
  %5623 = vmatpush2.msra.mxu0 0.0
  %5624 = vmatprep.subr.mxu0 0.0
  %5625 = vmatpush2.msra.mxu0 0.0
  %5626 = vmatprep.subr.mxu0 0.0
  %5627 = vmatpush2.msra.mxu0 0.0
  %5628 = vmatprep.subr.mxu0 0.0
  %5629 = vmatpush2.msra.mxu0 0.0
  %5630 = vmatprep.subr.mxu0 0.0
  %5631 = vmatpush2.msra.mxu0 0.0
  %5632 = vmatprep.subr.mxu0 0.0
  %5633 = vmatpush2.msra.mxu0 0.0
  %5634 = vmatprep.mubr.f32.mxu0 0.0
  %5635 = vmatmul.mubr.f32.gmra.mxu0 %v5493
  %v5636 = vpop.f32.mrf.mxu0
  %v5637 = vadd.f32 %v896, %v5636
  %v5638 = vpop.f32.mrf.mxu0
  %5639 = vdwg.mxu0
  %v5640 = vmul.f32 %v5569, %v5637
  %v5641 = vadd.f32 %v5491, %v5640
  %v5642 = vtanh.pop %v5641
  %v5643 = vsub.f32 %v5489, %v5642
  %5645 = vrot.lane.b32.xlu0 %v5643, 32
  %v5646 = vpop.permute.xlu0 %5645
  %v5648 = vmul.f32 %v5569, %v5646
  %5650 = vrot.lane.b32.xlu0 %v5648, 96
  %v5651 = vpop.permute.xlu0 %5650
  %v5653 = vadd.f32 %v5642, %v5651
  %v5654 = vld [vmem:[#allocation2 + $0xe8] sm:$0xff]
  %v5655 = vld [vmem:[#allocation3 + $0xe8] sm:$0xff]
  %v5657 = vsel %vm765, %v5653, 0
  %5659 = vmatprep.subr.mxu0 0.0
  %5660 = vmatpush1.msra.mxu0 0.0
  %5661 = vmatprep.subr.mxu0 0.0
  %5662 = vmatpush1.msra.mxu0 0.0
  %5663 = vmatprep.subr.mxu0 0.0
  %5664 = vmatpush1.msra.mxu0 0.0
  %5665 = vmatprep.subr.mxu0 0.0
  %5666 = vmatpush1.msra.mxu0 0.0
  %5667 = vmatprep.subr.mxu0 0.0
  %5668 = vmatpush1.msra.mxu0 0.0
  %5669 = vmatprep.subr.mxu0 0.0
  %5670 = vmatpush1.msra.mxu0 0.0
  %5671 = vmatprep.subr.mxu0 0.0
  %5672 = vmatpush1.msra.mxu0 0.0
  %5673 = vmatprep.subr.mxu0 0.0
  %5674 = vmatpush1.msra.mxu0 0.0
  %5675 = vmatprep.subr.mxu0 0.0
  %5676 = vmatpush1.msra.mxu0 0.0
  %5677 = vmatprep.subr.mxu0 0.0
  %5678 = vmatpush1.msra.mxu0 0.0
  %5679 = vmatprep.subr.mxu0 0.0
  %5680 = vmatpush1.msra.mxu0 0.0
  %5681 = vmatprep.subr.mxu0 0.0
  %5682 = vmatpush1.msra.mxu0 0.0
  %5683 = vmatprep.subr.mxu0 0.0
  %5684 = vmatpush1.msra.mxu0 %v886
  %5685 = vmatprep.subr.mxu0 0.0
  %5686 = vmatpush1.msra.mxu0 %v885
  %5687 = vmatprep.subr.mxu0 0.0
  %5688 = vmatpush1.msra.mxu0 %v884
  %5689 = vmatprep.subr.mxu0 0.0
  %5690 = vmatpush1.msra.mxu0 %v883
  %5691 = vmatprep.subr.mxu0 0.0
  %5692 = vmatpush2.msra.mxu0 0.0
  %5693 = vmatprep.subr.mxu0 0.0
  %5694 = vmatpush2.msra.mxu0 0.0
  %5695 = vmatprep.subr.mxu0 0.0
  %5696 = vmatpush2.msra.mxu0 0.0
  %5697 = vmatprep.subr.mxu0 0.0
  %5698 = vmatpush2.msra.mxu0 0.0
  %5699 = vmatprep.subr.mxu0 0.0
  %5700 = vmatpush2.msra.mxu0 0.0
  %5701 = vmatprep.subr.mxu0 0.0
  %5702 = vmatpush2.msra.mxu0 0.0
  %5703 = vmatprep.subr.mxu0 0.0
  %5704 = vmatpush2.msra.mxu0 0.0
  %5705 = vmatprep.subr.mxu0 0.0
  %5706 = vmatpush2.msra.mxu0 0.0
  %5707 = vmatprep.subr.mxu0 0.0
  %5708 = vmatpush2.msra.mxu0 0.0
  %5709 = vmatprep.subr.mxu0 0.0
  %5710 = vmatpush2.msra.mxu0 0.0
  %5711 = vmatprep.subr.mxu0 0.0
  %5712 = vmatpush2.msra.mxu0 0.0
  %5713 = vmatprep.subr.mxu0 0.0
  %5714 = vmatpush2.msra.mxu0 0.0
  %5715 = vmatprep.subr.mxu0 0.0
  %5716 = vmatpush2.msra.mxu0 0.0
  %5717 = vmatprep.subr.mxu0 0.0
  %5718 = vmatpush2.msra.mxu0 0.0
  %5719 = vmatprep.subr.mxu0 0.0
  %5720 = vmatpush2.msra.mxu0 0.0
  %5721 = vmatprep.subr.mxu0 0.0
  %5722 = vmatpush2.msra.mxu0 0.0
  %5723 = vmatprep.mubr.f32.mxu0 0.0
  %5724 = vmatmul.mubr.f32.gmra.mxu0 %v5657
  %v5725 = vpop.f32.mrf.mxu0
  %v5726 = vadd.f32 0.0, %v5725
  %v5727 = vpop.f32.mrf.mxu0
  %5728 = vdwg.mxu0
  %v5729 = vadd.f32 %v5654, %v5726
  %v5730 = vmul.f32 %v5729, 0.5
  %v5731 = vtanh.pop %v5730
  %v5732 = vadd.f32 %v5731, 1.0
  %v5733 = vmul.f32 %v5732, 0.5
  %5734 = vmatprep.subr.mxu0 0.0
  %5735 = vmatpush1.msra.mxu0 0.0
  %5736 = vmatprep.subr.mxu0 0.0
  %5737 = vmatpush1.msra.mxu0 0.0
  %5738 = vmatprep.subr.mxu0 0.0
  %5739 = vmatpush1.msra.mxu0 0.0
  %5740 = vmatprep.subr.mxu0 0.0
  %5741 = vmatpush1.msra.mxu0 0.0
  %5742 = vmatprep.subr.mxu0 0.0
  %5743 = vmatpush1.msra.mxu0 0.0
  %5744 = vmatprep.subr.mxu0 0.0
  %5745 = vmatpush1.msra.mxu0 0.0
  %5746 = vmatprep.subr.mxu0 0.0
  %5747 = vmatpush1.msra.mxu0 0.0
  %5748 = vmatprep.subr.mxu0 0.0
  %5749 = vmatpush1.msra.mxu0 0.0
  %5750 = vmatprep.subr.mxu0 0.0
  %5751 = vmatpush1.msra.mxu0 0.0
  %5752 = vmatprep.subr.mxu0 0.0
  %5753 = vmatpush1.msra.mxu0 0.0
  %5754 = vmatprep.subr.mxu0 0.0
  %5755 = vmatpush1.msra.mxu0 0.0
  %5756 = vmatprep.subr.mxu0 0.0
  %5757 = vmatpush1.msra.mxu0 0.0
  %5758 = vmatprep.subr.mxu0 0.0
  %5759 = vmatpush1.msra.mxu0 %v890
  %5760 = vmatprep.subr.mxu0 0.0
  %5761 = vmatpush1.msra.mxu0 %v889
  %5762 = vmatprep.subr.mxu0 0.0
  %5763 = vmatpush1.msra.mxu0 %v888
  %5764 = vmatprep.subr.mxu0 0.0
  %5765 = vmatpush1.msra.mxu0 %v887
  %5766 = vmatprep.subr.mxu0 0.0
  %5767 = vmatpush2.msra.mxu0 0.0
  %5768 = vmatprep.subr.mxu0 0.0
  %5769 = vmatpush2.msra.mxu0 0.0
  %5770 = vmatprep.subr.mxu0 0.0
  %5771 = vmatpush2.msra.mxu0 0.0
  %5772 = vmatprep.subr.mxu0 0.0
  %5773 = vmatpush2.msra.mxu0 0.0
  %5774 = vmatprep.subr.mxu0 0.0
  %5775 = vmatpush2.msra.mxu0 0.0
  %5776 = vmatprep.subr.mxu0 0.0
  %5777 = vmatpush2.msra.mxu0 0.0
  %5778 = vmatprep.subr.mxu0 0.0
  %5779 = vmatpush2.msra.mxu0 0.0
  %5780 = vmatprep.subr.mxu0 0.0
  %5781 = vmatpush2.msra.mxu0 0.0
  %5782 = vmatprep.subr.mxu0 0.0
  %5783 = vmatpush2.msra.mxu0 0.0
  %5784 = vmatprep.subr.mxu0 0.0
  %5785 = vmatpush2.msra.mxu0 0.0
  %5786 = vmatprep.subr.mxu0 0.0
  %5787 = vmatpush2.msra.mxu0 0.0
  %5788 = vmatprep.subr.mxu0 0.0
  %5789 = vmatpush2.msra.mxu0 0.0
  %5790 = vmatprep.subr.mxu0 0.0
  %5791 = vmatpush2.msra.mxu0 0.0
  %5792 = vmatprep.subr.mxu0 0.0
  %5793 = vmatpush2.msra.mxu0 0.0
  %5794 = vmatprep.subr.mxu0 0.0
  %5795 = vmatpush2.msra.mxu0 0.0
  %5796 = vmatprep.subr.mxu0 0.0
  %5797 = vmatpush2.msra.mxu0 0.0
  %5798 = vmatprep.mubr.f32.mxu0 0.0
  %5799 = vmatmul.mubr.f32.gmra.mxu0 %v5657
  %v5800 = vpop.f32.mrf.mxu0
  %v5801 = vadd.f32 %v896, %v5800
  %v5802 = vpop.f32.mrf.mxu0
  %5803 = vdwg.mxu0
  %v5804 = vmul.f32 %v5733, %v5801
  %v5805 = vadd.f32 %v5655, %v5804
  %v5806 = vtanh.pop %v5805
  %v5807 = vsub.f32 %v5653, %v5806
  %5809 = vrot.lane.b32.xlu0 %v5807, 32
  %v5810 = vpop.permute.xlu0 %5809
  %v5812 = vmul.f32 %v5733, %v5810
  %5814 = vrot.lane.b32.xlu0 %v5812, 96
  %v5815 = vpop.permute.xlu0 %5814
  %v5817 = vadd.f32 %v5806, %v5815
  %v5818 = vld [vmem:[#allocation2 + $0xf0] sm:$0xff]
  %v5819 = vld [vmem:[#allocation3 + $0xf0] sm:$0xff]
  %v5821 = vsel %vm765, %v5817, 0
  %5823 = vmatprep.subr.mxu0 0.0
  %5824 = vmatpush1.msra.mxu0 0.0
  %5825 = vmatprep.subr.mxu0 0.0
  %5826 = vmatpush1.msra.mxu0 0.0
  %5827 = vmatprep.subr.mxu0 0.0
  %5828 = vmatpush1.msra.mxu0 0.0
  %5829 = vmatprep.subr.mxu0 0.0
  %5830 = vmatpush1.msra.mxu0 0.0
  %5831 = vmatprep.subr.mxu0 0.0
  %5832 = vmatpush1.msra.mxu0 0.0
  %5833 = vmatprep.subr.mxu0 0.0
  %5834 = vmatpush1.msra.mxu0 0.0
  %5835 = vmatprep.subr.mxu0 0.0
  %5836 = vmatpush1.msra.mxu0 0.0
  %5837 = vmatprep.subr.mxu0 0.0
  %5838 = vmatpush1.msra.mxu0 0.0
  %5839 = vmatprep.subr.mxu0 0.0
  %5840 = vmatpush1.msra.mxu0 0.0
  %5841 = vmatprep.subr.mxu0 0.0
  %5842 = vmatpush1.msra.mxu0 0.0
  %5843 = vmatprep.subr.mxu0 0.0
  %5844 = vmatpush1.msra.mxu0 0.0
  %5845 = vmatprep.subr.mxu0 0.0
  %5846 = vmatpush1.msra.mxu0 0.0
  %5847 = vmatprep.subr.mxu0 0.0
  %5848 = vmatpush1.msra.mxu0 %v886
  %5849 = vmatprep.subr.mxu0 0.0
  %5850 = vmatpush1.msra.mxu0 %v885
  %5851 = vmatprep.subr.mxu0 0.0
  %5852 = vmatpush1.msra.mxu0 %v884
  %5853 = vmatprep.subr.mxu0 0.0
  %5854 = vmatpush1.msra.mxu0 %v883
  %5855 = vmatprep.subr.mxu0 0.0
  %5856 = vmatpush2.msra.mxu0 0.0
  %5857 = vmatprep.subr.mxu0 0.0
  %5858 = vmatpush2.msra.mxu0 0.0
  %5859 = vmatprep.subr.mxu0 0.0
  %5860 = vmatpush2.msra.mxu0 0.0
  %5861 = vmatprep.subr.mxu0 0.0
  %5862 = vmatpush2.msra.mxu0 0.0
  %5863 = vmatprep.subr.mxu0 0.0
  %5864 = vmatpush2.msra.mxu0 0.0
  %5865 = vmatprep.subr.mxu0 0.0
  %5866 = vmatpush2.msra.mxu0 0.0
  %5867 = vmatprep.subr.mxu0 0.0
  %5868 = vmatpush2.msra.mxu0 0.0
  %5869 = vmatprep.subr.mxu0 0.0
  %5870 = vmatpush2.msra.mxu0 0.0
  %5871 = vmatprep.subr.mxu0 0.0
  %5872 = vmatpush2.msra.mxu0 0.0
  %5873 = vmatprep.subr.mxu0 0.0
  %5874 = vmatpush2.msra.mxu0 0.0
  %5875 = vmatprep.subr.mxu0 0.0
  %5876 = vmatpush2.msra.mxu0 0.0
  %5877 = vmatprep.subr.mxu0 0.0
  %5878 = vmatpush2.msra.mxu0 0.0
  %5879 = vmatprep.subr.mxu0 0.0
  %5880 = vmatpush2.msra.mxu0 0.0
  %5881 = vmatprep.subr.mxu0 0.0
  %5882 = vmatpush2.msra.mxu0 0.0
  %5883 = vmatprep.subr.mxu0 0.0
  %5884 = vmatpush2.msra.mxu0 0.0
  %5885 = vmatprep.subr.mxu0 0.0
  %5886 = vmatpush2.msra.mxu0 0.0
  %5887 = vmatprep.mubr.f32.mxu0 0.0
  %5888 = vmatmul.mubr.f32.gmra.mxu0 %v5821
  %v5889 = vpop.f32.mrf.mxu0
  %v5890 = vadd.f32 0.0, %v5889
  %v5891 = vpop.f32.mrf.mxu0
  %5892 = vdwg.mxu0
  %v5893 = vadd.f32 %v5818, %v5890
  %v5894 = vmul.f32 %v5893, 0.5
  %v5895 = vtanh.pop %v5894
  %v5896 = vadd.f32 %v5895, 1.0
  %v5897 = vmul.f32 %v5896, 0.5
  %5898 = vmatprep.subr.mxu0 0.0
  %5899 = vmatpush1.msra.mxu0 0.0
  %5900 = vmatprep.subr.mxu0 0.0
  %5901 = vmatpush1.msra.mxu0 0.0
  %5902 = vmatprep.subr.mxu0 0.0
  %5903 = vmatpush1.msra.mxu0 0.0
  %5904 = vmatprep.subr.mxu0 0.0
  %5905 = vmatpush1.msra.mxu0 0.0
  %5906 = vmatprep.subr.mxu0 0.0
  %5907 = vmatpush1.msra.mxu0 0.0
  %5908 = vmatprep.subr.mxu0 0.0
  %5909 = vmatpush1.msra.mxu0 0.0
  %5910 = vmatprep.subr.mxu0 0.0
  %5911 = vmatpush1.msra.mxu0 0.0
  %5912 = vmatprep.subr.mxu0 0.0
  %5913 = vmatpush1.msra.mxu0 0.0
  %5914 = vmatprep.subr.mxu0 0.0
  %5915 = vmatpush1.msra.mxu0 0.0
  %5916 = vmatprep.subr.mxu0 0.0
  %5917 = vmatpush1.msra.mxu0 0.0
  %5918 = vmatprep.subr.mxu0 0.0
  %5919 = vmatpush1.msra.mxu0 0.0
  %5920 = vmatprep.subr.mxu0 0.0
  %5921 = vmatpush1.msra.mxu0 0.0
  %5922 = vmatprep.subr.mxu0 0.0
  %5923 = vmatpush1.msra.mxu0 %v890
  %5924 = vmatprep.subr.mxu0 0.0
  %5925 = vmatpush1.msra.mxu0 %v889
  %5926 = vmatprep.subr.mxu0 0.0
  %5927 = vmatpush1.msra.mxu0 %v888
  %5928 = vmatprep.subr.mxu0 0.0
  %5929 = vmatpush1.msra.mxu0 %v887
  %5930 = vmatprep.subr.mxu0 0.0
  %5931 = vmatpush2.msra.mxu0 0.0
  %5932 = vmatprep.subr.mxu0 0.0
  %5933 = vmatpush2.msra.mxu0 0.0
  %5934 = vmatprep.subr.mxu0 0.0
  %5935 = vmatpush2.msra.mxu0 0.0
  %5936 = vmatprep.subr.mxu0 0.0
  %5937 = vmatpush2.msra.mxu0 0.0
  %5938 = vmatprep.subr.mxu0 0.0
  %5939 = vmatpush2.msra.mxu0 0.0
  %5940 = vmatprep.subr.mxu0 0.0
  %5941 = vmatpush2.msra.mxu0 0.0
  %5942 = vmatprep.subr.mxu0 0.0
  %5943 = vmatpush2.msra.mxu0 0.0
  %5944 = vmatprep.subr.mxu0 0.0
  %5945 = vmatpush2.msra.mxu0 0.0
  %5946 = vmatprep.subr.mxu0 0.0
  %5947 = vmatpush2.msra.mxu0 0.0
  %5948 = vmatprep.subr.mxu0 0.0
  %5949 = vmatpush2.msra.mxu0 0.0
  %5950 = vmatprep.subr.mxu0 0.0
  %5951 = vmatpush2.msra.mxu0 0.0
  %5952 = vmatprep.subr.mxu0 0.0
  %5953 = vmatpush2.msra.mxu0 0.0
  %5954 = vmatprep.subr.mxu0 0.0
  %5955 = vmatpush2.msra.mxu0 0.0
  %5956 = vmatprep.subr.mxu0 0.0
  %5957 = vmatpush2.msra.mxu0 0.0
  %5958 = vmatprep.subr.mxu0 0.0
  %5959 = vmatpush2.msra.mxu0 0.0
  %5960 = vmatprep.subr.mxu0 0.0
  %5961 = vmatpush2.msra.mxu0 0.0
  %5962 = vmatprep.mubr.f32.mxu0 0.0
  %5963 = vmatmul.mubr.f32.gmra.mxu0 %v5821
  %v5964 = vpop.f32.mrf.mxu0
  %v5965 = vadd.f32 %v896, %v5964
  %v5966 = vpop.f32.mrf.mxu0
  %5967 = vdwg.mxu0
  %v5968 = vmul.f32 %v5897, %v5965
  %v5969 = vadd.f32 %v5819, %v5968
  %v5970 = vtanh.pop %v5969
  %v5971 = vsub.f32 %v5817, %v5970
  %5973 = vrot.lane.b32.xlu0 %v5971, 32
  %v5974 = vpop.permute.xlu0 %5973
  %v5976 = vmul.f32 %v5897, %v5974
  %5978 = vrot.lane.b32.xlu0 %v5976, 96
  %v5979 = vpop.permute.xlu0 %5978
  %v5981 = vadd.f32 %v5970, %v5979
  %v5982 = vld [vmem:[#allocation2 + $0xf8] sm:$0xff]
  %v5983 = vld [vmem:[#allocation3 + $0xf8] sm:$0xff]
  %v5985 = vsel %vm765, %v5981, 0
  %5987 = vmatprep.subr.mxu0 0.0
  %5988 = vmatpush1.msra.mxu0 0.0
  %5989 = vmatprep.subr.mxu0 0.0
  %5990 = vmatpush1.msra.mxu0 0.0
  %5991 = vmatprep.subr.mxu0 0.0
  %5992 = vmatpush1.msra.mxu0 0.0
  %5993 = vmatprep.subr.mxu0 0.0
  %5994 = vmatpush1.msra.mxu0 0.0
  %5995 = vmatprep.subr.mxu0 0.0
  %5996 = vmatpush1.msra.mxu0 0.0
  %5997 = vmatprep.subr.mxu0 0.0
  %5998 = vmatpush1.msra.mxu0 0.0
  %5999 = vmatprep.subr.mxu0 0.0
  %6000 = vmatpush1.msra.mxu0 0.0
  %6001 = vmatprep.subr.mxu0 0.0
  %6002 = vmatpush1.msra.mxu0 0.0
  %6003 = vmatprep.subr.mxu0 0.0
  %6004 = vmatpush1.msra.mxu0 0.0
  %6005 = vmatprep.subr.mxu0 0.0
  %6006 = vmatpush1.msra.mxu0 0.0
  %6007 = vmatprep.subr.mxu0 0.0
  %6008 = vmatpush1.msra.mxu0 0.0
  %6009 = vmatprep.subr.mxu0 0.0
  %6010 = vmatpush1.msra.mxu0 0.0
  %6011 = vmatprep.subr.mxu0 0.0
  %6012 = vmatpush1.msra.mxu0 %v886
  %6013 = vmatprep.subr.mxu0 0.0
  %6014 = vmatpush1.msra.mxu0 %v885
  %6015 = vmatprep.subr.mxu0 0.0
  %6016 = vmatpush1.msra.mxu0 %v884
  %6017 = vmatprep.subr.mxu0 0.0
  %6018 = vmatpush1.msra.mxu0 %v883
  %6019 = vmatprep.subr.mxu0 0.0
  %6020 = vmatpush2.msra.mxu0 0.0
  %6021 = vmatprep.subr.mxu0 0.0
  %6022 = vmatpush2.msra.mxu0 0.0
  %6023 = vmatprep.subr.mxu0 0.0
  %6024 = vmatpush2.msra.mxu0 0.0
  %6025 = vmatprep.subr.mxu0 0.0
  %6026 = vmatpush2.msra.mxu0 0.0
  %6027 = vmatprep.subr.mxu0 0.0
  %6028 = vmatpush2.msra.mxu0 0.0
  %6029 = vmatprep.subr.mxu0 0.0
  %6030 = vmatpush2.msra.mxu0 0.0
  %6031 = vmatprep.subr.mxu0 0.0
  %6032 = vmatpush2.msra.mxu0 0.0
  %6033 = vmatprep.subr.mxu0 0.0
  %6034 = vmatpush2.msra.mxu0 0.0
  %6035 = vmatprep.subr.mxu0 0.0
  %6036 = vmatpush2.msra.mxu0 0.0
  %6037 = vmatprep.subr.mxu0 0.0
  %6038 = vmatpush2.msra.mxu0 0.0
  %6039 = vmatprep.subr.mxu0 0.0
  %6040 = vmatpush2.msra.mxu0 0.0
  %6041 = vmatprep.subr.mxu0 0.0
  %6042 = vmatpush2.msra.mxu0 0.0
  %6043 = vmatprep.subr.mxu0 0.0
  %6044 = vmatpush2.msra.mxu0 0.0
  %6045 = vmatprep.subr.mxu0 0.0
  %6046 = vmatpush2.msra.mxu0 0.0
  %6047 = vmatprep.subr.mxu0 0.0
  %6048 = vmatpush2.msra.mxu0 0.0
  %6049 = vmatprep.subr.mxu0 0.0
  %6050 = vmatpush2.msra.mxu0 0.0
  %6051 = vmatprep.mubr.f32.mxu0 0.0
  %6052 = vmatmul.mubr.f32.gmra.mxu0 %v5985
  %v6053 = vpop.f32.mrf.mxu0
  %v6054 = vadd.f32 0.0, %v6053
  %v6055 = vpop.f32.mrf.mxu0
  %6056 = vdwg.mxu0
  %v6057 = vadd.f32 %v5982, %v6054
  %v6058 = vmul.f32 %v6057, 0.5
  %v6059 = vtanh.pop %v6058
  %v6060 = vadd.f32 %v6059, 1.0
  %v6061 = vmul.f32 %v6060, 0.5
  %6062 = vmatprep.subr.mxu0 0.0
  %6063 = vmatpush1.msra.mxu0 0.0
  %6064 = vmatprep.subr.mxu0 0.0
  %6065 = vmatpush1.msra.mxu0 0.0
  %6066 = vmatprep.subr.mxu0 0.0
  %6067 = vmatpush1.msra.mxu0 0.0
  %6068 = vmatprep.subr.mxu0 0.0
  %6069 = vmatpush1.msra.mxu0 0.0
  %6070 = vmatprep.subr.mxu0 0.0
  %6071 = vmatpush1.msra.mxu0 0.0
  %6072 = vmatprep.subr.mxu0 0.0
  %6073 = vmatpush1.msra.mxu0 0.0
  %6074 = vmatprep.subr.mxu0 0.0
  %6075 = vmatpush1.msra.mxu0 0.0
  %6076 = vmatprep.subr.mxu0 0.0
  %6077 = vmatpush1.msra.mxu0 0.0
  %6078 = vmatprep.subr.mxu0 0.0
  %6079 = vmatpush1.msra.mxu0 0.0
  %6080 = vmatprep.subr.mxu0 0.0
  %6081 = vmatpush1.msra.mxu0 0.0
  %6082 = vmatprep.subr.mxu0 0.0
  %6083 = vmatpush1.msra.mxu0 0.0
  %6084 = vmatprep.subr.mxu0 0.0
  %6085 = vmatpush1.msra.mxu0 0.0
  %6086 = vmatprep.subr.mxu0 0.0
  %6087 = vmatpush1.msra.mxu0 %v890
  %6088 = vmatprep.subr.mxu0 0.0
  %6089 = vmatpush1.msra.mxu0 %v889
  %6090 = vmatprep.subr.mxu0 0.0
  %6091 = vmatpush1.msra.mxu0 %v888
  %6092 = vmatprep.subr.mxu0 0.0
  %6093 = vmatpush1.msra.mxu0 %v887
  %6094 = vmatprep.subr.mxu0 0.0
  %6095 = vmatpush2.msra.mxu0 0.0
  %6096 = vmatprep.subr.mxu0 0.0
  %6097 = vmatpush2.msra.mxu0 0.0
  %6098 = vmatprep.subr.mxu0 0.0
  %6099 = vmatpush2.msra.mxu0 0.0
  %6100 = vmatprep.subr.mxu0 0.0
  %6101 = vmatpush2.msra.mxu0 0.0
  %6102 = vmatprep.subr.mxu0 0.0
  %6103 = vmatpush2.msra.mxu0 0.0
  %6104 = vmatprep.subr.mxu0 0.0
  %6105 = vmatpush2.msra.mxu0 0.0
  %6106 = vmatprep.subr.mxu0 0.0
  %6107 = vmatpush2.msra.mxu0 0.0
  %6108 = vmatprep.subr.mxu0 0.0
  %6109 = vmatpush2.msra.mxu0 0.0
  %6110 = vmatprep.subr.mxu0 0.0
  %6111 = vmatpush2.msra.mxu0 0.0
  %6112 = vmatprep.subr.mxu0 0.0
  %6113 = vmatpush2.msra.mxu0 0.0
  %6114 = vmatprep.subr.mxu0 0.0
  %6115 = vmatpush2.msra.mxu0 0.0
  %6116 = vmatprep.subr.mxu0 0.0
  %6117 = vmatpush2.msra.mxu0 0.0
  %6118 = vmatprep.subr.mxu0 0.0
  %6119 = vmatpush2.msra.mxu0 0.0
  %6120 = vmatprep.subr.mxu0 0.0
  %6121 = vmatpush2.msra.mxu0 0.0
  %6122 = vmatprep.subr.mxu0 0.0
  %6123 = vmatpush2.msra.mxu0 0.0
  %6124 = vmatprep.subr.mxu0 0.0
  %6125 = vmatpush2.msra.mxu0 0.0
  %6126 = vmatprep.mubr.f32.mxu0 0.0
  %6127 = vmatmul.mubr.f32.gmra.mxu0 %v5985
  %v6128 = vpop.f32.mrf.mxu0
  %v6129 = vadd.f32 %v896, %v6128
  %v6130 = vpop.f32.mrf.mxu0
  %6131 = vdwg.mxu0
  %v6132 = vmul.f32 %v6061, %v6129
  %v6133 = vadd.f32 %v5983, %v6132
  %v6134 = vtanh.pop %v6133
  %v6135 = vsub.f32 %v5981, %v6134
  %6137 = vrot.lane.b32.xlu0 %v6135, 32
  %v6138 = vpop.permute.xlu0 %6137
  %v6140 = vmul.f32 %v6061, %v6138
  %6142 = vrot.lane.b32.xlu0 %v6140, 96
  %v6143 = vpop.permute.xlu0 %6142
  %v6145 = vadd.f32 %v6134, %v6143
  %v6146 = vld [vmem:[#allocation2 + $0x100] sm:$0xff]
  %v6147 = vld [vmem:[#allocation3 + $0x100] sm:$0xff]
  %v6149 = vsel %vm765, %v6145, 0
  %6151 = vmatprep.subr.mxu0 0.0
  %6152 = vmatpush1.msra.mxu0 0.0
  %6153 = vmatprep.subr.mxu0 0.0
  %6154 = vmatpush1.msra.mxu0 0.0
  %6155 = vmatprep.subr.mxu0 0.0
  %6156 = vmatpush1.msra.mxu0 0.0
  %6157 = vmatprep.subr.mxu0 0.0
  %6158 = vmatpush1.msra.mxu0 0.0
  %6159 = vmatprep.subr.mxu0 0.0
  %6160 = vmatpush1.msra.mxu0 0.0
  %6161 = vmatprep.subr.mxu0 0.0
  %6162 = vmatpush1.msra.mxu0 0.0
  %6163 = vmatprep.subr.mxu0 0.0
  %6164 = vmatpush1.msra.mxu0 0.0
  %6165 = vmatprep.subr.mxu0 0.0
  %6166 = vmatpush1.msra.mxu0 0.0
  %6167 = vmatprep.subr.mxu0 0.0
  %6168 = vmatpush1.msra.mxu0 0.0
  %6169 = vmatprep.subr.mxu0 0.0
  %6170 = vmatpush1.msra.mxu0 0.0
  %6171 = vmatprep.subr.mxu0 0.0
  %6172 = vmatpush1.msra.mxu0 0.0
  %6173 = vmatprep.subr.mxu0 0.0
  %6174 = vmatpush1.msra.mxu0 0.0
  %6175 = vmatprep.subr.mxu0 0.0
  %6176 = vmatpush1.msra.mxu0 %v886
  %6177 = vmatprep.subr.mxu0 0.0
  %6178 = vmatpush1.msra.mxu0 %v885
  %6179 = vmatprep.subr.mxu0 0.0
  %6180 = vmatpush1.msra.mxu0 %v884
  %6181 = vmatprep.subr.mxu0 0.0
  %6182 = vmatpush1.msra.mxu0 %v883
  %6183 = vmatprep.subr.mxu0 0.0
  %6184 = vmatpush2.msra.mxu0 0.0
  %6185 = vmatprep.subr.mxu0 0.0
  %6186 = vmatpush2.msra.mxu0 0.0
  %6187 = vmatprep.subr.mxu0 0.0
  %6188 = vmatpush2.msra.mxu0 0.0
  %6189 = vmatprep.subr.mxu0 0.0
  %6190 = vmatpush2.msra.mxu0 0.0
  %6191 = vmatprep.subr.mxu0 0.0
  %6192 = vmatpush2.msra.mxu0 0.0
  %6193 = vmatprep.subr.mxu0 0.0
  %6194 = vmatpush2.msra.mxu0 0.0
  %6195 = vmatprep.subr.mxu0 0.0
  %6196 = vmatpush2.msra.mxu0 0.0
  %6197 = vmatprep.subr.mxu0 0.0
  %6198 = vmatpush2.msra.mxu0 0.0
  %6199 = vmatprep.subr.mxu0 0.0
  %6200 = vmatpush2.msra.mxu0 0.0
  %6201 = vmatprep.subr.mxu0 0.0
  %6202 = vmatpush2.msra.mxu0 0.0
  %6203 = vmatprep.subr.mxu0 0.0
  %6204 = vmatpush2.msra.mxu0 0.0
  %6205 = vmatprep.subr.mxu0 0.0
  %6206 = vmatpush2.msra.mxu0 0.0
  %6207 = vmatprep.subr.mxu0 0.0
  %6208 = vmatpush2.msra.mxu0 0.0
  %6209 = vmatprep.subr.mxu0 0.0
  %6210 = vmatpush2.msra.mxu0 0.0
  %6211 = vmatprep.subr.mxu0 0.0
  %6212 = vmatpush2.msra.mxu0 0.0
  %6213 = vmatprep.subr.mxu0 0.0
  %6214 = vmatpush2.msra.mxu0 0.0
  %6215 = vmatprep.mubr.f32.mxu0 0.0
  %6216 = vmatmul.mubr.f32.gmra.mxu0 %v6149
  %v6217 = vpop.f32.mrf.mxu0
  %v6218 = vadd.f32 0.0, %v6217
  %v6219 = vpop.f32.mrf.mxu0
  %6220 = vdwg.mxu0
  %v6221 = vadd.f32 %v6146, %v6218
  %v6222 = vmul.f32 %v6221, 0.5
  %v6223 = vtanh.pop %v6222
  %v6224 = vadd.f32 %v6223, 1.0
  %v6225 = vmul.f32 %v6224, 0.5
  %6226 = vmatprep.subr.mxu0 0.0
  %6227 = vmatpush1.msra.mxu0 0.0
  %6228 = vmatprep.subr.mxu0 0.0
  %6229 = vmatpush1.msra.mxu0 0.0
  %6230 = vmatprep.subr.mxu0 0.0
  %6231 = vmatpush1.msra.mxu0 0.0
  %6232 = vmatprep.subr.mxu0 0.0
  %6233 = vmatpush1.msra.mxu0 0.0
  %6234 = vmatprep.subr.mxu0 0.0
  %6235 = vmatpush1.msra.mxu0 0.0
  %6236 = vmatprep.subr.mxu0 0.0
  %6237 = vmatpush1.msra.mxu0 0.0
  %6238 = vmatprep.subr.mxu0 0.0
  %6239 = vmatpush1.msra.mxu0 0.0
  %6240 = vmatprep.subr.mxu0 0.0
  %6241 = vmatpush1.msra.mxu0 0.0
  %6242 = vmatprep.subr.mxu0 0.0
  %6243 = vmatpush1.msra.mxu0 0.0
  %6244 = vmatprep.subr.mxu0 0.0
  %6245 = vmatpush1.msra.mxu0 0.0
  %6246 = vmatprep.subr.mxu0 0.0
  %6247 = vmatpush1.msra.mxu0 0.0
  %6248 = vmatprep.subr.mxu0 0.0
  %6249 = vmatpush1.msra.mxu0 0.0
  %6250 = vmatprep.subr.mxu0 0.0
  %6251 = vmatpush1.msra.mxu0 %v890
  %6252 = vmatprep.subr.mxu0 0.0
  %6253 = vmatpush1.msra.mxu0 %v889
  %6254 = vmatprep.subr.mxu0 0.0
  %6255 = vmatpush1.msra.mxu0 %v888
  %6256 = vmatprep.subr.mxu0 0.0
  %6257 = vmatpush1.msra.mxu0 %v887
  %6258 = vmatprep.subr.mxu0 0.0
  %6259 = vmatpush2.msra.mxu0 0.0
  %6260 = vmatprep.subr.mxu0 0.0
  %6261 = vmatpush2.msra.mxu0 0.0
  %6262 = vmatprep.subr.mxu0 0.0
  %6263 = vmatpush2.msra.mxu0 0.0
  %6264 = vmatprep.subr.mxu0 0.0
  %6265 = vmatpush2.msra.mxu0 0.0
  %6266 = vmatprep.subr.mxu0 0.0
  %6267 = vmatpush2.msra.mxu0 0.0
  %6268 = vmatprep.subr.mxu0 0.0
  %6269 = vmatpush2.msra.mxu0 0.0
  %6270 = vmatprep.subr.mxu0 0.0
  %6271 = vmatpush2.msra.mxu0 0.0
  %6272 = vmatprep.subr.mxu0 0.0
  %6273 = vmatpush2.msra.mxu0 0.0
  %6274 = vmatprep.subr.mxu0 0.0
  %6275 = vmatpush2.msra.mxu0 0.0
  %6276 = vmatprep.subr.mxu0 0.0
  %6277 = vmatpush2.msra.mxu0 0.0
  %6278 = vmatprep.subr.mxu0 0.0
  %6279 = vmatpush2.msra.mxu0 0.0
  %6280 = vmatprep.subr.mxu0 0.0
  %6281 = vmatpush2.msra.mxu0 0.0
  %6282 = vmatprep.subr.mxu0 0.0
  %6283 = vmatpush2.msra.mxu0 0.0
  %6284 = vmatprep.subr.mxu0 0.0
  %6285 = vmatpush2.msra.mxu0 0.0
  %6286 = vmatprep.subr.mxu0 0.0
  %6287 = vmatpush2.msra.mxu0 0.0
  %6288 = vmatprep.subr.mxu0 0.0
  %6289 = vmatpush2.msra.mxu0 0.0
  %6290 = vmatprep.mubr.f32.mxu0 0.0
  %6291 = vmatmul.mubr.f32.gmra.mxu0 %v6149
  %v6292 = vpop.f32.mrf.mxu0
  %v6293 = vadd.f32 %v896, %v6292
  %v6294 = vpop.f32.mrf.mxu0
  %6295 = vdwg.mxu0
  %v6296 = vmul.f32 %v6225, %v6293
  %v6297 = vadd.f32 %v6147, %v6296
  %v6298 = vtanh.pop %v6297
  %v6299 = vsub.f32 %v6145, %v6298
  %6301 = vrot.lane.b32.xlu0 %v6299, 32
  %v6302 = vpop.permute.xlu0 %6301
  %v6304 = vmul.f32 %v6225, %v6302
  %6306 = vrot.lane.b32.xlu0 %v6304, 96
  %v6307 = vpop.permute.xlu0 %6306
  %v6309 = vadd.f32 %v6298, %v6307
  %v6310 = vld [vmem:[#allocation2 + $0x108] sm:$0xff]
  %v6311 = vld [vmem:[#allocation3 + $0x108] sm:$0xff]
  %v6313 = vsel %vm765, %v6309, 0
  %6315 = vmatprep.subr.mxu0 0.0
  %6316 = vmatpush1.msra.mxu0 0.0
  %6317 = vmatprep.subr.mxu0 0.0
  %6318 = vmatpush1.msra.mxu0 0.0
  %6319 = vmatprep.subr.mxu0 0.0
  %6320 = vmatpush1.msra.mxu0 0.0
  %6321 = vmatprep.subr.mxu0 0.0
  %6322 = vmatpush1.msra.mxu0 0.0
  %6323 = vmatprep.subr.mxu0 0.0
  %6324 = vmatpush1.msra.mxu0 0.0
  %6325 = vmatprep.subr.mxu0 0.0
  %6326 = vmatpush1.msra.mxu0 0.0
  %6327 = vmatprep.subr.mxu0 0.0
  %6328 = vmatpush1.msra.mxu0 0.0
  %6329 = vmatprep.subr.mxu0 0.0
  %6330 = vmatpush1.msra.mxu0 0.0
  %6331 = vmatprep.subr.mxu0 0.0
  %6332 = vmatpush1.msra.mxu0 0.0
  %6333 = vmatprep.subr.mxu0 0.0
  %6334 = vmatpush1.msra.mxu0 0.0
  %6335 = vmatprep.subr.mxu0 0.0
  %6336 = vmatpush1.msra.mxu0 0.0
  %6337 = vmatprep.subr.mxu0 0.0
  %6338 = vmatpush1.msra.mxu0 0.0
  %6339 = vmatprep.subr.mxu0 0.0
  %6340 = vmatpush1.msra.mxu0 %v886
  %6341 = vmatprep.subr.mxu0 0.0
  %6342 = vmatpush1.msra.mxu0 %v885
  %6343 = vmatprep.subr.mxu0 0.0
  %6344 = vmatpush1.msra.mxu0 %v884
  %6345 = vmatprep.subr.mxu0 0.0
  %6346 = vmatpush1.msra.mxu0 %v883
  %6347 = vmatprep.subr.mxu0 0.0
  %6348 = vmatpush2.msra.mxu0 0.0
  %6349 = vmatprep.subr.mxu0 0.0
  %6350 = vmatpush2.msra.mxu0 0.0
  %6351 = vmatprep.subr.mxu0 0.0
  %6352 = vmatpush2.msra.mxu0 0.0
  %6353 = vmatprep.subr.mxu0 0.0
  %6354 = vmatpush2.msra.mxu0 0.0
  %6355 = vmatprep.subr.mxu0 0.0
  %6356 = vmatpush2.msra.mxu0 0.0
  %6357 = vmatprep.subr.mxu0 0.0
  %6358 = vmatpush2.msra.mxu0 0.0
  %6359 = vmatprep.subr.mxu0 0.0
  %6360 = vmatpush2.msra.mxu0 0.0
  %6361 = vmatprep.subr.mxu0 0.0
  %6362 = vmatpush2.msra.mxu0 0.0
  %6363 = vmatprep.subr.mxu0 0.0
  %6364 = vmatpush2.msra.mxu0 0.0
  %6365 = vmatprep.subr.mxu0 0.0
  %6366 = vmatpush2.msra.mxu0 0.0
  %6367 = vmatprep.subr.mxu0 0.0
  %6368 = vmatpush2.msra.mxu0 0.0
  %6369 = vmatprep.subr.mxu0 0.0
  %6370 = vmatpush2.msra.mxu0 0.0
  %6371 = vmatprep.subr.mxu0 0.0
  %6372 = vmatpush2.msra.mxu0 0.0
  %6373 = vmatprep.subr.mxu0 0.0
  %6374 = vmatpush2.msra.mxu0 0.0
  %6375 = vmatprep.subr.mxu0 0.0
  %6376 = vmatpush2.msra.mxu0 0.0
  %6377 = vmatprep.subr.mxu0 0.0
  %6378 = vmatpush2.msra.mxu0 0.0
  %6379 = vmatprep.mubr.f32.mxu0 0.0
  %6380 = vmatmul.mubr.f32.gmra.mxu0 %v6313
  %v6381 = vpop.f32.mrf.mxu0
  %v6382 = vadd.f32 0.0, %v6381
  %v6383 = vpop.f32.mrf.mxu0
  %6384 = vdwg.mxu0
  %v6385 = vadd.f32 %v6310, %v6382
  %v6386 = vmul.f32 %v6385, 0.5
  %v6387 = vtanh.pop %v6386
  %v6388 = vadd.f32 %v6387, 1.0
  %v6389 = vmul.f32 %v6388, 0.5
  %6390 = vmatprep.subr.mxu0 0.0
  %6391 = vmatpush1.msra.mxu0 0.0
  %6392 = vmatprep.subr.mxu0 0.0
  %6393 = vmatpush1.msra.mxu0 0.0
  %6394 = vmatprep.subr.mxu0 0.0
  %6395 = vmatpush1.msra.mxu0 0.0
  %6396 = vmatprep.subr.mxu0 0.0
  %6397 = vmatpush1.msra.mxu0 0.0
  %6398 = vmatprep.subr.mxu0 0.0
  %6399 = vmatpush1.msra.mxu0 0.0
  %6400 = vmatprep.subr.mxu0 0.0
  %6401 = vmatpush1.msra.mxu0 0.0
  %6402 = vmatprep.subr.mxu0 0.0
  %6403 = vmatpush1.msra.mxu0 0.0
  %6404 = vmatprep.subr.mxu0 0.0
  %6405 = vmatpush1.msra.mxu0 0.0
  %6406 = vmatprep.subr.mxu0 0.0
  %6407 = vmatpush1.msra.mxu0 0.0
  %6408 = vmatprep.subr.mxu0 0.0
  %6409 = vmatpush1.msra.mxu0 0.0
  %6410 = vmatprep.subr.mxu0 0.0
  %6411 = vmatpush1.msra.mxu0 0.0
  %6412 = vmatprep.subr.mxu0 0.0
  %6413 = vmatpush1.msra.mxu0 0.0
  %6414 = vmatprep.subr.mxu0 0.0
  %6415 = vmatpush1.msra.mxu0 %v890
  %6416 = vmatprep.subr.mxu0 0.0
  %6417 = vmatpush1.msra.mxu0 %v889
  %6418 = vmatprep.subr.mxu0 0.0
  %6419 = vmatpush1.msra.mxu0 %v888
  %6420 = vmatprep.subr.mxu0 0.0
  %6421 = vmatpush1.msra.mxu0 %v887
  %6422 = vmatprep.subr.mxu0 0.0
  %6423 = vmatpush2.msra.mxu0 0.0
  %6424 = vmatprep.subr.mxu0 0.0
  %6425 = vmatpush2.msra.mxu0 0.0
  %6426 = vmatprep.subr.mxu0 0.0
  %6427 = vmatpush2.msra.mxu0 0.0
  %6428 = vmatprep.subr.mxu0 0.0
  %6429 = vmatpush2.msra.mxu0 0.0
  %6430 = vmatprep.subr.mxu0 0.0
  %6431 = vmatpush2.msra.mxu0 0.0
  %6432 = vmatprep.subr.mxu0 0.0
  %6433 = vmatpush2.msra.mxu0 0.0
  %6434 = vmatprep.subr.mxu0 0.0
  %6435 = vmatpush2.msra.mxu0 0.0
  %6436 = vmatprep.subr.mxu0 0.0
  %6437 = vmatpush2.msra.mxu0 0.0
  %6438 = vmatprep.subr.mxu0 0.0
  %6439 = vmatpush2.msra.mxu0 0.0
  %6440 = vmatprep.subr.mxu0 0.0
  %6441 = vmatpush2.msra.mxu0 0.0
  %6442 = vmatprep.subr.mxu0 0.0
  %6443 = vmatpush2.msra.mxu0 0.0
  %6444 = vmatprep.subr.mxu0 0.0
  %6445 = vmatpush2.msra.mxu0 0.0
  %6446 = vmatprep.subr.mxu0 0.0
  %6447 = vmatpush2.msra.mxu0 0.0
  %6448 = vmatprep.subr.mxu0 0.0
  %6449 = vmatpush2.msra.mxu0 0.0
  %6450 = vmatprep.subr.mxu0 0.0
  %6451 = vmatpush2.msra.mxu0 0.0
  %6452 = vmatprep.subr.mxu0 0.0
  %6453 = vmatpush2.msra.mxu0 0.0
  %6454 = vmatprep.mubr.f32.mxu0 0.0
  %6455 = vmatmul.mubr.f32.gmra.mxu0 %v6313
  %v6456 = vpop.f32.mrf.mxu0
  %v6457 = vadd.f32 %v896, %v6456
  %v6458 = vpop.f32.mrf.mxu0
  %6459 = vdwg.mxu0
  %v6460 = vmul.f32 %v6389, %v6457
  %v6461 = vadd.f32 %v6311, %v6460
  %v6462 = vtanh.pop %v6461
  %v6463 = vsub.f32 %v6309, %v6462
  %6465 = vrot.lane.b32.xlu0 %v6463, 32
  %v6466 = vpop.permute.xlu0 %6465
  %v6468 = vmul.f32 %v6389, %v6466
  %6470 = vrot.lane.b32.xlu0 %v6468, 96
  %v6471 = vpop.permute.xlu0 %6470
  %v6473 = vadd.f32 %v6462, %v6471
  %v6474 = vld [vmem:[#allocation2 + $0x110] sm:$0xff]
  %v6475 = vld [vmem:[#allocation3 + $0x110] sm:$0xff]
  %v6477 = vsel %vm765, %v6473, 0
  %6479 = vmatprep.subr.mxu0 0.0
  %6480 = vmatpush1.msra.mxu0 0.0
  %6481 = vmatprep.subr.mxu0 0.0
  %6482 = vmatpush1.msra.mxu0 0.0
  %6483 = vmatprep.subr.mxu0 0.0
  %6484 = vmatpush1.msra.mxu0 0.0
  %6485 = vmatprep.subr.mxu0 0.0
  %6486 = vmatpush1.msra.mxu0 0.0
  %6487 = vmatprep.subr.mxu0 0.0
  %6488 = vmatpush1.msra.mxu0 0.0
  %6489 = vmatprep.subr.mxu0 0.0
  %6490 = vmatpush1.msra.mxu0 0.0
  %6491 = vmatprep.subr.mxu0 0.0
  %6492 = vmatpush1.msra.mxu0 0.0
  %6493 = vmatprep.subr.mxu0 0.0
  %6494 = vmatpush1.msra.mxu0 0.0
  %6495 = vmatprep.subr.mxu0 0.0
  %6496 = vmatpush1.msra.mxu0 0.0
  %6497 = vmatprep.subr.mxu0 0.0
  %6498 = vmatpush1.msra.mxu0 0.0
  %6499 = vmatprep.subr.mxu0 0.0
  %6500 = vmatpush1.msra.mxu0 0.0
  %6501 = vmatprep.subr.mxu0 0.0
  %6502 = vmatpush1.msra.mxu0 0.0
  %6503 = vmatprep.subr.mxu0 0.0
  %6504 = vmatpush1.msra.mxu0 %v886
  %6505 = vmatprep.subr.mxu0 0.0
  %6506 = vmatpush1.msra.mxu0 %v885
  %6507 = vmatprep.subr.mxu0 0.0
  %6508 = vmatpush1.msra.mxu0 %v884
  %6509 = vmatprep.subr.mxu0 0.0
  %6510 = vmatpush1.msra.mxu0 %v883
  %6511 = vmatprep.subr.mxu0 0.0
  %6512 = vmatpush2.msra.mxu0 0.0
  %6513 = vmatprep.subr.mxu0 0.0
  %6514 = vmatpush2.msra.mxu0 0.0
  %6515 = vmatprep.subr.mxu0 0.0
  %6516 = vmatpush2.msra.mxu0 0.0
  %6517 = vmatprep.subr.mxu0 0.0
  %6518 = vmatpush2.msra.mxu0 0.0
  %6519 = vmatprep.subr.mxu0 0.0
  %6520 = vmatpush2.msra.mxu0 0.0
  %6521 = vmatprep.subr.mxu0 0.0
  %6522 = vmatpush2.msra.mxu0 0.0
  %6523 = vmatprep.subr.mxu0 0.0
  %6524 = vmatpush2.msra.mxu0 0.0
  %6525 = vmatprep.subr.mxu0 0.0
  %6526 = vmatpush2.msra.mxu0 0.0
  %6527 = vmatprep.subr.mxu0 0.0
  %6528 = vmatpush2.msra.mxu0 0.0
  %6529 = vmatprep.subr.mxu0 0.0
  %6530 = vmatpush2.msra.mxu0 0.0
  %6531 = vmatprep.subr.mxu0 0.0
  %6532 = vmatpush2.msra.mxu0 0.0
  %6533 = vmatprep.subr.mxu0 0.0
  %6534 = vmatpush2.msra.mxu0 0.0
  %6535 = vmatprep.subr.mxu0 0.0
  %6536 = vmatpush2.msra.mxu0 0.0
  %6537 = vmatprep.subr.mxu0 0.0
  %6538 = vmatpush2.msra.mxu0 0.0
  %6539 = vmatprep.subr.mxu0 0.0
  %6540 = vmatpush2.msra.mxu0 0.0
  %6541 = vmatprep.subr.mxu0 0.0
  %6542 = vmatpush2.msra.mxu0 0.0
  %6543 = vmatprep.mubr.f32.mxu0 0.0
  %6544 = vmatmul.mubr.f32.gmra.mxu0 %v6477
  %v6545 = vpop.f32.mrf.mxu0
  %v6546 = vadd.f32 0.0, %v6545
  %v6547 = vpop.f32.mrf.mxu0
  %6548 = vdwg.mxu0
  %v6549 = vadd.f32 %v6474, %v6546
  %v6550 = vmul.f32 %v6549, 0.5
  %v6551 = vtanh.pop %v6550
  %v6552 = vadd.f32 %v6551, 1.0
  %v6553 = vmul.f32 %v6552, 0.5
  %6554 = vmatprep.subr.mxu0 0.0
  %6555 = vmatpush1.msra.mxu0 0.0
  %6556 = vmatprep.subr.mxu0 0.0
  %6557 = vmatpush1.msra.mxu0 0.0
  %6558 = vmatprep.subr.mxu0 0.0
  %6559 = vmatpush1.msra.mxu0 0.0
  %6560 = vmatprep.subr.mxu0 0.0
  %6561 = vmatpush1.msra.mxu0 0.0
  %6562 = vmatprep.subr.mxu0 0.0
  %6563 = vmatpush1.msra.mxu0 0.0
  %6564 = vmatprep.subr.mxu0 0.0
  %6565 = vmatpush1.msra.mxu0 0.0
  %6566 = vmatprep.subr.mxu0 0.0
  %6567 = vmatpush1.msra.mxu0 0.0
  %6568 = vmatprep.subr.mxu0 0.0
  %6569 = vmatpush1.msra.mxu0 0.0
  %6570 = vmatprep.subr.mxu0 0.0
  %6571 = vmatpush1.msra.mxu0 0.0
  %6572 = vmatprep.subr.mxu0 0.0
  %6573 = vmatpush1.msra.mxu0 0.0
  %6574 = vmatprep.subr.mxu0 0.0
  %6575 = vmatpush1.msra.mxu0 0.0
  %6576 = vmatprep.subr.mxu0 0.0
  %6577 = vmatpush1.msra.mxu0 0.0
  %6578 = vmatprep.subr.mxu0 0.0
  %6579 = vmatpush1.msra.mxu0 %v890
  %6580 = vmatprep.subr.mxu0 0.0
  %6581 = vmatpush1.msra.mxu0 %v889
  %6582 = vmatprep.subr.mxu0 0.0
  %6583 = vmatpush1.msra.mxu0 %v888
  %6584 = vmatprep.subr.mxu0 0.0
  %6585 = vmatpush1.msra.mxu0 %v887
  %6586 = vmatprep.subr.mxu0 0.0
  %6587 = vmatpush2.msra.mxu0 0.0
  %6588 = vmatprep.subr.mxu0 0.0
  %6589 = vmatpush2.msra.mxu0 0.0
  %6590 = vmatprep.subr.mxu0 0.0
  %6591 = vmatpush2.msra.mxu0 0.0
  %6592 = vmatprep.subr.mxu0 0.0
  %6593 = vmatpush2.msra.mxu0 0.0
  %6594 = vmatprep.subr.mxu0 0.0
  %6595 = vmatpush2.msra.mxu0 0.0
  %6596 = vmatprep.subr.mxu0 0.0
  %6597 = vmatpush2.msra.mxu0 0.0
  %6598 = vmatprep.subr.mxu0 0.0
  %6599 = vmatpush2.msra.mxu0 0.0
  %6600 = vmatprep.subr.mxu0 0.0
  %6601 = vmatpush2.msra.mxu0 0.0
  %6602 = vmatprep.subr.mxu0 0.0
  %6603 = vmatpush2.msra.mxu0 0.0
  %6604 = vmatprep.subr.mxu0 0.0
  %6605 = vmatpush2.msra.mxu0 0.0
  %6606 = vmatprep.subr.mxu0 0.0
  %6607 = vmatpush2.msra.mxu0 0.0
  %6608 = vmatprep.subr.mxu0 0.0
  %6609 = vmatpush2.msra.mxu0 0.0
  %6610 = vmatprep.subr.mxu0 0.0
  %6611 = vmatpush2.msra.mxu0 0.0
  %6612 = vmatprep.subr.mxu0 0.0
  %6613 = vmatpush2.msra.mxu0 0.0
  %6614 = vmatprep.subr.mxu0 0.0
  %6615 = vmatpush2.msra.mxu0 0.0
  %6616 = vmatprep.subr.mxu0 0.0
  %6617 = vmatpush2.msra.mxu0 0.0
  %6618 = vmatprep.mubr.f32.mxu0 0.0
  %6619 = vmatmul.mubr.f32.gmra.mxu0 %v6477
  %v6620 = vpop.f32.mrf.mxu0
  %v6621 = vadd.f32 %v896, %v6620
  %v6622 = vpop.f32.mrf.mxu0
  %6623 = vdwg.mxu0
  %v6624 = vmul.f32 %v6553, %v6621
  %v6625 = vadd.f32 %v6475, %v6624
  %v6626 = vtanh.pop %v6625
  %v6627 = vsub.f32 %v6473, %v6626
  %6629 = vrot.lane.b32.xlu0 %v6627, 32
  %v6630 = vpop.permute.xlu0 %6629
  %v6632 = vmul.f32 %v6553, %v6630
  %6634 = vrot.lane.b32.xlu0 %v6632, 96
  %v6635 = vpop.permute.xlu0 %6634
  %v6637 = vadd.f32 %v6626, %v6635
  %v6638 = vld [vmem:[#allocation2 + $0x118] sm:$0xff]
  %v6639 = vld [vmem:[#allocation3 + $0x118] sm:$0xff]
  %v6641 = vsel %vm765, %v6637, 0
  %6643 = vmatprep.subr.mxu0 0.0
  %6644 = vmatpush1.msra.mxu0 0.0
  %6645 = vmatprep.subr.mxu0 0.0
  %6646 = vmatpush1.msra.mxu0 0.0
  %6647 = vmatprep.subr.mxu0 0.0
  %6648 = vmatpush1.msra.mxu0 0.0
  %6649 = vmatprep.subr.mxu0 0.0
  %6650 = vmatpush1.msra.mxu0 0.0
  %6651 = vmatprep.subr.mxu0 0.0
  %6652 = vmatpush1.msra.mxu0 0.0
  %6653 = vmatprep.subr.mxu0 0.0
  %6654 = vmatpush1.msra.mxu0 0.0
  %6655 = vmatprep.subr.mxu0 0.0
  %6656 = vmatpush1.msra.mxu0 0.0
  %6657 = vmatprep.subr.mxu0 0.0
  %6658 = vmatpush1.msra.mxu0 0.0
  %6659 = vmatprep.subr.mxu0 0.0
  %6660 = vmatpush1.msra.mxu0 0.0
  %6661 = vmatprep.subr.mxu0 0.0
  %6662 = vmatpush1.msra.mxu0 0.0
  %6663 = vmatprep.subr.mxu0 0.0
  %6664 = vmatpush1.msra.mxu0 0.0
  %6665 = vmatprep.subr.mxu0 0.0
  %6666 = vmatpush1.msra.mxu0 0.0
  %6667 = vmatprep.subr.mxu0 0.0
  %6668 = vmatpush1.msra.mxu0 %v886
  %6669 = vmatprep.subr.mxu0 0.0
  %6670 = vmatpush1.msra.mxu0 %v885
  %6671 = vmatprep.subr.mxu0 0.0
  %6672 = vmatpush1.msra.mxu0 %v884
  %6673 = vmatprep.subr.mxu0 0.0
  %6674 = vmatpush1.msra.mxu0 %v883
  %6675 = vmatprep.subr.mxu0 0.0
  %6676 = vmatpush2.msra.mxu0 0.0
  %6677 = vmatprep.subr.mxu0 0.0
  %6678 = vmatpush2.msra.mxu0 0.0
  %6679 = vmatprep.subr.mxu0 0.0
  %6680 = vmatpush2.msra.mxu0 0.0
  %6681 = vmatprep.subr.mxu0 0.0
  %6682 = vmatpush2.msra.mxu0 0.0
  %6683 = vmatprep.subr.mxu0 0.0
  %6684 = vmatpush2.msra.mxu0 0.0
  %6685 = vmatprep.subr.mxu0 0.0
  %6686 = vmatpush2.msra.mxu0 0.0
  %6687 = vmatprep.subr.mxu0 0.0
  %6688 = vmatpush2.msra.mxu0 0.0
  %6689 = vmatprep.subr.mxu0 0.0
  %6690 = vmatpush2.msra.mxu0 0.0
  %6691 = vmatprep.subr.mxu0 0.0
  %6692 = vmatpush2.msra.mxu0 0.0
  %6693 = vmatprep.subr.mxu0 0.0
  %6694 = vmatpush2.msra.mxu0 0.0
  %6695 = vmatprep.subr.mxu0 0.0
  %6696 = vmatpush2.msra.mxu0 0.0
  %6697 = vmatprep.subr.mxu0 0.0
  %6698 = vmatpush2.msra.mxu0 0.0
  %6699 = vmatprep.subr.mxu0 0.0
  %6700 = vmatpush2.msra.mxu0 0.0
  %6701 = vmatprep.subr.mxu0 0.0
  %6702 = vmatpush2.msra.mxu0 0.0
  %6703 = vmatprep.subr.mxu0 0.0
  %6704 = vmatpush2.msra.mxu0 0.0
  %6705 = vmatprep.subr.mxu0 0.0
  %6706 = vmatpush2.msra.mxu0 0.0
  %6707 = vmatprep.mubr.f32.mxu0 0.0
  %6708 = vmatmul.mubr.f32.gmra.mxu0 %v6641
  %v6709 = vpop.f32.mrf.mxu0
  %v6710 = vadd.f32 0.0, %v6709
  %v6711 = vpop.f32.mrf.mxu0
  %6712 = vdwg.mxu0
  %v6713 = vadd.f32 %v6638, %v6710
  %v6714 = vmul.f32 %v6713, 0.5
  %v6715 = vtanh.pop %v6714
  %v6716 = vadd.f32 %v6715, 1.0
  %v6717 = vmul.f32 %v6716, 0.5
  %6718 = vmatprep.subr.mxu0 0.0
  %6719 = vmatpush1.msra.mxu0 0.0
  %6720 = vmatprep.subr.mxu0 0.0
  %6721 = vmatpush1.msra.mxu0 0.0
  %6722 = vmatprep.subr.mxu0 0.0
  %6723 = vmatpush1.msra.mxu0 0.0
  %6724 = vmatprep.subr.mxu0 0.0
  %6725 = vmatpush1.msra.mxu0 0.0
  %6726 = vmatprep.subr.mxu0 0.0
  %6727 = vmatpush1.msra.mxu0 0.0
  %6728 = vmatprep.subr.mxu0 0.0
  %6729 = vmatpush1.msra.mxu0 0.0
  %6730 = vmatprep.subr.mxu0 0.0
  %6731 = vmatpush1.msra.mxu0 0.0
  %6732 = vmatprep.subr.mxu0 0.0
  %6733 = vmatpush1.msra.mxu0 0.0
  %6734 = vmatprep.subr.mxu0 0.0
  %6735 = vmatpush1.msra.mxu0 0.0
  %6736 = vmatprep.subr.mxu0 0.0
  %6737 = vmatpush1.msra.mxu0 0.0
  %6738 = vmatprep.subr.mxu0 0.0
  %6739 = vmatpush1.msra.mxu0 0.0
  %6740 = vmatprep.subr.mxu0 0.0
  %6741 = vmatpush1.msra.mxu0 0.0
  %6742 = vmatprep.subr.mxu0 0.0
  %6743 = vmatpush1.msra.mxu0 %v890
  %6744 = vmatprep.subr.mxu0 0.0
  %6745 = vmatpush1.msra.mxu0 %v889
  %6746 = vmatprep.subr.mxu0 0.0
  %6747 = vmatpush1.msra.mxu0 %v888
  %6748 = vmatprep.subr.mxu0 0.0
  %6749 = vmatpush1.msra.mxu0 %v887
  %6750 = vmatprep.subr.mxu0 0.0
  %6751 = vmatpush2.msra.mxu0 0.0
  %6752 = vmatprep.subr.mxu0 0.0
  %6753 = vmatpush2.msra.mxu0 0.0
  %6754 = vmatprep.subr.mxu0 0.0
  %6755 = vmatpush2.msra.mxu0 0.0
  %6756 = vmatprep.subr.mxu0 0.0
  %6757 = vmatpush2.msra.mxu0 0.0
  %6758 = vmatprep.subr.mxu0 0.0
  %6759 = vmatpush2.msra.mxu0 0.0
  %6760 = vmatprep.subr.mxu0 0.0
  %6761 = vmatpush2.msra.mxu0 0.0
  %6762 = vmatprep.subr.mxu0 0.0
  %6763 = vmatpush2.msra.mxu0 0.0
  %6764 = vmatprep.subr.mxu0 0.0
  %6765 = vmatpush2.msra.mxu0 0.0
  %6766 = vmatprep.subr.mxu0 0.0
  %6767 = vmatpush2.msra.mxu0 0.0
  %6768 = vmatprep.subr.mxu0 0.0
  %6769 = vmatpush2.msra.mxu0 0.0
  %6770 = vmatprep.subr.mxu0 0.0
  %6771 = vmatpush2.msra.mxu0 0.0
  %6772 = vmatprep.subr.mxu0 0.0
  %6773 = vmatpush2.msra.mxu0 0.0
  %6774 = vmatprep.subr.mxu0 0.0
  %6775 = vmatpush2.msra.mxu0 0.0
  %6776 = vmatprep.subr.mxu0 0.0
  %6777 = vmatpush2.msra.mxu0 0.0
  %6778 = vmatprep.subr.mxu0 0.0
  %6779 = vmatpush2.msra.mxu0 0.0
  %6780 = vmatprep.subr.mxu0 0.0
  %6781 = vmatpush2.msra.mxu0 0.0
  %6782 = vmatprep.mubr.f32.mxu0 0.0
  %6783 = vmatmul.mubr.f32.gmra.mxu0 %v6641
  %v6784 = vpop.f32.mrf.mxu0
  %v6785 = vadd.f32 %v896, %v6784
  %v6786 = vpop.f32.mrf.mxu0
  %6787 = vdwg.mxu0
  %v6788 = vmul.f32 %v6717, %v6785
  %v6789 = vadd.f32 %v6639, %v6788
  %v6790 = vtanh.pop %v6789
  %v6791 = vsub.f32 %v6637, %v6790
  %6793 = vrot.lane.b32.xlu0 %v6791, 32
  %v6794 = vpop.permute.xlu0 %6793
  %v6796 = vmul.f32 %v6717, %v6794
  %6798 = vrot.lane.b32.xlu0 %v6796, 96
  %v6799 = vpop.permute.xlu0 %6798
  %v6801 = vadd.f32 %v6790, %v6799
  %v6802 = vld [vmem:[%s11] sm:$0xff]
  %v6803 = vld [vmem:[%s12] sm:$0xff]
  %v6804 = vld [vmem:[%s15] sm:$0x1]
  %v6806 = vlaneseq
  %v6807 = vshrl.u32 %v6806, 7
  %v6808 = vsub.s32 0, %v6807
  %v6809 = vrot.slane %v6804, %v6808
  %v6811 = vld [vmem:[#allocation4] sm:$0xff]
  %v6812 = vld [vmem:[#allocation5] sm:$0xff]
  %v6813 = vsel %vm877, 0.0, 0
  %6815 = vmatprep.subr.mxu0 0.0
  %6816 = vmatpush1.msra.mxu0 0.0
  %6817 = vmatprep.subr.mxu0 0.0
  %6818 = vmatpush1.msra.mxu0 0.0
  %6819 = vmatprep.subr.mxu0 0.0
  %6820 = vmatpush1.msra.mxu0 0.0
  %6821 = vmatprep.subr.mxu0 0.0
  %6822 = vmatpush1.msra.mxu0 0.0
  %6823 = vmatprep.subr.mxu0 0.0
  %6824 = vmatpush1.msra.mxu0 0.0
  %6825 = vmatprep.subr.mxu0 0.0
  %6826 = vmatpush1.msra.mxu0 0.0
  %6827 = vmatprep.subr.mxu0 0.0
  %6828 = vmatpush1.msra.mxu0 0.0
  %6829 = vmatprep.subr.mxu0 0.0
  %6830 = vmatpush1.msra.mxu0 0.0
  %6831 = vmatprep.subr.mxu0 0.0
  %6832 = vmatpush1.msra.mxu0 0.0
  %6833 = vmatprep.subr.mxu0 0.0
  %6834 = vmatpush1.msra.mxu0 0.0
  %6835 = vmatprep.subr.mxu0 0.0
  %6836 = vmatpush1.msra.mxu0 0.0
  %6837 = vmatprep.subr.mxu0 0.0
  %6838 = vmatpush1.msra.mxu0 0.0
  %6839 = vmatprep.subr.mxu0 0.0
  %6840 = vmatpush1.msra.mxu0 0.0
  %6841 = vmatprep.subr.mxu0 0.0
  %6842 = vmatpush1.msra.mxu0 0.0
  %6843 = vmatprep.subr.mxu0 0.0
  %6844 = vmatpush1.msra.mxu0 0.0
  %6845 = vmatprep.subr.mxu0 0.0
  %6846 = vmatpush1.msra.mxu0 %v6802
  %6847 = vmatprep.subr.mxu0 0.0
  %6848 = vmatpush2.msra.mxu0 0.0
  %6849 = vmatprep.subr.mxu0 0.0
  %6850 = vmatpush2.msra.mxu0 0.0
  %6851 = vmatprep.subr.mxu0 0.0
  %6852 = vmatpush2.msra.mxu0 0.0
  %6853 = vmatprep.subr.mxu0 0.0
  %6854 = vmatpush2.msra.mxu0 0.0
  %6855 = vmatprep.subr.mxu0 0.0
  %6856 = vmatpush2.msra.mxu0 0.0
  %6857 = vmatprep.subr.mxu0 0.0
  %6858 = vmatpush2.msra.mxu0 0.0
  %6859 = vmatprep.subr.mxu0 0.0
  %6860 = vmatpush2.msra.mxu0 0.0
  %6861 = vmatprep.subr.mxu0 0.0
  %6862 = vmatpush2.msra.mxu0 0.0
  %6863 = vmatprep.subr.mxu0 0.0
  %6864 = vmatpush2.msra.mxu0 0.0
  %6865 = vmatprep.subr.mxu0 0.0
  %6866 = vmatpush2.msra.mxu0 0.0
  %6867 = vmatprep.subr.mxu0 0.0
  %6868 = vmatpush2.msra.mxu0 0.0
  %6869 = vmatprep.subr.mxu0 0.0
  %6870 = vmatpush2.msra.mxu0 0.0
  %6871 = vmatprep.subr.mxu0 0.0
  %6872 = vmatpush2.msra.mxu0 0.0
  %6873 = vmatprep.subr.mxu0 0.0
  %6874 = vmatpush2.msra.mxu0 0.0
  %6875 = vmatprep.subr.mxu0 0.0
  %6876 = vmatpush2.msra.mxu0 0.0
  %6877 = vmatprep.subr.mxu0 0.0
  %6878 = vmatpush2.msra.mxu0 0.0
  %6879 = vmatprep.mubr.f32.mxu0 0.0
  %6880 = vmatmul.mubr.f32.gmra.mxu0 %v6813
  %v6881 = vpop.f32.mrf.mxu0
  %v6882 = vadd.f32 0.0, %v6881
  %v6883 = vpop.f32.mrf.mxu0
  %6884 = vdwg.mxu0
  %v6885 = vadd.f32 %v6811, %v6882
  %v6886 = vmul.f32 %v6885, 0.5
  %v6887 = vtanh.pop %v6886
  %v6888 = vadd.f32 %v6887, 1.0
  %v6889 = vmul.f32 %v6888, 0.5
  %6890 = vmatprep.subr.mxu0 0.0
  %6891 = vmatpush1.msra.mxu0 0.0
  %6892 = vmatprep.subr.mxu0 0.0
  %6893 = vmatpush1.msra.mxu0 0.0
  %6894 = vmatprep.subr.mxu0 0.0
  %6895 = vmatpush1.msra.mxu0 0.0
  %6896 = vmatprep.subr.mxu0 0.0
  %6897 = vmatpush1.msra.mxu0 0.0
  %6898 = vmatprep.subr.mxu0 0.0
  %6899 = vmatpush1.msra.mxu0 0.0
  %6900 = vmatprep.subr.mxu0 0.0
  %6901 = vmatpush1.msra.mxu0 0.0
  %6902 = vmatprep.subr.mxu0 0.0
  %6903 = vmatpush1.msra.mxu0 0.0
  %6904 = vmatprep.subr.mxu0 0.0
  %6905 = vmatpush1.msra.mxu0 0.0
  %6906 = vmatprep.subr.mxu0 0.0
  %6907 = vmatpush1.msra.mxu0 0.0
  %6908 = vmatprep.subr.mxu0 0.0
  %6909 = vmatpush1.msra.mxu0 0.0
  %6910 = vmatprep.subr.mxu0 0.0
  %6911 = vmatpush1.msra.mxu0 0.0
  %6912 = vmatprep.subr.mxu0 0.0
  %6913 = vmatpush1.msra.mxu0 0.0
  %6914 = vmatprep.subr.mxu0 0.0
  %6915 = vmatpush1.msra.mxu0 0.0
  %6916 = vmatprep.subr.mxu0 0.0
  %6917 = vmatpush1.msra.mxu0 0.0
  %6918 = vmatprep.subr.mxu0 0.0
  %6919 = vmatpush1.msra.mxu0 0.0
  %6920 = vmatprep.subr.mxu0 0.0
  %6921 = vmatpush1.msra.mxu0 %v6803
  %6922 = vmatprep.subr.mxu0 0.0
  %6923 = vmatpush2.msra.mxu0 0.0
  %6924 = vmatprep.subr.mxu0 0.0
  %6925 = vmatpush2.msra.mxu0 0.0
  %6926 = vmatprep.subr.mxu0 0.0
  %6927 = vmatpush2.msra.mxu0 0.0
  %6928 = vmatprep.subr.mxu0 0.0
  %6929 = vmatpush2.msra.mxu0 0.0
  %6930 = vmatprep.subr.mxu0 0.0
  %6931 = vmatpush2.msra.mxu0 0.0
  %6932 = vmatprep.subr.mxu0 0.0
  %6933 = vmatpush2.msra.mxu0 0.0
  %6934 = vmatprep.subr.mxu0 0.0
  %6935 = vmatpush2.msra.mxu0 0.0
  %6936 = vmatprep.subr.mxu0 0.0
  %6937 = vmatpush2.msra.mxu0 0.0
  %6938 = vmatprep.subr.mxu0 0.0
  %6939 = vmatpush2.msra.mxu0 0.0
  %6940 = vmatprep.subr.mxu0 0.0
  %6941 = vmatpush2.msra.mxu0 0.0
  %6942 = vmatprep.subr.mxu0 0.0
  %6943 = vmatpush2.msra.mxu0 0.0
  %6944 = vmatprep.subr.mxu0 0.0
  %6945 = vmatpush2.msra.mxu0 0.0
  %6946 = vmatprep.subr.mxu0 0.0
  %6947 = vmatpush2.msra.mxu0 0.0
  %6948 = vmatprep.subr.mxu0 0.0
  %6949 = vmatpush2.msra.mxu0 0.0
  %6950 = vmatprep.subr.mxu0 0.0
  %6951 = vmatpush2.msra.mxu0 0.0
  %6952 = vmatprep.subr.mxu0 0.0
  %6953 = vmatpush2.msra.mxu0 0.0
  %6954 = vmatprep.mubr.f32.mxu0 0.0
  %6955 = vmatmul.mubr.f32.gmra.mxu0 %v6813
  %v6956 = vpop.f32.mrf.mxu0
  %v6957 = vadd.f32 %v6809, %v6956
  %v6958 = vpop.f32.mrf.mxu0
  %6959 = vdwg.mxu0
  %v6960 = vmul.f32 %v6889, %v6957
  %v6961 = vadd.f32 %v6812, %v6960
  %v6962 = vtanh.pop %v6961
  %v6963 = vsub.f32 0.0, %v6962
  %6965 = vrot.lane.b32.xlu0 %v6963, 8
  %v6966 = vpop.permute.xlu0 %6965
  %v6968 = vmul.f32 %v6889, %v6966
  %6970 = vrot.lane.b32.xlu0 %v6968, 120
  %v6971 = vpop.permute.xlu0 %6970
  %v6973 = vadd.f32 %v6962, %v6971
  %v6974 = vld [vmem:[#allocation4 + $0x8] sm:$0xff]
  %v6975 = vld [vmem:[#allocation5 + $0x8] sm:$0xff]
  %v6977 = vsel %vm877, %v6973, 0
  %6979 = vmatprep.subr.mxu0 0.0
  %6980 = vmatpush1.msra.mxu0 0.0
  %6981 = vmatprep.subr.mxu0 0.0
  %6982 = vmatpush1.msra.mxu0 0.0
  %6983 = vmatprep.subr.mxu0 0.0
  %6984 = vmatpush1.msra.mxu0 0.0
  %6985 = vmatprep.subr.mxu0 0.0
  %6986 = vmatpush1.msra.mxu0 0.0
  %6987 = vmatprep.subr.mxu0 0.0
  %6988 = vmatpush1.msra.mxu0 0.0
  %6989 = vmatprep.subr.mxu0 0.0
  %6990 = vmatpush1.msra.mxu0 0.0
  %6991 = vmatprep.subr.mxu0 0.0
  %6992 = vmatpush1.msra.mxu0 0.0
  %6993 = vmatprep.subr.mxu0 0.0
  %6994 = vmatpush1.msra.mxu0 0.0
  %6995 = vmatprep.subr.mxu0 0.0
  %6996 = vmatpush1.msra.mxu0 0.0
  %6997 = vmatprep.subr.mxu0 0.0
  %6998 = vmatpush1.msra.mxu0 0.0
  %6999 = vmatprep.subr.mxu0 0.0
  %7000 = vmatpush1.msra.mxu0 0.0
  %7001 = vmatprep.subr.mxu0 0.0
  %7002 = vmatpush1.msra.mxu0 0.0
  %7003 = vmatprep.subr.mxu0 0.0
  %7004 = vmatpush1.msra.mxu0 0.0
  %7005 = vmatprep.subr.mxu0 0.0
  %7006 = vmatpush1.msra.mxu0 0.0
  %7007 = vmatprep.subr.mxu0 0.0
  %7008 = vmatpush1.msra.mxu0 0.0
  %7009 = vmatprep.subr.mxu0 0.0
  %7010 = vmatpush1.msra.mxu0 %v6802
  %7011 = vmatprep.subr.mxu0 0.0
  %7012 = vmatpush2.msra.mxu0 0.0
  %7013 = vmatprep.subr.mxu0 0.0
  %7014 = vmatpush2.msra.mxu0 0.0
  %7015 = vmatprep.subr.mxu0 0.0
  %7016 = vmatpush2.msra.mxu0 0.0
  %7017 = vmatprep.subr.mxu0 0.0
  %7018 = vmatpush2.msra.mxu0 0.0
  %7019 = vmatprep.subr.mxu0 0.0
  %7020 = vmatpush2.msra.mxu0 0.0
  %7021 = vmatprep.subr.mxu0 0.0
  %7022 = vmatpush2.msra.mxu0 0.0
  %7023 = vmatprep.subr.mxu0 0.0
  %7024 = vmatpush2.msra.mxu0 0.0
  %7025 = vmatprep.subr.mxu0 0.0
  %7026 = vmatpush2.msra.mxu0 0.0
  %7027 = vmatprep.subr.mxu0 0.0
  %7028 = vmatpush2.msra.mxu0 0.0
  %7029 = vmatprep.subr.mxu0 0.0
  %7030 = vmatpush2.msra.mxu0 0.0
  %7031 = vmatprep.subr.mxu0 0.0
  %7032 = vmatpush2.msra.mxu0 0.0
  %7033 = vmatprep.subr.mxu0 0.0
  %7034 = vmatpush2.msra.mxu0 0.0
  %7035 = vmatprep.subr.mxu0 0.0
  %7036 = vmatpush2.msra.mxu0 0.0
  %7037 = vmatprep.subr.mxu0 0.0
  %7038 = vmatpush2.msra.mxu0 0.0
  %7039 = vmatprep.subr.mxu0 0.0
  %7040 = vmatpush2.msra.mxu0 0.0
  %7041 = vmatprep.subr.mxu0 0.0
  %7042 = vmatpush2.msra.mxu0 0.0
  %7043 = vmatprep.mubr.f32.mxu0 0.0
  %7044 = vmatmul.mubr.f32.gmra.mxu0 %v6977
  %v7045 = vpop.f32.mrf.mxu0
  %v7046 = vadd.f32 0.0, %v7045
  %v7047 = vpop.f32.mrf.mxu0
  %7048 = vdwg.mxu0
  %v7049 = vadd.f32 %v6974, %v7046
  %v7050 = vmul.f32 %v7049, 0.5
  %v7051 = vtanh.pop %v7050
  %v7052 = vadd.f32 %v7051, 1.0
  %v7053 = vmul.f32 %v7052, 0.5
  %7054 = vmatprep.subr.mxu0 0.0
  %7055 = vmatpush1.msra.mxu0 0.0
  %7056 = vmatprep.subr.mxu0 0.0
  %7057 = vmatpush1.msra.mxu0 0.0
  %7058 = vmatprep.subr.mxu0 0.0
  %7059 = vmatpush1.msra.mxu0 0.0
  %7060 = vmatprep.subr.mxu0 0.0
  %7061 = vmatpush1.msra.mxu0 0.0
  %7062 = vmatprep.subr.mxu0 0.0
  %7063 = vmatpush1.msra.mxu0 0.0
  %7064 = vmatprep.subr.mxu0 0.0
  %7065 = vmatpush1.msra.mxu0 0.0
  %7066 = vmatprep.subr.mxu0 0.0
  %7067 = vmatpush1.msra.mxu0 0.0
  %7068 = vmatprep.subr.mxu0 0.0
  %7069 = vmatpush1.msra.mxu0 0.0
  %7070 = vmatprep.subr.mxu0 0.0
  %7071 = vmatpush1.msra.mxu0 0.0
  %7072 = vmatprep.subr.mxu0 0.0
  %7073 = vmatpush1.msra.mxu0 0.0
  %7074 = vmatprep.subr.mxu0 0.0
  %7075 = vmatpush1.msra.mxu0 0.0
  %7076 = vmatprep.subr.mxu0 0.0
  %7077 = vmatpush1.msra.mxu0 0.0
  %7078 = vmatprep.subr.mxu0 0.0
  %7079 = vmatpush1.msra.mxu0 0.0
  %7080 = vmatprep.subr.mxu0 0.0
  %7081 = vmatpush1.msra.mxu0 0.0
  %7082 = vmatprep.subr.mxu0 0.0
  %7083 = vmatpush1.msra.mxu0 0.0
  %7084 = vmatprep.subr.mxu0 0.0
  %7085 = vmatpush1.msra.mxu0 %v6803
  %7086 = vmatprep.subr.mxu0 0.0
  %7087 = vmatpush2.msra.mxu0 0.0
  %7088 = vmatprep.subr.mxu0 0.0
  %7089 = vmatpush2.msra.mxu0 0.0
  %7090 = vmatprep.subr.mxu0 0.0
  %7091 = vmatpush2.msra.mxu0 0.0
  %7092 = vmatprep.subr.mxu0 0.0
  %7093 = vmatpush2.msra.mxu0 0.0
  %7094 = vmatprep.subr.mxu0 0.0
  %7095 = vmatpush2.msra.mxu0 0.0
  %7096 = vmatprep.subr.mxu0 0.0
  %7097 = vmatpush2.msra.mxu0 0.0
  %7098 = vmatprep.subr.mxu0 0.0
  %7099 = vmatpush2.msra.mxu0 0.0
  %7100 = vmatprep.subr.mxu0 0.0
  %7101 = vmatpush2.msra.mxu0 0.0
  %7102 = vmatprep.subr.mxu0 0.0
  %7103 = vmatpush2.msra.mxu0 0.0
  %7104 = vmatprep.subr.mxu0 0.0
  %7105 = vmatpush2.msra.mxu0 0.0
  %7106 = vmatprep.subr.mxu0 0.0
  %7107 = vmatpush2.msra.mxu0 0.0
  %7108 = vmatprep.subr.mxu0 0.0
  %7109 = vmatpush2.msra.mxu0 0.0
  %7110 = vmatprep.subr.mxu0 0.0
  %7111 = vmatpush2.msra.mxu0 0.0
  %7112 = vmatprep.subr.mxu0 0.0
  %7113 = vmatpush2.msra.mxu0 0.0
  %7114 = vmatprep.subr.mxu0 0.0
  %7115 = vmatpush2.msra.mxu0 0.0
  %7116 = vmatprep.subr.mxu0 0.0
  %7117 = vmatpush2.msra.mxu0 0.0
  %7118 = vmatprep.mubr.f32.mxu0 0.0
  %7119 = vmatmul.mubr.f32.gmra.mxu0 %v6977
  %v7120 = vpop.f32.mrf.mxu0
  %v7121 = vadd.f32 %v6809, %v7120
  %v7122 = vpop.f32.mrf.mxu0
  %7123 = vdwg.mxu0
  %v7124 = vmul.f32 %v7053, %v7121
  %v7125 = vadd.f32 %v6975, %v7124
  %v7126 = vtanh.pop %v7125
  %v7127 = vsub.f32 %v6973, %v7126
  %7129 = vrot.lane.b32.xlu0 %v7127, 8
  %v7130 = vpop.permute.xlu0 %7129
  %v7132 = vmul.f32 %v7053, %v7130
  %7134 = vrot.lane.b32.xlu0 %v7132, 120
  %v7135 = vpop.permute.xlu0 %7134
  %v7137 = vadd.f32 %v7126, %v7135
  %v7138 = vld [vmem:[#allocation4 + $0x10] sm:$0xff]
  %v7139 = vld [vmem:[#allocation5 + $0x10] sm:$0xff]
  %v7141 = vsel %vm877, %v7137, 0
  %7143 = vmatprep.subr.mxu0 0.0
  %7144 = vmatpush1.msra.mxu0 0.0
  %7145 = vmatprep.subr.mxu0 0.0
  %7146 = vmatpush1.msra.mxu0 0.0
  %7147 = vmatprep.subr.mxu0 0.0
  %7148 = vmatpush1.msra.mxu0 0.0
  %7149 = vmatprep.subr.mxu0 0.0
  %7150 = vmatpush1.msra.mxu0 0.0
  %7151 = vmatprep.subr.mxu0 0.0
  %7152 = vmatpush1.msra.mxu0 0.0
  %7153 = vmatprep.subr.mxu0 0.0
  %7154 = vmatpush1.msra.mxu0 0.0
  %7155 = vmatprep.subr.mxu0 0.0
  %7156 = vmatpush1.msra.mxu0 0.0
  %7157 = vmatprep.subr.mxu0 0.0
  %7158 = vmatpush1.msra.mxu0 0.0
  %7159 = vmatprep.subr.mxu0 0.0
  %7160 = vmatpush1.msra.mxu0 0.0
  %7161 = vmatprep.subr.mxu0 0.0
  %7162 = vmatpush1.msra.mxu0 0.0
  %7163 = vmatprep.subr.mxu0 0.0
  %7164 = vmatpush1.msra.mxu0 0.0
  %7165 = vmatprep.subr.mxu0 0.0
  %7166 = vmatpush1.msra.mxu0 0.0
  %7167 = vmatprep.subr.mxu0 0.0
  %7168 = vmatpush1.msra.mxu0 0.0
  %7169 = vmatprep.subr.mxu0 0.0
  %7170 = vmatpush1.msra.mxu0 0.0
  %7171 = vmatprep.subr.mxu0 0.0
  %7172 = vmatpush1.msra.mxu0 0.0
  %7173 = vmatprep.subr.mxu0 0.0
  %7174 = vmatpush1.msra.mxu0 %v6802
  %7175 = vmatprep.subr.mxu0 0.0
  %7176 = vmatpush2.msra.mxu0 0.0
  %7177 = vmatprep.subr.mxu0 0.0
  %7178 = vmatpush2.msra.mxu0 0.0
  %7179 = vmatprep.subr.mxu0 0.0
  %7180 = vmatpush2.msra.mxu0 0.0
  %7181 = vmatprep.subr.mxu0 0.0
  %7182 = vmatpush2.msra.mxu0 0.0
  %7183 = vmatprep.subr.mxu0 0.0
  %7184 = vmatpush2.msra.mxu0 0.0
  %7185 = vmatprep.subr.mxu0 0.0
  %7186 = vmatpush2.msra.mxu0 0.0
  %7187 = vmatprep.subr.mxu0 0.0
  %7188 = vmatpush2.msra.mxu0 0.0
  %7189 = vmatprep.subr.mxu0 0.0
  %7190 = vmatpush2.msra.mxu0 0.0
  %7191 = vmatprep.subr.mxu0 0.0
  %7192 = vmatpush2.msra.mxu0 0.0
  %7193 = vmatprep.subr.mxu0 0.0
  %7194 = vmatpush2.msra.mxu0 0.0
  %7195 = vmatprep.subr.mxu0 0.0
  %7196 = vmatpush2.msra.mxu0 0.0
  %7197 = vmatprep.subr.mxu0 0.0
  %7198 = vmatpush2.msra.mxu0 0.0
  %7199 = vmatprep.subr.mxu0 0.0
  %7200 = vmatpush2.msra.mxu0 0.0
  %7201 = vmatprep.subr.mxu0 0.0
  %7202 = vmatpush2.msra.mxu0 0.0
  %7203 = vmatprep.subr.mxu0 0.0
  %7204 = vmatpush2.msra.mxu0 0.0
  %7205 = vmatprep.subr.mxu0 0.0
  %7206 = vmatpush2.msra.mxu0 0.0
  %7207 = vmatprep.mubr.f32.mxu0 0.0
  %7208 = vmatmul.mubr.f32.gmra.mxu0 %v7141
  %v7209 = vpop.f32.mrf.mxu0
  %v7210 = vadd.f32 0.0, %v7209
  %v7211 = vpop.f32.mrf.mxu0
  %7212 = vdwg.mxu0
  %v7213 = vadd.f32 %v7138, %v7210
  %v7214 = vmul.f32 %v7213, 0.5
  %v7215 = vtanh.pop %v7214
  %v7216 = vadd.f32 %v7215, 1.0
  %v7217 = vmul.f32 %v7216, 0.5
  %7218 = vmatprep.subr.mxu0 0.0
  %7219 = vmatpush1.msra.mxu0 0.0
  %7220 = vmatprep.subr.mxu0 0.0
  %7221 = vmatpush1.msra.mxu0 0.0
  %7222 = vmatprep.subr.mxu0 0.0
  %7223 = vmatpush1.msra.mxu0 0.0
  %7224 = vmatprep.subr.mxu0 0.0
  %7225 = vmatpush1.msra.mxu0 0.0
  %7226 = vmatprep.subr.mxu0 0.0
  %7227 = vmatpush1.msra.mxu0 0.0
  %7228 = vmatprep.subr.mxu0 0.0
  %7229 = vmatpush1.msra.mxu0 0.0
  %7230 = vmatprep.subr.mxu0 0.0
  %7231 = vmatpush1.msra.mxu0 0.0
  %7232 = vmatprep.subr.mxu0 0.0
  %7233 = vmatpush1.msra.mxu0 0.0
  %7234 = vmatprep.subr.mxu0 0.0
  %7235 = vmatpush1.msra.mxu0 0.0
  %7236 = vmatprep.subr.mxu0 0.0
  %7237 = vmatpush1.msra.mxu0 0.0
  %7238 = vmatprep.subr.mxu0 0.0
  %7239 = vmatpush1.msra.mxu0 0.0
  %7240 = vmatprep.subr.mxu0 0.0
  %7241 = vmatpush1.msra.mxu0 0.0
  %7242 = vmatprep.subr.mxu0 0.0
  %7243 = vmatpush1.msra.mxu0 0.0
  %7244 = vmatprep.subr.mxu0 0.0
  %7245 = vmatpush1.msra.mxu0 0.0
  %7246 = vmatprep.subr.mxu0 0.0
  %7247 = vmatpush1.msra.mxu0 0.0
  %7248 = vmatprep.subr.mxu0 0.0
  %7249 = vmatpush1.msra.mxu0 %v6803
  %7250 = vmatprep.subr.mxu0 0.0
  %7251 = vmatpush2.msra.mxu0 0.0
  %7252 = vmatprep.subr.mxu0 0.0
  %7253 = vmatpush2.msra.mxu0 0.0
  %7254 = vmatprep.subr.mxu0 0.0
  %7255 = vmatpush2.msra.mxu0 0.0
  %7256 = vmatprep.subr.mxu0 0.0
  %7257 = vmatpush2.msra.mxu0 0.0
  %7258 = vmatprep.subr.mxu0 0.0
  %7259 = vmatpush2.msra.mxu0 0.0
  %7260 = vmatprep.subr.mxu0 0.0
  %7261 = vmatpush2.msra.mxu0 0.0
  %7262 = vmatprep.subr.mxu0 0.0
  %7263 = vmatpush2.msra.mxu0 0.0
  %7264 = vmatprep.subr.mxu0 0.0
  %7265 = vmatpush2.msra.mxu0 0.0
  %7266 = vmatprep.subr.mxu0 0.0
  %7267 = vmatpush2.msra.mxu0 0.0
  %7268 = vmatprep.subr.mxu0 0.0
  %7269 = vmatpush2.msra.mxu0 0.0
  %7270 = vmatprep.subr.mxu0 0.0
  %7271 = vmatpush2.msra.mxu0 0.0
  %7272 = vmatprep.subr.mxu0 0.0
  %7273 = vmatpush2.msra.mxu0 0.0
  %7274 = vmatprep.subr.mxu0 0.0
  %7275 = vmatpush2.msra.mxu0 0.0
  %7276 = vmatprep.subr.mxu0 0.0
  %7277 = vmatpush2.msra.mxu0 0.0
  %7278 = vmatprep.subr.mxu0 0.0
  %7279 = vmatpush2.msra.mxu0 0.0
  %7280 = vmatprep.subr.mxu0 0.0
  %7281 = vmatpush2.msra.mxu0 0.0
  %7282 = vmatprep.mubr.f32.mxu0 0.0
  %7283 = vmatmul.mubr.f32.gmra.mxu0 %v7141
  %v7284 = vpop.f32.mrf.mxu0
  %v7285 = vadd.f32 %v6809, %v7284
  %v7286 = vpop.f32.mrf.mxu0
  %7287 = vdwg.mxu0
  %v7288 = vmul.f32 %v7217, %v7285
  %v7289 = vadd.f32 %v7139, %v7288
  %v7290 = vtanh.pop %v7289
  %v7291 = vsub.f32 %v7137, %v7290
  %7293 = vrot.lane.b32.xlu0 %v7291, 8
  %v7294 = vpop.permute.xlu0 %7293
  %v7296 = vmul.f32 %v7217, %v7294
  %7298 = vrot.lane.b32.xlu0 %v7296, 120
  %v7299 = vpop.permute.xlu0 %7298
  %v7301 = vadd.f32 %v7290, %v7299
  %v7302 = vld [vmem:[#allocation4 + $0x18] sm:$0xff]
  %v7303 = vld [vmem:[#allocation5 + $0x18] sm:$0xff]
  %v7305 = vsel %vm877, %v7301, 0
  %7307 = vmatprep.subr.mxu0 0.0
  %7308 = vmatpush1.msra.mxu0 0.0
  %7309 = vmatprep.subr.mxu0 0.0
  %7310 = vmatpush1.msra.mxu0 0.0
  %7311 = vmatprep.subr.mxu0 0.0
  %7312 = vmatpush1.msra.mxu0 0.0
  %7313 = vmatprep.subr.mxu0 0.0
  %7314 = vmatpush1.msra.mxu0 0.0
  %7315 = vmatprep.subr.mxu0 0.0
  %7316 = vmatpush1.msra.mxu0 0.0
  %7317 = vmatprep.subr.mxu0 0.0
  %7318 = vmatpush1.msra.mxu0 0.0
  %7319 = vmatprep.subr.mxu0 0.0
  %7320 = vmatpush1.msra.mxu0 0.0
  %7321 = vmatprep.subr.mxu0 0.0
  %7322 = vmatpush1.msra.mxu0 0.0
  %7323 = vmatprep.subr.mxu0 0.0
  %7324 = vmatpush1.msra.mxu0 0.0
  %7325 = vmatprep.subr.mxu0 0.0
  %7326 = vmatpush1.msra.mxu0 0.0
  %7327 = vmatprep.subr.mxu0 0.0
  %7328 = vmatpush1.msra.mxu0 0.0
  %7329 = vmatprep.subr.mxu0 0.0
  %7330 = vmatpush1.msra.mxu0 0.0
  %7331 = vmatprep.subr.mxu0 0.0
  %7332 = vmatpush1.msra.mxu0 0.0
  %7333 = vmatprep.subr.mxu0 0.0
  %7334 = vmatpush1.msra.mxu0 0.0
  %7335 = vmatprep.subr.mxu0 0.0
  %7336 = vmatpush1.msra.mxu0 0.0
  %7337 = vmatprep.subr.mxu0 0.0
  %7338 = vmatpush1.msra.mxu0 %v6802
  %7339 = vmatprep.subr.mxu0 0.0
  %7340 = vmatpush2.msra.mxu0 0.0
  %7341 = vmatprep.subr.mxu0 0.0
  %7342 = vmatpush2.msra.mxu0 0.0
  %7343 = vmatprep.subr.mxu0 0.0
  %7344 = vmatpush2.msra.mxu0 0.0
  %7345 = vmatprep.subr.mxu0 0.0
  %7346 = vmatpush2.msra.mxu0 0.0
  %7347 = vmatprep.subr.mxu0 0.0
  %7348 = vmatpush2.msra.mxu0 0.0
  %7349 = vmatprep.subr.mxu0 0.0
  %7350 = vmatpush2.msra.mxu0 0.0
  %7351 = vmatprep.subr.mxu0 0.0
  %7352 = vmatpush2.msra.mxu0 0.0
  %7353 = vmatprep.subr.mxu0 0.0
  %7354 = vmatpush2.msra.mxu0 0.0
  %7355 = vmatprep.subr.mxu0 0.0
  %7356 = vmatpush2.msra.mxu0 0.0
  %7357 = vmatprep.subr.mxu0 0.0
  %7358 = vmatpush2.msra.mxu0 0.0
  %7359 = vmatprep.subr.mxu0 0.0
  %7360 = vmatpush2.msra.mxu0 0.0
  %7361 = vmatprep.subr.mxu0 0.0
  %7362 = vmatpush2.msra.mxu0 0.0
  %7363 = vmatprep.subr.mxu0 0.0
  %7364 = vmatpush2.msra.mxu0 0.0
  %7365 = vmatprep.subr.mxu0 0.0
  %7366 = vmatpush2.msra.mxu0 0.0
  %7367 = vmatprep.subr.mxu0 0.0
  %7368 = vmatpush2.msra.mxu0 0.0
  %7369 = vmatprep.subr.mxu0 0.0
  %7370 = vmatpush2.msra.mxu0 0.0
  %7371 = vmatprep.mubr.f32.mxu0 0.0
  %7372 = vmatmul.mubr.f32.gmra.mxu0 %v7305
  %v7373 = vpop.f32.mrf.mxu0
  %v7374 = vadd.f32 0.0, %v7373
  %v7375 = vpop.f32.mrf.mxu0
  %7376 = vdwg.mxu0
  %v7377 = vadd.f32 %v7302, %v7374
  %v7378 = vmul.f32 %v7377, 0.5
  %v7379 = vtanh.pop %v7378
  %v7380 = vadd.f32 %v7379, 1.0
  %v7381 = vmul.f32 %v7380, 0.5
  %7382 = vmatprep.subr.mxu0 0.0
  %7383 = vmatpush1.msra.mxu0 0.0
  %7384 = vmatprep.subr.mxu0 0.0
  %7385 = vmatpush1.msra.mxu0 0.0
  %7386 = vmatprep.subr.mxu0 0.0
  %7387 = vmatpush1.msra.mxu0 0.0
  %7388 = vmatprep.subr.mxu0 0.0
  %7389 = vmatpush1.msra.mxu0 0.0
  %7390 = vmatprep.subr.mxu0 0.0
  %7391 = vmatpush1.msra.mxu0 0.0
  %7392 = vmatprep.subr.mxu0 0.0
  %7393 = vmatpush1.msra.mxu0 0.0
  %7394 = vmatprep.subr.mxu0 0.0
  %7395 = vmatpush1.msra.mxu0 0.0
  %7396 = vmatprep.subr.mxu0 0.0
  %7397 = vmatpush1.msra.mxu0 0.0
  %7398 = vmatprep.subr.mxu0 0.0
  %7399 = vmatpush1.msra.mxu0 0.0
  %7400 = vmatprep.subr.mxu0 0.0
  %7401 = vmatpush1.msra.mxu0 0.0
  %7402 = vmatprep.subr.mxu0 0.0
  %7403 = vmatpush1.msra.mxu0 0.0
  %7404 = vmatprep.subr.mxu0 0.0
  %7405 = vmatpush1.msra.mxu0 0.0
  %7406 = vmatprep.subr.mxu0 0.0
  %7407 = vmatpush1.msra.mxu0 0.0
  %7408 = vmatprep.subr.mxu0 0.0
  %7409 = vmatpush1.msra.mxu0 0.0
  %7410 = vmatprep.subr.mxu0 0.0
  %7411 = vmatpush1.msra.mxu0 0.0
  %7412 = vmatprep.subr.mxu0 0.0
  %7413 = vmatpush1.msra.mxu0 %v6803
  %7414 = vmatprep.subr.mxu0 0.0
  %7415 = vmatpush2.msra.mxu0 0.0
  %7416 = vmatprep.subr.mxu0 0.0
  %7417 = vmatpush2.msra.mxu0 0.0
  %7418 = vmatprep.subr.mxu0 0.0
  %7419 = vmatpush2.msra.mxu0 0.0
  %7420 = vmatprep.subr.mxu0 0.0
  %7421 = vmatpush2.msra.mxu0 0.0
  %7422 = vmatprep.subr.mxu0 0.0
  %7423 = vmatpush2.msra.mxu0 0.0
  %7424 = vmatprep.subr.mxu0 0.0
  %7425 = vmatpush2.msra.mxu0 0.0
  %7426 = vmatprep.subr.mxu0 0.0
  %7427 = vmatpush2.msra.mxu0 0.0
  %7428 = vmatprep.subr.mxu0 0.0
  %7429 = vmatpush2.msra.mxu0 0.0
  %7430 = vmatprep.subr.mxu0 0.0
  %7431 = vmatpush2.msra.mxu0 0.0
  %7432 = vmatprep.subr.mxu0 0.0
  %7433 = vmatpush2.msra.mxu0 0.0
  %7434 = vmatprep.subr.mxu0 0.0
  %7435 = vmatpush2.msra.mxu0 0.0
  %7436 = vmatprep.subr.mxu0 0.0
  %7437 = vmatpush2.msra.mxu0 0.0
  %7438 = vmatprep.subr.mxu0 0.0
  %7439 = vmatpush2.msra.mxu0 0.0
  %7440 = vmatprep.subr.mxu0 0.0
  %7441 = vmatpush2.msra.mxu0 0.0
  %7442 = vmatprep.subr.mxu0 0.0
  %7443 = vmatpush2.msra.mxu0 0.0
  %7444 = vmatprep.subr.mxu0 0.0
  %7445 = vmatpush2.msra.mxu0 0.0
  %7446 = vmatprep.mubr.f32.mxu0 0.0
  %7447 = vmatmul.mubr.f32.gmra.mxu0 %v7305
  %v7448 = vpop.f32.mrf.mxu0
  %v7449 = vadd.f32 %v6809, %v7448
  %v7450 = vpop.f32.mrf.mxu0
  %7451 = vdwg.mxu0
  %v7452 = vmul.f32 %v7381, %v7449
  %v7453 = vadd.f32 %v7303, %v7452
  %v7454 = vtanh.pop %v7453
  %v7455 = vsub.f32 %v7301, %v7454
  %7457 = vrot.lane.b32.xlu0 %v7455, 8
  %v7458 = vpop.permute.xlu0 %7457
  %v7460 = vmul.f32 %v7381, %v7458
  %7462 = vrot.lane.b32.xlu0 %v7460, 120
  %v7463 = vpop.permute.xlu0 %7462
  %v7465 = vadd.f32 %v7454, %v7463
  %v7466 = vld [vmem:[#allocation4 + $0x20] sm:$0xff]
  %v7467 = vld [vmem:[#allocation5 + $0x20] sm:$0xff]
  %v7469 = vsel %vm877, %v7465, 0
  %7471 = vmatprep.subr.mxu0 0.0
  %7472 = vmatpush1.msra.mxu0 0.0
  %7473 = vmatprep.subr.mxu0 0.0
  %7474 = vmatpush1.msra.mxu0 0.0
  %7475 = vmatprep.subr.mxu0 0.0
  %7476 = vmatpush1.msra.mxu0 0.0
  %7477 = vmatprep.subr.mxu0 0.0
  %7478 = vmatpush1.msra.mxu0 0.0
  %7479 = vmatprep.subr.mxu0 0.0
  %7480 = vmatpush1.msra.mxu0 0.0
  %7481 = vmatprep.subr.mxu0 0.0
  %7482 = vmatpush1.msra.mxu0 0.0
  %7483 = vmatprep.subr.mxu0 0.0
  %7484 = vmatpush1.msra.mxu0 0.0
  %7485 = vmatprep.subr.mxu0 0.0
  %7486 = vmatpush1.msra.mxu0 0.0
  %7487 = vmatprep.subr.mxu0 0.0
  %7488 = vmatpush1.msra.mxu0 0.0
  %7489 = vmatprep.subr.mxu0 0.0
  %7490 = vmatpush1.msra.mxu0 0.0
  %7491 = vmatprep.subr.mxu0 0.0
  %7492 = vmatpush1.msra.mxu0 0.0
  %7493 = vmatprep.subr.mxu0 0.0
  %7494 = vmatpush1.msra.mxu0 0.0
  %7495 = vmatprep.subr.mxu0 0.0
  %7496 = vmatpush1.msra.mxu0 0.0
  %7497 = vmatprep.subr.mxu0 0.0
  %7498 = vmatpush1.msra.mxu0 0.0
  %7499 = vmatprep.subr.mxu0 0.0
  %7500 = vmatpush1.msra.mxu0 0.0
  %7501 = vmatprep.subr.mxu0 0.0
  %7502 = vmatpush1.msra.mxu0 %v6802
  %7503 = vmatprep.subr.mxu0 0.0
  %7504 = vmatpush2.msra.mxu0 0.0
  %7505 = vmatprep.subr.mxu0 0.0
  %7506 = vmatpush2.msra.mxu0 0.0
  %7507 = vmatprep.subr.mxu0 0.0
  %7508 = vmatpush2.msra.mxu0 0.0
  %7509 = vmatprep.subr.mxu0 0.0
  %7510 = vmatpush2.msra.mxu0 0.0
  %7511 = vmatprep.subr.mxu0 0.0
  %7512 = vmatpush2.msra.mxu0 0.0
  %7513 = vmatprep.subr.mxu0 0.0
  %7514 = vmatpush2.msra.mxu0 0.0
  %7515 = vmatprep.subr.mxu0 0.0
  %7516 = vmatpush2.msra.mxu0 0.0
  %7517 = vmatprep.subr.mxu0 0.0
  %7518 = vmatpush2.msra.mxu0 0.0
  %7519 = vmatprep.subr.mxu0 0.0
  %7520 = vmatpush2.msra.mxu0 0.0
  %7521 = vmatprep.subr.mxu0 0.0
  %7522 = vmatpush2.msra.mxu0 0.0
  %7523 = vmatprep.subr.mxu0 0.0
  %7524 = vmatpush2.msra.mxu0 0.0
  %7525 = vmatprep.subr.mxu0 0.0
  %7526 = vmatpush2.msra.mxu0 0.0
  %7527 = vmatprep.subr.mxu0 0.0
  %7528 = vmatpush2.msra.mxu0 0.0
  %7529 = vmatprep.subr.mxu0 0.0
  %7530 = vmatpush2.msra.mxu0 0.0
  %7531 = vmatprep.subr.mxu0 0.0
  %7532 = vmatpush2.msra.mxu0 0.0
  %7533 = vmatprep.subr.mxu0 0.0
  %7534 = vmatpush2.msra.mxu0 0.0
  %7535 = vmatprep.mubr.f32.mxu0 0.0
  %7536 = vmatmul.mubr.f32.gmra.mxu0 %v7469
  %v7537 = vpop.f32.mrf.mxu0
  %v7538 = vadd.f32 0.0, %v7537
  %v7539 = vpop.f32.mrf.mxu0
  %7540 = vdwg.mxu0
  %v7541 = vadd.f32 %v7466, %v7538
  %v7542 = vmul.f32 %v7541, 0.5
  %v7543 = vtanh.pop %v7542
  %v7544 = vadd.f32 %v7543, 1.0
  %v7545 = vmul.f32 %v7544, 0.5
  %7546 = vmatprep.subr.mxu0 0.0
  %7547 = vmatpush1.msra.mxu0 0.0
  %7548 = vmatprep.subr.mxu0 0.0
  %7549 = vmatpush1.msra.mxu0 0.0
  %7550 = vmatprep.subr.mxu0 0.0
  %7551 = vmatpush1.msra.mxu0 0.0
  %7552 = vmatprep.subr.mxu0 0.0
  %7553 = vmatpush1.msra.mxu0 0.0
  %7554 = vmatprep.subr.mxu0 0.0
  %7555 = vmatpush1.msra.mxu0 0.0
  %7556 = vmatprep.subr.mxu0 0.0
  %7557 = vmatpush1.msra.mxu0 0.0
  %7558 = vmatprep.subr.mxu0 0.0
  %7559 = vmatpush1.msra.mxu0 0.0
  %7560 = vmatprep.subr.mxu0 0.0
  %7561 = vmatpush1.msra.mxu0 0.0
  %7562 = vmatprep.subr.mxu0 0.0
  %7563 = vmatpush1.msra.mxu0 0.0
  %7564 = vmatprep.subr.mxu0 0.0
  %7565 = vmatpush1.msra.mxu0 0.0
  %7566 = vmatprep.subr.mxu0 0.0
  %7567 = vmatpush1.msra.mxu0 0.0
  %7568 = vmatprep.subr.mxu0 0.0
  %7569 = vmatpush1.msra.mxu0 0.0
  %7570 = vmatprep.subr.mxu0 0.0
  %7571 = vmatpush1.msra.mxu0 0.0
  %7572 = vmatprep.subr.mxu0 0.0
  %7573 = vmatpush1.msra.mxu0 0.0
  %7574 = vmatprep.subr.mxu0 0.0
  %7575 = vmatpush1.msra.mxu0 0.0
  %7576 = vmatprep.subr.mxu0 0.0
  %7577 = vmatpush1.msra.mxu0 %v6803
  %7578 = vmatprep.subr.mxu0 0.0
  %7579 = vmatpush2.msra.mxu0 0.0
  %7580 = vmatprep.subr.mxu0 0.0
  %7581 = vmatpush2.msra.mxu0 0.0
  %7582 = vmatprep.subr.mxu0 0.0
  %7583 = vmatpush2.msra.mxu0 0.0
  %7584 = vmatprep.subr.mxu0 0.0
  %7585 = vmatpush2.msra.mxu0 0.0
  %7586 = vmatprep.subr.mxu0 0.0
  %7587 = vmatpush2.msra.mxu0 0.0
  %7588 = vmatprep.subr.mxu0 0.0
  %7589 = vmatpush2.msra.mxu0 0.0
  %7590 = vmatprep.subr.mxu0 0.0
  %7591 = vmatpush2.msra.mxu0 0.0
  %7592 = vmatprep.subr.mxu0 0.0
  %7593 = vmatpush2.msra.mxu0 0.0
  %7594 = vmatprep.subr.mxu0 0.0
  %7595 = vmatpush2.msra.mxu0 0.0
  %7596 = vmatprep.subr.mxu0 0.0
  %7597 = vmatpush2.msra.mxu0 0.0
  %7598 = vmatprep.subr.mxu0 0.0
  %7599 = vmatpush2.msra.mxu0 0.0
  %7600 = vmatprep.subr.mxu0 0.0
  %7601 = vmatpush2.msra.mxu0 0.0
  %7602 = vmatprep.subr.mxu0 0.0
  %7603 = vmatpush2.msra.mxu0 0.0
  %7604 = vmatprep.subr.mxu0 0.0
  %7605 = vmatpush2.msra.mxu0 0.0
  %7606 = vmatprep.subr.mxu0 0.0
  %7607 = vmatpush2.msra.mxu0 0.0
  %7608 = vmatprep.subr.mxu0 0.0
  %7609 = vmatpush2.msra.mxu0 0.0
  %7610 = vmatprep.mubr.f32.mxu0 0.0
  %7611 = vmatmul.mubr.f32.gmra.mxu0 %v7469
  %v7612 = vpop.f32.mrf.mxu0
  %v7613 = vadd.f32 %v6809, %v7612
  %v7614 = vpop.f32.mrf.mxu0
  %7615 = vdwg.mxu0
  %v7616 = vmul.f32 %v7545, %v7613
  %v7617 = vadd.f32 %v7467, %v7616
  %v7618 = vtanh.pop %v7617
  %v7619 = vsub.f32 %v7465, %v7618
  %7621 = vrot.lane.b32.xlu0 %v7619, 8
  %v7622 = vpop.permute.xlu0 %7621
  %v7624 = vmul.f32 %v7545, %v7622
  %7626 = vrot.lane.b32.xlu0 %v7624, 120
  %v7627 = vpop.permute.xlu0 %7626
  %v7629 = vadd.f32 %v7618, %v7627
  %v7630 = vld [vmem:[%s16] sm:$0xff]
  %v7631 = vld [vmem:[%s16 + $0x8] sm:$0xff]
  %v7632 = vld [vmem:[%s16 + $0x10] sm:$0xff]
  %v7633 = vld [vmem:[%s16 + $0x18] sm:$0xff]
  %v7634 = vld [vmem:[%s17] sm:$0xff]
  %v7636 = vsel %vm877, %v7629, 0
  %7638 = vmatprep.subr.mxu0 0.0
  %7639 = vmatpush1.msra.mxu0 0.0
  %7640 = vmatprep.subr.mxu0 0.0
  %7641 = vmatpush1.msra.mxu0 0.0
  %7642 = vmatprep.subr.mxu0 0.0
  %7643 = vmatpush1.msra.mxu0 0.0
  %7644 = vmatprep.subr.mxu0 0.0
  %7645 = vmatpush1.msra.mxu0 0.0
  %7646 = vmatprep.subr.mxu0 0.0
  %7647 = vmatpush1.msra.mxu0 0.0
  %7648 = vmatprep.subr.mxu0 0.0
  %7649 = vmatpush1.msra.mxu0 0.0
  %7650 = vmatprep.subr.mxu0 0.0
  %7651 = vmatpush1.msra.mxu0 0.0
  %7652 = vmatprep.subr.mxu0 0.0
  %7653 = vmatpush1.msra.mxu0 0.0
  %7654 = vmatprep.subr.mxu0 0.0
  %7655 = vmatpush1.msra.mxu0 0.0
  %7656 = vmatprep.subr.mxu0 0.0
  %7657 = vmatpush1.msra.mxu0 0.0
  %7658 = vmatprep.subr.mxu0 0.0
  %7659 = vmatpush1.msra.mxu0 0.0
  %7660 = vmatprep.subr.mxu0 0.0
  %7661 = vmatpush1.msra.mxu0 0.0
  %7662 = vmatprep.subr.mxu0 0.0
  %7663 = vmatpush1.msra.mxu0 0.0
  %7664 = vmatprep.subr.mxu0 0.0
  %7665 = vmatpush1.msra.mxu0 0.0
  %7666 = vmatprep.subr.mxu0 0.0
  %7667 = vmatpush1.msra.mxu0 0.0
  %7668 = vmatprep.subr.mxu0 0.0
  %7669 = vmatpush1.msra.mxu0 %v7634
  %7670 = vmatprep.subr.mxu0 0.0
  %7671 = vmatpush2.msra.mxu0 0.0
  %7672 = vmatprep.subr.mxu0 0.0
  %7673 = vmatpush2.msra.mxu0 0.0
  %7674 = vmatprep.subr.mxu0 0.0
  %7675 = vmatpush2.msra.mxu0 0.0
  %7676 = vmatprep.subr.mxu0 0.0
  %7677 = vmatpush2.msra.mxu0 0.0
  %7678 = vmatprep.subr.mxu0 0.0
  %7679 = vmatpush2.msra.mxu0 0.0
  %7680 = vmatprep.subr.mxu0 0.0
  %7681 = vmatpush2.msra.mxu0 0.0
  %7682 = vmatprep.subr.mxu0 0.0
  %7683 = vmatpush2.msra.mxu0 0.0
  %7684 = vmatprep.subr.mxu0 0.0
  %7685 = vmatpush2.msra.mxu0 0.0
  %7686 = vmatprep.subr.mxu0 0.0
  %7687 = vmatpush2.msra.mxu0 0.0
  %7688 = vmatprep.subr.mxu0 0.0
  %7689 = vmatpush2.msra.mxu0 0.0
  %7690 = vmatprep.subr.mxu0 0.0
  %7691 = vmatpush2.msra.mxu0 0.0
  %7692 = vmatprep.subr.mxu0 0.0
  %7693 = vmatpush2.msra.mxu0 0.0
  %7694 = vmatprep.subr.mxu0 0.0
  %7695 = vmatpush2.msra.mxu0 0.0
  %7696 = vmatprep.subr.mxu0 0.0
  %7697 = vmatpush2.msra.mxu0 0.0
  %7698 = vmatprep.subr.mxu0 0.0
  %7699 = vmatpush2.msra.mxu0 0.0
  %7700 = vmatprep.subr.mxu0 0.0
  %7701 = vmatpush2.msra.mxu0 0.0
  %7702 = vmatprep.mubr.f32.mxu0 0.0
  %7703 = vmatmul.mubr.f32.gmra.mxu0 %v7636
  %v7704 = vpop.f32.mrf.mxu0
  %v7705 = vadd.f32 0.0, %v7704
  %v7706 = vpop.f32.mrf.mxu0
  %7707 = vdwg.mxu0
  %v7709 = vsel %vm765, %v6801, 0
  %7711 = vmatprep.subr.mxu0 0.0
  %7712 = vmatpush1.msra.mxu0 0.0
  %7713 = vmatprep.subr.mxu0 0.0
  %7714 = vmatpush1.msra.mxu0 0.0
  %7715 = vmatprep.subr.mxu0 0.0
  %7716 = vmatpush1.msra.mxu0 0.0
  %7717 = vmatprep.subr.mxu0 0.0
  %7718 = vmatpush1.msra.mxu0 0.0
  %7719 = vmatprep.subr.mxu0 0.0
  %7720 = vmatpush1.msra.mxu0 0.0
  %7721 = vmatprep.subr.mxu0 0.0
  %7722 = vmatpush1.msra.mxu0 0.0
  %7723 = vmatprep.subr.mxu0 0.0
  %7724 = vmatpush1.msra.mxu0 0.0
  %7725 = vmatprep.subr.mxu0 0.0
  %7726 = vmatpush1.msra.mxu0 0.0
  %7727 = vmatprep.subr.mxu0 0.0
  %7728 = vmatpush1.msra.mxu0 0.0
  %7729 = vmatprep.subr.mxu0 0.0
  %7730 = vmatpush1.msra.mxu0 0.0
  %7731 = vmatprep.subr.mxu0 0.0
  %7732 = vmatpush1.msra.mxu0 0.0
  %7733 = vmatprep.subr.mxu0 0.0
  %7734 = vmatpush1.msra.mxu0 0.0
  %7735 = vmatprep.subr.mxu0 0.0
  %7736 = vmatpush1.msra.mxu0 %v7633
  %7737 = vmatprep.subr.mxu0 0.0
  %7738 = vmatpush1.msra.mxu0 %v7632
  %7739 = vmatprep.subr.mxu0 0.0
  %7740 = vmatpush1.msra.mxu0 %v7631
  %7741 = vmatprep.subr.mxu0 0.0
  %7742 = vmatpush1.msra.mxu0 %v7630
  %7743 = vmatprep.subr.mxu0 0.0
  %7744 = vmatpush2.msra.mxu0 0.0
  %7745 = vmatprep.subr.mxu0 0.0
  %7746 = vmatpush2.msra.mxu0 0.0
  %7747 = vmatprep.subr.mxu0 0.0
  %7748 = vmatpush2.msra.mxu0 0.0
  %7749 = vmatprep.subr.mxu0 0.0
  %7750 = vmatpush2.msra.mxu0 0.0
  %7751 = vmatprep.subr.mxu0 0.0
  %7752 = vmatpush2.msra.mxu0 0.0
  %7753 = vmatprep.subr.mxu0 0.0
  %7754 = vmatpush2.msra.mxu0 0.0
  %7755 = vmatprep.subr.mxu0 0.0
  %7756 = vmatpush2.msra.mxu0 0.0
  %7757 = vmatprep.subr.mxu0 0.0
  %7758 = vmatpush2.msra.mxu0 0.0
  %7759 = vmatprep.subr.mxu0 0.0
  %7760 = vmatpush2.msra.mxu0 0.0
  %7761 = vmatprep.subr.mxu0 0.0
  %7762 = vmatpush2.msra.mxu0 0.0
  %7763 = vmatprep.subr.mxu0 0.0
  %7764 = vmatpush2.msra.mxu0 0.0
  %7765 = vmatprep.subr.mxu0 0.0
  %7766 = vmatpush2.msra.mxu0 0.0
  %7767 = vmatprep.subr.mxu0 0.0
  %7768 = vmatpush2.msra.mxu0 0.0
  %7769 = vmatprep.subr.mxu0 0.0
  %7770 = vmatpush2.msra.mxu0 0.0
  %7771 = vmatprep.subr.mxu0 0.0
  %7772 = vmatpush2.msra.mxu0 0.0
  %7773 = vmatprep.subr.mxu0 0.0
  %7774 = vmatpush2.msra.mxu0 0.0
  %7775 = vmatprep.mubr.f32.mxu0 0.0
  %7776 = vmatmul.mubr.f32.gmra.mxu0 %v7709
  %v7777 = vpop.f32.mrf.mxu0
  %v7778 = vadd.f32 %v7705, %v7777
  %v7779 = vpop.f32.mrf.mxu0
  %7780 = vdwg.mxu0
  %v7781 = vld [vmem:[%s18] sm:$0x1]
  %v7783 = vlaneseq
  %v7784 = vshrl.u32 %v7783, 7
  %v7785 = vsub.s32 0, %v7784
  %v7786 = vrot.slane %v7781, %v7785
  %v7788 = vadd.f32 %v7778, %v7786
  %v7789 = vmax.f32 %v7788, 0.0
  %v7790 = vld [vmem:[%s19] sm:$0xf]
  %v7791 = vld [vmem:[#allocation6] sm:$0x1]
  %v7793 = vlaneseq
  %v7794 = vshrl.u32 %v7793, 7
  %v7795 = vsub.s32 0, %v7794
  %v7796 = vrot.slane %v7791, %v7795
  %vm7798 = vcmask 31744
  %v7800 = vsel %vm7798, %v7789, 0
  %vm7802 = vcmask 1043456
  %v7804 = vsel %vm7802, %v7790, 0
  %7806 = vmatprep.subr.mxu0 0.0
  %7807 = vmatpush1.msra.mxu0 0.0
  %7808 = vmatprep.subr.mxu0 0.0
  %7809 = vmatpush1.msra.mxu0 0.0
  %7810 = vmatprep.subr.mxu0 0.0
  %7811 = vmatpush1.msra.mxu0 0.0
  %7812 = vmatprep.subr.mxu0 0.0
  %7813 = vmatpush1.msra.mxu0 0.0
  %7814 = vmatprep.subr.mxu0 0.0
  %7815 = vmatpush1.msra.mxu0 0.0
  %7816 = vmatprep.subr.mxu0 0.0
  %7817 = vmatpush1.msra.mxu0 0.0
  %7818 = vmatprep.subr.mxu0 0.0
  %7819 = vmatpush1.msra.mxu0 0.0
  %7820 = vmatprep.subr.mxu0 0.0
  %7821 = vmatpush1.msra.mxu0 0.0
  %7822 = vmatprep.subr.mxu0 0.0
  %7823 = vmatpush1.msra.mxu0 0.0
  %7824 = vmatprep.subr.mxu0 0.0
  %7825 = vmatpush1.msra.mxu0 0.0
  %7826 = vmatprep.subr.mxu0 0.0
  %7827 = vmatpush1.msra.mxu0 0.0
  %7828 = vmatprep.subr.mxu0 0.0
  %7829 = vmatpush1.msra.mxu0 0.0
  %7830 = vmatprep.subr.mxu0 0.0
  %7831 = vmatpush1.msra.mxu0 0.0
  %7832 = vmatprep.subr.mxu0 0.0
  %7833 = vmatpush1.msra.mxu0 0.0
  %7834 = vmatprep.subr.mxu0 0.0
  %7835 = vmatpush1.msra.mxu0 0.0
  %7836 = vmatprep.subr.mxu0 0.0
  %7837 = vmatpush1.msra.mxu0 %v7804
  %7838 = vmatprep.subr.mxu0 0.0
  %7839 = vmatpush2.msra.mxu0 0.0
  %7840 = vmatprep.subr.mxu0 0.0
  %7841 = vmatpush2.msra.mxu0 0.0
  %7842 = vmatprep.subr.mxu0 0.0
  %7843 = vmatpush2.msra.mxu0 0.0
  %7844 = vmatprep.subr.mxu0 0.0
  %7845 = vmatpush2.msra.mxu0 0.0
  %7846 = vmatprep.subr.mxu0 0.0
  %7847 = vmatpush2.msra.mxu0 0.0
  %7848 = vmatprep.subr.mxu0 0.0
  %7849 = vmatpush2.msra.mxu0 0.0
  %7850 = vmatprep.subr.mxu0 0.0
  %7851 = vmatpush2.msra.mxu0 0.0
  %7852 = vmatprep.subr.mxu0 0.0
  %7853 = vmatpush2.msra.mxu0 0.0
  %7854 = vmatprep.subr.mxu0 0.0
  %7855 = vmatpush2.msra.mxu0 0.0
  %7856 = vmatprep.subr.mxu0 0.0
  %7857 = vmatpush2.msra.mxu0 0.0
  %7858 = vmatprep.subr.mxu0 0.0
  %7859 = vmatpush2.msra.mxu0 0.0
  %7860 = vmatprep.subr.mxu0 0.0
  %7861 = vmatpush2.msra.mxu0 0.0
  %7862 = vmatprep.subr.mxu0 0.0
  %7863 = vmatpush2.msra.mxu0 0.0
  %7864 = vmatprep.subr.mxu0 0.0
  %7865 = vmatpush2.msra.mxu0 0.0
  %7866 = vmatprep.subr.mxu0 0.0
  %7867 = vmatpush2.msra.mxu0 0.0
  %7868 = vmatprep.subr.mxu0 0.0
  %7869 = vmatpush2.msra.mxu0 0.0
  %7870 = vmatprep.mubr.f32.mxu0 0.0
  %7871 = vmatmul.mubr.f32.gmra.mxu0 %v7800
  %v7872 = vpop.f32.mrf.mxu0
  %v7873 = vadd.f32 %v7796, %v7872
  %v7874 = vpop.f32.mrf.mxu0
  %7875 = vdwg.mxu0
  %vm7876 = vcmask 7168
  %7877 = vst.msk [vmem:[%s21] sm:$0xff] %vm7876, %v7873
  // Predicated region
  $region86: #{tpu_custom_call.1} parent=0 // pred_check
    _
  $region87: #{tpu_custom_call.1} parent=0 // pred_check_branch
    %7879 = sbr.rel (0) target = $region89
  $region88: #{tpu_custom_call.1} parent=0 // pred_region
    _
  $region89: #{tpu_custom_call.1} parent=0 // pred_fallthru
    _
  // Predicated region
  $region90: #{tpu_custom_call.1} parent=0 // pred_check
    _
  $region91: #{tpu_custom_call.1} parent=0 // pred_check_branch
    %7881 = sbr.rel (0) target = $region93
  $region92: #{tpu_custom_call.1} parent=0 // pred_region
    _
  $region93: #{tpu_custom_call.1} parent=0 // pred_fallthru
    _

</llo_original>
